<compile_context>
chip_gen: v7x
topology: tpu7x:2x2x1
jax: 0.10.0
libtpu: 0.0.40
codegen_flags: <defaults>
</compile_context>

<pallas_src>
import jax
import jax.numpy as jnp
from jax.experimental import pallas as pl
from jax.experimental.pallas import tpu as pltpu

# ------------------------- configuration (small shapes) -------------------------
INPLANES = 16
OUTPLANES = 32
EXPANSION = 4
MED_PLANES = OUTPLANES // EXPANSION      # 8
EMBED_DIM = 48
NUM_HEADS = 4
HEAD_DIM = EMBED_DIM // NUM_HEADS        # 12
MLP_RATIO = 4.0
MLP_HIDDEN = int(EMBED_DIM * MLP_RATIO)  # 192
DW_STRIDE = 2
BN_EPS = 1e-6
LN_EPS = 1e-6

B = 2
H = W = 8                                # power of two: index math uses shifts
HP, WP = H // DW_STRIDE, W // DW_STRIDE  # 4, 4
N_TOKENS = 1 + HP * WP                   # 17
ROWS = B * H * W                         # 128 spatial rows (b*64 + h*8 + w)
POOL_ROWS = B * HP * WP                  # 32 pooled rows (b*16 + hp*4 + wp)

# ------------------------- packed parameter layout (host + kernel) --------------
# All gamma / beta / bias vectors live as rows of one (27, 192) f32 table.
_VEC_SPECS = (
    ("cnn_bn1_g", MED_PLANES), ("cnn_bn1_b", MED_PLANES),
    ("cnn_bn2_g", MED_PLANES), ("cnn_bn2_b", MED_PLANES),
    ("cnn_bn3_g", OUTPLANES), ("cnn_bn3_b", OUTPLANES),
    ("cnn_bnr_g", OUTPLANES), ("cnn_bnr_b", OUTPLANES),
    ("fus_bn1_g", MED_PLANES), ("fus_bn1_b", MED_PLANES),
    ("fus_bn2_g", MED_PLANES), ("fus_bn2_b", MED_PLANES),
    ("fus_bn3_g", OUTPLANES), ("fus_bn3_b", OUTPLANES),
    ("down_b_proj", EMBED_DIM), ("down_ln_g", EMBED_DIM), ("down_ln_b", EMBED_DIM),
    ("up_b_proj", MED_PLANES), ("up_bn_g", MED_PLANES), ("up_bn_b", MED_PLANES),
    ("ln1_g", EMBED_DIM), ("ln1_b", EMBED_DIM), ("b_o", EMBED_DIM),
    ("ln2_g", EMBED_DIM), ("ln2_b", EMBED_DIM),
    ("b_fc1", MLP_HIDDEN), ("b_fc2", EMBED_DIM),
)
_VEC_ROW = {name: i for i, (name, _) in enumerate(_VEC_SPECS)}
_VEC_WIDTH = {name: wd for name, wd in _VEC_SPECS}
VEC_TBL_SHAPE = (len(_VEC_SPECS), MLP_HIDDEN)            # (27, 192)

# All matmul weights live as 8-row-aligned bands of one (488, 192) f32 blob.
_W_SPECS = (
    ("cnn_w1", (INPLANES, MED_PLANES)),
    ("cnn_w2", (MED_PLANES, 9 * MED_PLANES)),            # fused 3x3 taps
    ("cnn_w3", (MED_PLANES, OUTPLANES)),
    ("cnn_wr", (INPLANES, OUTPLANES)),
    ("fus_w1", (OUTPLANES, MED_PLANES)),
    ("fus_w2", (MED_PLANES, 9 * MED_PLANES)),
    ("fus_w3", (MED_PLANES, OUTPLANES)),
    ("down_w", (MED_PLANES, EMBED_DIM)),
    ("up_w", (EMBED_DIM, MED_PLANES)),
    ("w_qkv", (EMBED_DIM, 3 * EMBED_DIM)),               # columns = [Q | K | V], head-major
    ("w_o", (EMBED_DIM, EMBED_DIM)),
    ("w_fc1", (EMBED_DIM, MLP_HIDDEN)),
    ("w_fc2", (MLP_HIDDEN, EMBED_DIM)),
)
_W_SHAPE = {name: shp for name, shp in _W_SPECS}
_W_OFF = {}
_acc = 0
for _name, (_k, _n) in _W_SPECS:
    _W_OFF[_name] = _acc
    _acc += -(-_k // 8) * 8                              # 8-row alignment (already multiples)
WTS_SHAPE = (_acc, MLP_HIDDEN)                           # (488, 192)


# --------------------------- in-kernel math helpers -----------------------------

def _mm(a, b):
    """2-D matmul on the MXU, f32 accumulate."""
    return jnp.dot(a, b, preferred_element_type=jnp.float32)


def _mm_nt(a, b):
    """a @ b.T without materializing a transpose (q @ k^T / identity-transpose)."""
    return jax.lax.dot_general(a, b, (((1,), (1,)), ((), ())),
                               preferred_element_type=jnp.float32)


def _sel(shape, cond, value=1.0):
    """Constant 0/value selection matrix built from 2-D iotas (pure VPU work)."""
    r = jax.lax.broadcasted_iota(jnp.int32, shape, 0)
    c = jax.lax.broadcasted_iota(jnp.int32, shape, 1)
    return jnp.where(cond(r, c), value, 0.0).astype(jnp.float32)


def _erf(x):
    # TODO(synk): lax.erf lowering inside Mosaic is unverified; use the
    # Abramowitz & Stegun 7.1.26 rational approximation (|err| < 1.5e-7, below
    # f32 noise for GELU) built only from exp / mul / add / where.
    a1, a2, a3, a4, a5 = 0.254829592, -0.284496736, 1.421413741, -1.453152027, 1.061405429
    p = 0.3275911
    sgn = jnp.where(x >= 0.0, 1.0, -1.0)
    ax = jnp.abs(x)
    t = 1.0 / (1.0 + p * ax)
    poly = ((((a5 * t + a4) * t + a3) * t + a2) * t + a1) * t
    return sgn * (1.0 - poly * jnp.exp(-ax * ax))


def _gelu(x):
    """Exact (erf-based) GELU, matching nn.GELU."""
    return 0.5 * x * (1.0 + _erf(x * 0.7071067811865476))


def _pool_matrix():
    """AvgPool2d(2, 2) as (POOL_ROWS, ROWS) matrix (each row has four 0.25s)."""
    def cond(r, c):
        bo, ho, wo = r >> 4, (r >> 2) & 3, r & 3
        bi, hi, wi = c >> 6, (c >> 3) & 7, c & 7
        return (bo == bi) & ((hi >> 1) == ho) & ((wi >> 1) == wo)
    return _sel((POOL_ROWS, ROWS), cond, value=1.0 / (DW_STRIDE * DW_STRIDE))


def _upsample_matrix():
    """Nearest-neighbor 2x upsample as (ROWS, POOL_ROWS) 0/1 matrix."""
    def cond(r, c):
        bi, hi, wi = r >> 6, (r >> 3) & 7, r & 7
        bo, ho, wo = c >> 4, (c >> 2) & 3, c & 3
        return (bo == bi) & ((hi >> 1) == ho) & ((wi >> 1) == wo)
    return _sel((ROWS, POOL_ROWS), cond)


# --------------------------------- fused kernel ----------------------------------

def _conv_trans_kernel(x_ref, xt_ref, vec_ref, wts_ref, xout_ref, xtout_ref):
    # ---- packed-parameter accessors (static, lane-0 / 8-row aligned slices) ----
    def vec(name):
        row, width = _VEC_ROW[name], _VEC_WIDTH[name]
        return vec_ref[row:row + 1, 0:width]                 # (1, width)

    def wt(name):
        kk, nn = _W_SHAPE[name]
        off = _W_OFF[name]
        return wts_ref[off:off + kk, 0:nn]                   # (K, N)

    # ---- normalizations (stats on the VPU/XLU, no M=1 matmuls) ----
    def bn(x, g, b, relu):
        mu = jnp.mean(x, axis=0, keepdims=True)              # batch stats (training fwd)
        d = x - mu
        var = jnp.mean(d * d, axis=0, keepdims=True)         # biased, like PyTorch
        y = d * jax.lax.rsqrt(var + BN_EPS) * g + b
        return jnp.maximum(y, 0.0) if relu else y

    def ln(x, g, b):
        mu = jnp.mean(x, axis=-1, keepdims=True)
        d = x - mu
        var = jnp.mean(d * d, axis=-1, keepdims=True)
        return d * jax.lax.rsqrt(var + LN_EPS) * g + b

    # Row-coordinate iotas (row = b*H*W + h*W + w) for the conv border masks.
    r_sp = jax.lax.broadcasted_iota(jnp.int32, (ROWS, MED_PLANES), 0)
    h_sp = (r_sp >> 3) & (H - 1)
    w_sp = r_sp & (W - 1)

    def conv3x3(x, w_all):
        """3x3 conv, stride 1, pad 1: ONE fused-tap matmul, then per-tap sublane
        roll + border mask + accumulate (exact equivalent of S_k @ (x @ W_k))."""
        y = _mm(x, w_all)                                    # (ROWS, 9*MED)
        acc = None
        for k in range(9):
            dy, dx = k // 3 - 1, k % 3 - 1
            yk = y[:, k * MED_PLANES:(k + 1) * MED_PLANES]   # (ROWS, MED)
            off = dy * W + dx
            if off != 0:
                # want out[r] = y_k[r + off]  ->  jnp.roll-style shift of -off
                yk = pltpu.roll(yk, shift=(-off) % ROWS, axis=0)
            ok = None
            if dy > 0:
                ok = h_sp < H - dy
            elif dy < 0:
                ok = h_sp >= -dy
            if dx > 0:
                okx = w_sp < W - dx
                ok = okx if ok is None else ok & okx
            elif dx < 0:
                okx = w_sp >= -dx
                ok = okx if ok is None else ok & okx
            if ok is not None:
                yk = jnp.where(ok, yk, 0.0)
            acc = yk if acc is None else acc + yk
        return acc

    def conv_block(x_in, pre, res_conv, extra=None, return_x2=True):
        """ConvBlock: 1x1 -> BN+ReLU -> (+x_t) 3x3 -> BN+ReLU -> 1x1 -> BN
        -> +residual -> ReLU.  Operands are (ROWS, C) VMEM-resident values."""
        x1 = bn(_mm(x_in, wt(pre + "_w1")), vec(pre + "_bn1_g"), vec(pre + "_bn1_b"), True)
        if extra is not None:
            x1 = x1 + extra
        x2 = bn(conv3x3(x1, wt(pre + "_w2")), vec(pre + "_bn2_g"), vec(pre + "_bn2_b"), True)
        x3 = bn(_mm(x2, wt(pre + "_w3")), vec(pre + "_bn3_g"), vec(pre + "_bn3_b"), False)
        res = x_in
        if res_conv:
            res = bn(_mm(x_in, wt(pre + "_wr")), vec(pre + "_bnr_g"), vec(pre + "_bnr_b"), False)
        out = jnp.maximum(x3 + res, 0.0)
        return (out, x2) if return_x2 else out

    # ---- NCHW rows -> (spatial rows, channels) inside the kernel, via
    #      RHS-transposed identity matmuls on the MXU (no wrapper transpose op).
    eye_hw = _sel((H * W, H * W), lambda r, c: r == c)       # (64, 64)
    x_in = jnp.concatenate(
        [_mm_nt(eye_hw, x_ref[b * INPLANES:(b + 1) * INPLANES, :]) for b in range(B)],
        axis=0)                                              # (128, 16)

    # ---------------- cnn ConvBlock (res_conv=True) ----------------
    x_cnn, x2 = conv_block(x_in, "cnn", res_conv=True)       # (128,32), (128,8)

    # ---------------- FCUDown: 1x1 proj -> AvgPool2d -> LN -> GELU ----------------
    proj = _mm(x2, wt("down_w")) + vec("down_b_proj")        # (128, 48)
    pooled = _mm(_pool_matrix(), proj)                       # (32, 48)
    pooled = _gelu(ln(pooled, vec("down_ln_g"), vec("down_ln_b")))

    # ---------------- Transformer block (both batches stacked to M=34) ----------------
    xt = xt_ref[...]                                         # (34, 48)
    t_in_parts = []
    for b in range(B):
        xt_b = xt[b * N_TOKENS:(b + 1) * N_TOKENS, :]        # (17, 48)
        # x_st = [cls_token ; pooled tokens], trans input = x_st + x_t
        x_st_b = jnp.concatenate(
            [xt_b[0:1, :], pooled[b * (HP * WP):(b + 1) * (HP * WP), :]], axis=0)
        t_in_parts.append(xt_b + x_st_b)
    t_in = jnp.concatenate(t_in_parts, axis=0)               # (34, 48)

    h1 = ln(t_in, vec("ln1_g"), vec("ln1_b"))
    qkv = _mm(h1, wt("w_qkv"))                               # (34, 144) = [Q | K | V]
    scale = HEAD_DIM ** -0.5
    attn_parts = []
    for b in range(B):
        base = b * N_TOKENS
        head_outs = []
        for hh in range(NUM_HEADS):                          # qkv_bias=False
            c0 = hh * HEAD_DIM
            q = qkv[base:base + N_TOKENS, c0:c0 + HEAD_DIM]
            k = qkv[base:base + N_TOKENS, EMBED_DIM + c0:EMBED_DIM + c0 + HEAD_DIM]
            v = qkv[base:base + N_TOKENS, 2 * EMBED_DIM + c0:2 * EMBED_DIM + c0 + HEAD_DIM]
            s = _mm_nt(q, k) * scale                         # (17, 17)
            s = s - jnp.max(s, axis=-1, keepdims=True)
            e = jnp.exp(s)
            a = e * pl.reciprocal(jnp.sum(e, axis=-1, keepdims=True), approx=True)
            head_outs.append(_mm(a, v))                      # (17, 12)
        attn_parts.append(jnp.concatenate(head_outs, axis=1))  # (17, 48)
    attn_cat = jnp.concatenate(attn_parts, axis=0)           # (34, 48)
    t1 = t_in + _mm(attn_cat, wt("w_o")) + vec("b_o")        # proj + bias + residual

    h2 = ln(t1, vec("ln2_g"), vec("ln2_b"))
    m = _gelu(_mm(h2, wt("w_fc1")) + vec("b_fc1"))
    t_out = t1 + _mm(m, wt("w_fc2")) + vec("b_fc2")          # (34, 48)
    xtout_ref[...] = t_out                                   # single store

    # ---------------- FCUUp: drop cls -> 1x1 proj -> BN+ReLU -> 2x upsample ----------------
    up_in = jnp.concatenate(
        [t_out[b * N_TOKENS + 1:(b + 1) * N_TOKENS, :] for b in range(B)], axis=0)  # (32,48)
    u = _mm(up_in, wt("up_w")) + vec("up_b_proj")            # (32, 8)
    u = bn(u, vec("up_bn_g"), vec("up_bn_b"), True)
    x_t_r = _mm(_upsample_matrix(), u)                       # (128, 8)

    # ---------------- fusion ConvBlock (x_t_r injected before conv2) ----------------
    # TODO(synk): num_med_block == 0, so the Med_ConvBlock loop is intentionally omitted.
    x_fin = conv_block(x_cnn, "fus", res_conv=False, extra=x_t_r, return_x2=False)  # (128,32)

    # (spatial rows, channels) -> NCHW rows (b*C + c, h*W + w), single store.
    eye_c = _sel((OUTPLANES, OUTPLANES), lambda r, c: r == c)
    xout_ref[...] = jnp.concatenate(
        [_mm_nt(eye_c, x_fin[b * (H * W):(b + 1) * (H * W), :]) for b in range(B)],
        axis=0)                                              # (64, 64)


# ----------------------------------- wrapper --------------------------------------

@jax.jit
def conv_trans_block_forward(vec_tbl, wts, x_nchw, x_t):
    assert x_nchw.shape == (B, INPLANES, H, W) and x_t.shape == (B, N_TOKENS, EMBED_DIM)
    # Only free, contiguous reshapes at the boundary (no XLA transpose launches).
    x2d = x_nchw.reshape(B * INPLANES, H * W)
    xt2d = x_t.reshape(B * N_TOKENS, EMBED_DIM)

    out_x, out_xt = pl.pallas_call(
        _conv_trans_kernel,
        out_shape=(jax.ShapeDtypeStruct((B * OUTPLANES, H * W), jnp.float32),
                   jax.ShapeDtypeStruct((B * N_TOKENS, EMBED_DIM), jnp.float32)),
        grid=(1,),
        in_specs=[
            pl.BlockSpec((B * INPLANES, H * W), lambda i: (0, 0)),
            pl.BlockSpec((B * N_TOKENS, EMBED_DIM), lambda i: (0, 0)),
            pl.BlockSpec(VEC_TBL_SHAPE, lambda i: (0, 0)),
            pl.BlockSpec(WTS_SHAPE, lambda i: (0, 0)),
        ],
        out_specs=(pl.BlockSpec((B * OUTPLANES, H * W), lambda i: (0, 0)),
                   pl.BlockSpec((B * N_TOKENS, EMBED_DIM), lambda i: (0, 0))),
        compiler_params=pltpu.CompilerParams(
            dimension_semantics=("arbitrary",),      # single-shot; no megacore sharding
            vmem_limit_bytes=16 * 1024 * 1024,       # ~10x actual footprint
        ),
    )(x2d, xt2d, vec_tbl, wts)

    x_out = out_x.reshape(B, OUTPLANES, H, W)
    x_t_out = out_xt.reshape(B, N_TOKENS, EMBED_DIM)
    return x_out, x_t_out


# ------------------------------ deterministic init --------------------------------

def _tap_major(w9):
    """(9, cin, cout) per-tap conv weights -> (cin, 9*cout) fused-matmul layout."""
    k, cin, cout = w9.shape
    return jnp.transpose(w9, (1, 0, 2)).reshape(cin, k * cout)


def init_params(key):
    n_rand = len(_W_SPECS) + sum(1 for n, _ in _VEC_SPECS if not n.endswith("_g"))
    keys = iter(jax.random.split(key, n_rand))

    def w(shape):
        return jax.random.normal(next(keys), shape, jnp.float32) * 0.02

    weights = {
        "cnn_w1": w((INPLANES, MED_PLANES)),
        "cnn_w2": _tap_major(w((9, MED_PLANES, MED_PLANES))),
        "cnn_w3": w((MED_PLANES, OUTPLANES)),
        "cnn_wr": w((INPLANES, OUTPLANES)),
        "fus_w1": w((OUTPLANES, MED_PLANES)),
        "fus_w2": _tap_major(w((9, MED_PLANES, MED_PLANES))),
        "fus_w3": w((MED_PLANES, OUTPLANES)),
        "down_w": w((MED_PLANES, EMBED_DIM)),
        "up_w": w((EMBED_DIM, MED_PLANES)),
        "w_qkv": w((EMBED_DIM, 3 * EMBED_DIM)),
        "w_o": w((EMBED_DIM, EMBED_DIM)),
        "w_fc1": w((EMBED_DIM, MLP_HIDDEN)),
        "w_fc2": w((MLP_HIDDEN, EMBED_DIM)),
    }
    vectors = {}
    for name, width in _VEC_SPECS:
        vectors[name] = (jnp.ones((width,), jnp.float32) if name.endswith("_g")
                         else w((width,)))

    # ---- pack into the two kernel-side blobs (host-side, once) ----
    vec_tbl = jnp.zeros(VEC_TBL_SHAPE, jnp.float32)
    for name, width in _VEC_SPECS:
        vec_tbl = vec_tbl.at[_VEC_ROW[name], :width].set(vectors[name])
    wts = jnp.zeros(WTS_SHAPE, jnp.float32)
    for name, (kk, nn) in _W_SPECS:
        off = _W_OFF[name]
        wts = wts.at[off:off + kk, :nn].set(weights[name])
    return vec_tbl, wts


# -------------------------------------- main --------------------------------------

if __name__ == "__main__":
    key = jax.random.PRNGKey(0)
    k_params, k_x, k_xt = jax.random.split(key, 3)

    vec_tbl, wts = init_params(k_params)
    x = jax.random.normal(k_x, (B, INPLANES, H, W), jnp.float32)          # NCHW
    x_t = jax.random.normal(k_xt, (B, N_TOKENS, EMBED_DIM), jnp.float32)  # (B, N, C)

    x_out, x_t_out = conv_trans_block_forward(vec_tbl, wts, x, x_t)
    jax.block_until_ready((x_out, x_t_out))

    assert x_out.shape == (B, OUTPLANES, H, W), x_out.shape
    assert x_t_out.shape == (B, N_TOKENS, EMBED_DIM), x_t_out.shape
    assert bool(jnp.all(jnp.isfinite(x_out))) and bool(jnp.all(jnp.isfinite(x_t_out)))

    print("KERNEL_OK")
</pallas_src>

<mosaic_0001>
module attributes {stable_mosaic.version = 11 : i64} {
  func.func @_conv_trans_kernel(%arg0: i32, %arg1: memref<32x64xf32, #tpu.memory_space<vmem>>, %arg2: memref<34x48xf32, #tpu.memory_space<vmem>>, %arg3: memref<27x192xf32, #tpu.memory_space<vmem>>, %arg4: memref<488x192xf32, #tpu.memory_space<vmem>>, %arg5: memref<64x64xf32, #tpu.memory_space<vmem>>, %arg6: memref<34x48xf32, #tpu.memory_space<vmem>>) attributes {dimension_semantics = [#tpu.dimension_semantics<arbitrary>], iteration_bounds = array<i64: 1>, scalar_prefetch = 0 : i64, scratch_operands = 0 : i64, tpu.core_type = #tpu.core_type<tc>, window_params = [{pipeline_mode = #tpu.pipeline_mode<synchronous>, transform_indices = @transform_0, window_bounds = array<i64: 32, 64>}, {pipeline_mode = #tpu.pipeline_mode<synchronous>, transform_indices = @transform_1, window_bounds = array<i64: 34, 48>}, {pipeline_mode = #tpu.pipeline_mode<synchronous>, transform_indices = @transform_2, window_bounds = array<i64: 27, 192>}, {pipeline_mode = #tpu.pipeline_mode<synchronous>, transform_indices = @transform_3, window_bounds = array<i64: 488, 192>}, {pipeline_mode = #tpu.pipeline_mode<synchronous>, transform_indices = @transform_4, window_bounds = array<i64: 64, 64>}, {pipeline_mode = #tpu.pipeline_mode<synchronous>, transform_indices = @transform_5, window_bounds = array<i64: 34, 48>}]} {
    %0 = tpu.iota {dimensions = array<i32: 0>} : vector<128x8xi32>
    %c3_i32 = arith.constant 3 : i32
    %1 = vector.broadcast %c3_i32 : i32 to vector<128x8xi32>
    %2 = arith.shrsi %0, %1 : vector<128x8xi32>
    %c7_i32 = arith.constant 7 : i32
    %3 = vector.broadcast %c7_i32 : i32 to vector<128x8xi32>
    %4 = arith.andi %2, %3 : vector<128x8xi32>
    %c7_i32_0 = arith.constant 7 : i32
    %5 = vector.broadcast %c7_i32_0 : i32 to vector<128x8xi32>
    %6 = arith.andi %0, %5 : vector<128x8xi32>
    %7 = tpu.iota {dimensions = array<i32: 0>} : vector<64x64xi32>
    %8 = tpu.iota {dimensions = array<i32: 1>} : vector<64x64xi32>
    %9 = arith.cmpi eq, %7, %8 : vector<64x64xi32>
    %cst = arith.constant 1.000000e+00 : f32
    %cst_1 = arith.constant 0.000000e+00 : f32
    %10 = vector.broadcast %cst : f32 to vector<64x64xf32>
    %11 = vector.broadcast %cst_1 : f32 to vector<64x64xf32>
    %12 = arith.select %9, %10, %11 : vector<64x64xi1>, vector<64x64xf32>
    %c0 = arith.constant 0 : index
    %c0_2 = arith.constant 0 : index
    %13 = vector.load %arg1[%c0, %c0_2] : memref<32x64xf32, #tpu.memory_space<vmem>>, vector<16x64xf32>
    %cst_3 = arith.constant dense<0.000000e+00> : vector<64x16xf32>
    %14 = tpu.matmul %12, %13, %cst_3 {dimension_numbers = #tpu.dot_dimension_numbers<[1], [1], [0], [0], [0, 0, 1, 0], [], []>} : vector<64x64xf32>, vector<16x64xf32>, vector<64x16xf32> -> vector<64x16xf32>
    %c16 = arith.constant 16 : index
    %c0_4 = arith.constant 0 : index
    %15 = vector.load %arg1[%c16, %c0_4] : memref<32x64xf32, #tpu.memory_space<vmem>>, vector<16x64xf32>
    %cst_5 = arith.constant dense<0.000000e+00> : vector<64x16xf32>
    %16 = tpu.matmul %12, %15, %cst_5 {dimension_numbers = #tpu.dot_dimension_numbers<[1], [1], [0], [0], [0, 0, 1, 0], [], []>} : vector<64x64xf32>, vector<16x64xf32>, vector<64x16xf32> -> vector<64x16xf32>
    %17 = tpu.concatenate %14, %16 in 0 : vector<64x16xf32>, vector<64x16xf32> -> vector<128x16xf32>
    %c0_6 = arith.constant 0 : index
    %c0_7 = arith.constant 0 : index
    %18 = vector.load %arg4[%c0_6, %c0_7] : memref<488x192xf32, #tpu.memory_space<vmem>>, vector<16x8xf32>
    %cst_8 = arith.constant dense<0.000000e+00> : vector<128x8xf32>
    %19 = tpu.matmul %17, %18, %cst_8 {dimension_numbers = #tpu.dot_dimension_numbers<[1], [0], [0], [1], [0, 0, 1, 1], [], []>} : vector<128x16xf32>, vector<16x8xf32>, vector<128x8xf32> -> vector<128x8xf32>
    %c0_9 = arith.constant 0 : index
    %c0_10 = arith.constant 0 : index
    %20 = vector.load %arg3[%c0_9, %c0_10] : memref<27x192xf32, #tpu.memory_space<vmem>>, vector<1x8xf32>
    %c1 = arith.constant 1 : index
    %c0_11 = arith.constant 0 : index
    %21 = vector.load %arg3[%c1, %c0_11] : memref<27x192xf32, #tpu.memory_space<vmem>>, vector<1x8xf32>
    %cst_12 = arith.constant dense<0.000000e+00> : vector<8xf32>
    %22 = vector.multi_reduction <add>, %19, %cst_12 [0] : vector<128x8xf32> to vector<8xf32>
    %23 = vector.shape_cast %22 : vector<8xf32> to vector<1x8xf32>
    %cst_13 = arith.constant 1.280000e+02 : f32
    %24 = vector.broadcast %cst_13 : f32 to vector<1x8xf32>
    %25 = arith.divf %23, %24 : vector<1x8xf32>
    %26 = vector.broadcast %25 : vector<1x8xf32> to vector<128x8xf32>
    %27 = arith.subf %19, %26 : vector<128x8xf32>
    %28 = arith.mulf %27, %27 : vector<128x8xf32>
    %cst_14 = arith.constant dense<0.000000e+00> : vector<8xf32>
    %29 = vector.multi_reduction <add>, %28, %cst_14 [0] : vector<128x8xf32> to vector<8xf32>
    %30 = vector.shape_cast %29 : vector<8xf32> to vector<1x8xf32>
    %cst_15 = arith.constant 1.280000e+02 : f32
    %31 = vector.broadcast %cst_15 : f32 to vector<1x8xf32>
    %32 = arith.divf %30, %31 : vector<1x8xf32>
    %cst_16 = arith.constant 9.99999997E-7 : f32
    %33 = vector.broadcast %cst_16 : f32 to vector<1x8xf32>
    %34 = arith.addf %32, %33 : vector<1x8xf32>
    %35 = math.rsqrt %34 : vector<1x8xf32>
    %36 = vector.broadcast %35 : vector<1x8xf32> to vector<128x8xf32>
    %37 = arith.mulf %27, %36 : vector<128x8xf32>
    %38 = vector.broadcast %20 : vector<1x8xf32> to vector<128x8xf32>
    %39 = arith.mulf %37, %38 : vector<128x8xf32>
    %40 = vector.broadcast %21 : vector<1x8xf32> to vector<128x8xf32>
    %41 = arith.addf %39, %40 : vector<128x8xf32>
    %cst_17 = arith.constant 0.000000e+00 : f32
    %42 = vector.broadcast %cst_17 : f32 to vector<128x8xf32>
    %43 = arith.maximumf %41, %42 : vector<128x8xf32>
    %c16_18 = arith.constant 16 : index
    %c0_19 = arith.constant 0 : index
    %44 = vector.load %arg4[%c16_18, %c0_19] : memref<488x192xf32, #tpu.memory_space<vmem>>, vector<8x72xf32>
    %cst_20 = arith.constant dense<0.000000e+00> : vector<128x72xf32>
    %45 = tpu.matmul %43, %44, %cst_20 {dimension_numbers = #tpu.dot_dimension_numbers<[1], [0], [0], [1], [0, 0, 1, 1], [], []>} : vector<128x8xf32>, vector<8x72xf32>, vector<128x72xf32> -> vector<128x72xf32>
    %46 = vector.extract_strided_slice %45 {offsets = [0, 0], sizes = [128, 8], strides = [1, 1]} : vector<128x72xf32> to vector<128x8xf32>
    %c9_i32 = arith.constant 9 : i32
    %47 = tpu.dynamic_rotate %46 by %c9_i32 dim 0 : vector<128x8xf32>, i32 -> vector<128x8xf32>
    %c1_i32 = arith.constant 1 : i32
    %48 = vector.broadcast %c1_i32 : i32 to vector<128x8xi32>
    %49 = arith.cmpi sge, %4, %48 : vector<128x8xi32>
    %c1_i32_21 = arith.constant 1 : i32
    %50 = vector.broadcast %c1_i32_21 : i32 to vector<128x8xi32>
    %51 = arith.cmpi sge, %6, %50 : vector<128x8xi32>
    %52 = arith.andi %49, %51 : vector<128x8xi1>
    %cst_22 = arith.constant 0.000000e+00 : f32
    %53 = vector.broadcast %cst_22 : f32 to vector<128x8xf32>
    %54 = arith.select %52, %47, %53 : vector<128x8xi1>, vector<128x8xf32>
    %55 = vector.extract_strided_slice %45 {offsets = [0, 8], sizes = [128, 8], strides = [1, 1]} : vector<128x72xf32> to vector<128x8xf32>
    %c8_i32 = arith.constant 8 : i32
    %56 = tpu.dynamic_rotate %55 by %c8_i32 dim 0 : vector<128x8xf32>, i32 -> vector<128x8xf32>
    %c1_i32_23 = arith.constant 1 : i32
    %57 = vector.broadcast %c1_i32_23 : i32 to vector<128x8xi32>
    %58 = arith.cmpi sge, %4, %57 : vector<128x8xi32>
    %cst_24 = arith.constant 0.000000e+00 : f32
    %59 = vector.broadcast %cst_24 : f32 to vector<128x8xf32>
    %60 = arith.select %58, %56, %59 : vector<128x8xi1>, vector<128x8xf32>
    %61 = arith.addf %54, %60 : vector<128x8xf32>
    %62 = vector.extract_strided_slice %45 {offsets = [0, 16], sizes = [128, 8], strides = [1, 1]} : vector<128x72xf32> to vector<128x8xf32>
    %c7_i32_25 = arith.constant 7 : i32
    %63 = tpu.dynamic_rotate %62 by %c7_i32_25 dim 0 : vector<128x8xf32>, i32 -> vector<128x8xf32>
    %c1_i32_26 = arith.constant 1 : i32
    %64 = vector.broadcast %c1_i32_26 : i32 to vector<128x8xi32>
    %65 = arith.cmpi sge, %4, %64 : vector<128x8xi32>
    %c7_i32_27 = arith.constant 7 : i32
    %66 = vector.broadcast %c7_i32_27 : i32 to vector<128x8xi32>
    %67 = arith.cmpi slt, %6, %66 : vector<128x8xi32>
    %68 = arith.andi %65, %67 : vector<128x8xi1>
    %cst_28 = arith.constant 0.000000e+00 : f32
    %69 = vector.broadcast %cst_28 : f32 to vector<128x8xf32>
    %70 = arith.select %68, %63, %69 : vector<128x8xi1>, vector<128x8xf32>
    %71 = arith.addf %61, %70 : vector<128x8xf32>
    %72 = vector.extract_strided_slice %45 {offsets = [0, 24], sizes = [128, 8], strides = [1, 1]} : vector<128x72xf32> to vector<128x8xf32>
    %c1_i32_29 = arith.constant 1 : i32
    %73 = tpu.dynamic_rotate %72 by %c1_i32_29 dim 0 : vector<128x8xf32>, i32 -> vector<128x8xf32>
    %c1_i32_30 = arith.constant 1 : i32
    %74 = vector.broadcast %c1_i32_30 : i32 to vector<128x8xi32>
    %75 = arith.cmpi sge, %6, %74 : vector<128x8xi32>
    %cst_31 = arith.constant 0.000000e+00 : f32
    %76 = vector.broadcast %cst_31 : f32 to vector<128x8xf32>
    %77 = arith.select %75, %73, %76 : vector<128x8xi1>, vector<128x8xf32>
    %78 = arith.addf %71, %77 : vector<128x8xf32>
    %79 = vector.extract_strided_slice %45 {offsets = [0, 32], sizes = [128, 8], strides = [1, 1]} : vector<128x72xf32> to vector<128x8xf32>
    %80 = arith.addf %78, %79 : vector<128x8xf32>
    %81 = vector.extract_strided_slice %45 {offsets = [0, 40], sizes = [128, 8], strides = [1, 1]} : vector<128x72xf32> to vector<128x8xf32>
    %c127_i32 = arith.constant 127 : i32
    %82 = tpu.dynamic_rotate %81 by %c127_i32 dim 0 : vector<128x8xf32>, i32 -> vector<128x8xf32>
    %c7_i32_32 = arith.constant 7 : i32
    %83 = vector.broadcast %c7_i32_32 : i32 to vector<128x8xi32>
    %84 = arith.cmpi slt, %6, %83 : vector<128x8xi32>
    %cst_33 = arith.constant 0.000000e+00 : f32
    %85 = vector.broadcast %cst_33 : f32 to vector<128x8xf32>
    %86 = arith.select %84, %82, %85 : vector<128x8xi1>, vector<128x8xf32>
    %87 = arith.addf %80, %86 : vector<128x8xf32>
    %88 = vector.extract_strided_slice %45 {offsets = [0, 48], sizes = [128, 8], strides = [1, 1]} : vector<128x72xf32> to vector<128x8xf32>
    %c121_i32 = arith.constant 121 : i32
    %89 = tpu.dynamic_rotate %88 by %c121_i32 dim 0 : vector<128x8xf32>, i32 -> vector<128x8xf32>
    %c7_i32_34 = arith.constant 7 : i32
    %90 = vector.broadcast %c7_i32_34 : i32 to vector<128x8xi32>
    %91 = arith.cmpi slt, %4, %90 : vector<128x8xi32>
    %c1_i32_35 = arith.constant 1 : i32
    %92 = vector.broadcast %c1_i32_35 : i32 to vector<128x8xi32>
    %93 = arith.cmpi sge, %6, %92 : vector<128x8xi32>
    %94 = arith.andi %91, %93 : vector<128x8xi1>
    %cst_36 = arith.constant 0.000000e+00 : f32
    %95 = vector.broadcast %cst_36 : f32 to vector<128x8xf32>
    %96 = arith.select %94, %89, %95 : vector<128x8xi1>, vector<128x8xf32>
    %97 = arith.addf %87, %96 : vector<128x8xf32>
    %98 = vector.extract_strided_slice %45 {offsets = [0, 56], sizes = [128, 8], strides = [1, 1]} : vector<128x72xf32> to vector<128x8xf32>
    %c120_i32 = arith.constant 120 : i32
    %99 = tpu.dynamic_rotate %98 by %c120_i32 dim 0 : vector<128x8xf32>, i32 -> vector<128x8xf32>
    %c7_i32_37 = arith.constant 7 : i32
    %100 = vector.broadcast %c7_i32_37 : i32 to vector<128x8xi32>
    %101 = arith.cmpi slt, %4, %100 : vector<128x8xi32>
    %cst_38 = arith.constant 0.000000e+00 : f32
    %102 = vector.broadcast %cst_38 : f32 to vector<128x8xf32>
    %103 = arith.select %101, %99, %102 : vector<128x8xi1>, vector<128x8xf32>
    %104 = arith.addf %97, %103 : vector<128x8xf32>
    %105 = vector.extract_strided_slice %45 {offsets = [0, 64], sizes = [128, 8], strides = [1, 1]} : vector<128x72xf32> to vector<128x8xf32>
    %c119_i32 = arith.constant 119 : i32
    %106 = tpu.dynamic_rotate %105 by %c119_i32 dim 0 : vector<128x8xf32>, i32 -> vector<128x8xf32>
    %c7_i32_39 = arith.constant 7 : i32
    %107 = vector.broadcast %c7_i32_39 : i32 to vector<128x8xi32>
    %108 = arith.cmpi slt, %4, %107 : vector<128x8xi32>
    %c7_i32_40 = arith.constant 7 : i32
    %109 = vector.broadcast %c7_i32_40 : i32 to vector<128x8xi32>
    %110 = arith.cmpi slt, %6, %109 : vector<128x8xi32>
    %111 = arith.andi %108, %110 : vector<128x8xi1>
    %cst_41 = arith.constant 0.000000e+00 : f32
    %112 = vector.broadcast %cst_41 : f32 to vector<128x8xf32>
    %113 = arith.select %111, %106, %112 : vector<128x8xi1>, vector<128x8xf32>
    %114 = arith.addf %104, %113 : vector<128x8xf32>
    %c2 = arith.constant 2 : index
    %c0_42 = arith.constant 0 : index
    %115 = vector.load %arg3[%c2, %c0_42] : memref<27x192xf32, #tpu.memory_space<vmem>>, vector<1x8xf32>
    %c3 = arith.constant 3 : index
    %c0_43 = arith.constant 0 : index
    %116 = vector.load %arg3[%c3, %c0_43] : memref<27x192xf32, #tpu.memory_space<vmem>>, vector<1x8xf32>
    %cst_44 = arith.constant dense<0.000000e+00> : vector<8xf32>
    %117 = vector.multi_reduction <add>, %114, %cst_44 [0] : vector<128x8xf32> to vector<8xf32>
    %118 = vector.shape_cast %117 : vector<8xf32> to vector<1x8xf32>
    %cst_45 = arith.constant 1.280000e+02 : f32
    %119 = vector.broadcast %cst_45 : f32 to vector<1x8xf32>
    %120 = arith.divf %118, %119 : vector<1x8xf32>
    %121 = vector.broadcast %120 : vector<1x8xf32> to vector<128x8xf32>
    %122 = arith.subf %114, %121 : vector<128x8xf32>
    %123 = arith.mulf %122, %122 : vector<128x8xf32>
    %cst_46 = arith.constant dense<0.000000e+00> : vector<8xf32>
    %124 = vector.multi_reduction <add>, %123, %cst_46 [0] : vector<128x8xf32> to vector<8xf32>
    %125 = vector.shape_cast %124 : vector<8xf32> to vector<1x8xf32>
    %cst_47 = arith.constant 1.280000e+02 : f32
    %126 = vector.broadcast %cst_47 : f32 to vector<1x8xf32>
    %127 = arith.divf %125, %126 : vector<1x8xf32>
    %cst_48 = arith.constant 9.99999997E-7 : f32
    %128 = vector.broadcast %cst_48 : f32 to vector<1x8xf32>
    %129 = arith.addf %127, %128 : vector<1x8xf32>
    %130 = math.rsqrt %129 : vector<1x8xf32>
    %131 = vector.broadcast %130 : vector<1x8xf32> to vector<128x8xf32>
    %132 = arith.mulf %122, %131 : vector<128x8xf32>
    %133 = vector.broadcast %115 : vector<1x8xf32> to vector<128x8xf32>
    %134 = arith.mulf %132, %133 : vector<128x8xf32>
    %135 = vector.broadcast %116 : vector<1x8xf32> to vector<128x8xf32>
    %136 = arith.addf %134, %135 : vector<128x8xf32>
    %cst_49 = arith.constant 0.000000e+00 : f32
    %137 = vector.broadcast %cst_49 : f32 to vector<128x8xf32>
    %138 = arith.maximumf %136, %137 : vector<128x8xf32>
    %c24 = arith.constant 24 : index
    %c0_50 = arith.constant 0 : index
    %139 = vector.load %arg4[%c24, %c0_50] : memref<488x192xf32, #tpu.memory_space<vmem>>, vector<8x32xf32>
    %cst_51 = arith.constant dense<0.000000e+00> : vector<128x32xf32>
    %140 = tpu.matmul %138, %139, %cst_51 {dimension_numbers = #tpu.dot_dimension_numbers<[1], [0], [0], [1], [0, 0, 1, 1], [], []>} : vector<128x8xf32>, vector<8x32xf32>, vector<128x32xf32> -> vector<128x32xf32>
    %c4 = arith.constant 4 : index
    %c0_52 = arith.constant 0 : index
    %141 = vector.load %arg3[%c4, %c0_52] : memref<27x192xf32, #tpu.memory_space<vmem>>, vector<1x32xf32>
    %c5 = arith.constant 5 : index
    %c0_53 = arith.constant 0 : index
    %142 = vector.load %arg3[%c5, %c0_53] : memref<27x192xf32, #tpu.memory_space<vmem>>, vector<1x32xf32>
    %cst_54 = arith.constant dense<0.000000e+00> : vector<32xf32>
    %143 = vector.multi_reduction <add>, %140, %cst_54 [0] : vector<128x32xf32> to vector<32xf32>
    %144 = vector.shape_cast %143 : vector<32xf32> to vector<1x32xf32>
    %cst_55 = arith.constant 1.280000e+02 : f32
    %145 = vector.broadcast %cst_55 : f32 to vector<1x32xf32>
    %146 = arith.divf %144, %145 : vector<1x32xf32>
    %147 = vector.broadcast %146 : vector<1x32xf32> to vector<128x32xf32>
    %148 = arith.subf %140, %147 : vector<128x32xf32>
    %149 = arith.mulf %148, %148 : vector<128x32xf32>
    %cst_56 = arith.constant dense<0.000000e+00> : vector<32xf32>
    %150 = vector.multi_reduction <add>, %149, %cst_56 [0] : vector<128x32xf32> to vector<32xf32>
    %151 = vector.shape_cast %150 : vector<32xf32> to vector<1x32xf32>
    %cst_57 = arith.constant 1.280000e+02 : f32
    %152 = vector.broadcast %cst_57 : f32 to vector<1x32xf32>
    %153 = arith.divf %151, %152 : vector<1x32xf32>
    %cst_58 = arith.constant 9.99999997E-7 : f32
    %154 = vector.broadcast %cst_58 : f32 to vector<1x32xf32>
    %155 = arith.addf %153, %154 : vector<1x32xf32>
    %156 = math.rsqrt %155 : vector<1x32xf32>
    %157 = vector.broadcast %156 : vector<1x32xf32> to vector<128x32xf32>
    %158 = arith.mulf %148, %157 : vector<128x32xf32>
    %159 = vector.broadcast %141 : vector<1x32xf32> to vector<128x32xf32>
    %160 = arith.mulf %158, %159 : vector<128x32xf32>
    %161 = vector.broadcast %142 : vector<1x32xf32> to vector<128x32xf32>
    %162 = arith.addf %160, %161 : vector<128x32xf32>
    %c32 = arith.constant 32 : index
    %c0_59 = arith.constant 0 : index
    %163 = vector.load %arg4[%c32, %c0_59] : memref<488x192xf32, #tpu.memory_space<vmem>>, vector<16x32xf32>
    %cst_60 = arith.constant dense<0.000000e+00> : vector<128x32xf32>
    %164 = tpu.matmul %17, %163, %cst_60 {dimension_numbers = #tpu.dot_dimension_numbers<[1], [0], [0], [1], [0, 0, 1, 1], [], []>} : vector<128x16xf32>, vector<16x32xf32>, vector<128x32xf32> -> vector<128x32xf32>
    %c6 = arith.constant 6 : index
    %c0_61 = arith.constant 0 : index
    %165 = vector.load %arg3[%c6, %c0_61] : memref<27x192xf32, #tpu.memory_space<vmem>>, vector<1x32xf32>
    %c7 = arith.constant 7 : index
    %c0_62 = arith.constant 0 : index
    %166 = vector.load %arg3[%c7, %c0_62] : memref<27x192xf32, #tpu.memory_space<vmem>>, vector<1x32xf32>
    %cst_63 = arith.constant dense<0.000000e+00> : vector<32xf32>
    %167 = vector.multi_reduction <add>, %164, %cst_63 [0] : vector<128x32xf32> to vector<32xf32>
    %168 = vector.shape_cast %167 : vector<32xf32> to vector<1x32xf32>
    %cst_64 = arith.constant 1.280000e+02 : f32
    %169 = vector.broadcast %cst_64 : f32 to vector<1x32xf32>
    %170 = arith.divf %168, %169 : vector<1x32xf32>
    %171 = vector.broadcast %170 : vector<1x32xf32> to vector<128x32xf32>
    %172 = arith.subf %164, %171 : vector<128x32xf32>
    %173 = arith.mulf %172, %172 : vector<128x32xf32>
    %cst_65 = arith.constant dense<0.000000e+00> : vector<32xf32>
    %174 = vector.multi_reduction <add>, %173, %cst_65 [0] : vector<128x32xf32> to vector<32xf32>
    %175 = vector.shape_cast %174 : vector<32xf32> to vector<1x32xf32>
    %cst_66 = arith.constant 1.280000e+02 : f32
    %176 = vector.broadcast %cst_66 : f32 to vector<1x32xf32>
    %177 = arith.divf %175, %176 : vector<1x32xf32>
    %cst_67 = arith.constant 9.99999997E-7 : f32
    %178 = vector.broadcast %cst_67 : f32 to vector<1x32xf32>
    %179 = arith.addf %177, %178 : vector<1x32xf32>
    %180 = math.rsqrt %179 : vector<1x32xf32>
    %181 = vector.broadcast %180 : vector<1x32xf32> to vector<128x32xf32>
    %182 = arith.mulf %172, %181 : vector<128x32xf32>
    %183 = vector.broadcast %165 : vector<1x32xf32> to vector<128x32xf32>
    %184 = arith.mulf %182, %183 : vector<128x32xf32>
    %185 = vector.broadcast %166 : vector<1x32xf32> to vector<128x32xf32>
    %186 = arith.addf %184, %185 : vector<128x32xf32>
    %187 = arith.addf %162, %186 : vector<128x32xf32>
    %cst_68 = arith.constant 0.000000e+00 : f32
    %188 = vector.broadcast %cst_68 : f32 to vector<128x32xf32>
    %189 = arith.maximumf %187, %188 : vector<128x32xf32>
    %c96 = arith.constant 96 : index
    %c0_69 = arith.constant 0 : index
    %190 = vector.load %arg4[%c96, %c0_69] : memref<488x192xf32, #tpu.memory_space<vmem>>, vector<8x48xf32>
    %cst_70 = arith.constant dense<0.000000e+00> : vector<128x48xf32>
    %191 = tpu.matmul %138, %190, %cst_70 {dimension_numbers = #tpu.dot_dimension_numbers<[1], [0], [0], [1], [0, 0, 1, 1], [], []>} : vector<128x8xf32>, vector<8x48xf32>, vector<128x48xf32> -> vector<128x48xf32>
    %c14 = arith.constant 14 : index
    %c0_71 = arith.constant 0 : index
    %192 = vector.load %arg3[%c14, %c0_71] : memref<27x192xf32, #tpu.memory_space<vmem>>, vector<1x48xf32>
    %193 = vector.broadcast %192 : vector<1x48xf32> to vector<128x48xf32>
    %194 = arith.addf %191, %193 : vector<128x48xf32>
    %195 = tpu.iota {dimensions = array<i32: 0>} : vector<32x128xi32>
    %196 = tpu.iota {dimensions = array<i32: 1>} : vector<32x128xi32>
    %c4_i32 = arith.constant 4 : i32
    %197 = vector.broadcast %c4_i32 : i32 to vector<32x128xi32>
    %198 = arith.shrsi %195, %197 : vector<32x128xi32>
    %c2_i32 = arith.constant 2 : i32
    %199 = vector.broadcast %c2_i32 : i32 to vector<32x128xi32>
    %200 = arith.shrsi %195, %199 : vector<32x128xi32>
    %c3_i32_72 = arith.constant 3 : i32
    %201 = vector.broadcast %c3_i32_72 : i32 to vector<32x128xi32>
    %202 = arith.andi %200, %201 : vector<32x128xi32>
    %c3_i32_73 = arith.constant 3 : i32
    %203 = vector.broadcast %c3_i32_73 : i32 to vector<32x128xi32>
    %204 = arith.andi %195, %203 : vector<32x128xi32>
    %c6_i32 = arith.constant 6 : i32
    %205 = vector.broadcast %c6_i32 : i32 to vector<32x128xi32>
    %206 = arith.shrsi %196, %205 : vector<32x128xi32>
    %c3_i32_74 = arith.constant 3 : i32
    %207 = vector.broadcast %c3_i32_74 : i32 to vector<32x128xi32>
    %208 = arith.shrsi %196, %207 : vector<32x128xi32>
    %c7_i32_75 = arith.constant 7 : i32
    %209 = vector.broadcast %c7_i32_75 : i32 to vector<32x128xi32>
    %210 = arith.andi %208, %209 : vector<32x128xi32>
    %c7_i32_76 = arith.constant 7 : i32
    %211 = vector.broadcast %c7_i32_76 : i32 to vector<32x128xi32>
    %212 = arith.andi %196, %211 : vector<32x128xi32>
    %213 = arith.cmpi eq, %198, %206 : vector<32x128xi32>
    %c1_i32_77 = arith.constant 1 : i32
    %214 = vector.broadcast %c1_i32_77 : i32 to vector<32x128xi32>
    %215 = arith.shrsi %210, %214 : vector<32x128xi32>
    %216 = arith.cmpi eq, %215, %202 : vector<32x128xi32>
    %217 = arith.andi %213, %216 : vector<32x128xi1>
    %c1_i32_78 = arith.constant 1 : i32
    %218 = vector.broadcast %c1_i32_78 : i32 to vector<32x128xi32>
    %219 = arith.shrsi %212, %218 : vector<32x128xi32>
    %220 = arith.cmpi eq, %219, %204 : vector<32x128xi32>
    %221 = arith.andi %217, %220 : vector<32x128xi1>
    %cst_79 = arith.constant 2.500000e-01 : f32
    %cst_80 = arith.constant 0.000000e+00 : f32
    %222 = vector.broadcast %cst_79 : f32 to vector<32x128xf32>
    %223 = vector.broadcast %cst_80 : f32 to vector<32x128xf32>
    %224 = arith.select %221, %222, %223 : vector<32x128xi1>, vector<32x128xf32>
    %cst_81 = arith.constant dense<0.000000e+00> : vector<32x48xf32>
    %225 = tpu.matmul %224, %194, %cst_81 {dimension_numbers = #tpu.dot_dimension_numbers<[1], [0], [0], [1], [0, 0, 1, 1], [], []>} : vector<32x128xf32>, vector<128x48xf32>, vector<32x48xf32> -> vector<32x48xf32>
    %c15 = arith.constant 15 : index
    %c0_82 = arith.constant 0 : index
    %226 = vector.load %arg3[%c15, %c0_82] : memref<27x192xf32, #tpu.memory_space<vmem>>, vector<1x48xf32>
    %c16_83 = arith.constant 16 : index
    %c0_84 = arith.constant 0 : index
    %227 = vector.load %arg3[%c16_83, %c0_84] : memref<27x192xf32, #tpu.memory_space<vmem>>, vector<1x48xf32>
    %cst_85 = arith.constant dense<0.000000e+00> : vector<32xf32>
    %228 = vector.multi_reduction <add>, %225, %cst_85 [1] : vector<32x48xf32> to vector<32xf32>
    %229 = vector.shape_cast %228 : vector<32xf32> to vector<32x1xf32>
    %cst_86 = arith.constant 4.800000e+01 : f32
    %230 = vector.broadcast %cst_86 : f32 to vector<32x1xf32>
    %231 = arith.divf %229, %230 : vector<32x1xf32>
    %232 = vector.broadcast %231 : vector<32x1xf32> to vector<32x48xf32>
    %233 = arith.subf %225, %232 : vector<32x48xf32>
    %234 = arith.mulf %233, %233 : vector<32x48xf32>
    %cst_87 = arith.constant dense<0.000000e+00> : vector<32xf32>
    %235 = vector.multi_reduction <add>, %234, %cst_87 [1] : vector<32x48xf32> to vector<32xf32>
    %236 = vector.shape_cast %235 : vector<32xf32> to vector<32x1xf32>
    %cst_88 = arith.constant 4.800000e+01 : f32
    %237 = vector.broadcast %cst_88 : f32 to vector<32x1xf32>
    %238 = arith.divf %236, %237 : vector<32x1xf32>
    %cst_89 = arith.constant 9.99999997E-7 : f32
    %239 = vector.broadcast %cst_89 : f32 to vector<32x1xf32>
    %240 = arith.addf %238, %239 : vector<32x1xf32>
    %241 = math.rsqrt %240 : vector<32x1xf32>
    %242 = vector.broadcast %241 : vector<32x1xf32> to vector<32x48xf32>
    %243 = arith.mulf %233, %242 : vector<32x48xf32>
    %244 = vector.broadcast %226 : vector<1x48xf32> to vector<32x48xf32>
    %245 = arith.mulf %243, %244 : vector<32x48xf32>
    %246 = vector.broadcast %227 : vector<1x48xf32> to vector<32x48xf32>
    %247 = arith.addf %245, %246 : vector<32x48xf32>
    %cst_90 = arith.constant 5.000000e-01 : f32
    %248 = vector.broadcast %cst_90 : f32 to vector<32x48xf32>
    %249 = arith.mulf %248, %247 : vector<32x48xf32>
    %cst_91 = arith.constant 0.707106769 : f32
    %250 = vector.broadcast %cst_91 : f32 to vector<32x48xf32>
    %251 = arith.mulf %247, %250 : vector<32x48xf32>
    %cst_92 = arith.constant 0.000000e+00 : f32
    %252 = vector.broadcast %cst_92 : f32 to vector<32x48xf32>
    %253 = arith.cmpf oge, %251, %252 : vector<32x48xf32>
    %cst_93 = arith.constant 1.000000e+00 : f32
    %cst_94 = arith.constant -1.000000e+00 : f32
    %254 = vector.broadcast %cst_93 : f32 to vector<32x48xf32>
    %255 = vector.broadcast %cst_94 : f32 to vector<32x48xf32>
    %256 = arith.select %253, %254, %255 : vector<32x48xi1>, vector<32x48xf32>
    %257 = math.absf %251 : vector<32x48xf32>
    %cst_95 = arith.constant 0.327591091 : f32
    %258 = vector.broadcast %cst_95 : f32 to vector<32x48xf32>
    %259 = arith.mulf %258, %257 : vector<32x48xf32>
    %cst_96 = arith.constant 1.000000e+00 : f32
    %260 = vector.broadcast %cst_96 : f32 to vector<32x48xf32>
    %261 = arith.addf %260, %259 : vector<32x48xf32>
    %cst_97 = arith.constant 1.000000e+00 : f32
    %262 = vector.broadcast %cst_97 : f32 to vector<32x48xf32>
    %263 = arith.divf %262, %261 : vector<32x48xf32>
    %cst_98 = arith.constant 1.06140542 : f32
    %264 = vector.broadcast %cst_98 : f32 to vector<32x48xf32>
    %265 = arith.mulf %264, %263 : vector<32x48xf32>
    %cst_99 = arith.constant -1.45315206 : f32
    %266 = vector.broadcast %cst_99 : f32 to vector<32x48xf32>
    %267 = arith.addf %265, %266 : vector<32x48xf32>
    %268 = arith.mulf %267, %263 : vector<32x48xf32>
    %cst_100 = arith.constant 1.42141378 : f32
    %269 = vector.broadcast %cst_100 : f32 to vector<32x48xf32>
    %270 = arith.addf %268, %269 : vector<32x48xf32>
    %271 = arith.mulf %270, %263 : vector<32x48xf32>
    %cst_101 = arith.constant -0.284496725 : f32
    %272 = vector.broadcast %cst_101 : f32 to vector<32x48xf32>
    %273 = arith.addf %271, %272 : vector<32x48xf32>
    %274 = arith.mulf %273, %263 : vector<32x48xf32>
    %cst_102 = arith.constant 0.254829586 : f32
    %275 = vector.broadcast %cst_102 : f32 to vector<32x48xf32>
    %276 = arith.addf %274, %275 : vector<32x48xf32>
    %277 = arith.mulf %276, %263 : vector<32x48xf32>
    %cst_103 = arith.constant 0.000000e+00 : f32
    %278 = vector.broadcast %cst_103 : f32 to vector<32x48xf32>
    %279 = arith.subf %278, %257 : vector<32x48xf32>
    %280 = arith.mulf %279, %257 : vector<32x48xf32>
    %281 = math.exp %280 : vector<32x48xf32>
    %282 = arith.mulf %277, %281 : vector<32x48xf32>
    %cst_104 = arith.constant 1.000000e+00 : f32
    %283 = vector.broadcast %cst_104 : f32 to vector<32x48xf32>
    %284 = arith.subf %283, %282 : vector<32x48xf32>
    %285 = arith.mulf %256, %284 : vector<32x48xf32>
    %cst_105 = arith.constant 1.000000e+00 : f32
    %286 = vector.broadcast %cst_105 : f32 to vector<32x48xf32>
    %287 = arith.addf %286, %285 : vector<32x48xf32>
    %288 = arith.mulf %249, %287 : vector<32x48xf32>
    %c0_106 = arith.constant 0 : index
    %c0_107 = arith.constant 0 : index
    %289 = vector.load %arg2[%c0_106, %c0_107] : memref<34x48xf32, #tpu.memory_space<vmem>>, vector<34x48xf32>
    %290 = vector.extract_strided_slice %289 {offsets = [0, 0], sizes = [17, 48], strides = [1, 1]} : vector<34x48xf32> to vector<17x48xf32>
    %291 = vector.extract_strided_slice %290 {offsets = [0, 0], sizes = [1, 48], strides = [1, 1]} : vector<17x48xf32> to vector<1x48xf32>
    %292 = vector.extract_strided_slice %288 {offsets = [0, 0], sizes = [16, 48], strides = [1, 1]} : vector<32x48xf32> to vector<16x48xf32>
    %293 = tpu.concatenate %291, %292 in 0 : vector<1x48xf32>, vector<16x48xf32> -> vector<17x48xf32>
    %294 = arith.addf %290, %293 : vector<17x48xf32>
    %295 = vector.extract_strided_slice %289 {offsets = [17, 0], sizes = [17, 48], strides = [1, 1]} : vector<34x48xf32> to vector<17x48xf32>
    %296 = vector.extract_strided_slice %295 {offsets = [0, 0], sizes = [1, 48], strides = [1, 1]} : vector<17x48xf32> to vector<1x48xf32>
    %297 = vector.extract_strided_slice %288 {offsets = [16, 0], sizes = [16, 48], strides = [1, 1]} : vector<32x48xf32> to vector<16x48xf32>
    %298 = tpu.concatenate %296, %297 in 0 : vector<1x48xf32>, vector<16x48xf32> -> vector<17x48xf32>
    %299 = arith.addf %295, %298 : vector<17x48xf32>
    %300 = tpu.concatenate %294, %299 in 0 : vector<17x48xf32>, vector<17x48xf32> -> vector<34x48xf32>
    %c20 = arith.constant 20 : index
    %c0_108 = arith.constant 0 : index
    %301 = vector.load %arg3[%c20, %c0_108] : memref<27x192xf32, #tpu.memory_space<vmem>>, vector<1x48xf32>
    %c21 = arith.constant 21 : index
    %c0_109 = arith.constant 0 : index
    %302 = vector.load %arg3[%c21, %c0_109] : memref<27x192xf32, #tpu.memory_space<vmem>>, vector<1x48xf32>
    %cst_110 = arith.constant dense<0.000000e+00> : vector<34xf32>
    %303 = vector.multi_reduction <add>, %300, %cst_110 [1] : vector<34x48xf32> to vector<34xf32>
    %304 = vector.shape_cast %303 : vector<34xf32> to vector<34x1xf32>
    %cst_111 = arith.constant 4.800000e+01 : f32
    %305 = vector.broadcast %cst_111 : f32 to vector<34x1xf32>
    %306 = arith.divf %304, %305 : vector<34x1xf32>
    %307 = vector.broadcast %306 : vector<34x1xf32> to vector<34x48xf32>
    %308 = arith.subf %300, %307 : vector<34x48xf32>
    %309 = arith.mulf %308, %308 : vector<34x48xf32>
    %cst_112 = arith.constant dense<0.000000e+00> : vector<34xf32>
    %310 = vector.multi_reduction <add>, %309, %cst_112 [1] : vector<34x48xf32> to vector<34xf32>
    %311 = vector.shape_cast %310 : vector<34xf32> to vector<34x1xf32>
    %cst_113 = arith.constant 4.800000e+01 : f32
    %312 = vector.broadcast %cst_113 : f32 to vector<34x1xf32>
    %313 = arith.divf %311, %312 : vector<34x1xf32>
    %cst_114 = arith.constant 9.99999997E-7 : f32
    %314 = vector.broadcast %cst_114 : f32 to vector<34x1xf32>
    %315 = arith.addf %313, %314 : vector<34x1xf32>
    %316 = math.rsqrt %315 : vector<34x1xf32>
    %317 = vector.broadcast %316 : vector<34x1xf32> to vector<34x48xf32>
    %318 = arith.mulf %308, %317 : vector<34x48xf32>
    %319 = vector.broadcast %301 : vector<1x48xf32> to vector<34x48xf32>
    %320 = arith.mulf %318, %319 : vector<34x48xf32>
    %321 = vector.broadcast %302 : vector<1x48xf32> to vector<34x48xf32>
    %322 = arith.addf %320, %321 : vector<34x48xf32>
    %c152 = arith.constant 152 : index
    %c0_115 = arith.constant 0 : index
    %323 = vector.load %arg4[%c152, %c0_115] : memref<488x192xf32, #tpu.memory_space<vmem>>, vector<48x144xf32>
    %cst_116 = arith.constant dense<0.000000e+00> : vector<34x144xf32>
    %324 = tpu.matmul %322, %323, %cst_116 {dimension_numbers = #tpu.dot_dimension_numbers<[1], [0], [0], [1], [0, 0, 1, 1], [], []>} : vector<34x48xf32>, vector<48x144xf32>, vector<34x144xf32> -> vector<34x144xf32>
    %325 = vector.extract_strided_slice %324 {offsets = [0, 0], sizes = [17, 12], strides = [1, 1]} : vector<34x144xf32> to vector<17x12xf32>
    %326 = vector.extract_strided_slice %324 {offsets = [0, 48], sizes = [17, 12], strides = [1, 1]} : vector<34x144xf32> to vector<17x12xf32>
    %327 = vector.extract_strided_slice %324 {offsets = [0, 96], sizes = [17, 12], strides = [1, 1]} : vector<34x144xf32> to vector<17x12xf32>
    %cst_117 = arith.constant dense<0.000000e+00> : vector<17x17xf32>
    %328 = tpu.matmul %325, %326, %cst_117 {dimension_numbers = #tpu.dot_dimension_numbers<[1], [1], [0], [0], [0, 0, 1, 0], [], []>} : vector<17x12xf32>, vector<17x12xf32>, vector<17x17xf32> -> vector<17x17xf32>
    %cst_118 = arith.constant 0.288675129 : f32
    %329 = vector.broadcast %cst_118 : f32 to vector<17x17xf32>
    %330 = arith.mulf %328, %329 : vector<17x17xf32>
    %cst_119 = arith.constant dense<0xFF800000> : vector<17xf32>
    %331 = vector.multi_reduction <maximumf>, %330, %cst_119 [1] : vector<17x17xf32> to vector<17xf32>
    %332 = vector.shape_cast %331 : vector<17xf32> to vector<17x1xf32>
    %333 = vector.broadcast %332 : vector<17x1xf32> to vector<17x17xf32>
    %334 = arith.subf %330, %333 : vector<17x17xf32>
    %335 = math.exp %334 : vector<17x17xf32>
    %cst_120 = arith.constant dense<0.000000e+00> : vector<17xf32>
    %336 = vector.multi_reduction <add>, %335, %cst_120 [1] : vector<17x17xf32> to vector<17xf32>
    %337 = vector.shape_cast %336 : vector<17xf32> to vector<17x1xf32>
    %338 = tpu.reciprocal %337 {approx = true} : vector<17x1xf32> -> vector<17x1xf32>
    %339 = vector.broadcast %338 : vector<17x1xf32> to vector<17x17xf32>
    %340 = arith.mulf %335, %339 : vector<17x17xf32>
    %cst_121 = arith.constant dense<0.000000e+00> : vector<17x12xf32>
    %341 = tpu.matmul %340, %327, %cst_121 {dimension_numbers = #tpu.dot_dimension_numbers<[1], [0], [0], [1], [0, 0, 1, 1], [], []>} : vector<17x17xf32>, vector<17x12xf32>, vector<17x12xf32> -> vector<17x12xf32>
    %342 = vector.extract_strided_slice %324 {offsets = [0, 12], sizes = [17, 12], strides = [1, 1]} : vector<34x144xf32> to vector<17x12xf32>
    %343 = vector.extract_strided_slice %324 {offsets = [0, 60], sizes = [17, 12], strides = [1, 1]} : vector<34x144xf32> to vector<17x12xf32>
    %344 = vector.extract_strided_slice %324 {offsets = [0, 108], sizes = [17, 12], strides = [1, 1]} : vector<34x144xf32> to vector<17x12xf32>
    %cst_122 = arith.constant dense<0.000000e+00> : vector<17x17xf32>
    %345 = tpu.matmul %342, %343, %cst_122 {dimension_numbers = #tpu.dot_dimension_numbers<[1], [1], [0], [0], [0, 0, 1, 0], [], []>} : vector<17x12xf32>, vector<17x12xf32>, vector<17x17xf32> -> vector<17x17xf32>
    %cst_123 = arith.constant 0.288675129 : f32
    %346 = vector.broadcast %cst_123 : f32 to vector<17x17xf32>
    %347 = arith.mulf %345, %346 : vector<17x17xf32>
    %cst_124 = arith.constant dense<0xFF800000> : vector<17xf32>
    %348 = vector.multi_reduction <maximumf>, %347, %cst_124 [1] : vector<17x17xf32> to vector<17xf32>
    %349 = vector.shape_cast %348 : vector<17xf32> to vector<17x1xf32>
    %350 = vector.broadcast %349 : vector<17x1xf32> to vector<17x17xf32>
    %351 = arith.subf %347, %350 : vector<17x17xf32>
    %352 = math.exp %351 : vector<17x17xf32>
    %cst_125 = arith.constant dense<0.000000e+00> : vector<17xf32>
    %353 = vector.multi_reduction <add>, %352, %cst_125 [1] : vector<17x17xf32> to vector<17xf32>
    %354 = vector.shape_cast %353 : vector<17xf32> to vector<17x1xf32>
    %355 = tpu.reciprocal %354 {approx = true} : vector<17x1xf32> -> vector<17x1xf32>
    %356 = vector.broadcast %355 : vector<17x1xf32> to vector<17x17xf32>
    %357 = arith.mulf %352, %356 : vector<17x17xf32>
    %cst_126 = arith.constant dense<0.000000e+00> : vector<17x12xf32>
    %358 = tpu.matmul %357, %344, %cst_126 {dimension_numbers = #tpu.dot_dimension_numbers<[1], [0], [0], [1], [0, 0, 1, 1], [], []>} : vector<17x17xf32>, vector<17x12xf32>, vector<17x12xf32> -> vector<17x12xf32>
    %359 = vector.extract_strided_slice %324 {offsets = [0, 24], sizes = [17, 12], strides = [1, 1]} : vector<34x144xf32> to vector<17x12xf32>
    %360 = vector.extract_strided_slice %324 {offsets = [0, 72], sizes = [17, 12], strides = [1, 1]} : vector<34x144xf32> to vector<17x12xf32>
    %361 = vector.extract_strided_slice %324 {offsets = [0, 120], sizes = [17, 12], strides = [1, 1]} : vector<34x144xf32> to vector<17x12xf32>
    %cst_127 = arith.constant dense<0.000000e+00> : vector<17x17xf32>
    %362 = tpu.matmul %359, %360, %cst_127 {dimension_numbers = #tpu.dot_dimension_numbers<[1], [1], [0], [0], [0, 0, 1, 0], [], []>} : vector<17x12xf32>, vector<17x12xf32>, vector<17x17xf32> -> vector<17x17xf32>
    %cst_128 = arith.constant 0.288675129 : f32
    %363 = vector.broadcast %cst_128 : f32 to vector<17x17xf32>
    %364 = arith.mulf %362, %363 : vector<17x17xf32>
    %cst_129 = arith.constant dense<0xFF800000> : vector<17xf32>
    %365 = vector.multi_reduction <maximumf>, %364, %cst_129 [1] : vector<17x17xf32> to vector<17xf32>
    %366 = vector.shape_cast %365 : vector<17xf32> to vector<17x1xf32>
    %367 = vector.broadcast %366 : vector<17x1xf32> to vector<17x17xf32>
    %368 = arith.subf %364, %367 : vector<17x17xf32>
    %369 = math.exp %368 : vector<17x17xf32>
    %cst_130 = arith.constant dense<0.000000e+00> : vector<17xf32>
    %370 = vector.multi_reduction <add>, %369, %cst_130 [1] : vector<17x17xf32> to vector<17xf32>
    %371 = vector.shape_cast %370 : vector<17xf32> to vector<17x1xf32>
    %372 = tpu.reciprocal %371 {approx = true} : vector<17x1xf32> -> vector<17x1xf32>
    %373 = vector.broadcast %372 : vector<17x1xf32> to vector<17x17xf32>
    %374 = arith.mulf %369, %373 : vector<17x17xf32>
    %cst_131 = arith.constant dense<0.000000e+00> : vector<17x12xf32>
    %375 = tpu.matmul %374, %361, %cst_131 {dimension_numbers = #tpu.dot_dimension_numbers<[1], [0], [0], [1], [0, 0, 1, 1], [], []>} : vector<17x17xf32>, vector<17x12xf32>, vector<17x12xf32> -> vector<17x12xf32>
    %376 = vector.extract_strided_slice %324 {offsets = [0, 36], sizes = [17, 12], strides = [1, 1]} : vector<34x144xf32> to vector<17x12xf32>
    %377 = vector.extract_strided_slice %324 {offsets = [0, 84], sizes = [17, 12], strides = [1, 1]} : vector<34x144xf32> to vector<17x12xf32>
    %378 = vector.extract_strided_slice %324 {offsets = [0, 132], sizes = [17, 12], strides = [1, 1]} : vector<34x144xf32> to vector<17x12xf32>
    %cst_132 = arith.constant dense<0.000000e+00> : vector<17x17xf32>
    %379 = tpu.matmul %376, %377, %cst_132 {dimension_numbers = #tpu.dot_dimension_numbers<[1], [1], [0], [0], [0, 0, 1, 0], [], []>} : vector<17x12xf32>, vector<17x12xf32>, vector<17x17xf32> -> vector<17x17xf32>
    %cst_133 = arith.constant 0.288675129 : f32
    %380 = vector.broadcast %cst_133 : f32 to vector<17x17xf32>
    %381 = arith.mulf %379, %380 : vector<17x17xf32>
    %cst_134 = arith.constant dense<0xFF800000> : vector<17xf32>
    %382 = vector.multi_reduction <maximumf>, %381, %cst_134 [1] : vector<17x17xf32> to vector<17xf32>
    %383 = vector.shape_cast %382 : vector<17xf32> to vector<17x1xf32>
    %384 = vector.broadcast %383 : vector<17x1xf32> to vector<17x17xf32>
    %385 = arith.subf %381, %384 : vector<17x17xf32>
    %386 = math.exp %385 : vector<17x17xf32>
    %cst_135 = arith.constant dense<0.000000e+00> : vector<17xf32>
    %387 = vector.multi_reduction <add>, %386, %cst_135 [1] : vector<17x17xf32> to vector<17xf32>
    %388 = vector.shape_cast %387 : vector<17xf32> to vector<17x1xf32>
    %389 = tpu.reciprocal %388 {approx = true} : vector<17x1xf32> -> vector<17x1xf32>
    %390 = vector.broadcast %389 : vector<17x1xf32> to vector<17x17xf32>
    %391 = arith.mulf %386, %390 : vector<17x17xf32>
    %cst_136 = arith.constant dense<0.000000e+00> : vector<17x12xf32>
    %392 = tpu.matmul %391, %378, %cst_136 {dimension_numbers = #tpu.dot_dimension_numbers<[1], [0], [0], [1], [0, 0, 1, 1], [], []>} : vector<17x17xf32>, vector<17x12xf32>, vector<17x12xf32> -> vector<17x12xf32>
    %393 = tpu.concatenate %341, %358, %375, %392 in 1 : vector<17x12xf32>, vector<17x12xf32>, vector<17x12xf32>, vector<17x12xf32> -> vector<17x48xf32>
    %394 = vector.extract_strided_slice %324 {offsets = [17, 0], sizes = [17, 12], strides = [1, 1]} : vector<34x144xf32> to vector<17x12xf32>
    %395 = vector.extract_strided_slice %324 {offsets = [17, 48], sizes = [17, 12], strides = [1, 1]} : vector<34x144xf32> to vector<17x12xf32>
    %396 = vector.extract_strided_slice %324 {offsets = [17, 96], sizes = [17, 12], strides = [1, 1]} : vector<34x144xf32> to vector<17x12xf32>
    %cst_137 = arith.constant dense<0.000000e+00> : vector<17x17xf32>
    %397 = tpu.matmul %394, %395, %cst_137 {dimension_numbers = #tpu.dot_dimension_numbers<[1], [1], [0], [0], [0, 0, 1, 0], [], []>} : vector<17x12xf32>, vector<17x12xf32>, vector<17x17xf32> -> vector<17x17xf32>
    %cst_138 = arith.constant 0.288675129 : f32
    %398 = vector.broadcast %cst_138 : f32 to vector<17x17xf32>
    %399 = arith.mulf %397, %398 : vector<17x17xf32>
    %cst_139 = arith.constant dense<0xFF800000> : vector<17xf32>
    %400 = vector.multi_reduction <maximumf>, %399, %cst_139 [1] : vector<17x17xf32> to vector<17xf32>
    %401 = vector.shape_cast %400 : vector<17xf32> to vector<17x1xf32>
    %402 = vector.broadcast %401 : vector<17x1xf32> to vector<17x17xf32>
    %403 = arith.subf %399, %402 : vector<17x17xf32>
    %404 = math.exp %403 : vector<17x17xf32>
    %cst_140 = arith.constant dense<0.000000e+00> : vector<17xf32>
    %405 = vector.multi_reduction <add>, %404, %cst_140 [1] : vector<17x17xf32> to vector<17xf32>
    %406 = vector.shape_cast %405 : vector<17xf32> to vector<17x1xf32>
    %407 = tpu.reciprocal %406 {approx = true} : vector<17x1xf32> -> vector<17x1xf32>
    %408 = vector.broadcast %407 : vector<17x1xf32> to vector<17x17xf32>
    %409 = arith.mulf %404, %408 : vector<17x17xf32>
    %cst_141 = arith.constant dense<0.000000e+00> : vector<17x12xf32>
    %410 = tpu.matmul %409, %396, %cst_141 {dimension_numbers = #tpu.dot_dimension_numbers<[1], [0], [0], [1], [0, 0, 1, 1], [], []>} : vector<17x17xf32>, vector<17x12xf32>, vector<17x12xf32> -> vector<17x12xf32>
    %411 = vector.extract_strided_slice %324 {offsets = [17, 12], sizes = [17, 12], strides = [1, 1]} : vector<34x144xf32> to vector<17x12xf32>
    %412 = vector.extract_strided_slice %324 {offsets = [17, 60], sizes = [17, 12], strides = [1, 1]} : vector<34x144xf32> to vector<17x12xf32>
    %413 = vector.extract_strided_slice %324 {offsets = [17, 108], sizes = [17, 12], strides = [1, 1]} : vector<34x144xf32> to vector<17x12xf32>
    %cst_142 = arith.constant dense<0.000000e+00> : vector<17x17xf32>
    %414 = tpu.matmul %411, %412, %cst_142 {dimension_numbers = #tpu.dot_dimension_numbers<[1], [1], [0], [0], [0, 0, 1, 0], [], []>} : vector<17x12xf32>, vector<17x12xf32>, vector<17x17xf32> -> vector<17x17xf32>
    %cst_143 = arith.constant 0.288675129 : f32
    %415 = vector.broadcast %cst_143 : f32 to vector<17x17xf32>
    %416 = arith.mulf %414, %415 : vector<17x17xf32>
    %cst_144 = arith.constant dense<0xFF800000> : vector<17xf32>
    %417 = vector.multi_reduction <maximumf>, %416, %cst_144 [1] : vector<17x17xf32> to vector<17xf32>
    %418 = vector.shape_cast %417 : vector<17xf32> to vector<17x1xf32>
    %419 = vector.broadcast %418 : vector<17x1xf32> to vector<17x17xf32>
    %420 = arith.subf %416, %419 : vector<17x17xf32>
    %421 = math.exp %420 : vector<17x17xf32>
    %cst_145 = arith.constant dense<0.000000e+00> : vector<17xf32>
    %422 = vector.multi_reduction <add>, %421, %cst_145 [1] : vector<17x17xf32> to vector<17xf32>
    %423 = vector.shape_cast %422 : vector<17xf32> to vector<17x1xf32>
    %424 = tpu.reciprocal %423 {approx = true} : vector<17x1xf32> -> vector<17x1xf32>
    %425 = vector.broadcast %424 : vector<17x1xf32> to vector<17x17xf32>
    %426 = arith.mulf %421, %425 : vector<17x17xf32>
    %cst_146 = arith.constant dense<0.000000e+00> : vector<17x12xf32>
    %427 = tpu.matmul %426, %413, %cst_146 {dimension_numbers = #tpu.dot_dimension_numbers<[1], [0], [0], [1], [0, 0, 1, 1], [], []>} : vector<17x17xf32>, vector<17x12xf32>, vector<17x12xf32> -> vector<17x12xf32>
    %428 = vector.extract_strided_slice %324 {offsets = [17, 24], sizes = [17, 12], strides = [1, 1]} : vector<34x144xf32> to vector<17x12xf32>
    %429 = vector.extract_strided_slice %324 {offsets = [17, 72], sizes = [17, 12], strides = [1, 1]} : vector<34x144xf32> to vector<17x12xf32>
    %430 = vector.extract_strided_slice %324 {offsets = [17, 120], sizes = [17, 12], strides = [1, 1]} : vector<34x144xf32> to vector<17x12xf32>
    %cst_147 = arith.constant dense<0.000000e+00> : vector<17x17xf32>
    %431 = tpu.matmul %428, %429, %cst_147 {dimension_numbers = #tpu.dot_dimension_numbers<[1], [1], [0], [0], [0, 0, 1, 0], [], []>} : vector<17x12xf32>, vector<17x12xf32>, vector<17x17xf32> -> vector<17x17xf32>
    %cst_148 = arith.constant 0.288675129 : f32
    %432 = vector.broadcast %cst_148 : f32 to vector<17x17xf32>
    %433 = arith.mulf %431, %432 : vector<17x17xf32>
    %cst_149 = arith.constant dense<0xFF800000> : vector<17xf32>
    %434 = vector.multi_reduction <maximumf>, %433, %cst_149 [1] : vector<17x17xf32> to vector<17xf32>
    %435 = vector.shape_cast %434 : vector<17xf32> to vector<17x1xf32>
    %436 = vector.broadcast %435 : vector<17x1xf32> to vector<17x17xf32>
    %437 = arith.subf %433, %436 : vector<17x17xf32>
    %438 = math.exp %437 : vector<17x17xf32>
    %cst_150 = arith.constant dense<0.000000e+00> : vector<17xf32>
    %439 = vector.multi_reduction <add>, %438, %cst_150 [1] : vector<17x17xf32> to vector<17xf32>
    %440 = vector.shape_cast %439 : vector<17xf32> to vector<17x1xf32>
    %441 = tpu.reciprocal %440 {approx = true} : vector<17x1xf32> -> vector<17x1xf32>
    %442 = vector.broadcast %441 : vector<17x1xf32> to vector<17x17xf32>
    %443 = arith.mulf %438, %442 : vector<17x17xf32>
    %cst_151 = arith.constant dense<0.000000e+00> : vector<17x12xf32>
    %444 = tpu.matmul %443, %430, %cst_151 {dimension_numbers = #tpu.dot_dimension_numbers<[1], [0], [0], [1], [0, 0, 1, 1], [], []>} : vector<17x17xf32>, vector<17x12xf32>, vector<17x12xf32> -> vector<17x12xf32>
    %445 = vector.extract_strided_slice %324 {offsets = [17, 36], sizes = [17, 12], strides = [1, 1]} : vector<34x144xf32> to vector<17x12xf32>
    %446 = vector.extract_strided_slice %324 {offsets = [17, 84], sizes = [17, 12], strides = [1, 1]} : vector<34x144xf32> to vector<17x12xf32>
    %447 = vector.extract_strided_slice %324 {offsets = [17, 132], sizes = [17, 12], strides = [1, 1]} : vector<34x144xf32> to vector<17x12xf32>
    %cst_152 = arith.constant dense<0.000000e+00> : vector<17x17xf32>
    %448 = tpu.matmul %445, %446, %cst_152 {dimension_numbers = #tpu.dot_dimension_numbers<[1], [1], [0], [0], [0, 0, 1, 0], [], []>} : vector<17x12xf32>, vector<17x12xf32>, vector<17x17xf32> -> vector<17x17xf32>
    %cst_153 = arith.constant 0.288675129 : f32
    %449 = vector.broadcast %cst_153 : f32 to vector<17x17xf32>
    %450 = arith.mulf %448, %449 : vector<17x17xf32>
    %cst_154 = arith.constant dense<0xFF800000> : vector<17xf32>
    %451 = vector.multi_reduction <maximumf>, %450, %cst_154 [1] : vector<17x17xf32> to vector<17xf32>
    %452 = vector.shape_cast %451 : vector<17xf32> to vector<17x1xf32>
    %453 = vector.broadcast %452 : vector<17x1xf32> to vector<17x17xf32>
    %454 = arith.subf %450, %453 : vector<17x17xf32>
    %455 = math.exp %454 : vector<17x17xf32>
    %cst_155 = arith.constant dense<0.000000e+00> : vector<17xf32>
    %456 = vector.multi_reduction <add>, %455, %cst_155 [1] : vector<17x17xf32> to vector<17xf32>
    %457 = vector.shape_cast %456 : vector<17xf32> to vector<17x1xf32>
    %458 = tpu.reciprocal %457 {approx = true} : vector<17x1xf32> -> vector<17x1xf32>
    %459 = vector.broadcast %458 : vector<17x1xf32> to vector<17x17xf32>
    %460 = arith.mulf %455, %459 : vector<17x17xf32>
    %cst_156 = arith.constant dense<0.000000e+00> : vector<17x12xf32>
    %461 = tpu.matmul %460, %447, %cst_156 {dimension_numbers = #tpu.dot_dimension_numbers<[1], [0], [0], [1], [0, 0, 1, 1], [], []>} : vector<17x17xf32>, vector<17x12xf32>, vector<17x12xf32> -> vector<17x12xf32>
    %462 = tpu.concatenate %410, %427, %444, %461 in 1 : vector<17x12xf32>, vector<17x12xf32>, vector<17x12xf32>, vector<17x12xf32> -> vector<17x48xf32>
    %463 = tpu.concatenate %393, %462 in 0 : vector<17x48xf32>, vector<17x48xf32> -> vector<34x48xf32>
    %c200 = arith.constant 200 : index
    %c0_157 = arith.constant 0 : index
    %464 = vector.load %arg4[%c200, %c0_157] : memref<488x192xf32, #tpu.memory_space<vmem>>, vector<48x48xf32>
    %cst_158 = arith.constant dense<0.000000e+00> : vector<34x48xf32>
    %465 = tpu.matmul %463, %464, %cst_158 {dimension_numbers = #tpu.dot_dimension_numbers<[1], [0], [0], [1], [0, 0, 1, 1], [], []>} : vector<34x48xf32>, vector<48x48xf32>, vector<34x48xf32> -> vector<34x48xf32>
    %466 = arith.addf %300, %465 : vector<34x48xf32>
    %c22 = arith.constant 22 : index
    %c0_159 = arith.constant 0 : index
    %467 = vector.load %arg3[%c22, %c0_159] : memref<27x192xf32, #tpu.memory_space<vmem>>, vector<1x48xf32>
    %468 = vector.broadcast %467 : vector<1x48xf32> to vector<34x48xf32>
    %469 = arith.addf %466, %468 : vector<34x48xf32>
    %c23 = arith.constant 23 : index
    %c0_160 = arith.constant 0 : index
    %470 = vector.load %arg3[%c23, %c0_160] : memref<27x192xf32, #tpu.memory_space<vmem>>, vector<1x48xf32>
    %c24_161 = arith.constant 24 : index
    %c0_162 = arith.constant 0 : index
    %471 = vector.load %arg3[%c24_161, %c0_162] : memref<27x192xf32, #tpu.memory_space<vmem>>, vector<1x48xf32>
    %cst_163 = arith.constant dense<0.000000e+00> : vector<34xf32>
    %472 = vector.multi_reduction <add>, %469, %cst_163 [1] : vector<34x48xf32> to vector<34xf32>
    %473 = vector.shape_cast %472 : vector<34xf32> to vector<34x1xf32>
    %cst_164 = arith.constant 4.800000e+01 : f32
    %474 = vector.broadcast %cst_164 : f32 to vector<34x1xf32>
    %475 = arith.divf %473, %474 : vector<34x1xf32>
    %476 = vector.broadcast %475 : vector<34x1xf32> to vector<34x48xf32>
    %477 = arith.subf %469, %476 : vector<34x48xf32>
    %478 = arith.mulf %477, %477 : vector<34x48xf32>
    %cst_165 = arith.constant dense<0.000000e+00> : vector<34xf32>
    %479 = vector.multi_reduction <add>, %478, %cst_165 [1] : vector<34x48xf32> to vector<34xf32>
    %480 = vector.shape_cast %479 : vector<34xf32> to vector<34x1xf32>
    %cst_166 = arith.constant 4.800000e+01 : f32
    %481 = vector.broadcast %cst_166 : f32 to vector<34x1xf32>
    %482 = arith.divf %480, %481 : vector<34x1xf32>
    %cst_167 = arith.constant 9.99999997E-7 : f32
    %483 = vector.broadcast %cst_167 : f32 to vector<34x1xf32>
    %484 = arith.addf %482, %483 : vector<34x1xf32>
    %485 = math.rsqrt %484 : vector<34x1xf32>
    %486 = vector.broadcast %485 : vector<34x1xf32> to vector<34x48xf32>
    %487 = arith.mulf %477, %486 : vector<34x48xf32>
    %488 = vector.broadcast %470 : vector<1x48xf32> to vector<34x48xf32>
    %489 = arith.mulf %487, %488 : vector<34x48xf32>
    %490 = vector.broadcast %471 : vector<1x48xf32> to vector<34x48xf32>
    %491 = arith.addf %489, %490 : vector<34x48xf32>
    %c248 = arith.constant 248 : index
    %c0_168 = arith.constant 0 : index
    %492 = vector.load %arg4[%c248, %c0_168] : memref<488x192xf32, #tpu.memory_space<vmem>>, vector<48x192xf32>
    %cst_169 = arith.constant dense<0.000000e+00> : vector<34x192xf32>
    %493 = tpu.matmul %491, %492, %cst_169 {dimension_numbers = #tpu.dot_dimension_numbers<[1], [0], [0], [1], [0, 0, 1, 1], [], []>} : vector<34x48xf32>, vector<48x192xf32>, vector<34x192xf32> -> vector<34x192xf32>
    %c25 = arith.constant 25 : index
    %c0_170 = arith.constant 0 : index
    %494 = vector.load %arg3[%c25, %c0_170] : memref<27x192xf32, #tpu.memory_space<vmem>>, vector<1x192xf32>
    %495 = vector.broadcast %494 : vector<1x192xf32> to vector<34x192xf32>
    %496 = arith.addf %493, %495 : vector<34x192xf32>
    %cst_171 = arith.constant 5.000000e-01 : f32
    %497 = vector.broadcast %cst_171 : f32 to vector<34x192xf32>
    %498 = arith.mulf %497, %496 : vector<34x192xf32>
    %cst_172 = arith.constant 0.707106769 : f32
    %499 = vector.broadcast %cst_172 : f32 to vector<34x192xf32>
    %500 = arith.mulf %496, %499 : vector<34x192xf32>
    %cst_173 = arith.constant 0.000000e+00 : f32
    %501 = vector.broadcast %cst_173 : f32 to vector<34x192xf32>
    %502 = arith.cmpf oge, %500, %501 : vector<34x192xf32>
    %cst_174 = arith.constant 1.000000e+00 : f32
    %cst_175 = arith.constant -1.000000e+00 : f32
    %503 = vector.broadcast %cst_174 : f32 to vector<34x192xf32>
    %504 = vector.broadcast %cst_175 : f32 to vector<34x192xf32>
    %505 = arith.select %502, %503, %504 : vector<34x192xi1>, vector<34x192xf32>
    %506 = math.absf %500 : vector<34x192xf32>
    %cst_176 = arith.constant 0.327591091 : f32
    %507 = vector.broadcast %cst_176 : f32 to vector<34x192xf32>
    %508 = arith.mulf %507, %506 : vector<34x192xf32>
    %cst_177 = arith.constant 1.000000e+00 : f32
    %509 = vector.broadcast %cst_177 : f32 to vector<34x192xf32>
    %510 = arith.addf %509, %508 : vector<34x192xf32>
    %cst_178 = arith.constant 1.000000e+00 : f32
    %511 = vector.broadcast %cst_178 : f32 to vector<34x192xf32>
    %512 = arith.divf %511, %510 : vector<34x192xf32>
    %cst_179 = arith.constant 1.06140542 : f32
    %513 = vector.broadcast %cst_179 : f32 to vector<34x192xf32>
    %514 = arith.mulf %513, %512 : vector<34x192xf32>
    %cst_180 = arith.constant -1.45315206 : f32
    %515 = vector.broadcast %cst_180 : f32 to vector<34x192xf32>
    %516 = arith.addf %514, %515 : vector<34x192xf32>
    %517 = arith.mulf %516, %512 : vector<34x192xf32>
    %cst_181 = arith.constant 1.42141378 : f32
    %518 = vector.broadcast %cst_181 : f32 to vector<34x192xf32>
    %519 = arith.addf %517, %518 : vector<34x192xf32>
    %520 = arith.mulf %519, %512 : vector<34x192xf32>
    %cst_182 = arith.constant -0.284496725 : f32
    %521 = vector.broadcast %cst_182 : f32 to vector<34x192xf32>
    %522 = arith.addf %520, %521 : vector<34x192xf32>
    %523 = arith.mulf %522, %512 : vector<34x192xf32>
    %cst_183 = arith.constant 0.254829586 : f32
    %524 = vector.broadcast %cst_183 : f32 to vector<34x192xf32>
    %525 = arith.addf %523, %524 : vector<34x192xf32>
    %526 = arith.mulf %525, %512 : vector<34x192xf32>
    %cst_184 = arith.constant 0.000000e+00 : f32
    %527 = vector.broadcast %cst_184 : f32 to vector<34x192xf32>
    %528 = arith.subf %527, %506 : vector<34x192xf32>
    %529 = arith.mulf %528, %506 : vector<34x192xf32>
    %530 = math.exp %529 : vector<34x192xf32>
    %531 = arith.mulf %526, %530 : vector<34x192xf32>
    %cst_185 = arith.constant 1.000000e+00 : f32
    %532 = vector.broadcast %cst_185 : f32 to vector<34x192xf32>
    %533 = arith.subf %532, %531 : vector<34x192xf32>
    %534 = arith.mulf %505, %533 : vector<34x192xf32>
    %cst_186 = arith.constant 1.000000e+00 : f32
    %535 = vector.broadcast %cst_186 : f32 to vector<34x192xf32>
    %536 = arith.addf %535, %534 : vector<34x192xf32>
    %537 = arith.mulf %498, %536 : vector<34x192xf32>
    %c296 = arith.constant 296 : index
    %c0_187 = arith.constant 0 : index
    %538 = vector.load %arg4[%c296, %c0_187] : memref<488x192xf32, #tpu.memory_space<vmem>>, vector<192x48xf32>
    %cst_188 = arith.constant dense<0.000000e+00> : vector<34x48xf32>
    %539 = tpu.matmul %537, %538, %cst_188 {dimension_numbers = #tpu.dot_dimension_numbers<[1], [0], [0], [1], [0, 0, 1, 1], [], []>} : vector<34x192xf32>, vector<192x48xf32>, vector<34x48xf32> -> vector<34x48xf32>
    %540 = arith.addf %469, %539 : vector<34x48xf32>
    %c26 = arith.constant 26 : index
    %c0_189 = arith.constant 0 : index
    %541 = vector.load %arg3[%c26, %c0_189] : memref<27x192xf32, #tpu.memory_space<vmem>>, vector<1x48xf32>
    %542 = vector.broadcast %541 : vector<1x48xf32> to vector<34x48xf32>
    %543 = arith.addf %540, %542 : vector<34x48xf32>
    %c0_190 = arith.constant 0 : index
    %c0_191 = arith.constant 0 : index
    %544 = vector.load %arg6[%c0_190, %c0_191] : memref<34x48xf32, #tpu.memory_space<vmem>>, vector<34x48xf32>
    tpu.vector_store %arg6[%c0_190, %c0_191], %543 {strides = array<i32>} : memref<34x48xf32, #tpu.memory_space<vmem>>, vector<34x48xf32>,
    %545 = vector.extract_strided_slice %543 {offsets = [1, 0], sizes = [16, 48], strides = [1, 1]} : vector<34x48xf32> to vector<16x48xf32>
    %546 = vector.extract_strided_slice %543 {offsets = [18, 0], sizes = [16, 48], strides = [1, 1]} : vector<34x48xf32> to vector<16x48xf32>
    %547 = tpu.concatenate %545, %546 in 0 : vector<16x48xf32>, vector<16x48xf32> -> vector<32x48xf32>
    %c104 = arith.constant 104 : index
    %c0_192 = arith.constant 0 : index
    %548 = vector.load %arg4[%c104, %c0_192] : memref<488x192xf32, #tpu.memory_space<vmem>>, vector<48x8xf32>
    %cst_193 = arith.constant dense<0.000000e+00> : vector<32x8xf32>
    %549 = tpu.matmul %547, %548, %cst_193 {dimension_numbers = #tpu.dot_dimension_numbers<[1], [0], [0], [1], [0, 0, 1, 1], [], []>} : vector<32x48xf32>, vector<48x8xf32>, vector<32x8xf32> -> vector<32x8xf32>
    %c17 = arith.constant 17 : index
    %c0_194 = arith.constant 0 : index
    %550 = vector.load %arg3[%c17, %c0_194] : memref<27x192xf32, #tpu.memory_space<vmem>>, vector<1x8xf32>
    %551 = vector.broadcast %550 : vector<1x8xf32> to vector<32x8xf32>
    %552 = arith.addf %549, %551 : vector<32x8xf32>
    %c18 = arith.constant 18 : index
    %c0_195 = arith.constant 0 : index
    %553 = vector.load %arg3[%c18, %c0_195] : memref<27x192xf32, #tpu.memory_space<vmem>>, vector<1x8xf32>
    %c19 = arith.constant 19 : index
    %c0_196 = arith.constant 0 : index
    %554 = vector.load %arg3[%c19, %c0_196] : memref<27x192xf32, #tpu.memory_space<vmem>>, vector<1x8xf32>
    %cst_197 = arith.constant dense<0.000000e+00> : vector<8xf32>
    %555 = vector.multi_reduction <add>, %552, %cst_197 [0] : vector<32x8xf32> to vector<8xf32>
    %556 = vector.shape_cast %555 : vector<8xf32> to vector<1x8xf32>
    %cst_198 = arith.constant 3.200000e+01 : f32
    %557 = vector.broadcast %cst_198 : f32 to vector<1x8xf32>
    %558 = arith.divf %556, %557 : vector<1x8xf32>
    %559 = vector.broadcast %558 : vector<1x8xf32> to vector<32x8xf32>
    %560 = arith.subf %552, %559 : vector<32x8xf32>
    %561 = arith.mulf %560, %560 : vector<32x8xf32>
    %cst_199 = arith.constant dense<0.000000e+00> : vector<8xf32>
    %562 = vector.multi_reduction <add>, %561, %cst_199 [0] : vector<32x8xf32> to vector<8xf32>
    %563 = vector.shape_cast %562 : vector<8xf32> to vector<1x8xf32>
    %cst_200 = arith.constant 3.200000e+01 : f32
    %564 = vector.broadcast %cst_200 : f32 to vector<1x8xf32>
    %565 = arith.divf %563, %564 : vector<1x8xf32>
    %cst_201 = arith.constant 9.99999997E-7 : f32
    %566 = vector.broadcast %cst_201 : f32 to vector<1x8xf32>
    %567 = arith.addf %565, %566 : vector<1x8xf32>
    %568 = math.rsqrt %567 : vector<1x8xf32>
    %569 = vector.broadcast %568 : vector<1x8xf32> to vector<32x8xf32>
    %570 = arith.mulf %560, %569 : vector<32x8xf32>
    %571 = vector.broadcast %553 : vector<1x8xf32> to vector<32x8xf32>
    %572 = arith.mulf %570, %571 : vector<32x8xf32>
    %573 = vector.broadcast %554 : vector<1x8xf32> to vector<32x8xf32>
    %574 = arith.addf %572, %573 : vector<32x8xf32>
    %cst_202 = arith.constant 0.000000e+00 : f32
    %575 = vector.broadcast %cst_202 : f32 to vector<32x8xf32>
    %576 = arith.maximumf %574, %575 : vector<32x8xf32>
    %577 = tpu.iota {dimensions = array<i32: 0>} : vector<128x32xi32>
    %578 = tpu.iota {dimensions = array<i32: 1>} : vector<128x32xi32>
    %c6_i32_203 = arith.constant 6 : i32
    %579 = vector.broadcast %c6_i32_203 : i32 to vector<128x32xi32>
    %580 = arith.shrsi %577, %579 : vector<128x32xi32>
    %c3_i32_204 = arith.constant 3 : i32
    %581 = vector.broadcast %c3_i32_204 : i32 to vector<128x32xi32>
    %582 = arith.shrsi %577, %581 : vector<128x32xi32>
    %c7_i32_205 = arith.constant 7 : i32
    %583 = vector.broadcast %c7_i32_205 : i32 to vector<128x32xi32>
    %584 = arith.andi %582, %583 : vector<128x32xi32>
    %c7_i32_206 = arith.constant 7 : i32
    %585 = vector.broadcast %c7_i32_206 : i32 to vector<128x32xi32>
    %586 = arith.andi %577, %585 : vector<128x32xi32>
    %c4_i32_207 = arith.constant 4 : i32
    %587 = vector.broadcast %c4_i32_207 : i32 to vector<128x32xi32>
    %588 = arith.shrsi %578, %587 : vector<128x32xi32>
    %c2_i32_208 = arith.constant 2 : i32
    %589 = vector.broadcast %c2_i32_208 : i32 to vector<128x32xi32>
    %590 = arith.shrsi %578, %589 : vector<128x32xi32>
    %c3_i32_209 = arith.constant 3 : i32
    %591 = vector.broadcast %c3_i32_209 : i32 to vector<128x32xi32>
    %592 = arith.andi %590, %591 : vector<128x32xi32>
    %c3_i32_210 = arith.constant 3 : i32
    %593 = vector.broadcast %c3_i32_210 : i32 to vector<128x32xi32>
    %594 = arith.andi %578, %593 : vector<128x32xi32>
    %595 = arith.cmpi eq, %588, %580 : vector<128x32xi32>
    %c1_i32_211 = arith.constant 1 : i32
    %596 = vector.broadcast %c1_i32_211 : i32 to vector<128x32xi32>
    %597 = arith.shrsi %584, %596 : vector<128x32xi32>
    %598 = arith.cmpi eq, %597, %592 : vector<128x32xi32>
    %599 = arith.andi %595, %598 : vector<128x32xi1>
    %c1_i32_212 = arith.constant 1 : i32
    %600 = vector.broadcast %c1_i32_212 : i32 to vector<128x32xi32>
    %601 = arith.shrsi %586, %600 : vector<128x32xi32>
    %602 = arith.cmpi eq, %601, %594 : vector<128x32xi32>
    %603 = arith.andi %599, %602 : vector<128x32xi1>
    %cst_213 = arith.constant 1.000000e+00 : f32
    %cst_214 = arith.constant 0.000000e+00 : f32
    %604 = vector.broadcast %cst_213 : f32 to vector<128x32xf32>
    %605 = vector.broadcast %cst_214 : f32 to vector<128x32xf32>
    %606 = arith.select %603, %604, %605 : vector<128x32xi1>, vector<128x32xf32>
    %cst_215 = arith.constant dense<0.000000e+00> : vector<128x8xf32>
    %607 = tpu.matmul %606, %576, %cst_215 {dimension_numbers = #tpu.dot_dimension_numbers<[1], [0], [0], [1], [0, 0, 1, 1], [], []>} : vector<128x32xf32>, vector<32x8xf32>, vector<128x8xf32> -> vector<128x8xf32>
    %c48 = arith.constant 48 : index
    %c0_216 = arith.constant 0 : index
    %608 = vector.load %arg4[%c48, %c0_216] : memref<488x192xf32, #tpu.memory_space<vmem>>, vector<32x8xf32>
    %cst_217 = arith.constant dense<0.000000e+00> : vector<128x8xf32>
    %609 = tpu.matmul %189, %608, %cst_217 {dimension_numbers = #tpu.dot_dimension_numbers<[1], [0], [0], [1], [0, 0, 1, 1], [], []>} : vector<128x32xf32>, vector<32x8xf32>, vector<128x8xf32> -> vector<128x8xf32>
    %c8 = arith.constant 8 : index
    %c0_218 = arith.constant 0 : index
    %610 = vector.load %arg3[%c8, %c0_218] : memref<27x192xf32, #tpu.memory_space<vmem>>, vector<1x8xf32>
    %c9 = arith.constant 9 : index
    %c0_219 = arith.constant 0 : index
    %611 = vector.load %arg3[%c9, %c0_219] : memref<27x192xf32, #tpu.memory_space<vmem>>, vector<1x8xf32>
    %cst_220 = arith.constant dense<0.000000e+00> : vector<8xf32>
    %612 = vector.multi_reduction <add>, %609, %cst_220 [0] : vector<128x8xf32> to vector<8xf32>
    %613 = vector.shape_cast %612 : vector<8xf32> to vector<1x8xf32>
    %cst_221 = arith.constant 1.280000e+02 : f32
    %614 = vector.broadcast %cst_221 : f32 to vector<1x8xf32>
    %615 = arith.divf %613, %614 : vector<1x8xf32>
    %616 = vector.broadcast %615 : vector<1x8xf32> to vector<128x8xf32>
    %617 = arith.subf %609, %616 : vector<128x8xf32>
    %618 = arith.mulf %617, %617 : vector<128x8xf32>
    %cst_222 = arith.constant dense<0.000000e+00> : vector<8xf32>
    %619 = vector.multi_reduction <add>, %618, %cst_222 [0] : vector<128x8xf32> to vector<8xf32>
    %620 = vector.shape_cast %619 : vector<8xf32> to vector<1x8xf32>
    %cst_223 = arith.constant 1.280000e+02 : f32
    %621 = vector.broadcast %cst_223 : f32 to vector<1x8xf32>
    %622 = arith.divf %620, %621 : vector<1x8xf32>
    %cst_224 = arith.constant 9.99999997E-7 : f32
    %623 = vector.broadcast %cst_224 : f32 to vector<1x8xf32>
    %624 = arith.addf %622, %623 : vector<1x8xf32>
    %625 = math.rsqrt %624 : vector<1x8xf32>
    %626 = vector.broadcast %625 : vector<1x8xf32> to vector<128x8xf32>
    %627 = arith.mulf %617, %626 : vector<128x8xf32>
    %628 = vector.broadcast %610 : vector<1x8xf32> to vector<128x8xf32>
    %629 = arith.mulf %627, %628 : vector<128x8xf32>
    %630 = vector.broadcast %611 : vector<1x8xf32> to vector<128x8xf32>
    %631 = arith.addf %629, %630 : vector<128x8xf32>
    %cst_225 = arith.constant 0.000000e+00 : f32
    %632 = vector.broadcast %cst_225 : f32 to vector<128x8xf32>
    %633 = arith.maximumf %631, %632 : vector<128x8xf32>
    %634 = arith.addf %633, %607 : vector<128x8xf32>
    %c80 = arith.constant 80 : index
    %c0_226 = arith.constant 0 : index
    %635 = vector.load %arg4[%c80, %c0_226] : memref<488x192xf32, #tpu.memory_space<vmem>>, vector<8x72xf32>
    %cst_227 = arith.constant dense<0.000000e+00> : vector<128x72xf32>
    %636 = tpu.matmul %634, %635, %cst_227 {dimension_numbers = #tpu.dot_dimension_numbers<[1], [0], [0], [1], [0, 0, 1, 1], [], []>} : vector<128x8xf32>, vector<8x72xf32>, vector<128x72xf32> -> vector<128x72xf32>
    %637 = vector.extract_strided_slice %636 {offsets = [0, 0], sizes = [128, 8], strides = [1, 1]} : vector<128x72xf32> to vector<128x8xf32>
    %c9_i32_228 = arith.constant 9 : i32
    %638 = tpu.dynamic_rotate %637 by %c9_i32_228 dim 0 : vector<128x8xf32>, i32 -> vector<128x8xf32>
    %c1_i32_229 = arith.constant 1 : i32
    %639 = vector.broadcast %c1_i32_229 : i32 to vector<128x8xi32>
    %640 = arith.cmpi sge, %4, %639 : vector<128x8xi32>
    %c1_i32_230 = arith.constant 1 : i32
    %641 = vector.broadcast %c1_i32_230 : i32 to vector<128x8xi32>
    %642 = arith.cmpi sge, %6, %641 : vector<128x8xi32>
    %643 = arith.andi %640, %642 : vector<128x8xi1>
    %cst_231 = arith.constant 0.000000e+00 : f32
    %644 = vector.broadcast %cst_231 : f32 to vector<128x8xf32>
    %645 = arith.select %643, %638, %644 : vector<128x8xi1>, vector<128x8xf32>
    %646 = vector.extract_strided_slice %636 {offsets = [0, 8], sizes = [128, 8], strides = [1, 1]} : vector<128x72xf32> to vector<128x8xf32>
    %c8_i32_232 = arith.constant 8 : i32
    %647 = tpu.dynamic_rotate %646 by %c8_i32_232 dim 0 : vector<128x8xf32>, i32 -> vector<128x8xf32>
    %c1_i32_233 = arith.constant 1 : i32
    %648 = vector.broadcast %c1_i32_233 : i32 to vector<128x8xi32>
    %649 = arith.cmpi sge, %4, %648 : vector<128x8xi32>
    %cst_234 = arith.constant 0.000000e+00 : f32
    %650 = vector.broadcast %cst_234 : f32 to vector<128x8xf32>
    %651 = arith.select %649, %647, %650 : vector<128x8xi1>, vector<128x8xf32>
    %652 = arith.addf %645, %651 : vector<128x8xf32>
    %653 = vector.extract_strided_slice %636 {offsets = [0, 16], sizes = [128, 8], strides = [1, 1]} : vector<128x72xf32> to vector<128x8xf32>
    %c7_i32_235 = arith.constant 7 : i32
    %654 = tpu.dynamic_rotate %653 by %c7_i32_235 dim 0 : vector<128x8xf32>, i32 -> vector<128x8xf32>
    %c1_i32_236 = arith.constant 1 : i32
    %655 = vector.broadcast %c1_i32_236 : i32 to vector<128x8xi32>
    %656 = arith.cmpi sge, %4, %655 : vector<128x8xi32>
    %c7_i32_237 = arith.constant 7 : i32
    %657 = vector.broadcast %c7_i32_237 : i32 to vector<128x8xi32>
    %658 = arith.cmpi slt, %6, %657 : vector<128x8xi32>
    %659 = arith.andi %656, %658 : vector<128x8xi1>
    %cst_238 = arith.constant 0.000000e+00 : f32
    %660 = vector.broadcast %cst_238 : f32 to vector<128x8xf32>
    %661 = arith.select %659, %654, %660 : vector<128x8xi1>, vector<128x8xf32>
    %662 = arith.addf %652, %661 : vector<128x8xf32>
    %663 = vector.extract_strided_slice %636 {offsets = [0, 24], sizes = [128, 8], strides = [1, 1]} : vector<128x72xf32> to vector<128x8xf32>
    %c1_i32_239 = arith.constant 1 : i32
    %664 = tpu.dynamic_rotate %663 by %c1_i32_239 dim 0 : vector<128x8xf32>, i32 -> vector<128x8xf32>
    %c1_i32_240 = arith.constant 1 : i32
    %665 = vector.broadcast %c1_i32_240 : i32 to vector<128x8xi32>
    %666 = arith.cmpi sge, %6, %665 : vector<128x8xi32>
    %cst_241 = arith.constant 0.000000e+00 : f32
    %667 = vector.broadcast %cst_241 : f32 to vector<128x8xf32>
    %668 = arith.select %666, %664, %667 : vector<128x8xi1>, vector<128x8xf32>
    %669 = arith.addf %662, %668 : vector<128x8xf32>
    %670 = vector.extract_strided_slice %636 {offsets = [0, 32], sizes = [128, 8], strides = [1, 1]} : vector<128x72xf32> to vector<128x8xf32>
    %671 = arith.addf %669, %670 : vector<128x8xf32>
    %672 = vector.extract_strided_slice %636 {offsets = [0, 40], sizes = [128, 8], strides = [1, 1]} : vector<128x72xf32> to vector<128x8xf32>
    %c127_i32_242 = arith.constant 127 : i32
    %673 = tpu.dynamic_rotate %672 by %c127_i32_242 dim 0 : vector<128x8xf32>, i32 -> vector<128x8xf32>
    %c7_i32_243 = arith.constant 7 : i32
    %674 = vector.broadcast %c7_i32_243 : i32 to vector<128x8xi32>
    %675 = arith.cmpi slt, %6, %674 : vector<128x8xi32>
    %cst_244 = arith.constant 0.000000e+00 : f32
    %676 = vector.broadcast %cst_244 : f32 to vector<128x8xf32>
    %677 = arith.select %675, %673, %676 : vector<128x8xi1>, vector<128x8xf32>
    %678 = arith.addf %671, %677 : vector<128x8xf32>
    %679 = vector.extract_strided_slice %636 {offsets = [0, 48], sizes = [128, 8], strides = [1, 1]} : vector<128x72xf32> to vector<128x8xf32>
    %c121_i32_245 = arith.constant 121 : i32
    %680 = tpu.dynamic_rotate %679 by %c121_i32_245 dim 0 : vector<128x8xf32>, i32 -> vector<128x8xf32>
    %c7_i32_246 = arith.constant 7 : i32
    %681 = vector.broadcast %c7_i32_246 : i32 to vector<128x8xi32>
    %682 = arith.cmpi slt, %4, %681 : vector<128x8xi32>
    %c1_i32_247 = arith.constant 1 : i32
    %683 = vector.broadcast %c1_i32_247 : i32 to vector<128x8xi32>
    %684 = arith.cmpi sge, %6, %683 : vector<128x8xi32>
    %685 = arith.andi %682, %684 : vector<128x8xi1>
    %cst_248 = arith.constant 0.000000e+00 : f32
    %686 = vector.broadcast %cst_248 : f32 to vector<128x8xf32>
    %687 = arith.select %685, %680, %686 : vector<128x8xi1>, vector<128x8xf32>
    %688 = arith.addf %678, %687 : vector<128x8xf32>
    %689 = vector.extract_strided_slice %636 {offsets = [0, 56], sizes = [128, 8], strides = [1, 1]} : vector<128x72xf32> to vector<128x8xf32>
    %c120_i32_249 = arith.constant 120 : i32
    %690 = tpu.dynamic_rotate %689 by %c120_i32_249 dim 0 : vector<128x8xf32>, i32 -> vector<128x8xf32>
    %c7_i32_250 = arith.constant 7 : i32
    %691 = vector.broadcast %c7_i32_250 : i32 to vector<128x8xi32>
    %692 = arith.cmpi slt, %4, %691 : vector<128x8xi32>
    %cst_251 = arith.constant 0.000000e+00 : f32
    %693 = vector.broadcast %cst_251 : f32 to vector<128x8xf32>
    %694 = arith.select %692, %690, %693 : vector<128x8xi1>, vector<128x8xf32>
    %695 = arith.addf %688, %694 : vector<128x8xf32>
    %696 = vector.extract_strided_slice %636 {offsets = [0, 64], sizes = [128, 8], strides = [1, 1]} : vector<128x72xf32> to vector<128x8xf32>
    %c119_i32_252 = arith.constant 119 : i32
    %697 = tpu.dynamic_rotate %696 by %c119_i32_252 dim 0 : vector<128x8xf32>, i32 -> vector<128x8xf32>
    %c7_i32_253 = arith.constant 7 : i32
    %698 = vector.broadcast %c7_i32_253 : i32 to vector<128x8xi32>
    %699 = arith.cmpi slt, %4, %698 : vector<128x8xi32>
    %c7_i32_254 = arith.constant 7 : i32
    %700 = vector.broadcast %c7_i32_254 : i32 to vector<128x8xi32>
    %701 = arith.cmpi slt, %6, %700 : vector<128x8xi32>
    %702 = arith.andi %699, %701 : vector<128x8xi1>
    %cst_255 = arith.constant 0.000000e+00 : f32
    %703 = vector.broadcast %cst_255 : f32 to vector<128x8xf32>
    %704 = arith.select %702, %697, %703 : vector<128x8xi1>, vector<128x8xf32>
    %705 = arith.addf %695, %704 : vector<128x8xf32>
    %c10 = arith.constant 10 : index
    %c0_256 = arith.constant 0 : index
    %706 = vector.load %arg3[%c10, %c0_256] : memref<27x192xf32, #tpu.memory_space<vmem>>, vector<1x8xf32>
    %c11 = arith.constant 11 : index
    %c0_257 = arith.constant 0 : index
    %707 = vector.load %arg3[%c11, %c0_257] : memref<27x192xf32, #tpu.memory_space<vmem>>, vector<1x8xf32>
    %cst_258 = arith.constant dense<0.000000e+00> : vector<8xf32>
    %708 = vector.multi_reduction <add>, %705, %cst_258 [0] : vector<128x8xf32> to vector<8xf32>
    %709 = vector.shape_cast %708 : vector<8xf32> to vector<1x8xf32>
    %cst_259 = arith.constant 1.280000e+02 : f32
    %710 = vector.broadcast %cst_259 : f32 to vector<1x8xf32>
    %711 = arith.divf %709, %710 : vector<1x8xf32>
    %712 = vector.broadcast %711 : vector<1x8xf32> to vector<128x8xf32>
    %713 = arith.subf %705, %712 : vector<128x8xf32>
    %714 = arith.mulf %713, %713 : vector<128x8xf32>
    %cst_260 = arith.constant dense<0.000000e+00> : vector<8xf32>
    %715 = vector.multi_reduction <add>, %714, %cst_260 [0] : vector<128x8xf32> to vector<8xf32>
    %716 = vector.shape_cast %715 : vector<8xf32> to vector<1x8xf32>
    %cst_261 = arith.constant 1.280000e+02 : f32
    %717 = vector.broadcast %cst_261 : f32 to vector<1x8xf32>
    %718 = arith.divf %716, %717 : vector<1x8xf32>
    %cst_262 = arith.constant 9.99999997E-7 : f32
    %719 = vector.broadcast %cst_262 : f32 to vector<1x8xf32>
    %720 = arith.addf %718, %719 : vector<1x8xf32>
    %721 = math.rsqrt %720 : vector<1x8xf32>
    %722 = vector.broadcast %721 : vector<1x8xf32> to vector<128x8xf32>
    %723 = arith.mulf %713, %722 : vector<128x8xf32>
    %724 = vector.broadcast %706 : vector<1x8xf32> to vector<128x8xf32>
    %725 = arith.mulf %723, %724 : vector<128x8xf32>
    %726 = vector.broadcast %707 : vector<1x8xf32> to vector<128x8xf32>
    %727 = arith.addf %725, %726 : vector<128x8xf32>
    %cst_263 = arith.constant 0.000000e+00 : f32
    %728 = vector.broadcast %cst_263 : f32 to vector<128x8xf32>
    %729 = arith.maximumf %727, %728 : vector<128x8xf32>
    %c88 = arith.constant 88 : index
    %c0_264 = arith.constant 0 : index
    %730 = vector.load %arg4[%c88, %c0_264] : memref<488x192xf32, #tpu.memory_space<vmem>>, vector<8x32xf32>
    %cst_265 = arith.constant dense<0.000000e+00> : vector<128x32xf32>
    %731 = tpu.matmul %729, %730, %cst_265 {dimension_numbers = #tpu.dot_dimension_numbers<[1], [0], [0], [1], [0, 0, 1, 1], [], []>} : vector<128x8xf32>, vector<8x32xf32>, vector<128x32xf32> -> vector<128x32xf32>
    %c12 = arith.constant 12 : index
    %c0_266 = arith.constant 0 : index
    %732 = vector.load %arg3[%c12, %c0_266] : memref<27x192xf32, #tpu.memory_space<vmem>>, vector<1x32xf32>
    %c13 = arith.constant 13 : index
    %c0_267 = arith.constant 0 : index
    %733 = vector.load %arg3[%c13, %c0_267] : memref<27x192xf32, #tpu.memory_space<vmem>>, vector<1x32xf32>
    %cst_268 = arith.constant dense<0.000000e+00> : vector<32xf32>
    %734 = vector.multi_reduction <add>, %731, %cst_268 [0] : vector<128x32xf32> to vector<32xf32>
    %735 = vector.shape_cast %734 : vector<32xf32> to vector<1x32xf32>
    %cst_269 = arith.constant 1.280000e+02 : f32
    %736 = vector.broadcast %cst_269 : f32 to vector<1x32xf32>
    %737 = arith.divf %735, %736 : vector<1x32xf32>
    %738 = vector.broadcast %737 : vector<1x32xf32> to vector<128x32xf32>
    %739 = arith.subf %731, %738 : vector<128x32xf32>
    %740 = arith.mulf %739, %739 : vector<128x32xf32>
    %cst_270 = arith.constant dense<0.000000e+00> : vector<32xf32>
    %741 = vector.multi_reduction <add>, %740, %cst_270 [0] : vector<128x32xf32> to vector<32xf32>
    %742 = vector.shape_cast %741 : vector<32xf32> to vector<1x32xf32>
    %cst_271 = arith.constant 1.280000e+02 : f32
    %743 = vector.broadcast %cst_271 : f32 to vector<1x32xf32>
    %744 = arith.divf %742, %743 : vector<1x32xf32>
    %cst_272 = arith.constant 9.99999997E-7 : f32
    %745 = vector.broadcast %cst_272 : f32 to vector<1x32xf32>
    %746 = arith.addf %744, %745 : vector<1x32xf32>
    %747 = math.rsqrt %746 : vector<1x32xf32>
    %748 = vector.broadcast %747 : vector<1x32xf32> to vector<128x32xf32>
    %749 = arith.mulf %739, %748 : vector<128x32xf32>
    %750 = vector.broadcast %732 : vector<1x32xf32> to vector<128x32xf32>
    %751 = arith.mulf %749, %750 : vector<128x32xf32>
    %752 = vector.broadcast %733 : vector<1x32xf32> to vector<128x32xf32>
    %753 = arith.addf %751, %752 : vector<128x32xf32>
    %754 = arith.addf %753, %189 : vector<128x32xf32>
    %cst_273 = arith.constant 0.000000e+00 : f32
    %755 = vector.broadcast %cst_273 : f32 to vector<128x32xf32>
    %756 = arith.maximumf %754, %755 : vector<128x32xf32>
    %757 = tpu.iota {dimensions = array<i32: 0>} : vector<32x32xi32>
    %758 = tpu.iota {dimensions = array<i32: 1>} : vector<32x32xi32>
    %759 = arith.cmpi eq, %757, %758 : vector<32x32xi32>
    %cst_274 = arith.constant 1.000000e+00 : f32
    %cst_275 = arith.constant 0.000000e+00 : f32
    %760 = vector.broadcast %cst_274 : f32 to vector<32x32xf32>
    %761 = vector.broadcast %cst_275 : f32 to vector<32x32xf32>
    %762 = arith.select %759, %760, %761 : vector<32x32xi1>, vector<32x32xf32>
    %763 = vector.extract_strided_slice %756 {offsets = [0, 0], sizes = [64, 32], strides = [1, 1]} : vector<128x32xf32> to vector<64x32xf32>
    %cst_276 = arith.constant dense<0.000000e+00> : vector<32x64xf32>
    %764 = tpu.matmul %762, %763, %cst_276 {dimension_numbers = #tpu.dot_dimension_numbers<[1], [1], [0], [0], [0, 0, 1, 0], [], []>} : vector<32x32xf32>, vector<64x32xf32>, vector<32x64xf32> -> vector<32x64xf32>
    %765 = vector.extract_strided_slice %756 {offsets = [64, 0], sizes = [64, 32], strides = [1, 1]} : vector<128x32xf32> to vector<64x32xf32>
    %cst_277 = arith.constant dense<0.000000e+00> : vector<32x64xf32>
    %766 = tpu.matmul %762, %765, %cst_277 {dimension_numbers = #tpu.dot_dimension_numbers<[1], [1], [0], [0], [0, 0, 1, 0], [], []>} : vector<32x32xf32>, vector<64x32xf32>, vector<32x64xf32> -> vector<32x64xf32>
    %767 = tpu.concatenate %764, %766 in 0 : vector<32x64xf32>, vector<32x64xf32> -> vector<64x64xf32>
    %c0_278 = arith.constant 0 : index
    %c0_279 = arith.constant 0 : index
    %768 = vector.load %arg5[%c0_278, %c0_279] : memref<64x64xf32, #tpu.memory_space<vmem>>, vector<64x64xf32>
    tpu.vector_store %arg5[%c0_278, %c0_279], %767 {strides = array<i32>} : memref<64x64xf32, #tpu.memory_space<vmem>>, vector<64x64xf32>,
    return
  }
  func.func @transform_0(%arg0: i32) -> (i32, i32) {
    %c0_i32 = arith.constant 0 : i32
    %c0_i32_0 = arith.constant 0 : i32
    %c0_i32_1 = arith.constant 0 : i32
    return %c0_i32, %c0_i32_0 : i32, i32
  }
  func.func @transform_1(%arg0: i32) -> (i32, i32) {
    %c0_i32 = arith.constant 0 : i32
    %c0_i32_0 = arith.constant 0 : i32
    %c0_i32_1 = arith.constant 0 : i32
    return %c0_i32, %c0_i32_0 : i32, i32
  }
  func.func @transform_2(%arg0: i32) -> (i32, i32) {
    %c0_i32 = arith.constant 0 : i32
    %c0_i32_0 = arith.constant 0 : i32
    %c0_i32_1 = arith.constant 0 : i32
    return %c0_i32, %c0_i32_0 : i32, i32
  }
  func.func @transform_3(%arg0: i32) -> (i32, i32) {
    %c0_i32 = arith.constant 0 : i32
    %c0_i32_0 = arith.constant 0 : i32
    %c0_i32_1 = arith.constant 0 : i32
    return %c0_i32, %c0_i32_0 : i32, i32
  }
  func.func @transform_4(%arg0: i32) -> (i32, i32) {
    %c0_i32 = arith.constant 0 : i32
    %c0_i32_0 = arith.constant 0 : i32
    %c0_i32_1 = arith.constant 0 : i32
    return %c0_i32, %c0_i32_0 : i32, i32
  }
  func.func @transform_5(%arg0: i32) -> (i32, i32) {
    %c0_i32 = arith.constant 0 : i32
    %c0_i32_0 = arith.constant 0 : i32
    %c0_i32_1 = arith.constant 0 : i32
    return %c0_i32, %c0_i32_0 : i32, i32
  }
}

</mosaic_0001>

<llo_original>
// kernel: conv_trans_block_forward.1
$region0: #{conv_trans_block_forward.1}
  #allocation0 [shape = 'u32[]', space=smem, size = 0x4, offset = 0x4, fixed_abs, tag = 'smem constant byte address 0x4 - core index']
  #allocation1 [shape = 'u32[144,128]{1,0:T(1,128)}', space=vmem, size = 0x12000, scoped, tag = 'internal scratch']
  %s0 = inlined_call_operand.vmem [shape: f32[32,64], index: 0, kind: input, shape index: {}]
  %s1 = inlined_call_operand.vmem [shape: f32[34,48], index: 1, kind: input, shape index: {}]
  %s2 = inlined_call_operand.vmem [shape: f32[27,192], index: 2, kind: input, shape index: {}]
  %s3 = inlined_call_operand.vmem [shape: f32[488,192], index: 3, kind: input, shape index: {}]
  %s4 = inlined_call_operand.vmem [shape: f32[64,64], index: 4, kind: output, shape index: {0}]
  %s5 = inlined_call_operand.vmem [shape: f32[34,48], index: 5, kind: output, shape index: {1}]
  %6 = xla_tuple %s4, %s5
  %s7 = sld [smem:[#allocation0]]
  $region34: #{conv_trans_block_forward.1} parent=0
    _
  %s9 = ssub.s32 1, %s7
  %s10 = scalar_select 0, %s9, %s7
  // Predicated region
  $region2: #{conv_trans_block_forward.1} parent=0 // pred_check
    _
  $region3: #{conv_trans_block_forward.1} parent=0 // pred_check_branch
    %12 = sbr.rel (0) target = $region5
  $region4: #{conv_trans_block_forward.1} parent=0 // pred_region
    _
  $region5: #{conv_trans_block_forward.1} parent=0 // pred_fallthru
    _
  // Predicated region
  $region6: #{conv_trans_block_forward.1} parent=0 // pred_check
    _
  $region7: #{conv_trans_block_forward.1} parent=0 // pred_check_branch
    %14 = sbr.rel (0) target = $region9
  $region8: #{conv_trans_block_forward.1} parent=0 // pred_region
    _
  $region9: #{conv_trans_block_forward.1} parent=0 // pred_fallthru
    _
  // Predicated region
  $region10: #{conv_trans_block_forward.1} parent=0 // pred_check
    _
  $region11: #{conv_trans_block_forward.1} parent=0 // pred_check_branch
    %16 = sbr.rel (0) target = $region13
  $region12: #{conv_trans_block_forward.1} parent=0 // pred_region
    _
  $region13: #{conv_trans_block_forward.1} parent=0 // pred_fallthru
    _
  // Predicated region
  $region14: #{conv_trans_block_forward.1} parent=0 // pred_check
    _
  $region15: #{conv_trans_block_forward.1} parent=0 // pred_check_branch
    %18 = sbr.rel (0) target = $region17
  $region16: #{conv_trans_block_forward.1} parent=0 // pred_region
    _
  $region17: #{conv_trans_block_forward.1} parent=0 // pred_fallthru
    _
  %v19 = vlaneseq
  %v20 = vshrl.u32 %v19, 7
  %v21 = vadd.s32 %v20, 8
  %v22 = vadd.s32 %v20, 16
  %v23 = vadd.s32 %v20, 24
  %v24 = vadd.s32 %v20, 32
  %v25 = vadd.s32 %v20, 40
  %v26 = vadd.s32 %v20, 48
  %v27 = vadd.s32 %v20, 56
  %v28 = vadd.s32 %v20, 64
  %v29 = vadd.s32 %v20, 72
  %v30 = vadd.s32 %v20, 80
  %v31 = vadd.s32 %v20, 88
  %v32 = vadd.s32 %v20, 96
  %v33 = vadd.s32 %v20, 104
  %v34 = vadd.s32 %v20, 112
  %v35 = vadd.s32 %v20, 120
  %v36 = vshra.s32 %v20, 3
  %v37 = vshra.s32 %v21, 3
  %v38 = vshra.s32 %v22, 3
  %v39 = vshra.s32 %v23, 3
  %v40 = vshra.s32 %v24, 3
  %v41 = vshra.s32 %v25, 3
  %v42 = vshra.s32 %v26, 3
  %v43 = vshra.s32 %v27, 3
  %v44 = vshra.s32 %v28, 3
  %v45 = vshra.s32 %v29, 3
  %v46 = vshra.s32 %v30, 3
  %v47 = vshra.s32 %v31, 3
  %v48 = vshra.s32 %v32, 3
  %v49 = vshra.s32 %v33, 3
  %v50 = vshra.s32 %v34, 3
  %v51 = vshra.s32 %v35, 3
  %v52 = vand.u32 %v36, 7
  %v53 = vand.u32 %v37, 7
  %v54 = vand.u32 %v38, 7
  %v55 = vand.u32 %v39, 7
  %v56 = vand.u32 %v40, 7
  %v57 = vand.u32 %v41, 7
  %v58 = vand.u32 %v42, 7
  %v59 = vand.u32 %v43, 7
  %v60 = vand.u32 %v44, 7
  %v61 = vand.u32 %v45, 7
  %v62 = vand.u32 %v46, 7
  %v63 = vand.u32 %v47, 7
  %v64 = vand.u32 %v48, 7
  %v65 = vand.u32 %v49, 7
  %v66 = vand.u32 %v50, 7
  %v67 = vand.u32 %v51, 7
  %v68 = vand.u32 %v20, 7
  %v69 = vand.u32 %v21, 7
  %v70 = vand.u32 %v22, 7
  %v71 = vand.u32 %v23, 7
  %v72 = vand.u32 %v24, 7
  %v73 = vand.u32 %v25, 7
  %v74 = vand.u32 %v26, 7
  %v75 = vand.u32 %v27, 7
  %v76 = vand.u32 %v28, 7
  %v77 = vand.u32 %v29, 7
  %v78 = vand.u32 %v30, 7
  %v79 = vand.u32 %v31, 7
  %v80 = vand.u32 %v32, 7
  %v81 = vand.u32 %v33, 7
  %v82 = vand.u32 %v34, 7
  %v83 = vand.u32 %v35, 7
  %v84 = vlaneseq
  %v85 = vand.u32 %v84, 127
  %vm86 = vcmp.eq.s32.totalorder %v20, %v85
  %vm87 = vcmp.eq.s32.totalorder %v21, %v85
  %vm88 = vcmp.eq.s32.totalorder %v22, %v85
  %vm89 = vcmp.eq.s32.totalorder %v23, %v85
  %vm90 = vcmp.eq.s32.totalorder %v24, %v85
  %vm91 = vcmp.eq.s32.totalorder %v25, %v85
  %vm92 = vcmp.eq.s32.totalorder %v26, %v85
  %vm93 = vcmp.eq.s32.totalorder %v27, %v85
  %v94 = vsel %vm86, 1.0, 0.0
  %v95 = vsel %vm87, 1.0, 0.0
  %v96 = vsel %vm88, 1.0, 0.0
  %v97 = vsel %vm89, 1.0, 0.0
  %v98 = vsel %vm90, 1.0, 0.0
  %v99 = vsel %vm91, 1.0, 0.0
  %v100 = vsel %vm92, 1.0, 0.0
  %v101 = vsel %vm93, 1.0, 0.0
  %v102 = vld [vmem:[%s0] sm:$0xff]
  %v103 = vld [vmem:[%s0 + $0x8] sm:$0xff]
  %vm104 = vcmask 523264
  %v106 = vsel %vm104, %v94, 0
  %v109 = vsel %vm104, %v95, 0
  %v112 = vsel %vm104, %v96, 0
  %v115 = vsel %vm104, %v97, 0
  %v118 = vsel %vm104, %v98, 0
  %v121 = vsel %vm104, %v99, 0
  %v124 = vsel %vm104, %v100, 0
  %v127 = vsel %vm104, %v101, 0
  %v130 = vsel %vm104, %v102, 0
  %v133 = vsel %vm104, %v103, 0
  %135 = vmatprep.subr.mxu0 0.0
  %136 = vmatpush1.xpose.msra.mxu0 %v130
  %137 = vmatprep.subr.mxu0 0.0
  %138 = vmatpush1.xpose.msra.mxu0 %v133
  %139 = vmatprep.subr.mxu0 0.0
  %140 = vmatpush1.xpose.msra.mxu0 0.0
  %141 = vmatprep.subr.mxu0 0.0
  %142 = vmatpush1.xpose.msra.mxu0 0.0
  %143 = vmatprep.subr.mxu0 0.0
  %144 = vmatpush1.xpose.msra.mxu0 0.0
  %145 = vmatprep.subr.mxu0 0.0
  %146 = vmatpush1.xpose.msra.mxu0 0.0
  %147 = vmatprep.subr.mxu0 0.0
  %148 = vmatpush1.xpose.msra.mxu0 0.0
  %149 = vmatprep.subr.mxu0 0.0
  %150 = vmatpush1.xpose.msra.mxu0 0.0
  %151 = vmatprep.subr.mxu0 0.0
  %152 = vmatpush1.xpose.msra.mxu0 0.0
  %153 = vmatprep.subr.mxu0 0.0
  %154 = vmatpush1.xpose.msra.mxu0 0.0
  %155 = vmatprep.subr.mxu0 0.0
  %156 = vmatpush1.xpose.msra.mxu0 0.0
  %157 = vmatprep.subr.mxu0 0.0
  %158 = vmatpush1.xpose.msra.mxu0 0.0
  %159 = vmatprep.subr.mxu0 0.0
  %160 = vmatpush1.xpose.msra.mxu0 0.0
  %161 = vmatprep.subr.mxu0 0.0
  %162 = vmatpush1.xpose.msra.mxu0 0.0
  %163 = vmatprep.subr.mxu0 0.0
  %164 = vmatpush1.xpose.msra.mxu0 0.0
  %165 = vmatprep.subr.mxu0 0.0
  %166 = vmatpush1.xpose.msra.mxu0 0.0
  %167 = vmatprep.subr.mxu0 0.0
  %168 = vmatpush1.xpose.msra.mxu0 0.0
  %169 = vmatprep.subr.mxu0 0.0
  %170 = vmatpush1.xpose.msra.mxu0 0.0
  %171 = vmatprep.subr.mxu0 0.0
  %172 = vmatpush1.xpose.msra.mxu0 0.0
  %173 = vmatprep.subr.mxu0 0.0
  %174 = vmatpush1.xpose.msra.mxu0 0.0
  %175 = vmatprep.subr.mxu0 0.0
  %176 = vmatpush1.xpose.msra.mxu0 0.0
  %177 = vmatprep.subr.mxu0 0.0
  %178 = vmatpush1.xpose.msra.mxu0 0.0
  %179 = vmatprep.subr.mxu0 0.0
  %180 = vmatpush1.xpose.msra.mxu0 0.0
  %181 = vmatprep.subr.mxu0 0.0
  %182 = vmatpush1.xpose.msra.mxu0 0.0
  %183 = vmatprep.subr.mxu0 0.0
  %184 = vmatpush1.xpose.msra.mxu0 0.0
  %185 = vmatprep.subr.mxu0 0.0
  %186 = vmatpush1.xpose.msra.mxu0 0.0
  %187 = vmatprep.subr.mxu0 0.0
  %188 = vmatpush1.xpose.msra.mxu0 0.0
  %189 = vmatprep.subr.mxu0 0.0
  %190 = vmatpush1.xpose.msra.mxu0 0.0
  %191 = vmatprep.subr.mxu0 0.0
  %192 = vmatpush1.xpose.msra.mxu0 0.0
  %193 = vmatprep.subr.mxu0 0.0
  %194 = vmatpush1.xpose.msra.mxu0 0.0
  %195 = vmatprep.subr.mxu0 0.0
  %196 = vmatpush1.xpose.msra.mxu0 0.0
  %197 = vmatprep.subr.mxu0 0.0
  %198 = vmatpush1.xpose.msra.mxu0 0.0
  %199 = vmatprep.mubr.f32.mxu0 0.0
  %200 = vmatmul.mubr.f32.gmra.mrb[0].mxu0 %v106
  %v201 = vpop.f32.mrb[0].mxu0
  %v202 = vadd.f32 0.0, %v201
  %v203 = vpop.f32.mrb[0].mxu0
  %204 = vmatprep.mubr.f32.mxu0 0.0
  %205 = vmatmul.mubr.f32.gmra.mrb[0].mxu0 %v109
  %v206 = vpop.f32.mrb[0].mxu0
  %v207 = vadd.f32 0.0, %v206
  %v208 = vpop.f32.mrb[0].mxu0
  %209 = vmatprep.mubr.f32.mxu0 0.0
  %210 = vmatmul.mubr.f32.gmra.mrb[0].mxu0 %v112
  %v211 = vpop.f32.mrb[0].mxu0
  %v212 = vadd.f32 0.0, %v211
  %v213 = vpop.f32.mrb[0].mxu0
  %214 = vmatprep.mubr.f32.mxu0 0.0
  %215 = vmatmul.mubr.f32.gmra.mrb[0].mxu0 %v115
  %v216 = vpop.f32.mrb[0].mxu0
  %v217 = vadd.f32 0.0, %v216
  %v218 = vpop.f32.mrb[0].mxu0
  %219 = vmatprep.mubr.f32.mxu0 0.0
  %220 = vmatmul.mubr.f32.gmra.mrb[0].mxu0 %v118
  %v221 = vpop.f32.mrb[0].mxu0
  %v222 = vadd.f32 0.0, %v221
  %v223 = vpop.f32.mrb[0].mxu0
  %224 = vmatprep.mubr.f32.mxu0 0.0
  %225 = vmatmul.mubr.f32.gmra.mrb[0].mxu0 %v121
  %v226 = vpop.f32.mrb[0].mxu0
  %v227 = vadd.f32 0.0, %v226
  %v228 = vpop.f32.mrb[0].mxu0
  %229 = vmatprep.mubr.f32.mxu0 0.0
  %230 = vmatmul.mubr.f32.gmra.mrb[0].mxu0 %v124
  %v231 = vpop.f32.mrb[0].mxu0
  %v232 = vadd.f32 0.0, %v231
  %v233 = vpop.f32.mrb[0].mxu0
  %234 = vmatprep.mubr.f32.mxu0 0.0
  %235 = vmatmul.mubr.f32.gmra.mrb[0].mxu0 %v127
  %v236 = vpop.f32.mrb[0].mxu0
  %v237 = vadd.f32 0.0, %v236
  %v238 = vpop.f32.mrb[0].mxu0
  %239 = vdwg.mxu0
  %v240 = vld [vmem:[%s0 + $0x10] sm:$0xff]
  %v241 = vld [vmem:[%s0 + $0x18] sm:$0xff]
  %v243 = vsel %vm104, %v240, 0
  %v246 = vsel %vm104, %v241, 0
  %248 = vmatprep.subr.mxu0 0.0
  %249 = vmatpush1.xpose.msra.mxu0 %v243
  %250 = vmatprep.subr.mxu0 0.0
  %251 = vmatpush1.xpose.msra.mxu0 %v246
  %252 = vmatprep.subr.mxu0 0.0
  %253 = vmatpush1.xpose.msra.mxu0 0.0
  %254 = vmatprep.subr.mxu0 0.0
  %255 = vmatpush1.xpose.msra.mxu0 0.0
  %256 = vmatprep.subr.mxu0 0.0
  %257 = vmatpush1.xpose.msra.mxu0 0.0
  %258 = vmatprep.subr.mxu0 0.0
  %259 = vmatpush1.xpose.msra.mxu0 0.0
  %260 = vmatprep.subr.mxu0 0.0
  %261 = vmatpush1.xpose.msra.mxu0 0.0
  %262 = vmatprep.subr.mxu0 0.0
  %263 = vmatpush1.xpose.msra.mxu0 0.0
  %264 = vmatprep.subr.mxu0 0.0
  %265 = vmatpush1.xpose.msra.mxu0 0.0
  %266 = vmatprep.subr.mxu0 0.0
  %267 = vmatpush1.xpose.msra.mxu0 0.0
  %268 = vmatprep.subr.mxu0 0.0
  %269 = vmatpush1.xpose.msra.mxu0 0.0
  %270 = vmatprep.subr.mxu0 0.0
  %271 = vmatpush1.xpose.msra.mxu0 0.0
  %272 = vmatprep.subr.mxu0 0.0
  %273 = vmatpush1.xpose.msra.mxu0 0.0
  %274 = vmatprep.subr.mxu0 0.0
  %275 = vmatpush1.xpose.msra.mxu0 0.0
  %276 = vmatprep.subr.mxu0 0.0
  %277 = vmatpush1.xpose.msra.mxu0 0.0
  %278 = vmatprep.subr.mxu0 0.0
  %279 = vmatpush1.xpose.msra.mxu0 0.0
  %280 = vmatprep.subr.mxu0 0.0
  %281 = vmatpush1.xpose.msra.mxu0 0.0
  %282 = vmatprep.subr.mxu0 0.0
  %283 = vmatpush1.xpose.msra.mxu0 0.0
  %284 = vmatprep.subr.mxu0 0.0
  %285 = vmatpush1.xpose.msra.mxu0 0.0
  %286 = vmatprep.subr.mxu0 0.0
  %287 = vmatpush1.xpose.msra.mxu0 0.0
  %288 = vmatprep.subr.mxu0 0.0
  %289 = vmatpush1.xpose.msra.mxu0 0.0
  %290 = vmatprep.subr.mxu0 0.0
  %291 = vmatpush1.xpose.msra.mxu0 0.0
  %292 = vmatprep.subr.mxu0 0.0
  %293 = vmatpush1.xpose.msra.mxu0 0.0
  %294 = vmatprep.subr.mxu0 0.0
  %295 = vmatpush1.xpose.msra.mxu0 0.0
  %296 = vmatprep.subr.mxu0 0.0
  %297 = vmatpush1.xpose.msra.mxu0 0.0
  %298 = vmatprep.subr.mxu0 0.0
  %299 = vmatpush1.xpose.msra.mxu0 0.0
  %300 = vmatprep.subr.mxu0 0.0
  %301 = vmatpush1.xpose.msra.mxu0 0.0
  %302 = vmatprep.subr.mxu0 0.0
  %303 = vmatpush1.xpose.msra.mxu0 0.0
  %304 = vmatprep.subr.mxu0 0.0
  %305 = vmatpush1.xpose.msra.mxu0 0.0
  %306 = vmatprep.subr.mxu0 0.0
  %307 = vmatpush1.xpose.msra.mxu0 0.0
  %308 = vmatprep.subr.mxu0 0.0
  %309 = vmatpush1.xpose.msra.mxu0 0.0
  %310 = vmatprep.subr.mxu0 0.0
  %311 = vmatpush1.xpose.msra.mxu0 0.0
  %312 = vmatprep.mubr.f32.mxu0 0.0
  %313 = vmatmul.mubr.f32.gmra.mrb[0].mxu0 %v106
  %v314 = vpop.f32.mrb[0].mxu0
  %v315 = vadd.f32 0.0, %v314
  %v316 = vpop.f32.mrb[0].mxu0
  %317 = vmatprep.mubr.f32.mxu0 0.0
  %318 = vmatmul.mubr.f32.gmra.mrb[0].mxu0 %v109
  %v319 = vpop.f32.mrb[0].mxu0
  %v320 = vadd.f32 0.0, %v319
  %v321 = vpop.f32.mrb[0].mxu0
  %322 = vmatprep.mubr.f32.mxu0 0.0
  %323 = vmatmul.mubr.f32.gmra.mrb[0].mxu0 %v112
  %v324 = vpop.f32.mrb[0].mxu0
  %v325 = vadd.f32 0.0, %v324
  %v326 = vpop.f32.mrb[0].mxu0
  %327 = vmatprep.mubr.f32.mxu0 0.0
  %328 = vmatmul.mubr.f32.gmra.mrb[0].mxu0 %v115
  %v329 = vpop.f32.mrb[0].mxu0
  %v330 = vadd.f32 0.0, %v329
  %v331 = vpop.f32.mrb[0].mxu0
  %332 = vmatprep.mubr.f32.mxu0 0.0
  %333 = vmatmul.mubr.f32.gmra.mrb[0].mxu0 %v118
  %v334 = vpop.f32.mrb[0].mxu0
  %v335 = vadd.f32 0.0, %v334
  %v336 = vpop.f32.mrb[0].mxu0
  %337 = vmatprep.mubr.f32.mxu0 0.0
  %338 = vmatmul.mubr.f32.gmra.mrb[0].mxu0 %v121
  %v339 = vpop.f32.mrb[0].mxu0
  %v340 = vadd.f32 0.0, %v339
  %v341 = vpop.f32.mrb[0].mxu0
  %342 = vmatprep.mubr.f32.mxu0 0.0
  %343 = vmatmul.mubr.f32.gmra.mrb[0].mxu0 %v124
  %v344 = vpop.f32.mrb[0].mxu0
  %v345 = vadd.f32 0.0, %v344
  %v346 = vpop.f32.mrb[0].mxu0
  %347 = vmatprep.mubr.f32.mxu0 0.0
  %348 = vmatmul.mubr.f32.gmra.mrb[0].mxu0 %v127
  %v349 = vpop.f32.mrb[0].mxu0
  %v350 = vadd.f32 0.0, %v349
  %v351 = vpop.f32.mrb[0].mxu0
  %352 = vdwg.mxu0
  %v353 = vld [vmem:[%s3] sm:$0xff]
  %v354 = vld [vmem:[%s3 + $0x10] sm:$0xff]
  %vm355 = vcmask 130048
  %v357 = vsel %vm355, %v202, 0
  %v360 = vsel %vm355, %v207, 0
  %v363 = vsel %vm355, %v212, 0
  %v366 = vsel %vm355, %v217, 0
  %v369 = vsel %vm355, %v222, 0
  %v372 = vsel %vm355, %v227, 0
  %v375 = vsel %vm355, %v232, 0
  %v378 = vsel %vm355, %v237, 0
  %v381 = vsel %vm355, %v315, 0
  %v384 = vsel %vm355, %v320, 0
  %v387 = vsel %vm355, %v325, 0
  %v390 = vsel %vm355, %v330, 0
  %v393 = vsel %vm355, %v335, 0
  %v396 = vsel %vm355, %v340, 0
  %v399 = vsel %vm355, %v345, 0
  %v402 = vsel %vm355, %v350, 0
  %404 = vmatprep.subr.mxu0 0.0
  %405 = vmatpush1.msra.mxu0 %v353
  %406 = vmatprep.subr.mxu0 0.0
  %407 = vmatpush1.msra.mxu0 %v354
  %408 = vmatprep.subr.mxu0 0.0
  %409 = vmatpush1.msra.mxu0 0.0
  %410 = vmatprep.subr.mxu0 0.0
  %411 = vmatpush1.msra.mxu0 0.0
  %412 = vmatprep.subr.mxu0 0.0
  %413 = vmatpush1.msra.mxu0 0.0
  %414 = vmatprep.subr.mxu0 0.0
  %415 = vmatpush1.msra.mxu0 0.0
  %416 = vmatprep.subr.mxu0 0.0
  %417 = vmatpush1.msra.mxu0 0.0
  %418 = vmatprep.subr.mxu0 0.0
  %419 = vmatpush1.msra.mxu0 0.0
  %420 = vmatprep.subr.mxu0 0.0
  %421 = vmatpush1.msra.mxu0 0.0
  %422 = vmatprep.subr.mxu0 0.0
  %423 = vmatpush1.msra.mxu0 0.0
  %424 = vmatprep.subr.mxu0 0.0
  %425 = vmatpush1.msra.mxu0 0.0
  %426 = vmatprep.subr.mxu0 0.0
  %427 = vmatpush1.msra.mxu0 0.0
  %428 = vmatprep.subr.mxu0 0.0
  %429 = vmatpush1.msra.mxu0 0.0
  %430 = vmatprep.subr.mxu0 0.0
  %431 = vmatpush1.msra.mxu0 0.0
  %432 = vmatprep.subr.mxu0 0.0
  %433 = vmatpush1.msra.mxu0 0.0
  %434 = vmatprep.subr.mxu0 0.0
  %435 = vmatpush1.msra.mxu0 0.0
  %436 = vmatprep.subr.mxu0 0.0
  %437 = vmatpush1.msra.mxu0 0.0
  %438 = vmatprep.subr.mxu0 0.0
  %439 = vmatpush1.msra.mxu0 0.0
  %440 = vmatprep.subr.mxu0 0.0
  %441 = vmatpush1.msra.mxu0 0.0
  %442 = vmatprep.subr.mxu0 0.0
  %443 = vmatpush1.msra.mxu0 0.0
  %444 = vmatprep.subr.mxu0 0.0
  %445 = vmatpush1.msra.mxu0 0.0
  %446 = vmatprep.subr.mxu0 0.0
  %447 = vmatpush1.msra.mxu0 0.0
  %448 = vmatprep.subr.mxu0 0.0
  %449 = vmatpush1.msra.mxu0 0.0
  %450 = vmatprep.subr.mxu0 0.0
  %451 = vmatpush1.msra.mxu0 0.0
  %452 = vmatprep.subr.mxu0 0.0
  %453 = vmatpush1.msra.mxu0 0.0
  %454 = vmatprep.subr.mxu0 0.0
  %455 = vmatpush1.msra.mxu0 0.0
  %456 = vmatprep.subr.mxu0 0.0
  %457 = vmatpush1.msra.mxu0 0.0
  %458 = vmatprep.subr.mxu0 0.0
  %459 = vmatpush1.msra.mxu0 0.0
  %460 = vmatprep.subr.mxu0 0.0
  %461 = vmatpush1.msra.mxu0 0.0
  %462 = vmatprep.subr.mxu0 0.0
  %463 = vmatpush1.msra.mxu0 0.0
  %464 = vmatprep.subr.mxu0 0.0
  %465 = vmatpush1.msra.mxu0 0.0
  %466 = vmatprep.subr.mxu0 0.0
  %467 = vmatpush1.msra.mxu0 0.0
  %468 = vmatprep.mubr.f32.mxu0 0.0
  %469 = vmatmul.mubr.f32.gmra.mrb[0].mxu0 %v357
  %v470 = vpop.f32.mrb[0].mxu0
  %v471 = vadd.f32 0.0, %v470
  %v472 = vpop.f32.mrb[0].mxu0
  %473 = vmatprep.mubr.f32.mxu0 0.0
  %474 = vmatmul.mubr.f32.gmra.mrb[0].mxu0 %v360
  %v475 = vpop.f32.mrb[0].mxu0
  %v476 = vadd.f32 0.0, %v475
  %v477 = vpop.f32.mrb[0].mxu0
  %478 = vmatprep.mubr.f32.mxu0 0.0
  %479 = vmatmul.mubr.f32.gmra.mrb[0].mxu0 %v363
  %v480 = vpop.f32.mrb[0].mxu0
  %v481 = vadd.f32 0.0, %v480
  %v482 = vpop.f32.mrb[0].mxu0
  %483 = vmatprep.mubr.f32.mxu0 0.0
  %484 = vmatmul.mubr.f32.gmra.mrb[0].mxu0 %v366
  %v485 = vpop.f32.mrb[0].mxu0
  %v486 = vadd.f32 0.0, %v485
  %v487 = vpop.f32.mrb[0].mxu0
  %488 = vmatprep.mubr.f32.mxu0 0.0
  %489 = vmatmul.mubr.f32.gmra.mrb[0].mxu0 %v369
  %v490 = vpop.f32.mrb[0].mxu0
  %v491 = vadd.f32 0.0, %v490
  %v492 = vpop.f32.mrb[0].mxu0
  %493 = vmatprep.mubr.f32.mxu0 0.0
  %494 = vmatmul.mubr.f32.gmra.mrb[0].mxu0 %v372
  %v495 = vpop.f32.mrb[0].mxu0
  %v496 = vadd.f32 0.0, %v495
  %v497 = vpop.f32.mrb[0].mxu0
  %498 = vmatprep.mubr.f32.mxu0 0.0
  %499 = vmatmul.mubr.f32.gmra.mrb[0].mxu0 %v375
  %v500 = vpop.f32.mrb[0].mxu0
  %v501 = vadd.f32 0.0, %v500
  %v502 = vpop.f32.mrb[0].mxu0
  %503 = vmatprep.mubr.f32.mxu0 0.0
  %504 = vmatmul.mubr.f32.gmra.mrb[0].mxu0 %v378
  %v505 = vpop.f32.mrb[0].mxu0
  %v506 = vadd.f32 0.0, %v505
  %v507 = vpop.f32.mrb[0].mxu0
  %508 = vmatprep.mubr.f32.mxu0 0.0
  %509 = vmatmul.mubr.f32.gmra.mrb[0].mxu0 %v381
  %v510 = vpop.f32.mrb[0].mxu0
  %v511 = vadd.f32 0.0, %v510
  %v512 = vpop.f32.mrb[0].mxu0
  %513 = vmatprep.mubr.f32.mxu0 0.0
  %514 = vmatmul.mubr.f32.gmra.mrb[0].mxu0 %v384
  %v515 = vpop.f32.mrb[0].mxu0
  %v516 = vadd.f32 0.0, %v515
  %v517 = vpop.f32.mrb[0].mxu0
  %518 = vmatprep.mubr.f32.mxu0 0.0
  %519 = vmatmul.mubr.f32.gmra.mrb[0].mxu0 %v387
  %v520 = vpop.f32.mrb[0].mxu0
  %v521 = vadd.f32 0.0, %v520
  %v522 = vpop.f32.mrb[0].mxu0
  %523 = vmatprep.mubr.f32.mxu0 0.0
  %524 = vmatmul.mubr.f32.gmra.mrb[0].mxu0 %v390
  %v525 = vpop.f32.mrb[0].mxu0
  %v526 = vadd.f32 0.0, %v525
  %v527 = vpop.f32.mrb[0].mxu0
  %528 = vmatprep.mubr.f32.mxu0 0.0
  %529 = vmatmul.mubr.f32.gmra.mrb[0].mxu0 %v393
  %v530 = vpop.f32.mrb[0].mxu0
  %v531 = vadd.f32 0.0, %v530
  %v532 = vpop.f32.mrb[0].mxu0
  %533 = vmatprep.mubr.f32.mxu0 0.0
  %534 = vmatmul.mubr.f32.gmra.mrb[0].mxu0 %v396
  %v535 = vpop.f32.mrb[0].mxu0
  %v536 = vadd.f32 0.0, %v535
  %v537 = vpop.f32.mrb[0].mxu0
  %538 = vmatprep.mubr.f32.mxu0 0.0
  %539 = vmatmul.mubr.f32.gmra.mrb[0].mxu0 %v399
  %v540 = vpop.f32.mrb[0].mxu0
  %v541 = vadd.f32 0.0, %v540
  %v542 = vpop.f32.mrb[0].mxu0
  %543 = vmatprep.mubr.f32.mxu0 0.0
  %544 = vmatmul.mubr.f32.gmra.mrb[0].mxu0 %v402
  %v545 = vpop.f32.mrb[0].mxu0
  %v546 = vadd.f32 0.0, %v545
  %v547 = vpop.f32.mrb[0].mxu0
  %548 = vdwg.mxu0
  %v549 = vld [vmem:[%s2] ss:$0 sm:$0xff]
  %v550 = vld [vmem:[%s2 + $0x1] ss:$0 sm:$0xff]
  %vm551 = vcmask 64512
  %v552 = vsel %vm551, %v471, 0.0
  %v553 = vsel %vm551, %v476, 0.0
  %v554 = vadd.f32 %v552, %v553
  %v555 = vsel %vm551, %v481, 0.0
  %v556 = vadd.f32 %v554, %v555
  %v557 = vsel %vm551, %v486, 0.0
  %v558 = vadd.f32 %v556, %v557
  %v559 = vsel %vm551, %v491, 0.0
  %v560 = vadd.f32 %v558, %v559
  %v561 = vsel %vm551, %v496, 0.0
  %v562 = vadd.f32 %v560, %v561
  %v563 = vsel %vm551, %v501, 0.0
  %v564 = vadd.f32 %v562, %v563
  %v565 = vsel %vm551, %v506, 0.0
  %v566 = vadd.f32 %v564, %v565
  %v567 = vsel %vm551, %v511, 0.0
  %v568 = vadd.f32 %v566, %v567
  %v569 = vsel %vm551, %v516, 0.0
  %v570 = vadd.f32 %v568, %v569
  %v571 = vsel %vm551, %v521, 0.0
  %v572 = vadd.f32 %v570, %v571
  %v573 = vsel %vm551, %v526, 0.0
  %v574 = vadd.f32 %v572, %v573
  %v575 = vsel %vm551, %v531, 0.0
  %v576 = vadd.f32 %v574, %v575
  %v577 = vsel %vm551, %v536, 0.0
  %v578 = vadd.f32 %v576, %v577
  %v579 = vsel %vm551, %v541, 0.0
  %v580 = vadd.f32 %v578, %v579
  %v581 = vsel %vm551, %v546, 0.0
  %v582 = vadd.f32 %v580, %v581
  %v583 = vrot.slane %v582, 4
  %v584 = vadd.f32 %v582, %v583
  %v585 = vrot.slane %v584, 2
  %v586 = vadd.f32 %v584, %v585
  %v587 = vrot.slane %v586, 1
  %v588 = vadd.f32 %v586, %v587
  %v589 = vrcp.pop 128.0
  %v590 = vmul.f32 %v588, %v589
  %v591 = vsub.f32 %v471, %v590
  %v592 = vsub.f32 %v476, %v590
  %v593 = vsub.f32 %v481, %v590
  %v594 = vsub.f32 %v486, %v590
  %v595 = vsub.f32 %v491, %v590
  %v596 = vsub.f32 %v496, %v590
  %v597 = vsub.f32 %v501, %v590
  %v598 = vsub.f32 %v506, %v590
  %v599 = vsub.f32 %v511, %v590
  %v600 = vsub.f32 %v516, %v590
  %v601 = vsub.f32 %v521, %v590
  %v602 = vsub.f32 %v526, %v590
  %v603 = vsub.f32 %v531, %v590
  %v604 = vsub.f32 %v536, %v590
  %v605 = vsub.f32 %v541, %v590
  %v606 = vsub.f32 %v546, %v590
  %v607 = vmul.f32 %v591, %v591
  %v608 = vmul.f32 %v592, %v592
  %v609 = vmul.f32 %v593, %v593
  %v610 = vmul.f32 %v594, %v594
  %v611 = vmul.f32 %v595, %v595
  %v612 = vmul.f32 %v596, %v596
  %v613 = vmul.f32 %v597, %v597
  %v614 = vmul.f32 %v598, %v598
  %v615 = vmul.f32 %v599, %v599
  %v616 = vmul.f32 %v600, %v600
  %v617 = vmul.f32 %v601, %v601
  %v618 = vmul.f32 %v602, %v602
  %v619 = vmul.f32 %v603, %v603
  %v620 = vmul.f32 %v604, %v604
  %v621 = vmul.f32 %v605, %v605
  %v622 = vmul.f32 %v606, %v606
  %v623 = vsel %vm551, %v607, 0.0
  %v624 = vsel %vm551, %v608, 0.0
  %v625 = vadd.f32 %v623, %v624
  %v626 = vsel %vm551, %v609, 0.0
  %v627 = vadd.f32 %v625, %v626
  %v628 = vsel %vm551, %v610, 0.0
  %v629 = vadd.f32 %v627, %v628
  %v630 = vsel %vm551, %v611, 0.0
  %v631 = vadd.f32 %v629, %v630
  %v632 = vsel %vm551, %v612, 0.0
  %v633 = vadd.f32 %v631, %v632
  %v634 = vsel %vm551, %v613, 0.0
  %v635 = vadd.f32 %v633, %v634
  %v636 = vsel %vm551, %v614, 0.0
  %v637 = vadd.f32 %v635, %v636
  %v638 = vsel %vm551, %v615, 0.0
  %v639 = vadd.f32 %v637, %v638
  %v640 = vsel %vm551, %v616, 0.0
  %v641 = vadd.f32 %v639, %v640
  %v642 = vsel %vm551, %v617, 0.0
  %v643 = vadd.f32 %v641, %v642
  %v644 = vsel %vm551, %v618, 0.0
  %v645 = vadd.f32 %v643, %v644
  %v646 = vsel %vm551, %v619, 0.0
  %v647 = vadd.f32 %v645, %v646
  %v648 = vsel %vm551, %v620, 0.0
  %v649 = vadd.f32 %v647, %v648
  %v650 = vsel %vm551, %v621, 0.0
  %v651 = vadd.f32 %v649, %v650
  %v652 = vsel %vm551, %v622, 0.0
  %v653 = vadd.f32 %v651, %v652
  %v654 = vrot.slane %v653, 4
  %v655 = vadd.f32 %v653, %v654
  %v656 = vrot.slane %v655, 2
  %v657 = vadd.f32 %v655, %v656
  %v658 = vrot.slane %v657, 1
  %v659 = vadd.f32 %v657, %v658
  %v660 = vmul.f32 %v659, %v589
  %v661 = vadd.f32 %v660, 1e-06
  %v662 = vrsqrt.pop %v661
  %v663 = vmul.f32 %v591, %v662
  %v664 = vmul.f32 %v592, %v662
  %v665 = vmul.f32 %v593, %v662
  %v666 = vmul.f32 %v594, %v662
  %v667 = vmul.f32 %v595, %v662
  %v668 = vmul.f32 %v596, %v662
  %v669 = vmul.f32 %v597, %v662
  %v670 = vmul.f32 %v598, %v662
  %v671 = vmul.f32 %v599, %v662
  %v672 = vmul.f32 %v600, %v662
  %v673 = vmul.f32 %v601, %v662
  %v674 = vmul.f32 %v602, %v662
  %v675 = vmul.f32 %v603, %v662
  %v676 = vmul.f32 %v604, %v662
  %v677 = vmul.f32 %v605, %v662
  %v678 = vmul.f32 %v606, %v662
  %v679 = vmul.f32 %v663, %v549
  %v680 = vmul.f32 %v664, %v549
  %v681 = vmul.f32 %v665, %v549
  %v682 = vmul.f32 %v666, %v549
  %v683 = vmul.f32 %v667, %v549
  %v684 = vmul.f32 %v668, %v549
  %v685 = vmul.f32 %v669, %v549
  %v686 = vmul.f32 %v670, %v549
  %v687 = vmul.f32 %v671, %v549
  %v688 = vmul.f32 %v672, %v549
  %v689 = vmul.f32 %v673, %v549
  %v690 = vmul.f32 %v674, %v549
  %v691 = vmul.f32 %v675, %v549
  %v692 = vmul.f32 %v676, %v549
  %v693 = vmul.f32 %v677, %v549
  %v694 = vmul.f32 %v678, %v549
  %v695 = vadd.f32 %v679, %v550
  %v696 = vadd.f32 %v680, %v550
  %v697 = vadd.f32 %v681, %v550
  %v698 = vadd.f32 %v682, %v550
  %v699 = vadd.f32 %v683, %v550
  %v700 = vadd.f32 %v684, %v550
  %v701 = vadd.f32 %v685, %v550
  %v702 = vadd.f32 %v686, %v550
  %v703 = vadd.f32 %v687, %v550
  %v704 = vadd.f32 %v688, %v550
  %v705 = vadd.f32 %v689, %v550
  %v706 = vadd.f32 %v690, %v550
  %v707 = vadd.f32 %v691, %v550
  %v708 = vadd.f32 %v692, %v550
  %v709 = vadd.f32 %v693, %v550
  %v710 = vadd.f32 %v694, %v550
  %v711 = vmax.f32 %v695, 0.0
  %v712 = vmax.f32 %v696, 0.0
  %v713 = vmax.f32 %v697, 0.0
  %v714 = vmax.f32 %v698, 0.0
  %v715 = vmax.f32 %v699, 0.0
  %v716 = vmax.f32 %v700, 0.0
  %v717 = vmax.f32 %v701, 0.0
  %v718 = vmax.f32 %v702, 0.0
  %v719 = vmax.f32 %v703, 0.0
  %v720 = vmax.f32 %v704, 0.0
  %v721 = vmax.f32 %v705, 0.0
  %v722 = vmax.f32 %v706, 0.0
  %v723 = vmax.f32 %v707, 0.0
  %v724 = vmax.f32 %v708, 0.0
  %v725 = vmax.f32 %v709, 0.0
  %v726 = vmax.f32 %v710, 0.0
  %v727 = vld [vmem:[%s3 + $0x20] sm:$0xff]
  %v729 = vsel %vm551, %v711, 0
  %v732 = vsel %vm551, %v712, 0
  %v735 = vsel %vm551, %v713, 0
  %v738 = vsel %vm551, %v714, 0
  %v741 = vsel %vm551, %v715, 0
  %v744 = vsel %vm551, %v716, 0
  %v747 = vsel %vm551, %v717, 0
  %v750 = vsel %vm551, %v718, 0
  %v753 = vsel %vm551, %v719, 0
  %v756 = vsel %vm551, %v720, 0
  %v759 = vsel %vm551, %v721, 0
  %v762 = vsel %vm551, %v722, 0
  %v765 = vsel %vm551, %v723, 0
  %v768 = vsel %vm551, %v724, 0
  %v771 = vsel %vm551, %v725, 0
  %v774 = vsel %vm551, %v726, 0
  %776 = vmatprep.subr.mxu0 0.0
  %777 = vmatpush1.msra.mxu0 %v727
  %778 = vmatprep.subr.mxu0 0.0
  %779 = vmatpush1.msra.mxu0 0.0
  %780 = vmatprep.subr.mxu0 0.0
  %781 = vmatpush1.msra.mxu0 0.0
  %782 = vmatprep.subr.mxu0 0.0
  %783 = vmatpush1.msra.mxu0 0.0
  %784 = vmatprep.subr.mxu0 0.0
  %785 = vmatpush1.msra.mxu0 0.0
  %786 = vmatprep.subr.mxu0 0.0
  %787 = vmatpush1.msra.mxu0 0.0
  %788 = vmatprep.subr.mxu0 0.0
  %789 = vmatpush1.msra.mxu0 0.0
  %790 = vmatprep.subr.mxu0 0.0
  %791 = vmatpush1.msra.mxu0 0.0
  %792 = vmatprep.subr.mxu0 0.0
  %793 = vmatpush1.msra.mxu0 0.0
  %794 = vmatprep.subr.mxu0 0.0
  %795 = vmatpush1.msra.mxu0 0.0
  %796 = vmatprep.subr.mxu0 0.0
  %797 = vmatpush1.msra.mxu0 0.0
  %798 = vmatprep.subr.mxu0 0.0
  %799 = vmatpush1.msra.mxu0 0.0
  %800 = vmatprep.subr.mxu0 0.0
  %801 = vmatpush1.msra.mxu0 0.0
  %802 = vmatprep.subr.mxu0 0.0
  %803 = vmatpush1.msra.mxu0 0.0
  %804 = vmatprep.subr.mxu0 0.0
  %805 = vmatpush1.msra.mxu0 0.0
  %806 = vmatprep.subr.mxu0 0.0
  %807 = vmatpush1.msra.mxu0 0.0
  %808 = vmatprep.subr.mxu0 0.0
  %809 = vmatpush1.msra.mxu0 0.0
  %810 = vmatprep.subr.mxu0 0.0
  %811 = vmatpush1.msra.mxu0 0.0
  %812 = vmatprep.subr.mxu0 0.0
  %813 = vmatpush1.msra.mxu0 0.0
  %814 = vmatprep.subr.mxu0 0.0
  %815 = vmatpush1.msra.mxu0 0.0
  %816 = vmatprep.subr.mxu0 0.0
  %817 = vmatpush1.msra.mxu0 0.0
  %818 = vmatprep.subr.mxu0 0.0
  %819 = vmatpush1.msra.mxu0 0.0
  %820 = vmatprep.subr.mxu0 0.0
  %821 = vmatpush1.msra.mxu0 0.0
  %822 = vmatprep.subr.mxu0 0.0
  %823 = vmatpush1.msra.mxu0 0.0
  %824 = vmatprep.subr.mxu0 0.0
  %825 = vmatpush1.msra.mxu0 0.0
  %826 = vmatprep.subr.mxu0 0.0
  %827 = vmatpush1.msra.mxu0 0.0
  %828 = vmatprep.subr.mxu0 0.0
  %829 = vmatpush1.msra.mxu0 0.0
  %830 = vmatprep.subr.mxu0 0.0
  %831 = vmatpush1.msra.mxu0 0.0
  %832 = vmatprep.subr.mxu0 0.0
  %833 = vmatpush1.msra.mxu0 0.0
  %834 = vmatprep.subr.mxu0 0.0
  %835 = vmatpush1.msra.mxu0 0.0
  %836 = vmatprep.subr.mxu0 0.0
  %837 = vmatpush1.msra.mxu0 0.0
  %838 = vmatprep.subr.mxu0 0.0
  %839 = vmatpush1.msra.mxu0 0.0
  %840 = vmatprep.mubr.f32.mxu0 0.0
  %841 = vmatmul.mubr.f32.gmra.mrb[0].mxu0 %v729
  %v842 = vpop.f32.mrb[0].mxu0
  %v843 = vadd.f32 0.0, %v842
  %v844 = vpop.f32.mrb[0].mxu0
  %845 = vmatprep.mubr.f32.mxu0 0.0
  %846 = vmatmul.mubr.f32.gmra.mrb[0].mxu0 %v732
  %v847 = vpop.f32.mrb[0].mxu0
  %v848 = vadd.f32 0.0, %v847
  %v849 = vpop.f32.mrb[0].mxu0
  %850 = vmatprep.mubr.f32.mxu0 0.0
  %851 = vmatmul.mubr.f32.gmra.mrb[0].mxu0 %v735
  %v852 = vpop.f32.mrb[0].mxu0
  %v853 = vadd.f32 0.0, %v852
  %v854 = vpop.f32.mrb[0].mxu0
  %855 = vmatprep.mubr.f32.mxu0 0.0
  %856 = vmatmul.mubr.f32.gmra.mrb[0].mxu0 %v738
  %v857 = vpop.f32.mrb[0].mxu0
  %v858 = vadd.f32 0.0, %v857
  %v859 = vpop.f32.mrb[0].mxu0
  %860 = vmatprep.mubr.f32.mxu0 0.0
  %861 = vmatmul.mubr.f32.gmra.mrb[0].mxu0 %v741
  %v862 = vpop.f32.mrb[0].mxu0
  %v863 = vadd.f32 0.0, %v862
  %v864 = vpop.f32.mrb[0].mxu0
  %865 = vmatprep.mubr.f32.mxu0 0.0
  %866 = vmatmul.mubr.f32.gmra.mrb[0].mxu0 %v744
  %v867 = vpop.f32.mrb[0].mxu0
  %v868 = vadd.f32 0.0, %v867
  %v869 = vpop.f32.mrb[0].mxu0
  %870 = vmatprep.mubr.f32.mxu0 0.0
  %871 = vmatmul.mubr.f32.gmra.mrb[0].mxu0 %v747
  %v872 = vpop.f32.mrb[0].mxu0
  %v873 = vadd.f32 0.0, %v872
  %v874 = vpop.f32.mrb[0].mxu0
  %875 = vmatprep.mubr.f32.mxu0 0.0
  %876 = vmatmul.mubr.f32.gmra.mrb[0].mxu0 %v750
  %v877 = vpop.f32.mrb[0].mxu0
  %v878 = vadd.f32 0.0, %v877
  %v879 = vpop.f32.mrb[0].mxu0
  %880 = vmatprep.mubr.f32.mxu0 0.0
  %881 = vmatmul.mubr.f32.gmra.mrb[0].mxu0 %v753
  %v882 = vpop.f32.mrb[0].mxu0
  %v883 = vadd.f32 0.0, %v882
  %v884 = vpop.f32.mrb[0].mxu0
  %885 = vmatprep.mubr.f32.mxu0 0.0
  %886 = vmatmul.mubr.f32.gmra.mrb[0].mxu0 %v756
  %v887 = vpop.f32.mrb[0].mxu0
  %v888 = vadd.f32 0.0, %v887
  %v889 = vpop.f32.mrb[0].mxu0
  %890 = vmatprep.mubr.f32.mxu0 0.0
  %891 = vmatmul.mubr.f32.gmra.mrb[0].mxu0 %v759
  %v892 = vpop.f32.mrb[0].mxu0
  %v893 = vadd.f32 0.0, %v892
  %v894 = vpop.f32.mrb[0].mxu0
  %895 = vmatprep.mubr.f32.mxu0 0.0
  %896 = vmatmul.mubr.f32.gmra.mrb[0].mxu0 %v762
  %v897 = vpop.f32.mrb[0].mxu0
  %v898 = vadd.f32 0.0, %v897
  %v899 = vpop.f32.mrb[0].mxu0
  %900 = vmatprep.mubr.f32.mxu0 0.0
  %901 = vmatmul.mubr.f32.gmra.mrb[0].mxu0 %v765
  %v902 = vpop.f32.mrb[0].mxu0
  %v903 = vadd.f32 0.0, %v902
  %v904 = vpop.f32.mrb[0].mxu0
  %905 = vmatprep.mubr.f32.mxu0 0.0
  %906 = vmatmul.mubr.f32.gmra.mrb[0].mxu0 %v768
  %v907 = vpop.f32.mrb[0].mxu0
  %v908 = vadd.f32 0.0, %v907
  %v909 = vpop.f32.mrb[0].mxu0
  %910 = vmatprep.mubr.f32.mxu0 0.0
  %911 = vmatmul.mubr.f32.gmra.mrb[0].mxu0 %v771
  %v912 = vpop.f32.mrb[0].mxu0
  %v913 = vadd.f32 0.0, %v912
  %v914 = vpop.f32.mrb[0].mxu0
  %915 = vmatprep.mubr.f32.mxu0 0.0
  %916 = vmatmul.mubr.f32.gmra.mrb[0].mxu0 %v774
  %v917 = vpop.f32.mrb[0].mxu0
  %v918 = vadd.f32 0.0, %v917
  %v919 = vpop.f32.mrb[0].mxu0
  %920 = vdwg.mxu0
  %v921 = vrot.slane %v843, 7
  %v922 = vrot.slane %v848, 7
  %v923 = vrot.slane %v853, 7
  %v924 = vrot.slane %v858, 7
  %v925 = vrot.slane %v863, 7
  %v926 = vrot.slane %v868, 7
  %v927 = vrot.slane %v873, 7
  %v928 = vrot.slane %v878, 7
  %v929 = vrot.slane %v883, 7
  %v930 = vrot.slane %v888, 7
  %v931 = vrot.slane %v893, 7
  %v932 = vrot.slane %v898, 7
  %v933 = vrot.slane %v903, 7
  %v934 = vrot.slane %v908, 7
  %v935 = vrot.slane %v913, 7
  %v936 = vrot.slane %v918, 7
  %vm937 = vcmp.lt.s32.totalorder %v20, 1
  %v938 = vsel %vm937, %v935, %v936
  %v939 = vsel %vm937, %v934, %v935
  %v940 = vsel %vm937, %v933, %v934
  %v941 = vsel %vm937, %v932, %v933
  %v942 = vsel %vm937, %v931, %v932
  %v943 = vsel %vm937, %v930, %v931
  %v944 = vsel %vm937, %v929, %v930
  %v945 = vsel %vm937, %v928, %v929
  %v946 = vsel %vm937, %v927, %v928
  %v947 = vsel %vm937, %v926, %v927
  %v948 = vsel %vm937, %v925, %v926
  %v949 = vsel %vm937, %v924, %v925
  %v950 = vsel %vm937, %v923, %v924
  %v951 = vsel %vm937, %v922, %v923
  %v952 = vsel %vm937, %v921, %v922
  %v953 = vsel %vm937, %v936, %v921
  %vm954 = vcmp.ge.s32.totalorder %v52, 1
  %vm955 = vcmp.ge.s32.totalorder %v53, 1
  %vm956 = vcmp.ge.s32.totalorder %v54, 1
  %vm957 = vcmp.ge.s32.totalorder %v55, 1
  %vm958 = vcmp.ge.s32.totalorder %v56, 1
  %vm959 = vcmp.ge.s32.totalorder %v57, 1
  %vm960 = vcmp.ge.s32.totalorder %v58, 1
  %vm961 = vcmp.ge.s32.totalorder %v59, 1
  %vm962 = vcmp.ge.s32.totalorder %v60, 1
  %vm963 = vcmp.ge.s32.totalorder %v61, 1
  %vm964 = vcmp.ge.s32.totalorder %v62, 1
  %vm965 = vcmp.ge.s32.totalorder %v63, 1
  %vm966 = vcmp.ge.s32.totalorder %v64, 1
  %vm967 = vcmp.ge.s32.totalorder %v65, 1
  %vm968 = vcmp.ge.s32.totalorder %v66, 1
  %vm969 = vcmp.ge.s32.totalorder %v67, 1
  %vm970 = vcmp.ge.s32.totalorder %v68, 1
  %vm971 = vcmp.ge.s32.totalorder %v69, 1
  %vm972 = vcmp.ge.s32.totalorder %v70, 1
  %vm973 = vcmp.ge.s32.totalorder %v71, 1
  %vm974 = vcmp.ge.s32.totalorder %v72, 1
  %vm975 = vcmp.ge.s32.totalorder %v73, 1
  %vm976 = vcmp.ge.s32.totalorder %v74, 1
  %vm977 = vcmp.ge.s32.totalorder %v75, 1
  %vm978 = vcmp.ge.s32.totalorder %v76, 1
  %vm979 = vcmp.ge.s32.totalorder %v77, 1
  %vm980 = vcmp.ge.s32.totalorder %v78, 1
  %vm981 = vcmp.ge.s32.totalorder %v79, 1
  %vm982 = vcmp.ge.s32.totalorder %v80, 1
  %vm983 = vcmp.ge.s32.totalorder %v81, 1
  %vm984 = vcmp.ge.s32.totalorder %v82, 1
  %vm985 = vcmp.ge.s32.totalorder %v83, 1
  %vm986 = vmand %vm954, %vm970
  %vm987 = vmand %vm955, %vm971
  %vm988 = vmand %vm956, %vm972
  %vm989 = vmand %vm957, %vm973
  %vm990 = vmand %vm958, %vm974
  %vm991 = vmand %vm959, %vm975
  %vm992 = vmand %vm960, %vm976
  %vm993 = vmand %vm961, %vm977
  %vm994 = vmand %vm962, %vm978
  %vm995 = vmand %vm963, %vm979
  %vm996 = vmand %vm964, %vm980
  %vm997 = vmand %vm965, %vm981
  %vm998 = vmand %vm966, %vm982
  %vm999 = vmand %vm967, %vm983
  %vm1000 = vmand %vm968, %vm984
  %vm1001 = vmand %vm969, %vm985
  %v1002 = vsel %vm986, %v938, 0.0
  %v1003 = vsel %vm987, %v953, 0.0
  %v1004 = vsel %vm988, %v952, 0.0
  %v1005 = vsel %vm989, %v951, 0.0
  %v1006 = vsel %vm990, %v950, 0.0
  %v1007 = vsel %vm991, %v949, 0.0
  %v1008 = vsel %vm992, %v948, 0.0
  %v1009 = vsel %vm993, %v947, 0.0
  %v1010 = vsel %vm994, %v946, 0.0
  %v1011 = vsel %vm995, %v945, 0.0
  %v1012 = vsel %vm996, %v944, 0.0
  %v1013 = vsel %vm997, %v943, 0.0
  %v1014 = vsel %vm998, %v942, 0.0
  %v1015 = vsel %vm999, %v941, 0.0
  %v1016 = vsel %vm1000, %v940, 0.0
  %v1017 = vsel %vm1001, %v939, 0.0
  %1034 = vrot.lane.b32.xlu0 %v843, 120
  %v1035 = vpop.permute.xlu0 %1034
  %1036 = vrot.lane.b32.xlu0 %v848, 120
  %v1037 = vpop.permute.xlu0 %1036
  %1038 = vrot.lane.b32.xlu0 %v853, 120
  %v1039 = vpop.permute.xlu0 %1038
  %1040 = vrot.lane.b32.xlu0 %v858, 120
  %v1041 = vpop.permute.xlu0 %1040
  %1042 = vrot.lane.b32.xlu0 %v863, 120
  %v1043 = vpop.permute.xlu0 %1042
  %1044 = vrot.lane.b32.xlu0 %v868, 120
  %v1045 = vpop.permute.xlu0 %1044
  %1046 = vrot.lane.b32.xlu0 %v873, 120
  %v1047 = vpop.permute.xlu0 %1046
  %1048 = vrot.lane.b32.xlu0 %v878, 120
  %v1049 = vpop.permute.xlu0 %1048
  %1050 = vrot.lane.b32.xlu0 %v883, 120
  %v1051 = vpop.permute.xlu0 %1050
  %1052 = vrot.lane.b32.xlu0 %v888, 120
  %v1053 = vpop.permute.xlu0 %1052
  %1054 = vrot.lane.b32.xlu0 %v893, 120
  %v1055 = vpop.permute.xlu0 %1054
  %1056 = vrot.lane.b32.xlu0 %v898, 120
  %v1057 = vpop.permute.xlu0 %1056
  %1058 = vrot.lane.b32.xlu0 %v903, 120
  %v1059 = vpop.permute.xlu0 %1058
  %1060 = vrot.lane.b32.xlu0 %v908, 120
  %v1061 = vpop.permute.xlu0 %1060
  %1062 = vrot.lane.b32.xlu0 %v913, 120
  %v1063 = vpop.permute.xlu0 %1062
  %1064 = vrot.lane.b32.xlu0 %v918, 120
  %v1065 = vpop.permute.xlu0 %1064
  %v1082 = vsel %vm954, %v1065, 0.0
  %v1083 = vsel %vm955, %v1035, 0.0
  %v1084 = vsel %vm956, %v1037, 0.0
  %v1085 = vsel %vm957, %v1039, 0.0
  %v1086 = vsel %vm958, %v1041, 0.0
  %v1087 = vsel %vm959, %v1043, 0.0
  %v1088 = vsel %vm960, %v1045, 0.0
  %v1089 = vsel %vm961, %v1047, 0.0
  %v1090 = vsel %vm962, %v1049, 0.0
  %v1091 = vsel %vm963, %v1051, 0.0
  %v1092 = vsel %vm964, %v1053, 0.0
  %v1093 = vsel %vm965, %v1055, 0.0
  %v1094 = vsel %vm966, %v1057, 0.0
  %v1095 = vsel %vm967, %v1059, 0.0
  %v1096 = vsel %vm968, %v1061, 0.0
  %v1097 = vsel %vm969, %v1063, 0.0
  %v1098 = vadd.f32 %v1002, %v1082
  %v1099 = vadd.f32 %v1003, %v1083
  %v1100 = vadd.f32 %v1004, %v1084
  %v1101 = vadd.f32 %v1005, %v1085
  %v1102 = vadd.f32 %v1006, %v1086
  %v1103 = vadd.f32 %v1007, %v1087
  %v1104 = vadd.f32 %v1008, %v1088
  %v1105 = vadd.f32 %v1009, %v1089
  %v1106 = vadd.f32 %v1010, %v1090
  %v1107 = vadd.f32 %v1011, %v1091
  %v1108 = vadd.f32 %v1012, %v1092
  %v1109 = vadd.f32 %v1013, %v1093
  %v1110 = vadd.f32 %v1014, %v1094
  %v1111 = vadd.f32 %v1015, %v1095
  %v1112 = vadd.f32 %v1016, %v1096
  %v1113 = vadd.f32 %v1017, %v1097
  %1114 = vrot.lane.b32.xlu0 %v843, 112
  %v1115 = vpop.permute.xlu0 %1114
  %1116 = vrot.lane.b32.xlu0 %v848, 112
  %v1117 = vpop.permute.xlu0 %1116
  %1118 = vrot.lane.b32.xlu0 %v853, 112
  %v1119 = vpop.permute.xlu0 %1118
  %1120 = vrot.lane.b32.xlu0 %v858, 112
  %v1121 = vpop.permute.xlu0 %1120
  %1122 = vrot.lane.b32.xlu0 %v863, 112
  %v1123 = vpop.permute.xlu0 %1122
  %1124 = vrot.lane.b32.xlu0 %v868, 112
  %v1125 = vpop.permute.xlu0 %1124
  %1126 = vrot.lane.b32.xlu0 %v873, 112
  %v1127 = vpop.permute.xlu0 %1126
  %1128 = vrot.lane.b32.xlu0 %v878, 112
  %v1129 = vpop.permute.xlu0 %1128
  %1130 = vrot.lane.b32.xlu0 %v883, 112
  %v1131 = vpop.permute.xlu0 %1130
  %1132 = vrot.lane.b32.xlu0 %v888, 112
  %v1133 = vpop.permute.xlu0 %1132
  %1134 = vrot.lane.b32.xlu0 %v893, 112
  %v1135 = vpop.permute.xlu0 %1134
  %1136 = vrot.lane.b32.xlu0 %v898, 112
  %v1137 = vpop.permute.xlu0 %1136
  %1138 = vrot.lane.b32.xlu0 %v903, 112
  %v1139 = vpop.permute.xlu0 %1138
  %1140 = vrot.lane.b32.xlu0 %v908, 112
  %v1141 = vpop.permute.xlu0 %1140
  %1142 = vrot.lane.b32.xlu0 %v913, 112
  %v1143 = vpop.permute.xlu0 %1142
  %1144 = vrot.lane.b32.xlu0 %v918, 112
  %v1145 = vpop.permute.xlu0 %1144
  %v1162 = vrot.slane %v1115, 1
  %v1163 = vrot.slane %v1117, 1
  %v1164 = vrot.slane %v1119, 1
  %v1165 = vrot.slane %v1121, 1
  %v1166 = vrot.slane %v1123, 1
  %v1167 = vrot.slane %v1125, 1
  %v1168 = vrot.slane %v1127, 1
  %v1169 = vrot.slane %v1129, 1
  %v1170 = vrot.slane %v1131, 1
  %v1171 = vrot.slane %v1133, 1
  %v1172 = vrot.slane %v1135, 1
  %v1173 = vrot.slane %v1137, 1
  %v1174 = vrot.slane %v1139, 1
  %v1175 = vrot.slane %v1141, 1
  %v1176 = vrot.slane %v1143, 1
  %v1177 = vrot.slane %v1145, 1
  %vm1178 = vcmp.lt.s32.totalorder %v20, 7
  %v1179 = vsel %vm1178, %v1176, %v1177
  %v1180 = vsel %vm1178, %v1175, %v1176
  %v1181 = vsel %vm1178, %v1174, %v1175
  %v1182 = vsel %vm1178, %v1173, %v1174
  %v1183 = vsel %vm1178, %v1172, %v1173
  %v1184 = vsel %vm1178, %v1171, %v1172
  %v1185 = vsel %vm1178, %v1170, %v1171
  %v1186 = vsel %vm1178, %v1169, %v1170
  %v1187 = vsel %vm1178, %v1168, %v1169
  %v1188 = vsel %vm1178, %v1167, %v1168
  %v1189 = vsel %vm1178, %v1166, %v1167
  %v1190 = vsel %vm1178, %v1165, %v1166
  %v1191 = vsel %vm1178, %v1164, %v1165
  %v1192 = vsel %vm1178, %v1163, %v1164
  %v1193 = vsel %vm1178, %v1162, %v1163
  %v1194 = vsel %vm1178, %v1177, %v1162
  %vm1195 = vcmp.lt.s32.totalorder %v68, 7
  %vm1196 = vcmp.lt.s32.totalorder %v69, 7
  %vm1197 = vcmp.lt.s32.totalorder %v70, 7
  %vm1198 = vcmp.lt.s32.totalorder %v71, 7
  %vm1199 = vcmp.lt.s32.totalorder %v72, 7
  %vm1200 = vcmp.lt.s32.totalorder %v73, 7
  %vm1201 = vcmp.lt.s32.totalorder %v74, 7
  %vm1202 = vcmp.lt.s32.totalorder %v75, 7
  %vm1203 = vcmp.lt.s32.totalorder %v76, 7
  %vm1204 = vcmp.lt.s32.totalorder %v77, 7
  %vm1205 = vcmp.lt.s32.totalorder %v78, 7
  %vm1206 = vcmp.lt.s32.totalorder %v79, 7
  %vm1207 = vcmp.lt.s32.totalorder %v80, 7
  %vm1208 = vcmp.lt.s32.totalorder %v81, 7
  %vm1209 = vcmp.lt.s32.totalorder %v82, 7
  %vm1210 = vcmp.lt.s32.totalorder %v83, 7
  %vm1211 = vmand %vm954, %vm1195
  %vm1212 = vmand %vm955, %vm1196
  %vm1213 = vmand %vm956, %vm1197
  %vm1214 = vmand %vm957, %vm1198
  %vm1215 = vmand %vm958, %vm1199
  %vm1216 = vmand %vm959, %vm1200
  %vm1217 = vmand %vm960, %vm1201
  %vm1218 = vmand %vm961, %vm1202
  %vm1219 = vmand %vm962, %vm1203
  %vm1220 = vmand %vm963, %vm1204
  %vm1221 = vmand %vm964, %vm1205
  %vm1222 = vmand %vm965, %vm1206
  %vm1223 = vmand %vm966, %vm1207
  %vm1224 = vmand %vm967, %vm1208
  %vm1225 = vmand %vm968, %vm1209
  %vm1226 = vmand %vm969, %vm1210
  %v1227 = vsel %vm1211, %v1194, 0.0
  %v1228 = vsel %vm1212, %v1193, 0.0
  %v1229 = vsel %vm1213, %v1192, 0.0
  %v1230 = vsel %vm1214, %v1191, 0.0
  %v1231 = vsel %vm1215, %v1190, 0.0
  %v1232 = vsel %vm1216, %v1189, 0.0
  %v1233 = vsel %vm1217, %v1188, 0.0
  %v1234 = vsel %vm1218, %v1187, 0.0
  %v1235 = vsel %vm1219, %v1186, 0.0
  %v1236 = vsel %vm1220, %v1185, 0.0
  %v1237 = vsel %vm1221, %v1184, 0.0
  %v1238 = vsel %vm1222, %v1183, 0.0
  %v1239 = vsel %vm1223, %v1182, 0.0
  %v1240 = vsel %vm1224, %v1181, 0.0
  %v1241 = vsel %vm1225, %v1180, 0.0
  %v1242 = vsel %vm1226, %v1179, 0.0
  %v1243 = vadd.f32 %v1098, %v1227
  %v1244 = vadd.f32 %v1099, %v1228
  %v1245 = vadd.f32 %v1100, %v1229
  %v1246 = vadd.f32 %v1101, %v1230
  %v1247 = vadd.f32 %v1102, %v1231
  %v1248 = vadd.f32 %v1103, %v1232
  %v1249 = vadd.f32 %v1104, %v1233
  %v1250 = vadd.f32 %v1105, %v1234
  %v1251 = vadd.f32 %v1106, %v1235
  %v1252 = vadd.f32 %v1107, %v1236
  %v1253 = vadd.f32 %v1108, %v1237
  %v1254 = vadd.f32 %v1109, %v1238
  %v1255 = vadd.f32 %v1110, %v1239
  %v1256 = vadd.f32 %v1111, %v1240
  %v1257 = vadd.f32 %v1112, %v1241
  %v1258 = vadd.f32 %v1113, %v1242
  %1259 = vrot.lane.b32.xlu0 %v843, 104
  %v1260 = vpop.permute.xlu0 %1259
  %1261 = vrot.lane.b32.xlu0 %v848, 104
  %v1262 = vpop.permute.xlu0 %1261
  %1263 = vrot.lane.b32.xlu0 %v853, 104
  %v1264 = vpop.permute.xlu0 %1263
  %1265 = vrot.lane.b32.xlu0 %v858, 104
  %v1266 = vpop.permute.xlu0 %1265
  %1267 = vrot.lane.b32.xlu0 %v863, 104
  %v1268 = vpop.permute.xlu0 %1267
  %1269 = vrot.lane.b32.xlu0 %v868, 104
  %v1270 = vpop.permute.xlu0 %1269
  %1271 = vrot.lane.b32.xlu0 %v873, 104
  %v1272 = vpop.permute.xlu0 %1271
  %1273 = vrot.lane.b32.xlu0 %v878, 104
  %v1274 = vpop.permute.xlu0 %1273
  %1275 = vrot.lane.b32.xlu0 %v883, 104
  %v1276 = vpop.permute.xlu0 %1275
  %1277 = vrot.lane.b32.xlu0 %v888, 104
  %v1278 = vpop.permute.xlu0 %1277
  %1279 = vrot.lane.b32.xlu0 %v893, 104
  %v1280 = vpop.permute.xlu0 %1279
  %1281 = vrot.lane.b32.xlu0 %v898, 104
  %v1282 = vpop.permute.xlu0 %1281
  %1283 = vrot.lane.b32.xlu0 %v903, 104
  %v1284 = vpop.permute.xlu0 %1283
  %1285 = vrot.lane.b32.xlu0 %v908, 104
  %v1286 = vpop.permute.xlu0 %1285
  %1287 = vrot.lane.b32.xlu0 %v913, 104
  %v1288 = vpop.permute.xlu0 %1287
  %1289 = vrot.lane.b32.xlu0 %v918, 104
  %v1290 = vpop.permute.xlu0 %1289
  %v1307 = vrot.slane %v1260, 7
  %v1308 = vrot.slane %v1262, 7
  %v1309 = vrot.slane %v1264, 7
  %v1310 = vrot.slane %v1266, 7
  %v1311 = vrot.slane %v1268, 7
  %v1312 = vrot.slane %v1270, 7
  %v1313 = vrot.slane %v1272, 7
  %v1314 = vrot.slane %v1274, 7
  %v1315 = vrot.slane %v1276, 7
  %v1316 = vrot.slane %v1278, 7
  %v1317 = vrot.slane %v1280, 7
  %v1318 = vrot.slane %v1282, 7
  %v1319 = vrot.slane %v1284, 7
  %v1320 = vrot.slane %v1286, 7
  %v1321 = vrot.slane %v1288, 7
  %v1322 = vrot.slane %v1290, 7
  %v1323 = vsel %vm937, %v1321, %v1322
  %v1324 = vsel %vm937, %v1320, %v1321
  %v1325 = vsel %vm937, %v1319, %v1320
  %v1326 = vsel %vm937, %v1318, %v1319
  %v1327 = vsel %vm937, %v1317, %v1318
  %v1328 = vsel %vm937, %v1316, %v1317
  %v1329 = vsel %vm937, %v1315, %v1316
  %v1330 = vsel %vm937, %v1314, %v1315
  %v1331 = vsel %vm937, %v1313, %v1314
  %v1332 = vsel %vm937, %v1312, %v1313
  %v1333 = vsel %vm937, %v1311, %v1312
  %v1334 = vsel %vm937, %v1310, %v1311
  %v1335 = vsel %vm937, %v1309, %v1310
  %v1336 = vsel %vm937, %v1308, %v1309
  %v1337 = vsel %vm937, %v1307, %v1308
  %v1338 = vsel %vm937, %v1322, %v1307
  %v1339 = vsel %vm970, %v1338, 0.0
  %v1340 = vsel %vm971, %v1337, 0.0
  %v1341 = vsel %vm972, %v1336, 0.0
  %v1342 = vsel %vm973, %v1335, 0.0
  %v1343 = vsel %vm974, %v1334, 0.0
  %v1344 = vsel %vm975, %v1333, 0.0
  %v1345 = vsel %vm976, %v1332, 0.0
  %v1346 = vsel %vm977, %v1331, 0.0
  %v1347 = vsel %vm978, %v1330, 0.0
  %v1348 = vsel %vm979, %v1329, 0.0
  %v1349 = vsel %vm980, %v1328, 0.0
  %v1350 = vsel %vm981, %v1327, 0.0
  %v1351 = vsel %vm982, %v1326, 0.0
  %v1352 = vsel %vm983, %v1325, 0.0
  %v1353 = vsel %vm984, %v1324, 0.0
  %v1354 = vsel %vm985, %v1323, 0.0
  %v1355 = vadd.f32 %v1243, %v1339
  %v1356 = vadd.f32 %v1244, %v1340
  %v1357 = vadd.f32 %v1245, %v1341
  %v1358 = vadd.f32 %v1246, %v1342
  %v1359 = vadd.f32 %v1247, %v1343
  %v1360 = vadd.f32 %v1248, %v1344
  %v1361 = vadd.f32 %v1249, %v1345
  %v1362 = vadd.f32 %v1250, %v1346
  %v1363 = vadd.f32 %v1251, %v1347
  %v1364 = vadd.f32 %v1252, %v1348
  %v1365 = vadd.f32 %v1253, %v1349
  %v1366 = vadd.f32 %v1254, %v1350
  %v1367 = vadd.f32 %v1255, %v1351
  %v1368 = vadd.f32 %v1256, %v1352
  %v1369 = vadd.f32 %v1257, %v1353
  %v1370 = vadd.f32 %v1258, %v1354
  %1371 = vrot.lane.b32.xlu0 %v843, 96
  %v1372 = vpop.permute.xlu0 %1371
  %1373 = vrot.lane.b32.xlu0 %v848, 96
  %v1374 = vpop.permute.xlu0 %1373
  %1375 = vrot.lane.b32.xlu0 %v853, 96
  %v1376 = vpop.permute.xlu0 %1375
  %1377 = vrot.lane.b32.xlu0 %v858, 96
  %v1378 = vpop.permute.xlu0 %1377
  %1379 = vrot.lane.b32.xlu0 %v863, 96
  %v1380 = vpop.permute.xlu0 %1379
  %1381 = vrot.lane.b32.xlu0 %v868, 96
  %v1382 = vpop.permute.xlu0 %1381
  %1383 = vrot.lane.b32.xlu0 %v873, 96
  %v1384 = vpop.permute.xlu0 %1383
  %1385 = vrot.lane.b32.xlu0 %v878, 96
  %v1386 = vpop.permute.xlu0 %1385
  %1387 = vrot.lane.b32.xlu0 %v883, 96
  %v1388 = vpop.permute.xlu0 %1387
  %1389 = vrot.lane.b32.xlu0 %v888, 96
  %v1390 = vpop.permute.xlu0 %1389
  %1391 = vrot.lane.b32.xlu0 %v893, 96
  %v1392 = vpop.permute.xlu0 %1391
  %1393 = vrot.lane.b32.xlu0 %v898, 96
  %v1394 = vpop.permute.xlu0 %1393
  %1395 = vrot.lane.b32.xlu0 %v903, 96
  %v1396 = vpop.permute.xlu0 %1395
  %1397 = vrot.lane.b32.xlu0 %v908, 96
  %v1398 = vpop.permute.xlu0 %1397
  %1399 = vrot.lane.b32.xlu0 %v913, 96
  %v1400 = vpop.permute.xlu0 %1399
  %1401 = vrot.lane.b32.xlu0 %v918, 96
  %v1402 = vpop.permute.xlu0 %1401
  %v1419 = vadd.f32 %v1355, %v1372
  %v1420 = vadd.f32 %v1356, %v1374
  %v1421 = vadd.f32 %v1357, %v1376
  %v1422 = vadd.f32 %v1358, %v1378
  %v1423 = vadd.f32 %v1359, %v1380
  %v1424 = vadd.f32 %v1360, %v1382
  %v1425 = vadd.f32 %v1361, %v1384
  %v1426 = vadd.f32 %v1362, %v1386
  %v1427 = vadd.f32 %v1363, %v1388
  %v1428 = vadd.f32 %v1364, %v1390
  %v1429 = vadd.f32 %v1365, %v1392
  %v1430 = vadd.f32 %v1366, %v1394
  %v1431 = vadd.f32 %v1367, %v1396
  %v1432 = vadd.f32 %v1368, %v1398
  %v1433 = vadd.f32 %v1369, %v1400
  %v1434 = vadd.f32 %v1370, %v1402
  %1435 = vrot.lane.b32.xlu0 %v843, 88
  %v1436 = vpop.permute.xlu0 %1435
  %1437 = vrot.lane.b32.xlu0 %v848, 88
  %v1438 = vpop.permute.xlu0 %1437
  %1439 = vrot.lane.b32.xlu0 %v853, 88
  %v1440 = vpop.permute.xlu0 %1439
  %1441 = vrot.lane.b32.xlu0 %v858, 88
  %v1442 = vpop.permute.xlu0 %1441
  %1443 = vrot.lane.b32.xlu0 %v863, 88
  %v1444 = vpop.permute.xlu0 %1443
  %1445 = vrot.lane.b32.xlu0 %v868, 88
  %v1446 = vpop.permute.xlu0 %1445
  %1447 = vrot.lane.b32.xlu0 %v873, 88
  %v1448 = vpop.permute.xlu0 %1447
  %1449 = vrot.lane.b32.xlu0 %v878, 88
  %v1450 = vpop.permute.xlu0 %1449
  %1451 = vrot.lane.b32.xlu0 %v883, 88
  %v1452 = vpop.permute.xlu0 %1451
  %1453 = vrot.lane.b32.xlu0 %v888, 88
  %v1454 = vpop.permute.xlu0 %1453
  %1455 = vrot.lane.b32.xlu0 %v893, 88
  %v1456 = vpop.permute.xlu0 %1455
  %1457 = vrot.lane.b32.xlu0 %v898, 88
  %v1458 = vpop.permute.xlu0 %1457
  %1459 = vrot.lane.b32.xlu0 %v903, 88
  %v1460 = vpop.permute.xlu0 %1459
  %1461 = vrot.lane.b32.xlu0 %v908, 88
  %v1462 = vpop.permute.xlu0 %1461
  %1463 = vrot.lane.b32.xlu0 %v913, 88
  %v1464 = vpop.permute.xlu0 %1463
  %1465 = vrot.lane.b32.xlu0 %v918, 88
  %v1466 = vpop.permute.xlu0 %1465
  %v1483 = vrot.slane %v1436, 1
  %v1484 = vrot.slane %v1438, 1
  %v1485 = vrot.slane %v1440, 1
  %v1486 = vrot.slane %v1442, 1
  %v1487 = vrot.slane %v1444, 1
  %v1488 = vrot.slane %v1446, 1
  %v1489 = vrot.slane %v1448, 1
  %v1490 = vrot.slane %v1450, 1
  %v1491 = vrot.slane %v1452, 1
  %v1492 = vrot.slane %v1454, 1
  %v1493 = vrot.slane %v1456, 1
  %v1494 = vrot.slane %v1458, 1
  %v1495 = vrot.slane %v1460, 1
  %v1496 = vrot.slane %v1462, 1
  %v1497 = vrot.slane %v1464, 1
  %v1498 = vrot.slane %v1466, 1
  %v1499 = vsel %vm1178, %v1497, %v1498
  %v1500 = vsel %vm1178, %v1496, %v1497
  %v1501 = vsel %vm1178, %v1495, %v1496
  %v1502 = vsel %vm1178, %v1494, %v1495
  %v1503 = vsel %vm1178, %v1493, %v1494
  %v1504 = vsel %vm1178, %v1492, %v1493
  %v1505 = vsel %vm1178, %v1491, %v1492
  %v1506 = vsel %vm1178, %v1490, %v1491
  %v1507 = vsel %vm1178, %v1489, %v1490
  %v1508 = vsel %vm1178, %v1488, %v1489
  %v1509 = vsel %vm1178, %v1487, %v1488
  %v1510 = vsel %vm1178, %v1486, %v1487
  %v1511 = vsel %vm1178, %v1485, %v1486
  %v1512 = vsel %vm1178, %v1484, %v1485
  %v1513 = vsel %vm1178, %v1483, %v1484
  %v1514 = vsel %vm1178, %v1498, %v1483
  %v1515 = vsel %vm1195, %v1513, 0.0
  %v1516 = vsel %vm1196, %v1512, 0.0
  %v1517 = vsel %vm1197, %v1511, 0.0
  %v1518 = vsel %vm1198, %v1510, 0.0
  %v1519 = vsel %vm1199, %v1509, 0.0
  %v1520 = vsel %vm1200, %v1508, 0.0
  %v1521 = vsel %vm1201, %v1507, 0.0
  %v1522 = vsel %vm1202, %v1506, 0.0
  %v1523 = vsel %vm1203, %v1505, 0.0
  %v1524 = vsel %vm1204, %v1504, 0.0
  %v1525 = vsel %vm1205, %v1503, 0.0
  %v1526 = vsel %vm1206, %v1502, 0.0
  %v1527 = vsel %vm1207, %v1501, 0.0
  %v1528 = vsel %vm1208, %v1500, 0.0
  %v1529 = vsel %vm1209, %v1499, 0.0
  %v1530 = vsel %vm1210, %v1514, 0.0
  %v1531 = vadd.f32 %v1419, %v1515
  %v1532 = vadd.f32 %v1420, %v1516
  %v1533 = vadd.f32 %v1421, %v1517
  %v1534 = vadd.f32 %v1422, %v1518
  %v1535 = vadd.f32 %v1423, %v1519
  %v1536 = vadd.f32 %v1424, %v1520
  %v1537 = vadd.f32 %v1425, %v1521
  %v1538 = vadd.f32 %v1426, %v1522
  %v1539 = vadd.f32 %v1427, %v1523
  %v1540 = vadd.f32 %v1428, %v1524
  %v1541 = vadd.f32 %v1429, %v1525
  %v1542 = vadd.f32 %v1430, %v1526
  %v1543 = vadd.f32 %v1431, %v1527
  %v1544 = vadd.f32 %v1432, %v1528
  %v1545 = vadd.f32 %v1433, %v1529
  %v1546 = vadd.f32 %v1434, %v1530
  %1547 = vrot.lane.b32.xlu0 %v843, 80
  %v1548 = vpop.permute.xlu0 %1547
  %1549 = vrot.lane.b32.xlu0 %v848, 80
  %v1550 = vpop.permute.xlu0 %1549
  %1551 = vrot.lane.b32.xlu0 %v853, 80
  %v1552 = vpop.permute.xlu0 %1551
  %1553 = vrot.lane.b32.xlu0 %v858, 80
  %v1554 = vpop.permute.xlu0 %1553
  %1555 = vrot.lane.b32.xlu0 %v863, 80
  %v1556 = vpop.permute.xlu0 %1555
  %1557 = vrot.lane.b32.xlu0 %v868, 80
  %v1558 = vpop.permute.xlu0 %1557
  %1559 = vrot.lane.b32.xlu0 %v873, 80
  %v1560 = vpop.permute.xlu0 %1559
  %1561 = vrot.lane.b32.xlu0 %v878, 80
  %v1562 = vpop.permute.xlu0 %1561
  %1563 = vrot.lane.b32.xlu0 %v883, 80
  %v1564 = vpop.permute.xlu0 %1563
  %1565 = vrot.lane.b32.xlu0 %v888, 80
  %v1566 = vpop.permute.xlu0 %1565
  %1567 = vrot.lane.b32.xlu0 %v893, 80
  %v1568 = vpop.permute.xlu0 %1567
  %1569 = vrot.lane.b32.xlu0 %v898, 80
  %v1570 = vpop.permute.xlu0 %1569
  %1571 = vrot.lane.b32.xlu0 %v903, 80
  %v1572 = vpop.permute.xlu0 %1571
  %1573 = vrot.lane.b32.xlu0 %v908, 80
  %v1574 = vpop.permute.xlu0 %1573
  %1575 = vrot.lane.b32.xlu0 %v913, 80
  %v1576 = vpop.permute.xlu0 %1575
  %1577 = vrot.lane.b32.xlu0 %v918, 80
  %v1578 = vpop.permute.xlu0 %1577
  %v1595 = vrot.slane %v1548, 7
  %v1596 = vrot.slane %v1550, 7
  %v1597 = vrot.slane %v1552, 7
  %v1598 = vrot.slane %v1554, 7
  %v1599 = vrot.slane %v1556, 7
  %v1600 = vrot.slane %v1558, 7
  %v1601 = vrot.slane %v1560, 7
  %v1602 = vrot.slane %v1562, 7
  %v1603 = vrot.slane %v1564, 7
  %v1604 = vrot.slane %v1566, 7
  %v1605 = vrot.slane %v1568, 7
  %v1606 = vrot.slane %v1570, 7
  %v1607 = vrot.slane %v1572, 7
  %v1608 = vrot.slane %v1574, 7
  %v1609 = vrot.slane %v1576, 7
  %v1610 = vrot.slane %v1578, 7
  %v1611 = vsel %vm937, %v1609, %v1610
  %v1612 = vsel %vm937, %v1608, %v1609
  %v1613 = vsel %vm937, %v1607, %v1608
  %v1614 = vsel %vm937, %v1606, %v1607
  %v1615 = vsel %vm937, %v1605, %v1606
  %v1616 = vsel %vm937, %v1604, %v1605
  %v1617 = vsel %vm937, %v1603, %v1604
  %v1618 = vsel %vm937, %v1602, %v1603
  %v1619 = vsel %vm937, %v1601, %v1602
  %v1620 = vsel %vm937, %v1600, %v1601
  %v1621 = vsel %vm937, %v1599, %v1600
  %v1622 = vsel %vm937, %v1598, %v1599
  %v1623 = vsel %vm937, %v1597, %v1598
  %v1624 = vsel %vm937, %v1596, %v1597
  %v1625 = vsel %vm937, %v1595, %v1596
  %v1626 = vsel %vm937, %v1610, %v1595
  %vm1627 = vcmp.lt.s32.totalorder %v52, 7
  %vm1628 = vcmp.lt.s32.totalorder %v53, 7
  %vm1629 = vcmp.lt.s32.totalorder %v54, 7
  %vm1630 = vcmp.lt.s32.totalorder %v55, 7
  %vm1631 = vcmp.lt.s32.totalorder %v56, 7
  %vm1632 = vcmp.lt.s32.totalorder %v57, 7
  %vm1633 = vcmp.lt.s32.totalorder %v58, 7
  %vm1634 = vcmp.lt.s32.totalorder %v59, 7
  %vm1635 = vcmp.lt.s32.totalorder %v60, 7
  %vm1636 = vcmp.lt.s32.totalorder %v61, 7
  %vm1637 = vcmp.lt.s32.totalorder %v62, 7
  %vm1638 = vcmp.lt.s32.totalorder %v63, 7
  %vm1639 = vcmp.lt.s32.totalorder %v64, 7
  %vm1640 = vcmp.lt.s32.totalorder %v65, 7
  %vm1641 = vcmp.lt.s32.totalorder %v66, 7
  %vm1642 = vcmp.lt.s32.totalorder %v67, 7
  %vm1643 = vmand %vm1627, %vm970
  %vm1644 = vmand %vm1628, %vm971
  %vm1645 = vmand %vm1629, %vm972
  %vm1646 = vmand %vm1630, %vm973
  %vm1647 = vmand %vm1631, %vm974
  %vm1648 = vmand %vm1632, %vm975
  %vm1649 = vmand %vm1633, %vm976
  %vm1650 = vmand %vm1634, %vm977
  %vm1651 = vmand %vm1635, %vm978
  %vm1652 = vmand %vm1636, %vm979
  %vm1653 = vmand %vm1637, %vm980
  %vm1654 = vmand %vm1638, %vm981
  %vm1655 = vmand %vm1639, %vm982
  %vm1656 = vmand %vm1640, %vm983
  %vm1657 = vmand %vm1641, %vm984
  %vm1658 = vmand %vm1642, %vm985
  %v1659 = vsel %vm1643, %v1625, 0.0
  %v1660 = vsel %vm1644, %v1624, 0.0
  %v1661 = vsel %vm1645, %v1623, 0.0
  %v1662 = vsel %vm1646, %v1622, 0.0
  %v1663 = vsel %vm1647, %v1621, 0.0
  %v1664 = vsel %vm1648, %v1620, 0.0
  %v1665 = vsel %vm1649, %v1619, 0.0
  %v1666 = vsel %vm1650, %v1618, 0.0
  %v1667 = vsel %vm1651, %v1617, 0.0
  %v1668 = vsel %vm1652, %v1616, 0.0
  %v1669 = vsel %vm1653, %v1615, 0.0
  %v1670 = vsel %vm1654, %v1614, 0.0
  %v1671 = vsel %vm1655, %v1613, 0.0
  %v1672 = vsel %vm1656, %v1612, 0.0
  %v1673 = vsel %vm1657, %v1611, 0.0
  %v1674 = vsel %vm1658, %v1626, 0.0
  %v1675 = vadd.f32 %v1531, %v1659
  %v1676 = vadd.f32 %v1532, %v1660
  %v1677 = vadd.f32 %v1533, %v1661
  %v1678 = vadd.f32 %v1534, %v1662
  %v1679 = vadd.f32 %v1535, %v1663
  %v1680 = vadd.f32 %v1536, %v1664
  %v1681 = vadd.f32 %v1537, %v1665
  %v1682 = vadd.f32 %v1538, %v1666
  %v1683 = vadd.f32 %v1539, %v1667
  %v1684 = vadd.f32 %v1540, %v1668
  %v1685 = vadd.f32 %v1541, %v1669
  %v1686 = vadd.f32 %v1542, %v1670
  %v1687 = vadd.f32 %v1543, %v1671
  %v1688 = vadd.f32 %v1544, %v1672
  %v1689 = vadd.f32 %v1545, %v1673
  %v1690 = vadd.f32 %v1546, %v1674
  %1691 = vrot.lane.b32.xlu0 %v843, 72
  %v1692 = vpop.permute.xlu0 %1691
  %1693 = vrot.lane.b32.xlu0 %v848, 72
  %v1694 = vpop.permute.xlu0 %1693
  %1695 = vrot.lane.b32.xlu0 %v853, 72
  %v1696 = vpop.permute.xlu0 %1695
  %1697 = vrot.lane.b32.xlu0 %v858, 72
  %v1698 = vpop.permute.xlu0 %1697
  %1699 = vrot.lane.b32.xlu0 %v863, 72
  %v1700 = vpop.permute.xlu0 %1699
  %1701 = vrot.lane.b32.xlu0 %v868, 72
  %v1702 = vpop.permute.xlu0 %1701
  %1703 = vrot.lane.b32.xlu0 %v873, 72
  %v1704 = vpop.permute.xlu0 %1703
  %1705 = vrot.lane.b32.xlu0 %v878, 72
  %v1706 = vpop.permute.xlu0 %1705
  %1707 = vrot.lane.b32.xlu0 %v883, 72
  %v1708 = vpop.permute.xlu0 %1707
  %1709 = vrot.lane.b32.xlu0 %v888, 72
  %v1710 = vpop.permute.xlu0 %1709
  %1711 = vrot.lane.b32.xlu0 %v893, 72
  %v1712 = vpop.permute.xlu0 %1711
  %1713 = vrot.lane.b32.xlu0 %v898, 72
  %v1714 = vpop.permute.xlu0 %1713
  %1715 = vrot.lane.b32.xlu0 %v903, 72
  %v1716 = vpop.permute.xlu0 %1715
  %1717 = vrot.lane.b32.xlu0 %v908, 72
  %v1718 = vpop.permute.xlu0 %1717
  %1719 = vrot.lane.b32.xlu0 %v913, 72
  %v1720 = vpop.permute.xlu0 %1719
  %1721 = vrot.lane.b32.xlu0 %v918, 72
  %v1722 = vpop.permute.xlu0 %1721
  %v1739 = vsel %vm1627, %v1694, 0.0
  %v1740 = vsel %vm1628, %v1696, 0.0
  %v1741 = vsel %vm1629, %v1698, 0.0
  %v1742 = vsel %vm1630, %v1700, 0.0
  %v1743 = vsel %vm1631, %v1702, 0.0
  %v1744 = vsel %vm1632, %v1704, 0.0
  %v1745 = vsel %vm1633, %v1706, 0.0
  %v1746 = vsel %vm1634, %v1708, 0.0
  %v1747 = vsel %vm1635, %v1710, 0.0
  %v1748 = vsel %vm1636, %v1712, 0.0
  %v1749 = vsel %vm1637, %v1714, 0.0
  %v1750 = vsel %vm1638, %v1716, 0.0
  %v1751 = vsel %vm1639, %v1718, 0.0
  %v1752 = vsel %vm1640, %v1720, 0.0
  %v1753 = vsel %vm1641, %v1722, 0.0
  %v1754 = vsel %vm1642, %v1692, 0.0
  %v1755 = vadd.f32 %v1675, %v1739
  %v1756 = vadd.f32 %v1676, %v1740
  %v1757 = vadd.f32 %v1677, %v1741
  %v1758 = vadd.f32 %v1678, %v1742
  %v1759 = vadd.f32 %v1679, %v1743
  %v1760 = vadd.f32 %v1680, %v1744
  %v1761 = vadd.f32 %v1681, %v1745
  %v1762 = vadd.f32 %v1682, %v1746
  %v1763 = vadd.f32 %v1683, %v1747
  %v1764 = vadd.f32 %v1684, %v1748
  %v1765 = vadd.f32 %v1685, %v1749
  %v1766 = vadd.f32 %v1686, %v1750
  %v1767 = vadd.f32 %v1687, %v1751
  %v1768 = vadd.f32 %v1688, %v1752
  %v1769 = vadd.f32 %v1689, %v1753
  %v1770 = vadd.f32 %v1690, %v1754
  %1771 = vrot.lane.b32.xlu0 %v843, 64
  %v1772 = vpop.permute.xlu0 %1771
  %1773 = vrot.lane.b32.xlu0 %v848, 64
  %v1774 = vpop.permute.xlu0 %1773
  %1775 = vrot.lane.b32.xlu0 %v853, 64
  %v1776 = vpop.permute.xlu0 %1775
  %1777 = vrot.lane.b32.xlu0 %v858, 64
  %v1778 = vpop.permute.xlu0 %1777
  %1779 = vrot.lane.b32.xlu0 %v863, 64
  %v1780 = vpop.permute.xlu0 %1779
  %1781 = vrot.lane.b32.xlu0 %v868, 64
  %v1782 = vpop.permute.xlu0 %1781
  %1783 = vrot.lane.b32.xlu0 %v873, 64
  %v1784 = vpop.permute.xlu0 %1783
  %1785 = vrot.lane.b32.xlu0 %v878, 64
  %v1786 = vpop.permute.xlu0 %1785
  %1787 = vrot.lane.b32.xlu0 %v883, 64
  %v1788 = vpop.permute.xlu0 %1787
  %1789 = vrot.lane.b32.xlu0 %v888, 64
  %v1790 = vpop.permute.xlu0 %1789
  %1791 = vrot.lane.b32.xlu0 %v893, 64
  %v1792 = vpop.permute.xlu0 %1791
  %1793 = vrot.lane.b32.xlu0 %v898, 64
  %v1794 = vpop.permute.xlu0 %1793
  %1795 = vrot.lane.b32.xlu0 %v903, 64
  %v1796 = vpop.permute.xlu0 %1795
  %1797 = vrot.lane.b32.xlu0 %v908, 64
  %v1798 = vpop.permute.xlu0 %1797
  %1799 = vrot.lane.b32.xlu0 %v913, 64
  %v1800 = vpop.permute.xlu0 %1799
  %1801 = vrot.lane.b32.xlu0 %v918, 64
  %v1802 = vpop.permute.xlu0 %1801
  %v1819 = vrot.slane %v1772, 1
  %v1820 = vrot.slane %v1774, 1
  %v1821 = vrot.slane %v1776, 1
  %v1822 = vrot.slane %v1778, 1
  %v1823 = vrot.slane %v1780, 1
  %v1824 = vrot.slane %v1782, 1
  %v1825 = vrot.slane %v1784, 1
  %v1826 = vrot.slane %v1786, 1
  %v1827 = vrot.slane %v1788, 1
  %v1828 = vrot.slane %v1790, 1
  %v1829 = vrot.slane %v1792, 1
  %v1830 = vrot.slane %v1794, 1
  %v1831 = vrot.slane %v1796, 1
  %v1832 = vrot.slane %v1798, 1
  %v1833 = vrot.slane %v1800, 1
  %v1834 = vrot.slane %v1802, 1
  %v1835 = vsel %vm1178, %v1833, %v1834
  %v1836 = vsel %vm1178, %v1832, %v1833
  %v1837 = vsel %vm1178, %v1831, %v1832
  %v1838 = vsel %vm1178, %v1830, %v1831
  %v1839 = vsel %vm1178, %v1829, %v1830
  %v1840 = vsel %vm1178, %v1828, %v1829
  %v1841 = vsel %vm1178, %v1827, %v1828
  %v1842 = vsel %vm1178, %v1826, %v1827
  %v1843 = vsel %vm1178, %v1825, %v1826
  %v1844 = vsel %vm1178, %v1824, %v1825
  %v1845 = vsel %vm1178, %v1823, %v1824
  %v1846 = vsel %vm1178, %v1822, %v1823
  %v1847 = vsel %vm1178, %v1821, %v1822
  %v1848 = vsel %vm1178, %v1820, %v1821
  %v1849 = vsel %vm1178, %v1819, %v1820
  %v1850 = vsel %vm1178, %v1834, %v1819
  %vm1851 = vmand %vm1627, %vm1195
  %vm1852 = vmand %vm1628, %vm1196
  %vm1853 = vmand %vm1629, %vm1197
  %vm1854 = vmand %vm1630, %vm1198
  %vm1855 = vmand %vm1631, %vm1199
  %vm1856 = vmand %vm1632, %vm1200
  %vm1857 = vmand %vm1633, %vm1201
  %vm1858 = vmand %vm1634, %vm1202
  %vm1859 = vmand %vm1635, %vm1203
  %vm1860 = vmand %vm1636, %vm1204
  %vm1861 = vmand %vm1637, %vm1205
  %vm1862 = vmand %vm1638, %vm1206
  %vm1863 = vmand %vm1639, %vm1207
  %vm1864 = vmand %vm1640, %vm1208
  %vm1865 = vmand %vm1641, %vm1209
  %vm1866 = vmand %vm1642, %vm1210
  %v1867 = vsel %vm1851, %v1848, 0.0
  %v1868 = vsel %vm1852, %v1847, 0.0
  %v1869 = vsel %vm1853, %v1846, 0.0
  %v1870 = vsel %vm1854, %v1845, 0.0
  %v1871 = vsel %vm1855, %v1844, 0.0
  %v1872 = vsel %vm1856, %v1843, 0.0
  %v1873 = vsel %vm1857, %v1842, 0.0
  %v1874 = vsel %vm1858, %v1841, 0.0
  %v1875 = vsel %vm1859, %v1840, 0.0
  %v1876 = vsel %vm1860, %v1839, 0.0
  %v1877 = vsel %vm1861, %v1838, 0.0
  %v1878 = vsel %vm1862, %v1837, 0.0
  %v1879 = vsel %vm1863, %v1836, 0.0
  %v1880 = vsel %vm1864, %v1835, 0.0
  %v1881 = vsel %vm1865, %v1850, 0.0
  %v1882 = vsel %vm1866, %v1849, 0.0
  %v1883 = vadd.f32 %v1755, %v1867
  %v1884 = vadd.f32 %v1756, %v1868
  %v1885 = vadd.f32 %v1757, %v1869
  %v1886 = vadd.f32 %v1758, %v1870
  %v1887 = vadd.f32 %v1759, %v1871
  %v1888 = vadd.f32 %v1760, %v1872
  %v1889 = vadd.f32 %v1761, %v1873
  %v1890 = vadd.f32 %v1762, %v1874
  %v1891 = vadd.f32 %v1763, %v1875
  %v1892 = vadd.f32 %v1764, %v1876
  %v1893 = vadd.f32 %v1765, %v1877
  %v1894 = vadd.f32 %v1766, %v1878
  %v1895 = vadd.f32 %v1767, %v1879
  %v1896 = vadd.f32 %v1768, %v1880
  %v1897 = vadd.f32 %v1769, %v1881
  %v1898 = vadd.f32 %v1770, %v1882
  %v1899 = vld [vmem:[%s2 + $0x2] ss:$0 sm:$0xff]
  %v1900 = vld [vmem:[%s2 + $0x3] ss:$0 sm:$0xff]
  %v1901 = vsel %vm551, %v1883, 0.0
  %v1902 = vsel %vm551, %v1884, 0.0
  %v1903 = vadd.f32 %v1901, %v1902
  %v1904 = vsel %vm551, %v1885, 0.0
  %v1905 = vadd.f32 %v1903, %v1904
  %v1906 = vsel %vm551, %v1886, 0.0
  %v1907 = vadd.f32 %v1905, %v1906
  %v1908 = vsel %vm551, %v1887, 0.0
  %v1909 = vadd.f32 %v1907, %v1908
  %v1910 = vsel %vm551, %v1888, 0.0
  %v1911 = vadd.f32 %v1909, %v1910
  %v1912 = vsel %vm551, %v1889, 0.0
  %v1913 = vadd.f32 %v1911, %v1912
  %v1914 = vsel %vm551, %v1890, 0.0
  %v1915 = vadd.f32 %v1913, %v1914
  %v1916 = vsel %vm551, %v1891, 0.0
  %v1917 = vadd.f32 %v1915, %v1916
  %v1918 = vsel %vm551, %v1892, 0.0
  %v1919 = vadd.f32 %v1917, %v1918
  %v1920 = vsel %vm551, %v1893, 0.0
  %v1921 = vadd.f32 %v1919, %v1920
  %v1922 = vsel %vm551, %v1894, 0.0
  %v1923 = vadd.f32 %v1921, %v1922
  %v1924 = vsel %vm551, %v1895, 0.0
  %v1925 = vadd.f32 %v1923, %v1924
  %v1926 = vsel %vm551, %v1896, 0.0
  %v1927 = vadd.f32 %v1925, %v1926
  %v1928 = vsel %vm551, %v1897, 0.0
  %v1929 = vadd.f32 %v1927, %v1928
  %v1930 = vsel %vm551, %v1898, 0.0
  %v1931 = vadd.f32 %v1929, %v1930
  %v1932 = vrot.slane %v1931, 4
  %v1933 = vadd.f32 %v1931, %v1932
  %v1934 = vrot.slane %v1933, 2
  %v1935 = vadd.f32 %v1933, %v1934
  %v1936 = vrot.slane %v1935, 1
  %v1937 = vadd.f32 %v1935, %v1936
  %v1938 = vmul.f32 %v1937, %v589
  %v1939 = vsub.f32 %v1883, %v1938
  %v1940 = vsub.f32 %v1884, %v1938
  %v1941 = vsub.f32 %v1885, %v1938
  %v1942 = vsub.f32 %v1886, %v1938
  %v1943 = vsub.f32 %v1887, %v1938
  %v1944 = vsub.f32 %v1888, %v1938
  %v1945 = vsub.f32 %v1889, %v1938
  %v1946 = vsub.f32 %v1890, %v1938
  %v1947 = vsub.f32 %v1891, %v1938
  %v1948 = vsub.f32 %v1892, %v1938
  %v1949 = vsub.f32 %v1893, %v1938
  %v1950 = vsub.f32 %v1894, %v1938
  %v1951 = vsub.f32 %v1895, %v1938
  %v1952 = vsub.f32 %v1896, %v1938
  %v1953 = vsub.f32 %v1897, %v1938
  %v1954 = vsub.f32 %v1898, %v1938
  %v1955 = vmul.f32 %v1939, %v1939
  %v1956 = vmul.f32 %v1940, %v1940
  %v1957 = vmul.f32 %v1941, %v1941
  %v1958 = vmul.f32 %v1942, %v1942
  %v1959 = vmul.f32 %v1943, %v1943
  %v1960 = vmul.f32 %v1944, %v1944
  %v1961 = vmul.f32 %v1945, %v1945
  %v1962 = vmul.f32 %v1946, %v1946
  %v1963 = vmul.f32 %v1947, %v1947
  %v1964 = vmul.f32 %v1948, %v1948
  %v1965 = vmul.f32 %v1949, %v1949
  %v1966 = vmul.f32 %v1950, %v1950
  %v1967 = vmul.f32 %v1951, %v1951
  %v1968 = vmul.f32 %v1952, %v1952
  %v1969 = vmul.f32 %v1953, %v1953
  %v1970 = vmul.f32 %v1954, %v1954
  %v1971 = vsel %vm551, %v1955, 0.0
  %v1972 = vsel %vm551, %v1956, 0.0
  %v1973 = vadd.f32 %v1971, %v1972
  %v1974 = vsel %vm551, %v1957, 0.0
  %v1975 = vadd.f32 %v1973, %v1974
  %v1976 = vsel %vm551, %v1958, 0.0
  %v1977 = vadd.f32 %v1975, %v1976
  %v1978 = vsel %vm551, %v1959, 0.0
  %v1979 = vadd.f32 %v1977, %v1978
  %v1980 = vsel %vm551, %v1960, 0.0
  %v1981 = vadd.f32 %v1979, %v1980
  %v1982 = vsel %vm551, %v1961, 0.0
  %v1983 = vadd.f32 %v1981, %v1982
  %v1984 = vsel %vm551, %v1962, 0.0
  %v1985 = vadd.f32 %v1983, %v1984
  %v1986 = vsel %vm551, %v1963, 0.0
  %v1987 = vadd.f32 %v1985, %v1986
  %v1988 = vsel %vm551, %v1964, 0.0
  %v1989 = vadd.f32 %v1987, %v1988
  %v1990 = vsel %vm551, %v1965, 0.0
  %v1991 = vadd.f32 %v1989, %v1990
  %v1992 = vsel %vm551, %v1966, 0.0
  %v1993 = vadd.f32 %v1991, %v1992
  %v1994 = vsel %vm551, %v1967, 0.0
  %v1995 = vadd.f32 %v1993, %v1994
  %v1996 = vsel %vm551, %v1968, 0.0
  %v1997 = vadd.f32 %v1995, %v1996
  %v1998 = vsel %vm551, %v1969, 0.0
  %v1999 = vadd.f32 %v1997, %v1998
  %v2000 = vsel %vm551, %v1970, 0.0
  %v2001 = vadd.f32 %v1999, %v2000
  %v2002 = vrot.slane %v2001, 4
  %v2003 = vadd.f32 %v2001, %v2002
  %v2004 = vrot.slane %v2003, 2
  %v2005 = vadd.f32 %v2003, %v2004
  %v2006 = vrot.slane %v2005, 1
  %v2007 = vadd.f32 %v2005, %v2006
  %v2008 = vmul.f32 %v2007, %v589
  %v2009 = vadd.f32 %v2008, 1e-06
  %v2010 = vrsqrt.pop %v2009
  %v2011 = vmul.f32 %v1939, %v2010
  %v2012 = vmul.f32 %v1940, %v2010
  %v2013 = vmul.f32 %v1941, %v2010
  %v2014 = vmul.f32 %v1942, %v2010
  %v2015 = vmul.f32 %v1943, %v2010
  %v2016 = vmul.f32 %v1944, %v2010
  %v2017 = vmul.f32 %v1945, %v2010
  %v2018 = vmul.f32 %v1946, %v2010
  %v2019 = vmul.f32 %v1947, %v2010
  %v2020 = vmul.f32 %v1948, %v2010
  %v2021 = vmul.f32 %v1949, %v2010
  %v2022 = vmul.f32 %v1950, %v2010
  %v2023 = vmul.f32 %v1951, %v2010
  %v2024 = vmul.f32 %v1952, %v2010
  %v2025 = vmul.f32 %v1953, %v2010
  %v2026 = vmul.f32 %v1954, %v2010
  %v2027 = vmul.f32 %v2011, %v1899
  %v2028 = vmul.f32 %v2012, %v1899
  %v2029 = vmul.f32 %v2013, %v1899
  %v2030 = vmul.f32 %v2014, %v1899
  %v2031 = vmul.f32 %v2015, %v1899
  %v2032 = vmul.f32 %v2016, %v1899
  %v2033 = vmul.f32 %v2017, %v1899
  %v2034 = vmul.f32 %v2018, %v1899
  %v2035 = vmul.f32 %v2019, %v1899
  %v2036 = vmul.f32 %v2020, %v1899
  %v2037 = vmul.f32 %v2021, %v1899
  %v2038 = vmul.f32 %v2022, %v1899
  %v2039 = vmul.f32 %v2023, %v1899
  %v2040 = vmul.f32 %v2024, %v1899
  %v2041 = vmul.f32 %v2025, %v1899
  %v2042 = vmul.f32 %v2026, %v1899
  %v2043 = vadd.f32 %v2027, %v1900
  %v2044 = vadd.f32 %v2028, %v1900
  %v2045 = vadd.f32 %v2029, %v1900
  %v2046 = vadd.f32 %v2030, %v1900
  %v2047 = vadd.f32 %v2031, %v1900
  %v2048 = vadd.f32 %v2032, %v1900
  %v2049 = vadd.f32 %v2033, %v1900
  %v2050 = vadd.f32 %v2034, %v1900
  %v2051 = vadd.f32 %v2035, %v1900
  %v2052 = vadd.f32 %v2036, %v1900
  %v2053 = vadd.f32 %v2037, %v1900
  %v2054 = vadd.f32 %v2038, %v1900
  %v2055 = vadd.f32 %v2039, %v1900
  %v2056 = vadd.f32 %v2040, %v1900
  %v2057 = vadd.f32 %v2041, %v1900
  %v2058 = vadd.f32 %v2042, %v1900
  %v2059 = vmax.f32 %v2043, 0.0
  %v2060 = vmax.f32 %v2044, 0.0
  %v2061 = vmax.f32 %v2045, 0.0
  %v2062 = vmax.f32 %v2046, 0.0
  %v2063 = vmax.f32 %v2047, 0.0
  %v2064 = vmax.f32 %v2048, 0.0
  %v2065 = vmax.f32 %v2049, 0.0
  %v2066 = vmax.f32 %v2050, 0.0
  %v2067 = vmax.f32 %v2051, 0.0
  %v2068 = vmax.f32 %v2052, 0.0
  %v2069 = vmax.f32 %v2053, 0.0
  %v2070 = vmax.f32 %v2054, 0.0
  %v2071 = vmax.f32 %v2055, 0.0
  %v2072 = vmax.f32 %v2056, 0.0
  %v2073 = vmax.f32 %v2057, 0.0
  %v2074 = vmax.f32 %v2058, 0.0
  %v2075 = vld [vmem:[%s3 + $0x30] sm:$0xff]
  %v2077 = vsel %vm551, %v2059, 0
  %v2080 = vsel %vm551, %v2060, 0
  %v2083 = vsel %vm551, %v2061, 0
  %v2086 = vsel %vm551, %v2062, 0
  %v2089 = vsel %vm551, %v2063, 0
  %v2092 = vsel %vm551, %v2064, 0
  %v2095 = vsel %vm551, %v2065, 0
  %v2098 = vsel %vm551, %v2066, 0
  %v2101 = vsel %vm551, %v2067, 0
  %v2104 = vsel %vm551, %v2068, 0
  %v2107 = vsel %vm551, %v2069, 0
  %v2110 = vsel %vm551, %v2070, 0
  %v2113 = vsel %vm551, %v2071, 0
  %v2116 = vsel %vm551, %v2072, 0
  %v2119 = vsel %vm551, %v2073, 0
  %v2122 = vsel %vm551, %v2074, 0
  %2124 = vmatprep.subr.mxu0 0.0
  %2125 = vmatpush1.msra.mxu0 %v2075
  %2126 = vmatprep.subr.mxu0 0.0
  %2127 = vmatpush1.msra.mxu0 0.0
  %2128 = vmatprep.subr.mxu0 0.0
  %2129 = vmatpush1.msra.mxu0 0.0
  %2130 = vmatprep.subr.mxu0 0.0
  %2131 = vmatpush1.msra.mxu0 0.0
  %2132 = vmatprep.subr.mxu0 0.0
  %2133 = vmatpush1.msra.mxu0 0.0
  %2134 = vmatprep.subr.mxu0 0.0
  %2135 = vmatpush1.msra.mxu0 0.0
  %2136 = vmatprep.subr.mxu0 0.0
  %2137 = vmatpush1.msra.mxu0 0.0
  %2138 = vmatprep.subr.mxu0 0.0
  %2139 = vmatpush1.msra.mxu0 0.0
  %2140 = vmatprep.subr.mxu0 0.0
  %2141 = vmatpush1.msra.mxu0 0.0
  %2142 = vmatprep.subr.mxu0 0.0
  %2143 = vmatpush1.msra.mxu0 0.0
  %2144 = vmatprep.subr.mxu0 0.0
  %2145 = vmatpush1.msra.mxu0 0.0
  %2146 = vmatprep.subr.mxu0 0.0
  %2147 = vmatpush1.msra.mxu0 0.0
  %2148 = vmatprep.subr.mxu0 0.0
  %2149 = vmatpush1.msra.mxu0 0.0
  %2150 = vmatprep.subr.mxu0 0.0
  %2151 = vmatpush1.msra.mxu0 0.0
  %2152 = vmatprep.subr.mxu0 0.0
  %2153 = vmatpush1.msra.mxu0 0.0
  %2154 = vmatprep.subr.mxu0 0.0
  %2155 = vmatpush1.msra.mxu0 0.0
  %2156 = vmatprep.subr.mxu0 0.0
  %2157 = vmatpush1.msra.mxu0 0.0
  %2158 = vmatprep.subr.mxu0 0.0
  %2159 = vmatpush1.msra.mxu0 0.0
  %2160 = vmatprep.subr.mxu0 0.0
  %2161 = vmatpush1.msra.mxu0 0.0
  %2162 = vmatprep.subr.mxu0 0.0
  %2163 = vmatpush1.msra.mxu0 0.0
  %2164 = vmatprep.subr.mxu0 0.0
  %2165 = vmatpush1.msra.mxu0 0.0
  %2166 = vmatprep.subr.mxu0 0.0
  %2167 = vmatpush1.msra.mxu0 0.0
  %2168 = vmatprep.subr.mxu0 0.0
  %2169 = vmatpush1.msra.mxu0 0.0
  %2170 = vmatprep.subr.mxu0 0.0
  %2171 = vmatpush1.msra.mxu0 0.0
  %2172 = vmatprep.subr.mxu0 0.0
  %2173 = vmatpush1.msra.mxu0 0.0
  %2174 = vmatprep.subr.mxu0 0.0
  %2175 = vmatpush1.msra.mxu0 0.0
  %2176 = vmatprep.subr.mxu0 0.0
  %2177 = vmatpush1.msra.mxu0 0.0
  %2178 = vmatprep.subr.mxu0 0.0
  %2179 = vmatpush1.msra.mxu0 0.0
  %2180 = vmatprep.subr.mxu0 0.0
  %2181 = vmatpush1.msra.mxu0 0.0
  %2182 = vmatprep.subr.mxu0 0.0
  %2183 = vmatpush1.msra.mxu0 0.0
  %2184 = vmatprep.subr.mxu0 0.0
  %2185 = vmatpush1.msra.mxu0 0.0
  %2186 = vmatprep.subr.mxu0 0.0
  %2187 = vmatpush1.msra.mxu0 0.0
  %2188 = vmatprep.mubr.f32.mxu0 0.0
  %2189 = vmatmul.mubr.f32.gmra.mrb[0].mxu0 %v2077
  %v2190 = vpop.f32.mrb[0].mxu0
  %v2191 = vadd.f32 0.0, %v2190
  %v2192 = vpop.f32.mrb[0].mxu0
  %2193 = vmatprep.mubr.f32.mxu0 0.0
  %2194 = vmatmul.mubr.f32.gmra.mrb[0].mxu0 %v2080
  %v2195 = vpop.f32.mrb[0].mxu0
  %v2196 = vadd.f32 0.0, %v2195
  %v2197 = vpop.f32.mrb[0].mxu0
  %2198 = vmatprep.mubr.f32.mxu0 0.0
  %2199 = vmatmul.mubr.f32.gmra.mrb[0].mxu0 %v2083
  %v2200 = vpop.f32.mrb[0].mxu0
  %v2201 = vadd.f32 0.0, %v2200
  %v2202 = vpop.f32.mrb[0].mxu0
  %2203 = vmatprep.mubr.f32.mxu0 0.0
  %2204 = vmatmul.mubr.f32.gmra.mrb[0].mxu0 %v2086
  %v2205 = vpop.f32.mrb[0].mxu0
  %v2206 = vadd.f32 0.0, %v2205
  %v2207 = vpop.f32.mrb[0].mxu0
  %2208 = vmatprep.mubr.f32.mxu0 0.0
  %2209 = vmatmul.mubr.f32.gmra.mrb[0].mxu0 %v2089
  %v2210 = vpop.f32.mrb[0].mxu0
  %v2211 = vadd.f32 0.0, %v2210
  %v2212 = vpop.f32.mrb[0].mxu0
  %2213 = vmatprep.mubr.f32.mxu0 0.0
  %2214 = vmatmul.mubr.f32.gmra.mrb[0].mxu0 %v2092
  %v2215 = vpop.f32.mrb[0].mxu0
  %v2216 = vadd.f32 0.0, %v2215
  %v2217 = vpop.f32.mrb[0].mxu0
  %2218 = vmatprep.mubr.f32.mxu0 0.0
  %2219 = vmatmul.mubr.f32.gmra.mrb[0].mxu0 %v2095
  %v2220 = vpop.f32.mrb[0].mxu0
  %v2221 = vadd.f32 0.0, %v2220
  %v2222 = vpop.f32.mrb[0].mxu0
  %2223 = vmatprep.mubr.f32.mxu0 0.0
  %2224 = vmatmul.mubr.f32.gmra.mrb[0].mxu0 %v2098
  %v2225 = vpop.f32.mrb[0].mxu0
  %v2226 = vadd.f32 0.0, %v2225
  %v2227 = vpop.f32.mrb[0].mxu0
  %2228 = vmatprep.mubr.f32.mxu0 0.0
  %2229 = vmatmul.mubr.f32.gmra.mrb[0].mxu0 %v2101
  %v2230 = vpop.f32.mrb[0].mxu0
  %v2231 = vadd.f32 0.0, %v2230
  %v2232 = vpop.f32.mrb[0].mxu0
  %2233 = vmatprep.mubr.f32.mxu0 0.0
  %2234 = vmatmul.mubr.f32.gmra.mrb[0].mxu0 %v2104
  %v2235 = vpop.f32.mrb[0].mxu0
  %v2236 = vadd.f32 0.0, %v2235
  %v2237 = vpop.f32.mrb[0].mxu0
  %2238 = vmatprep.mubr.f32.mxu0 0.0
  %2239 = vmatmul.mubr.f32.gmra.mrb[0].mxu0 %v2107
  %v2240 = vpop.f32.mrb[0].mxu0
  %v2241 = vadd.f32 0.0, %v2240
  %v2242 = vpop.f32.mrb[0].mxu0
  %2243 = vmatprep.mubr.f32.mxu0 0.0
  %2244 = vmatmul.mubr.f32.gmra.mrb[0].mxu0 %v2110
  %v2245 = vpop.f32.mrb[0].mxu0
  %v2246 = vadd.f32 0.0, %v2245
  %v2247 = vpop.f32.mrb[0].mxu0
  %2248 = vmatprep.mubr.f32.mxu0 0.0
  %2249 = vmatmul.mubr.f32.gmra.mrb[0].mxu0 %v2113
  %v2250 = vpop.f32.mrb[0].mxu0
  %v2251 = vadd.f32 0.0, %v2250
  %v2252 = vpop.f32.mrb[0].mxu0
  %2253 = vmatprep.mubr.f32.mxu0 0.0
  %2254 = vmatmul.mubr.f32.gmra.mrb[0].mxu0 %v2116
  %v2255 = vpop.f32.mrb[0].mxu0
  %v2256 = vadd.f32 0.0, %v2255
  %v2257 = vpop.f32.mrb[0].mxu0
  %2258 = vmatprep.mubr.f32.mxu0 0.0
  %2259 = vmatmul.mubr.f32.gmra.mrb[0].mxu0 %v2119
  %v2260 = vpop.f32.mrb[0].mxu0
  %v2261 = vadd.f32 0.0, %v2260
  %v2262 = vpop.f32.mrb[0].mxu0
  %2263 = vmatprep.mubr.f32.mxu0 0.0
  %2264 = vmatmul.mubr.f32.gmra.mrb[0].mxu0 %v2122
  %v2265 = vpop.f32.mrb[0].mxu0
  %v2266 = vadd.f32 0.0, %v2265
  %v2267 = vpop.f32.mrb[0].mxu0
  %2268 = vdwg.mxu0
  %v2269 = vld [vmem:[%s2 + $0x4] ss:$0 sm:$0xff]
  %v2270 = vld [vmem:[%s2 + $0x5] ss:$0 sm:$0xff]
  %vm2271 = vcmask 261120
  %v2272 = vsel %vm2271, %v2191, 0.0
  %v2273 = vsel %vm2271, %v2196, 0.0
  %v2274 = vadd.f32 %v2272, %v2273
  %v2275 = vsel %vm2271, %v2201, 0.0
  %v2276 = vadd.f32 %v2274, %v2275
  %v2277 = vsel %vm2271, %v2206, 0.0
  %v2278 = vadd.f32 %v2276, %v2277
  %v2279 = vsel %vm2271, %v2211, 0.0
  %v2280 = vadd.f32 %v2278, %v2279
  %v2281 = vsel %vm2271, %v2216, 0.0
  %v2282 = vadd.f32 %v2280, %v2281
  %v2283 = vsel %vm2271, %v2221, 0.0
  %v2284 = vadd.f32 %v2282, %v2283
  %v2285 = vsel %vm2271, %v2226, 0.0
  %v2286 = vadd.f32 %v2284, %v2285
  %v2287 = vsel %vm2271, %v2231, 0.0
  %v2288 = vadd.f32 %v2286, %v2287
  %v2289 = vsel %vm2271, %v2236, 0.0
  %v2290 = vadd.f32 %v2288, %v2289
  %v2291 = vsel %vm2271, %v2241, 0.0
  %v2292 = vadd.f32 %v2290, %v2291
  %v2293 = vsel %vm2271, %v2246, 0.0
  %v2294 = vadd.f32 %v2292, %v2293
  %v2295 = vsel %vm2271, %v2251, 0.0
  %v2296 = vadd.f32 %v2294, %v2295
  %v2297 = vsel %vm2271, %v2256, 0.0
  %v2298 = vadd.f32 %v2296, %v2297
  %v2299 = vsel %vm2271, %v2261, 0.0
  %v2300 = vadd.f32 %v2298, %v2299
  %v2301 = vsel %vm2271, %v2266, 0.0
  %v2302 = vadd.f32 %v2300, %v2301
  %v2303 = vrot.slane %v2302, 4
  %v2304 = vadd.f32 %v2302, %v2303
  %v2305 = vrot.slane %v2304, 2
  %v2306 = vadd.f32 %v2304, %v2305
  %v2307 = vrot.slane %v2306, 1
  %v2308 = vadd.f32 %v2306, %v2307
  %v2309 = vmul.f32 %v2308, %v589
  %v2310 = vsub.f32 %v2191, %v2309
  %v2311 = vsub.f32 %v2196, %v2309
  %v2312 = vsub.f32 %v2201, %v2309
  %v2313 = vsub.f32 %v2206, %v2309
  %v2314 = vsub.f32 %v2211, %v2309
  %v2315 = vsub.f32 %v2216, %v2309
  %v2316 = vsub.f32 %v2221, %v2309
  %v2317 = vsub.f32 %v2226, %v2309
  %v2318 = vsub.f32 %v2231, %v2309
  %v2319 = vsub.f32 %v2236, %v2309
  %v2320 = vsub.f32 %v2241, %v2309
  %v2321 = vsub.f32 %v2246, %v2309
  %v2322 = vsub.f32 %v2251, %v2309
  %v2323 = vsub.f32 %v2256, %v2309
  %v2324 = vsub.f32 %v2261, %v2309
  %v2325 = vsub.f32 %v2266, %v2309
  %v2326 = vmul.f32 %v2310, %v2310
  %v2327 = vmul.f32 %v2311, %v2311
  %v2328 = vmul.f32 %v2312, %v2312
  %v2329 = vmul.f32 %v2313, %v2313
  %v2330 = vmul.f32 %v2314, %v2314
  %v2331 = vmul.f32 %v2315, %v2315
  %v2332 = vmul.f32 %v2316, %v2316
  %v2333 = vmul.f32 %v2317, %v2317
  %v2334 = vmul.f32 %v2318, %v2318
  %v2335 = vmul.f32 %v2319, %v2319
  %v2336 = vmul.f32 %v2320, %v2320
  %v2337 = vmul.f32 %v2321, %v2321
  %v2338 = vmul.f32 %v2322, %v2322
  %v2339 = vmul.f32 %v2323, %v2323
  %v2340 = vmul.f32 %v2324, %v2324
  %v2341 = vmul.f32 %v2325, %v2325
  %v2342 = vsel %vm2271, %v2326, 0.0
  %v2343 = vsel %vm2271, %v2327, 0.0
  %v2344 = vadd.f32 %v2342, %v2343
  %v2345 = vsel %vm2271, %v2328, 0.0
  %v2346 = vadd.f32 %v2344, %v2345
  %v2347 = vsel %vm2271, %v2329, 0.0
  %v2348 = vadd.f32 %v2346, %v2347
  %v2349 = vsel %vm2271, %v2330, 0.0
  %v2350 = vadd.f32 %v2348, %v2349
  %v2351 = vsel %vm2271, %v2331, 0.0
  %v2352 = vadd.f32 %v2350, %v2351
  %v2353 = vsel %vm2271, %v2332, 0.0
  %v2354 = vadd.f32 %v2352, %v2353
  %v2355 = vsel %vm2271, %v2333, 0.0
  %v2356 = vadd.f32 %v2354, %v2355
  %v2357 = vsel %vm2271, %v2334, 0.0
  %v2358 = vadd.f32 %v2356, %v2357
  %v2359 = vsel %vm2271, %v2335, 0.0
  %v2360 = vadd.f32 %v2358, %v2359
  %v2361 = vsel %vm2271, %v2336, 0.0
  %v2362 = vadd.f32 %v2360, %v2361
  %v2363 = vsel %vm2271, %v2337, 0.0
  %v2364 = vadd.f32 %v2362, %v2363
  %v2365 = vsel %vm2271, %v2338, 0.0
  %v2366 = vadd.f32 %v2364, %v2365
  %v2367 = vsel %vm2271, %v2339, 0.0
  %v2368 = vadd.f32 %v2366, %v2367
  %v2369 = vsel %vm2271, %v2340, 0.0
  %v2370 = vadd.f32 %v2368, %v2369
  %v2371 = vsel %vm2271, %v2341, 0.0
  %v2372 = vadd.f32 %v2370, %v2371
  %v2373 = vrot.slane %v2372, 4
  %v2374 = vadd.f32 %v2372, %v2373
  %v2375 = vrot.slane %v2374, 2
  %v2376 = vadd.f32 %v2374, %v2375
  %v2377 = vrot.slane %v2376, 1
  %v2378 = vadd.f32 %v2376, %v2377
  %v2379 = vmul.f32 %v2378, %v589
  %v2380 = vadd.f32 %v2379, 1e-06
  %v2381 = vrsqrt.pop %v2380
  %v2382 = vmul.f32 %v2310, %v2381
  %v2383 = vmul.f32 %v2311, %v2381
  %v2384 = vmul.f32 %v2312, %v2381
  %v2385 = vmul.f32 %v2313, %v2381
  %v2386 = vmul.f32 %v2314, %v2381
  %v2387 = vmul.f32 %v2315, %v2381
  %v2388 = vmul.f32 %v2316, %v2381
  %v2389 = vmul.f32 %v2317, %v2381
  %v2390 = vmul.f32 %v2318, %v2381
  %v2391 = vmul.f32 %v2319, %v2381
  %v2392 = vmul.f32 %v2320, %v2381
  %v2393 = vmul.f32 %v2321, %v2381
  %v2394 = vmul.f32 %v2322, %v2381
  %v2395 = vmul.f32 %v2323, %v2381
  %v2396 = vmul.f32 %v2324, %v2381
  %v2397 = vmul.f32 %v2325, %v2381
  %v2398 = vmul.f32 %v2382, %v2269
  %v2399 = vmul.f32 %v2383, %v2269
  %v2400 = vmul.f32 %v2384, %v2269
  %v2401 = vmul.f32 %v2385, %v2269
  %v2402 = vmul.f32 %v2386, %v2269
  %v2403 = vmul.f32 %v2387, %v2269
  %v2404 = vmul.f32 %v2388, %v2269
  %v2405 = vmul.f32 %v2389, %v2269
  %v2406 = vmul.f32 %v2390, %v2269
  %v2407 = vmul.f32 %v2391, %v2269
  %v2408 = vmul.f32 %v2392, %v2269
  %v2409 = vmul.f32 %v2393, %v2269
  %v2410 = vmul.f32 %v2394, %v2269
  %v2411 = vmul.f32 %v2395, %v2269
  %v2412 = vmul.f32 %v2396, %v2269
  %v2413 = vmul.f32 %v2397, %v2269
  %v2414 = vadd.f32 %v2398, %v2270
  %v2415 = vadd.f32 %v2399, %v2270
  %v2416 = vadd.f32 %v2400, %v2270
  %v2417 = vadd.f32 %v2401, %v2270
  %v2418 = vadd.f32 %v2402, %v2270
  %v2419 = vadd.f32 %v2403, %v2270
  %v2420 = vadd.f32 %v2404, %v2270
  %v2421 = vadd.f32 %v2405, %v2270
  %v2422 = vadd.f32 %v2406, %v2270
  %v2423 = vadd.f32 %v2407, %v2270
  %v2424 = vadd.f32 %v2408, %v2270
  %v2425 = vadd.f32 %v2409, %v2270
  %v2426 = vadd.f32 %v2410, %v2270
  %v2427 = vadd.f32 %v2411, %v2270
  %v2428 = vadd.f32 %v2412, %v2270
  %v2429 = vadd.f32 %v2413, %v2270
  %v2430 = vld [vmem:[%s3 + $0x40] sm:$0xff]
  %v2431 = vld [vmem:[%s3 + $0x50] sm:$0xff]
  %2432 = vmatprep.subr.mxu0 0.0
  %2433 = vmatpush1.msra.mxu0 %v2430
  %2434 = vmatprep.subr.mxu0 0.0
  %2435 = vmatpush1.msra.mxu0 %v2431
  %2436 = vmatprep.subr.mxu0 0.0
  %2437 = vmatpush1.msra.mxu0 0.0
  %2438 = vmatprep.subr.mxu0 0.0
  %2439 = vmatpush1.msra.mxu0 0.0
  %2440 = vmatprep.subr.mxu0 0.0
  %2441 = vmatpush1.msra.mxu0 0.0
  %2442 = vmatprep.subr.mxu0 0.0
  %2443 = vmatpush1.msra.mxu0 0.0
  %2444 = vmatprep.subr.mxu0 0.0
  %2445 = vmatpush1.msra.mxu0 0.0
  %2446 = vmatprep.subr.mxu0 0.0
  %2447 = vmatpush1.msra.mxu0 0.0
  %2448 = vmatprep.subr.mxu0 0.0
  %2449 = vmatpush1.msra.mxu0 0.0
  %2450 = vmatprep.subr.mxu0 0.0
  %2451 = vmatpush1.msra.mxu0 0.0
  %2452 = vmatprep.subr.mxu0 0.0
  %2453 = vmatpush1.msra.mxu0 0.0
  %2454 = vmatprep.subr.mxu0 0.0
  %2455 = vmatpush1.msra.mxu0 0.0
  %2456 = vmatprep.subr.mxu0 0.0
  %2457 = vmatpush1.msra.mxu0 0.0
  %2458 = vmatprep.subr.mxu0 0.0
  %2459 = vmatpush1.msra.mxu0 0.0
  %2460 = vmatprep.subr.mxu0 0.0
  %2461 = vmatpush1.msra.mxu0 0.0
  %2462 = vmatprep.subr.mxu0 0.0
  %2463 = vmatpush1.msra.mxu0 0.0
  %2464 = vmatprep.subr.mxu0 0.0
  %2465 = vmatpush1.msra.mxu0 0.0
  %2466 = vmatprep.subr.mxu0 0.0
  %2467 = vmatpush1.msra.mxu0 0.0
  %2468 = vmatprep.subr.mxu0 0.0
  %2469 = vmatpush1.msra.mxu0 0.0
  %2470 = vmatprep.subr.mxu0 0.0
  %2471 = vmatpush1.msra.mxu0 0.0
  %2472 = vmatprep.subr.mxu0 0.0
  %2473 = vmatpush1.msra.mxu0 0.0
  %2474 = vmatprep.subr.mxu0 0.0
  %2475 = vmatpush1.msra.mxu0 0.0
  %2476 = vmatprep.subr.mxu0 0.0
  %2477 = vmatpush1.msra.mxu0 0.0
  %2478 = vmatprep.subr.mxu0 0.0
  %2479 = vmatpush1.msra.mxu0 0.0
  %2480 = vmatprep.subr.mxu0 0.0
  %2481 = vmatpush1.msra.mxu0 0.0
  %2482 = vmatprep.subr.mxu0 0.0
  %2483 = vmatpush1.msra.mxu0 0.0
  %2484 = vmatprep.subr.mxu0 0.0
  %2485 = vmatpush1.msra.mxu0 0.0
  %2486 = vmatprep.subr.mxu0 0.0
  %2487 = vmatpush1.msra.mxu0 0.0
  %2488 = vmatprep.subr.mxu0 0.0
  %2489 = vmatpush1.msra.mxu0 0.0
  %2490 = vmatprep.subr.mxu0 0.0
  %2491 = vmatpush1.msra.mxu0 0.0
  %2492 = vmatprep.subr.mxu0 0.0
  %2493 = vmatpush1.msra.mxu0 0.0
  %2494 = vmatprep.subr.mxu0 0.0
  %2495 = vmatpush1.msra.mxu0 0.0
  %2496 = vmatprep.mubr.f32.mxu0 0.0
  %2497 = vmatmul.mubr.f32.gmra.mrb[0].mxu0 %v357
  %v2498 = vpop.f32.mrb[0].mxu0
  %v2499 = vadd.f32 0.0, %v2498
  %v2500 = vpop.f32.mrb[0].mxu0
  %2501 = vmatprep.mubr.f32.mxu0 0.0
  %2502 = vmatmul.mubr.f32.gmra.mrb[0].mxu0 %v360
  %v2503 = vpop.f32.mrb[0].mxu0
  %v2504 = vadd.f32 0.0, %v2503
  %v2505 = vpop.f32.mrb[0].mxu0
  %2506 = vmatprep.mubr.f32.mxu0 0.0
  %2507 = vmatmul.mubr.f32.gmra.mrb[0].mxu0 %v363
  %v2508 = vpop.f32.mrb[0].mxu0
  %v2509 = vadd.f32 0.0, %v2508
  %v2510 = vpop.f32.mrb[0].mxu0
  %2511 = vmatprep.mubr.f32.mxu0 0.0
  %2512 = vmatmul.mubr.f32.gmra.mrb[0].mxu0 %v366
  %v2513 = vpop.f32.mrb[0].mxu0
  %v2514 = vadd.f32 0.0, %v2513
  %v2515 = vpop.f32.mrb[0].mxu0
  %2516 = vmatprep.mubr.f32.mxu0 0.0
  %2517 = vmatmul.mubr.f32.gmra.mrb[0].mxu0 %v369
  %v2518 = vpop.f32.mrb[0].mxu0
  %v2519 = vadd.f32 0.0, %v2518
  %v2520 = vpop.f32.mrb[0].mxu0
  %2521 = vmatprep.mubr.f32.mxu0 0.0
  %2522 = vmatmul.mubr.f32.gmra.mrb[0].mxu0 %v372
  %v2523 = vpop.f32.mrb[0].mxu0
  %v2524 = vadd.f32 0.0, %v2523
  %v2525 = vpop.f32.mrb[0].mxu0
  %2526 = vmatprep.mubr.f32.mxu0 0.0
  %2527 = vmatmul.mubr.f32.gmra.mrb[0].mxu0 %v375
  %v2528 = vpop.f32.mrb[0].mxu0
  %v2529 = vadd.f32 0.0, %v2528
  %v2530 = vpop.f32.mrb[0].mxu0
  %2531 = vmatprep.mubr.f32.mxu0 0.0
  %2532 = vmatmul.mubr.f32.gmra.mrb[0].mxu0 %v378
  %v2533 = vpop.f32.mrb[0].mxu0
  %v2534 = vadd.f32 0.0, %v2533
  %v2535 = vpop.f32.mrb[0].mxu0
  %2536 = vmatprep.mubr.f32.mxu0 0.0
  %2537 = vmatmul.mubr.f32.gmra.mrb[0].mxu0 %v381
  %v2538 = vpop.f32.mrb[0].mxu0
  %v2539 = vadd.f32 0.0, %v2538
  %v2540 = vpop.f32.mrb[0].mxu0
  %2541 = vmatprep.mubr.f32.mxu0 0.0
  %2542 = vmatmul.mubr.f32.gmra.mrb[0].mxu0 %v384
  %v2543 = vpop.f32.mrb[0].mxu0
  %v2544 = vadd.f32 0.0, %v2543
  %v2545 = vpop.f32.mrb[0].mxu0
  %2546 = vmatprep.mubr.f32.mxu0 0.0
  %2547 = vmatmul.mubr.f32.gmra.mrb[0].mxu0 %v387
  %v2548 = vpop.f32.mrb[0].mxu0
  %v2549 = vadd.f32 0.0, %v2548
  %v2550 = vpop.f32.mrb[0].mxu0
  %2551 = vmatprep.mubr.f32.mxu0 0.0
  %2552 = vmatmul.mubr.f32.gmra.mrb[0].mxu0 %v390
  %v2553 = vpop.f32.mrb[0].mxu0
  %v2554 = vadd.f32 0.0, %v2553
  %v2555 = vpop.f32.mrb[0].mxu0
  %2556 = vmatprep.mubr.f32.mxu0 0.0
  %2557 = vmatmul.mubr.f32.gmra.mrb[0].mxu0 %v393
  %v2558 = vpop.f32.mrb[0].mxu0
  %v2559 = vadd.f32 0.0, %v2558
  %v2560 = vpop.f32.mrb[0].mxu0
  %2561 = vmatprep.mubr.f32.mxu0 0.0
  %2562 = vmatmul.mubr.f32.gmra.mrb[0].mxu0 %v396
  %v2563 = vpop.f32.mrb[0].mxu0
  %v2564 = vadd.f32 0.0, %v2563
  %v2565 = vpop.f32.mrb[0].mxu0
  %2566 = vmatprep.mubr.f32.mxu0 0.0
  %2567 = vmatmul.mubr.f32.gmra.mrb[0].mxu0 %v399
  %v2568 = vpop.f32.mrb[0].mxu0
  %v2569 = vadd.f32 0.0, %v2568
  %v2570 = vpop.f32.mrb[0].mxu0
  %2571 = vmatprep.mubr.f32.mxu0 0.0
  %2572 = vmatmul.mubr.f32.gmra.mrb[0].mxu0 %v402
  %v2573 = vpop.f32.mrb[0].mxu0
  %v2574 = vadd.f32 0.0, %v2573
  %v2575 = vpop.f32.mrb[0].mxu0
  %2576 = vdwg.mxu0
  %v2577 = vld [vmem:[%s2 + $0x6] ss:$0 sm:$0xff]
  %v2578 = vld [vmem:[%s2 + $0x7] ss:$0 sm:$0xff]
  %v2579 = vsel %vm2271, %v2499, 0.0
  %v2580 = vsel %vm2271, %v2504, 0.0
  %v2581 = vadd.f32 %v2579, %v2580
  %v2582 = vsel %vm2271, %v2509, 0.0
  %v2583 = vadd.f32 %v2581, %v2582
  %v2584 = vsel %vm2271, %v2514, 0.0
  %v2585 = vadd.f32 %v2583, %v2584
  %v2586 = vsel %vm2271, %v2519, 0.0
  %v2587 = vadd.f32 %v2585, %v2586
  %v2588 = vsel %vm2271, %v2524, 0.0
  %v2589 = vadd.f32 %v2587, %v2588
  %v2590 = vsel %vm2271, %v2529, 0.0
  %v2591 = vadd.f32 %v2589, %v2590
  %v2592 = vsel %vm2271, %v2534, 0.0
  %v2593 = vadd.f32 %v2591, %v2592
  %v2594 = vsel %vm2271, %v2539, 0.0
  %v2595 = vadd.f32 %v2593, %v2594
  %v2596 = vsel %vm2271, %v2544, 0.0
  %v2597 = vadd.f32 %v2595, %v2596
  %v2598 = vsel %vm2271, %v2549, 0.0
  %v2599 = vadd.f32 %v2597, %v2598
  %v2600 = vsel %vm2271, %v2554, 0.0
  %v2601 = vadd.f32 %v2599, %v2600
  %v2602 = vsel %vm2271, %v2559, 0.0
  %v2603 = vadd.f32 %v2601, %v2602
  %v2604 = vsel %vm2271, %v2564, 0.0
  %v2605 = vadd.f32 %v2603, %v2604
  %v2606 = vsel %vm2271, %v2569, 0.0
  %v2607 = vadd.f32 %v2605, %v2606
  %v2608 = vsel %vm2271, %v2574, 0.0
  %v2609 = vadd.f32 %v2607, %v2608
  %v2610 = vrot.slane %v2609, 4
  %v2611 = vadd.f32 %v2609, %v2610
  %v2612 = vrot.slane %v2611, 2
  %v2613 = vadd.f32 %v2611, %v2612
  %v2614 = vrot.slane %v2613, 1
  %v2615 = vadd.f32 %v2613, %v2614
  %v2616 = vmul.f32 %v2615, %v589
  %v2617 = vsub.f32 %v2499, %v2616
  %v2618 = vsub.f32 %v2504, %v2616
  %v2619 = vsub.f32 %v2509, %v2616
  %v2620 = vsub.f32 %v2514, %v2616
  %v2621 = vsub.f32 %v2519, %v2616
  %v2622 = vsub.f32 %v2524, %v2616
  %v2623 = vsub.f32 %v2529, %v2616
  %v2624 = vsub.f32 %v2534, %v2616
  %v2625 = vsub.f32 %v2539, %v2616
  %v2626 = vsub.f32 %v2544, %v2616
  %v2627 = vsub.f32 %v2549, %v2616
  %v2628 = vsub.f32 %v2554, %v2616
  %v2629 = vsub.f32 %v2559, %v2616
  %v2630 = vsub.f32 %v2564, %v2616
  %v2631 = vsub.f32 %v2569, %v2616
  %v2632 = vsub.f32 %v2574, %v2616
  %v2633 = vmul.f32 %v2617, %v2617
  %v2634 = vmul.f32 %v2618, %v2618
  %v2635 = vmul.f32 %v2619, %v2619
  %v2636 = vmul.f32 %v2620, %v2620
  %v2637 = vmul.f32 %v2621, %v2621
  %v2638 = vmul.f32 %v2622, %v2622
  %v2639 = vmul.f32 %v2623, %v2623
  %v2640 = vmul.f32 %v2624, %v2624
  %v2641 = vmul.f32 %v2625, %v2625
  %v2642 = vmul.f32 %v2626, %v2626
  %v2643 = vmul.f32 %v2627, %v2627
  %v2644 = vmul.f32 %v2628, %v2628
  %v2645 = vmul.f32 %v2629, %v2629
  %v2646 = vmul.f32 %v2630, %v2630
  %v2647 = vmul.f32 %v2631, %v2631
  %v2648 = vmul.f32 %v2632, %v2632
  %v2649 = vsel %vm2271, %v2633, 0.0
  %v2650 = vsel %vm2271, %v2634, 0.0
  %v2651 = vadd.f32 %v2649, %v2650
  %v2652 = vsel %vm2271, %v2635, 0.0
  %v2653 = vadd.f32 %v2651, %v2652
  %v2654 = vsel %vm2271, %v2636, 0.0
  %v2655 = vadd.f32 %v2653, %v2654
  %v2656 = vsel %vm2271, %v2637, 0.0
  %v2657 = vadd.f32 %v2655, %v2656
  %v2658 = vsel %vm2271, %v2638, 0.0
  %v2659 = vadd.f32 %v2657, %v2658
  %v2660 = vsel %vm2271, %v2639, 0.0
  %v2661 = vadd.f32 %v2659, %v2660
  %v2662 = vsel %vm2271, %v2640, 0.0
  %v2663 = vadd.f32 %v2661, %v2662
  %v2664 = vsel %vm2271, %v2641, 0.0
  %v2665 = vadd.f32 %v2663, %v2664
  %v2666 = vsel %vm2271, %v2642, 0.0
  %v2667 = vadd.f32 %v2665, %v2666
  %v2668 = vsel %vm2271, %v2643, 0.0
  %v2669 = vadd.f32 %v2667, %v2668
  %v2670 = vsel %vm2271, %v2644, 0.0
  %v2671 = vadd.f32 %v2669, %v2670
  %v2672 = vsel %vm2271, %v2645, 0.0
  %v2673 = vadd.f32 %v2671, %v2672
  %v2674 = vsel %vm2271, %v2646, 0.0
  %v2675 = vadd.f32 %v2673, %v2674
  %v2676 = vsel %vm2271, %v2647, 0.0
  %v2677 = vadd.f32 %v2675, %v2676
  %v2678 = vsel %vm2271, %v2648, 0.0
  %v2679 = vadd.f32 %v2677, %v2678
  %v2680 = vrot.slane %v2679, 4
  %v2681 = vadd.f32 %v2679, %v2680
  %v2682 = vrot.slane %v2681, 2
  %v2683 = vadd.f32 %v2681, %v2682
  %v2684 = vrot.slane %v2683, 1
  %v2685 = vadd.f32 %v2683, %v2684
  %v2686 = vmul.f32 %v2685, %v589
  %v2687 = vadd.f32 %v2686, 1e-06
  %v2688 = vrsqrt.pop %v2687
  %v2689 = vmul.f32 %v2617, %v2688
  %v2690 = vmul.f32 %v2618, %v2688
  %v2691 = vmul.f32 %v2619, %v2688
  %v2692 = vmul.f32 %v2620, %v2688
  %v2693 = vmul.f32 %v2621, %v2688
  %v2694 = vmul.f32 %v2622, %v2688
  %v2695 = vmul.f32 %v2623, %v2688
  %v2696 = vmul.f32 %v2624, %v2688
  %v2697 = vmul.f32 %v2625, %v2688
  %v2698 = vmul.f32 %v2626, %v2688
  %v2699 = vmul.f32 %v2627, %v2688
  %v2700 = vmul.f32 %v2628, %v2688
  %v2701 = vmul.f32 %v2629, %v2688
  %v2702 = vmul.f32 %v2630, %v2688
  %v2703 = vmul.f32 %v2631, %v2688
  %v2704 = vmul.f32 %v2632, %v2688
  %v2705 = vmul.f32 %v2689, %v2577
  %v2706 = vmul.f32 %v2690, %v2577
  %v2707 = vmul.f32 %v2691, %v2577
  %v2708 = vmul.f32 %v2692, %v2577
  %v2709 = vmul.f32 %v2693, %v2577
  %v2710 = vmul.f32 %v2694, %v2577
  %v2711 = vmul.f32 %v2695, %v2577
  %v2712 = vmul.f32 %v2696, %v2577
  %v2713 = vmul.f32 %v2697, %v2577
  %v2714 = vmul.f32 %v2698, %v2577
  %v2715 = vmul.f32 %v2699, %v2577
  %v2716 = vmul.f32 %v2700, %v2577
  %v2717 = vmul.f32 %v2701, %v2577
  %v2718 = vmul.f32 %v2702, %v2577
  %v2719 = vmul.f32 %v2703, %v2577
  %v2720 = vmul.f32 %v2704, %v2577
  %v2721 = vadd.f32 %v2705, %v2578
  %v2722 = vadd.f32 %v2706, %v2578
  %v2723 = vadd.f32 %v2707, %v2578
  %v2724 = vadd.f32 %v2708, %v2578
  %v2725 = vadd.f32 %v2709, %v2578
  %v2726 = vadd.f32 %v2710, %v2578
  %v2727 = vadd.f32 %v2711, %v2578
  %v2728 = vadd.f32 %v2712, %v2578
  %v2729 = vadd.f32 %v2713, %v2578
  %v2730 = vadd.f32 %v2714, %v2578
  %v2731 = vadd.f32 %v2715, %v2578
  %v2732 = vadd.f32 %v2716, %v2578
  %v2733 = vadd.f32 %v2717, %v2578
  %v2734 = vadd.f32 %v2718, %v2578
  %v2735 = vadd.f32 %v2719, %v2578
  %v2736 = vadd.f32 %v2720, %v2578
  %v2737 = vadd.f32 %v2414, %v2721
  %v2738 = vadd.f32 %v2415, %v2722
  %v2739 = vadd.f32 %v2416, %v2723
  %v2740 = vadd.f32 %v2417, %v2724
  %v2741 = vadd.f32 %v2418, %v2725
  %v2742 = vadd.f32 %v2419, %v2726
  %v2743 = vadd.f32 %v2420, %v2727
  %v2744 = vadd.f32 %v2421, %v2728
  %v2745 = vadd.f32 %v2422, %v2729
  %v2746 = vadd.f32 %v2423, %v2730
  %v2747 = vadd.f32 %v2424, %v2731
  %v2748 = vadd.f32 %v2425, %v2732
  %v2749 = vadd.f32 %v2426, %v2733
  %v2750 = vadd.f32 %v2427, %v2734
  %v2751 = vadd.f32 %v2428, %v2735
  %v2752 = vadd.f32 %v2429, %v2736
  %v2753 = vmax.f32 %v2737, 0.0
  %v2754 = vmax.f32 %v2738, 0.0
  %v2755 = vmax.f32 %v2739, 0.0
  %v2756 = vmax.f32 %v2740, 0.0
  %v2757 = vmax.f32 %v2741, 0.0
  %v2758 = vmax.f32 %v2742, 0.0
  %v2759 = vmax.f32 %v2743, 0.0
  %v2760 = vmax.f32 %v2744, 0.0
  %v2761 = vmax.f32 %v2745, 0.0
  %v2762 = vmax.f32 %v2746, 0.0
  %v2763 = vmax.f32 %v2747, 0.0
  %v2764 = vmax.f32 %v2748, 0.0
  %v2765 = vmax.f32 %v2749, 0.0
  %v2766 = vmax.f32 %v2750, 0.0
  %v2767 = vmax.f32 %v2751, 0.0
  %v2768 = vmax.f32 %v2752, 0.0
  %v2769 = vld [vmem:[%s3 + $0xc0] sm:$0xff]
  %v2770 = vld [vmem:[%s2 + $0x16] ss:$0 sm:$0xff]
  %2771 = vmatprep.subr.mxu0 0.0
  %2772 = vmatpush1.msra.mxu0 %v2769
  %2773 = vmatprep.subr.mxu0 0.0
  %2774 = vmatpush1.msra.mxu0 0.0
  %2775 = vmatprep.subr.mxu0 0.0
  %2776 = vmatpush1.msra.mxu0 0.0
  %2777 = vmatprep.subr.mxu0 0.0
  %2778 = vmatpush1.msra.mxu0 0.0
  %2779 = vmatprep.subr.mxu0 0.0
  %2780 = vmatpush1.msra.mxu0 0.0
  %2781 = vmatprep.subr.mxu0 0.0
  %2782 = vmatpush1.msra.mxu0 0.0
  %2783 = vmatprep.subr.mxu0 0.0
  %2784 = vmatpush1.msra.mxu0 0.0
  %2785 = vmatprep.subr.mxu0 0.0
  %2786 = vmatpush1.msra.mxu0 0.0
  %2787 = vmatprep.subr.mxu0 0.0
  %2788 = vmatpush1.msra.mxu0 0.0
  %2789 = vmatprep.subr.mxu0 0.0
  %2790 = vmatpush1.msra.mxu0 0.0
  %2791 = vmatprep.subr.mxu0 0.0
  %2792 = vmatpush1.msra.mxu0 0.0
  %2793 = vmatprep.subr.mxu0 0.0
  %2794 = vmatpush1.msra.mxu0 0.0
  %2795 = vmatprep.subr.mxu0 0.0
  %2796 = vmatpush1.msra.mxu0 0.0
  %2797 = vmatprep.subr.mxu0 0.0
  %2798 = vmatpush1.msra.mxu0 0.0
  %2799 = vmatprep.subr.mxu0 0.0
  %2800 = vmatpush1.msra.mxu0 0.0
  %2801 = vmatprep.subr.mxu0 0.0
  %2802 = vmatpush1.msra.mxu0 0.0
  %2803 = vmatprep.subr.mxu0 0.0
  %2804 = vmatpush1.msra.mxu0 0.0
  %2805 = vmatprep.subr.mxu0 0.0
  %2806 = vmatpush1.msra.mxu0 0.0
  %2807 = vmatprep.subr.mxu0 0.0
  %2808 = vmatpush1.msra.mxu0 0.0
  %2809 = vmatprep.subr.mxu0 0.0
  %2810 = vmatpush1.msra.mxu0 0.0
  %2811 = vmatprep.subr.mxu0 0.0
  %2812 = vmatpush1.msra.mxu0 0.0
  %2813 = vmatprep.subr.mxu0 0.0
  %2814 = vmatpush1.msra.mxu0 0.0
  %2815 = vmatprep.subr.mxu0 0.0
  %2816 = vmatpush1.msra.mxu0 0.0
  %2817 = vmatprep.subr.mxu0 0.0
  %2818 = vmatpush1.msra.mxu0 0.0
  %2819 = vmatprep.subr.mxu0 0.0
  %2820 = vmatpush1.msra.mxu0 0.0
  %2821 = vmatprep.subr.mxu0 0.0
  %2822 = vmatpush1.msra.mxu0 0.0
  %2823 = vmatprep.subr.mxu0 0.0
  %2824 = vmatpush1.msra.mxu0 0.0
  %2825 = vmatprep.subr.mxu0 0.0
  %2826 = vmatpush1.msra.mxu0 0.0
  %2827 = vmatprep.subr.mxu0 0.0
  %2828 = vmatpush1.msra.mxu0 0.0
  %2829 = vmatprep.subr.mxu0 0.0
  %2830 = vmatpush1.msra.mxu0 0.0
  %2831 = vmatprep.subr.mxu0 0.0
  %2832 = vmatpush1.msra.mxu0 0.0
  %2833 = vmatprep.subr.mxu0 0.0
  %2834 = vmatpush1.msra.mxu0 0.0
  %2835 = vmatprep.mubr.f32.mxu0 0.0
  %2836 = vmatmul.mubr.f32.gmra.mrb[0].mxu0 %v2077
  %v2837 = vpop.f32.mrb[0].mxu0
  %v2838 = vadd.f32 %v2770, %v2837
  %v2839 = vpop.f32.mrb[0].mxu0
  %2840 = vmatprep.mubr.f32.mxu0 0.0
  %2841 = vmatmul.mubr.f32.gmra.mrb[0].mxu0 %v2080
  %v2842 = vpop.f32.mrb[0].mxu0
  %v2843 = vadd.f32 %v2770, %v2842
  %v2844 = vpop.f32.mrb[0].mxu0
  %2845 = vmatprep.mubr.f32.mxu0 0.0
  %2846 = vmatmul.mubr.f32.gmra.mrb[0].mxu0 %v2083
  %v2847 = vpop.f32.mrb[0].mxu0
  %v2848 = vadd.f32 %v2770, %v2847
  %v2849 = vpop.f32.mrb[0].mxu0
  %2850 = vmatprep.mubr.f32.mxu0 0.0
  %2851 = vmatmul.mubr.f32.gmra.mrb[0].mxu0 %v2086
  %v2852 = vpop.f32.mrb[0].mxu0
  %v2853 = vadd.f32 %v2770, %v2852
  %v2854 = vpop.f32.mrb[0].mxu0
  %2855 = vmatprep.mubr.f32.mxu0 0.0
  %2856 = vmatmul.mubr.f32.gmra.mrb[0].mxu0 %v2089
  %v2857 = vpop.f32.mrb[0].mxu0
  %v2858 = vadd.f32 %v2770, %v2857
  %v2859 = vpop.f32.mrb[0].mxu0
  %2860 = vmatprep.mubr.f32.mxu0 0.0
  %2861 = vmatmul.mubr.f32.gmra.mrb[0].mxu0 %v2092
  %v2862 = vpop.f32.mrb[0].mxu0
  %v2863 = vadd.f32 %v2770, %v2862
  %v2864 = vpop.f32.mrb[0].mxu0
  %2865 = vmatprep.mubr.f32.mxu0 0.0
  %2866 = vmatmul.mubr.f32.gmra.mrb[0].mxu0 %v2095
  %v2867 = vpop.f32.mrb[0].mxu0
  %v2868 = vadd.f32 %v2770, %v2867
  %v2869 = vpop.f32.mrb[0].mxu0
  %2870 = vmatprep.mubr.f32.mxu0 0.0
  %2871 = vmatmul.mubr.f32.gmra.mrb[0].mxu0 %v2098
  %v2872 = vpop.f32.mrb[0].mxu0
  %v2873 = vadd.f32 %v2770, %v2872
  %v2874 = vpop.f32.mrb[0].mxu0
  %2875 = vmatprep.mubr.f32.mxu0 0.0
  %2876 = vmatmul.mubr.f32.gmra.mrb[0].mxu0 %v2101
  %v2877 = vpop.f32.mrb[0].mxu0
  %v2878 = vadd.f32 %v2770, %v2877
  %v2879 = vpop.f32.mrb[0].mxu0
  %2880 = vmatprep.mubr.f32.mxu0 0.0
  %2881 = vmatmul.mubr.f32.gmra.mrb[0].mxu0 %v2104
  %v2882 = vpop.f32.mrb[0].mxu0
  %v2883 = vadd.f32 %v2770, %v2882
  %v2884 = vpop.f32.mrb[0].mxu0
  %2885 = vmatprep.mubr.f32.mxu0 0.0
  %2886 = vmatmul.mubr.f32.gmra.mrb[0].mxu0 %v2107
  %v2887 = vpop.f32.mrb[0].mxu0
  %v2888 = vadd.f32 %v2770, %v2887
  %v2889 = vpop.f32.mrb[0].mxu0
  %2890 = vmatprep.mubr.f32.mxu0 0.0
  %2891 = vmatmul.mubr.f32.gmra.mrb[0].mxu0 %v2110
  %v2892 = vpop.f32.mrb[0].mxu0
  %v2893 = vadd.f32 %v2770, %v2892
  %v2894 = vpop.f32.mrb[0].mxu0
  %2895 = vmatprep.mubr.f32.mxu0 0.0
  %2896 = vmatmul.mubr.f32.gmra.mrb[0].mxu0 %v2113
  %v2897 = vpop.f32.mrb[0].mxu0
  %v2898 = vadd.f32 %v2770, %v2897
  %v2899 = vpop.f32.mrb[0].mxu0
  %2900 = vmatprep.mubr.f32.mxu0 0.0
  %2901 = vmatmul.mubr.f32.gmra.mrb[0].mxu0 %v2116
  %v2902 = vpop.f32.mrb[0].mxu0
  %v2903 = vadd.f32 %v2770, %v2902
  %v2904 = vpop.f32.mrb[0].mxu0
  %2905 = vmatprep.mubr.f32.mxu0 0.0
  %2906 = vmatmul.mubr.f32.gmra.mrb[0].mxu0 %v2119
  %v2907 = vpop.f32.mrb[0].mxu0
  %v2908 = vadd.f32 %v2770, %v2907
  %v2909 = vpop.f32.mrb[0].mxu0
  %2910 = vmatprep.mubr.f32.mxu0 0.0
  %2911 = vmatmul.mubr.f32.gmra.mrb[0].mxu0 %v2122
  %v2912 = vpop.f32.mrb[0].mxu0
  %v2913 = vadd.f32 %v2770, %v2912
  %v2914 = vpop.f32.mrb[0].mxu0
  %2915 = vdwg.mxu0
  %v2916 = vshra.s32 %v20, 4
  %v2917 = vshra.s32 %v21, 4
  %v2918 = vshra.s32 %v22, 4
  %v2919 = vshra.s32 %v23, 4
  %v2920 = vshra.s32 %v20, 2
  %v2921 = vshra.s32 %v21, 2
  %v2922 = vshra.s32 %v22, 2
  %v2923 = vshra.s32 %v23, 2
  %v2924 = vand.u32 %v2920, 3
  %v2925 = vand.u32 %v2921, 3
  %v2926 = vand.u32 %v2922, 3
  %v2927 = vand.u32 %v2923, 3
  %v2928 = vand.u32 %v20, 3
  %v2929 = vand.u32 %v21, 3
  %v2930 = vand.u32 %v22, 3
  %v2931 = vand.u32 %v23, 3
  %v2932 = vshra.s32 %v85, 6
  %v2933 = vshra.s32 %v85, 3
  %v2934 = vand.u32 %v2933, 7
  %v2935 = vand.u32 %v85, 7
  %vm2936 = vcmp.eq.s32.totalorder %v2916, %v2932
  %vm2937 = vcmp.eq.s32.totalorder %v2917, %v2932
  %vm2938 = vcmp.eq.s32.totalorder %v2918, %v2932
  %vm2939 = vcmp.eq.s32.totalorder %v2919, %v2932
  %v2940 = vshra.s32 %v2934, 1
  %vm2941 = vcmp.eq.s32.totalorder %v2940, %v2924
  %vm2942 = vcmp.eq.s32.totalorder %v2940, %v2925
  %vm2943 = vcmp.eq.s32.totalorder %v2940, %v2926
  %vm2944 = vcmp.eq.s32.totalorder %v2940, %v2927
  %vm2945 = vmand %vm2936, %vm2941
  %vm2946 = vmand %vm2937, %vm2942
  %vm2947 = vmand %vm2938, %vm2943
  %vm2948 = vmand %vm2939, %vm2944
  %v2949 = vshra.s32 %v2935, 1
  %vm2950 = vcmp.eq.s32.totalorder %v2949, %v2928
  %vm2951 = vcmp.eq.s32.totalorder %v2949, %v2929
  %vm2952 = vcmp.eq.s32.totalorder %v2949, %v2930
  %vm2953 = vcmp.eq.s32.totalorder %v2949, %v2931
  %vm2954 = vmand %vm2945, %vm2950
  %vm2955 = vmand %vm2946, %vm2951
  %vm2956 = vmand %vm2947, %vm2952
  %vm2957 = vmand %vm2948, %vm2953
  %v2958 = vsel %vm2954, 0.25, 0.0
  %v2959 = vsel %vm2955, 0.25, 0.0
  %v2960 = vsel %vm2956, 0.25, 0.0
  %v2961 = vsel %vm2957, 0.25, 0.0
  %2962 = vmatprep.subr.mxu0 0.0
  %2963 = vmatpush1.msra.mxu0 %v2838
  %2964 = vmatprep.subr.mxu0 0.0
  %2965 = vmatpush1.msra.mxu0 %v2843
  %2966 = vmatprep.subr.mxu0 0.0
  %2967 = vmatpush1.msra.mxu0 %v2848
  %2968 = vmatprep.subr.mxu0 0.0
  %2969 = vmatpush1.msra.mxu0 %v2853
  %2970 = vmatprep.subr.mxu0 0.0
  %2971 = vmatpush1.msra.mxu0 %v2858
  %2972 = vmatprep.subr.mxu0 0.0
  %2973 = vmatpush1.msra.mxu0 %v2863
  %2974 = vmatprep.subr.mxu0 0.0
  %2975 = vmatpush1.msra.mxu0 %v2868
  %2976 = vmatprep.subr.mxu0 0.0
  %2977 = vmatpush1.msra.mxu0 %v2873
  %2978 = vmatprep.subr.mxu0 0.0
  %2979 = vmatpush1.msra.mxu0 %v2878
  %2980 = vmatprep.subr.mxu0 0.0
  %2981 = vmatpush1.msra.mxu0 %v2883
  %2982 = vmatprep.subr.mxu0 0.0
  %2983 = vmatpush1.msra.mxu0 %v2888
  %2984 = vmatprep.subr.mxu0 0.0
  %2985 = vmatpush1.msra.mxu0 %v2893
  %2986 = vmatprep.subr.mxu0 0.0
  %2987 = vmatpush1.msra.mxu0 %v2898
  %2988 = vmatprep.subr.mxu0 0.0
  %2989 = vmatpush1.msra.mxu0 %v2903
  %2990 = vmatprep.subr.mxu0 0.0
  %2991 = vmatpush1.msra.mxu0 %v2908
  %2992 = vmatprep.subr.mxu0 0.0
  %2993 = vmatpush1.msra.mxu0 %v2913
  %2994 = vmatprep.subr.mxu0 0.0
  %2995 = vmatpush1.msra.mxu0 0.0
  %2996 = vmatprep.subr.mxu0 0.0
  %2997 = vmatpush1.msra.mxu0 0.0
  %2998 = vmatprep.subr.mxu0 0.0
  %2999 = vmatpush1.msra.mxu0 0.0
  %3000 = vmatprep.subr.mxu0 0.0
  %3001 = vmatpush1.msra.mxu0 0.0
  %3002 = vmatprep.subr.mxu0 0.0
  %3003 = vmatpush1.msra.mxu0 0.0
  %3004 = vmatprep.subr.mxu0 0.0
  %3005 = vmatpush1.msra.mxu0 0.0
  %3006 = vmatprep.subr.mxu0 0.0
  %3007 = vmatpush1.msra.mxu0 0.0
  %3008 = vmatprep.subr.mxu0 0.0
  %3009 = vmatpush1.msra.mxu0 0.0
  %3010 = vmatprep.subr.mxu0 0.0
  %3011 = vmatpush1.msra.mxu0 0.0
  %3012 = vmatprep.subr.mxu0 0.0
  %3013 = vmatpush1.msra.mxu0 0.0
  %3014 = vmatprep.subr.mxu0 0.0
  %3015 = vmatpush1.msra.mxu0 0.0
  %3016 = vmatprep.subr.mxu0 0.0
  %3017 = vmatpush1.msra.mxu0 0.0
  %3018 = vmatprep.subr.mxu0 0.0
  %3019 = vmatpush1.msra.mxu0 0.0
  %3020 = vmatprep.subr.mxu0 0.0
  %3021 = vmatpush1.msra.mxu0 0.0
  %3022 = vmatprep.subr.mxu0 0.0
  %3023 = vmatpush1.msra.mxu0 0.0
  %3024 = vmatprep.subr.mxu0 0.0
  %3025 = vmatpush1.msra.mxu0 0.0
  %3026 = vmatprep.mubr.f32.mxu0 0.0
  %3027 = vmatmul.mubr.f32.gmra.mrb[0].mxu0 %v2958
  %v3028 = vpop.f32.mrb[0].mxu0
  %v3029 = vadd.f32 0.0, %v3028
  %v3030 = vpop.f32.mrb[0].mxu0
  %3031 = vmatprep.mubr.f32.mxu0 0.0
  %3032 = vmatmul.mubr.f32.gmra.mrb[0].mxu0 %v2959
  %v3033 = vpop.f32.mrb[0].mxu0
  %v3034 = vadd.f32 0.0, %v3033
  %v3035 = vpop.f32.mrb[0].mxu0
  %3036 = vmatprep.mubr.f32.mxu0 0.0
  %3037 = vmatmul.mubr.f32.gmra.mrb[0].mxu0 %v2960
  %v3038 = vpop.f32.mrb[0].mxu0
  %v3039 = vadd.f32 0.0, %v3038
  %v3040 = vpop.f32.mrb[0].mxu0
  %3041 = vmatprep.mubr.f32.mxu0 0.0
  %3042 = vmatmul.mubr.f32.gmra.mrb[0].mxu0 %v2961
  %v3043 = vpop.f32.mrb[0].mxu0
  %v3044 = vadd.f32 0.0, %v3043
  %v3045 = vpop.f32.mrb[0].mxu0
  %3046 = vdwg.mxu0
  %v3047 = vld [vmem:[%s2 + $0x17] ss:$0 sm:$0xff]
  %v3048 = vld [vmem:[%s2 + $0x20] ss:$0 sm:$0xff]
  %vm3049 = vcmask 392192
  %v3050 = vsel %vm3049, %v3029, 0.0
  %3051 = vadd.xlane.f32.xlu0 %v3050
  %v3052 = vpop.xlane.xlu0 %3051
  %v3053 = vsel %vm3049, %v3034, 0.0
  %3054 = vadd.xlane.f32.xlu0 %v3053
  %v3055 = vpop.xlane.xlu0 %3054
  %v3056 = vsel %vm3049, %v3039, 0.0
  %3057 = vadd.xlane.f32.xlu0 %v3056
  %v3058 = vpop.xlane.xlu0 %3057
  %v3059 = vsel %vm3049, %v3044, 0.0
  %3060 = vadd.xlane.f32.xlu0 %v3059
  %v3061 = vpop.xlane.xlu0 %3060
  %v3062 = vrcp.pop 48.0
  %v3063 = vmul.f32 %v3052, %v3062
  %v3064 = vmul.f32 %v3055, %v3062
  %v3065 = vmul.f32 %v3058, %v3062
  %v3066 = vmul.f32 %v3061, %v3062
  %v3067 = vsub.f32 %v3029, %v3063
  %v3068 = vsub.f32 %v3034, %v3064
  %v3069 = vsub.f32 %v3039, %v3065
  %v3070 = vsub.f32 %v3044, %v3066
  %v3071 = vmul.f32 %v3067, %v3067
  %v3072 = vmul.f32 %v3068, %v3068
  %v3073 = vmul.f32 %v3069, %v3069
  %v3074 = vmul.f32 %v3070, %v3070
  %v3075 = vsel %vm3049, %v3071, 0.0
  %3076 = vadd.xlane.f32.xlu0 %v3075
  %v3077 = vpop.xlane.xlu0 %3076
  %v3078 = vsel %vm3049, %v3072, 0.0
  %3079 = vadd.xlane.f32.xlu0 %v3078
  %v3080 = vpop.xlane.xlu0 %3079
  %v3081 = vsel %vm3049, %v3073, 0.0
  %3082 = vadd.xlane.f32.xlu0 %v3081
  %v3083 = vpop.xlane.xlu0 %3082
  %v3084 = vsel %vm3049, %v3074, 0.0
  %3085 = vadd.xlane.f32.xlu0 %v3084
  %v3086 = vpop.xlane.xlu0 %3085
  %v3087 = vmul.f32 %v3077, %v3062
  %v3088 = vmul.f32 %v3080, %v3062
  %v3089 = vmul.f32 %v3083, %v3062
  %v3090 = vmul.f32 %v3086, %v3062
  %v3091 = vadd.f32 %v3087, 1e-06
  %v3092 = vadd.f32 %v3088, 1e-06
  %v3093 = vadd.f32 %v3089, 1e-06
  %v3094 = vadd.f32 %v3090, 1e-06
  %v3095 = vrsqrt.pop %v3091
  %v3096 = vrsqrt.pop %v3092
  %v3097 = vrsqrt.pop %v3093
  %v3098 = vrsqrt.pop %v3094
  %v3099 = vmul.f32 %v3067, %v3095
  %v3100 = vmul.f32 %v3068, %v3096
  %v3101 = vmul.f32 %v3069, %v3097
  %v3102 = vmul.f32 %v3070, %v3098
  %v3103 = vmul.f32 %v3099, %v3047
  %v3104 = vmul.f32 %v3100, %v3047
  %v3105 = vmul.f32 %v3101, %v3047
  %v3106 = vmul.f32 %v3102, %v3047
  %v3107 = vadd.f32 %v3103, %v3048
  %v3108 = vadd.f32 %v3104, %v3048
  %v3109 = vadd.f32 %v3105, %v3048
  %v3110 = vadd.f32 %v3106, %v3048
  %v3111 = vmul.f32 %v3107, 0.5
  %v3112 = vmul.f32 %v3108, 0.5
  %v3113 = vmul.f32 %v3109, 0.5
  %v3114 = vmul.f32 %v3110, 0.5
  %v3115 = vmul.f32 %v3107, 0.70710677
  %v3116 = vmul.f32 %v3108, 0.70710677
  %v3117 = vmul.f32 %v3109, 0.70710677
  %v3118 = vmul.f32 %v3110, 0.70710677
  %vm3119 = vcmp.ge.f32.partialorder %v3115, 0.0
  %vm3120 = vcmp.ge.f32.partialorder %v3116, 0.0
  %vm3121 = vcmp.ge.f32.partialorder %v3117, 0.0
  %vm3122 = vcmp.ge.f32.partialorder %v3118, 0.0
  %v3123 = vsel %vm3119, 1.0, -1.0
  %v3124 = vsel %vm3120, 1.0, -1.0
  %v3125 = vsel %vm3121, 1.0, -1.0
  %v3126 = vsel %vm3122, 1.0, -1.0
  %v3127 = vand.u32 2147483647, %v3115
  %v3128 = vand.u32 2147483647, %v3116
  %v3129 = vand.u32 2147483647, %v3117
  %v3130 = vand.u32 2147483647, %v3118
  %v3131 = vmul.f32 %v3127, 0.3275911
  %v3132 = vmul.f32 %v3128, 0.3275911
  %v3133 = vmul.f32 %v3129, 0.3275911
  %v3134 = vmul.f32 %v3130, 0.3275911
  %v3135 = vadd.f32 %v3131, 1.0
  %v3136 = vadd.f32 %v3132, 1.0
  %v3137 = vadd.f32 %v3133, 1.0
  %v3138 = vadd.f32 %v3134, 1.0
  %v3139 = vrcp.pop %v3135
  %v3140 = vmul.f32 1.0, %v3139
  %v3141 = vrcp.pop %v3136
  %v3142 = vmul.f32 1.0, %v3141
  %v3143 = vrcp.pop %v3137
  %v3144 = vmul.f32 1.0, %v3143
  %v3145 = vrcp.pop %v3138
  %v3146 = vmul.f32 1.0, %v3145
  %v3147 = vmul.f32 %v3140, 1.0614054
  %v3148 = vmul.f32 %v3142, 1.0614054
  %v3149 = vmul.f32 %v3144, 1.0614054
  %v3150 = vmul.f32 %v3146, 1.0614054
  %v3151 = vadd.f32 %v3147, -1.4531521
  %v3152 = vadd.f32 %v3148, -1.4531521
  %v3153 = vadd.f32 %v3149, -1.4531521
  %v3154 = vadd.f32 %v3150, -1.4531521
  %v3155 = vmul.f32 %v3151, %v3140
  %v3156 = vmul.f32 %v3152, %v3142
  %v3157 = vmul.f32 %v3153, %v3144
  %v3158 = vmul.f32 %v3154, %v3146
  %v3159 = vadd.f32 %v3155, 1.4214138
  %v3160 = vadd.f32 %v3156, 1.4214138
  %v3161 = vadd.f32 %v3157, 1.4214138
  %v3162 = vadd.f32 %v3158, 1.4214138
  %v3163 = vmul.f32 %v3159, %v3140
  %v3164 = vmul.f32 %v3160, %v3142
  %v3165 = vmul.f32 %v3161, %v3144
  %v3166 = vmul.f32 %v3162, %v3146
  %v3167 = vadd.f32 %v3163, -0.28449672
  %v3168 = vadd.f32 %v3164, -0.28449672
  %v3169 = vadd.f32 %v3165, -0.28449672
  %v3170 = vadd.f32 %v3166, -0.28449672
  %v3171 = vmul.f32 %v3167, %v3140
  %v3172 = vmul.f32 %v3168, %v3142
  %v3173 = vmul.f32 %v3169, %v3144
  %v3174 = vmul.f32 %v3170, %v3146
  %v3175 = vadd.f32 %v3171, 0.2548296
  %v3176 = vadd.f32 %v3172, 0.2548296
  %v3177 = vadd.f32 %v3173, 0.2548296
  %v3178 = vadd.f32 %v3174, 0.2548296
  %v3179 = vmul.f32 %v3175, %v3140
  %v3180 = vmul.f32 %v3176, %v3142
  %v3181 = vmul.f32 %v3177, %v3144
  %v3182 = vmul.f32 %v3178, %v3146
  %v3183 = vsub.f32 0.0, %v3127
  %v3184 = vsub.f32 0.0, %v3128
  %v3185 = vsub.f32 0.0, %v3129
  %v3186 = vsub.f32 0.0, %v3130
  %v3187 = vmul.f32 %v3183, %v3127
  %v3188 = vmul.f32 %v3184, %v3128
  %v3189 = vmul.f32 %v3185, %v3129
  %v3190 = vmul.f32 %v3186, %v3130
  %v3191 = vmul.f32 %v3187, 1.442695
  %v3192 = vpow.pop %v3191
  %v3193 = vmul.f32 %v3188, 1.442695
  %v3194 = vpow.pop %v3193
  %v3195 = vmul.f32 %v3189, 1.442695
  %v3196 = vpow.pop %v3195
  %v3197 = vmul.f32 %v3190, 1.442695
  %v3198 = vpow.pop %v3197
  %v3199 = vmul.f32 %v3179, %v3192
  %v3200 = vmul.f32 %v3180, %v3194
  %v3201 = vmul.f32 %v3181, %v3196
  %v3202 = vmul.f32 %v3182, %v3198
  %v3203 = vsub.f32 1.0, %v3199
  %v3204 = vsub.f32 1.0, %v3200
  %v3205 = vsub.f32 1.0, %v3201
  %v3206 = vsub.f32 1.0, %v3202
  %v3207 = vmul.f32 %v3123, %v3203
  %v3208 = vmul.f32 %v3124, %v3204
  %v3209 = vmul.f32 %v3125, %v3205
  %v3210 = vmul.f32 %v3126, %v3206
  %v3211 = vadd.f32 %v3207, 1.0
  %v3212 = vadd.f32 %v3208, 1.0
  %v3213 = vadd.f32 %v3209, 1.0
  %v3214 = vadd.f32 %v3210, 1.0
  %v3215 = vmul.f32 %v3111, %v3211
  %v3216 = vmul.f32 %v3112, %v3212
  %v3217 = vmul.f32 %v3113, %v3213
  %v3218 = vmul.f32 %v3114, %v3214
  %v3219 = vld [vmem:[%s1] sm:$0xff]
  %v3220 = vld [vmem:[%s1 + $0x8] sm:$0xff]
  %v3221 = vld [vmem:[%s1 + $0x10] sm:$0xff]
  %v3222 = vld [vmem:[%s1 + $0x18] sm:$0xff]
  %v3223 = vld [vmem:[%s1 + $0x20] sm:$0x3]
  %vm3226 = vcmask 1040384
  %v3227 = vrot.slane %v3215, 7
  %v3228 = vrot.slane %v3216, 7
  %v3229 = vsel %vm3226, %v3227, %v3228
  %v3233 = vsel %vm3226, %v3219, %v3227
  %v3234 = vadd.f32 %v3219, %v3233
  %v3235 = vadd.f32 %v3220, %v3229
  %v3236 = vadd.f32 %v3221, %v3228
  %v3238 = vrot.slane %v3221, 1
  %v3242 = vrot.slane %v3217, 7
  %v3243 = vrot.slane %v3218, 7
  %v3244 = vsel %vm3226, %v3242, %v3243
  %v3246 = vsel %vm3226, %v3238, %v3242
  %v3248 = vrot.slane %v3246, 7
  %v3249 = vrot.slane %v3244, 7
  %v3250 = vsel %vm3226, %v3248, %v3249
  %v3251 = vrot.slane %v3243, 7
  %v3252 = vsel %vm3226, %v3249, %v3251
  %v3256 = vadd.f32 %v3221, %v3248
  %v3257 = vadd.f32 %v3222, %v3250
  %v3258 = vadd.f32 %v3223, %v3252
  %v3259 = vsel %vm3226, %v3236, %v3256
  %v3260 = vld [vmem:[%s2 + $0x24] ss:$0 sm:$0xff]
  %v3261 = vld [vmem:[%s2 + $0x25] ss:$0 sm:$0xff]
  %v3262 = vsel %vm3049, %v3234, 0.0
  %3263 = vadd.xlane.f32.xlu0 %v3262
  %v3264 = vpop.xlane.xlu0 %3263
  %v3265 = vsel %vm3049, %v3235, 0.0
  %3266 = vadd.xlane.f32.xlu0 %v3265
  %v3267 = vpop.xlane.xlu0 %3266
  %v3268 = vsel %vm3049, %v3259, 0.0
  %3269 = vadd.xlane.f32.xlu0 %v3268
  %v3270 = vpop.xlane.xlu0 %3269
  %v3271 = vsel %vm3049, %v3257, 0.0
  %3272 = vadd.xlane.f32.xlu0 %v3271
  %v3273 = vpop.xlane.xlu0 %3272
  %vm3274 = vcmask 386048
  %v3275 = vsel %vm3274, %v3258, 0.0
  %3276 = vadd.xlane.f32.xlu0 %v3275
  %v3277 = vpop.xlane.xlu0 %3276
  %v3278 = vmul.f32 %v3264, %v3062
  %v3279 = vmul.f32 %v3267, %v3062
  %v3280 = vmul.f32 %v3270, %v3062
  %v3281 = vmul.f32 %v3273, %v3062
  %v3282 = vmul.f32 %v3277, %v3062
  %v3283 = vsub.f32 %v3234, %v3278
  %v3284 = vsub.f32 %v3235, %v3279
  %v3285 = vsub.f32 %v3259, %v3280
  %v3286 = vsub.f32 %v3257, %v3281
  %v3287 = vsub.f32 %v3258, %v3282
  %v3288 = vmul.f32 %v3283, %v3283
  %v3289 = vmul.f32 %v3284, %v3284
  %v3290 = vmul.f32 %v3285, %v3285
  %v3291 = vmul.f32 %v3286, %v3286
  %v3292 = vmul.f32 %v3287, %v3287
  %v3293 = vsel %vm3049, %v3288, 0.0
  %3294 = vadd.xlane.f32.xlu0 %v3293
  %v3295 = vpop.xlane.xlu0 %3294
  %v3296 = vsel %vm3049, %v3289, 0.0
  %3297 = vadd.xlane.f32.xlu0 %v3296
  %v3298 = vpop.xlane.xlu0 %3297
  %v3299 = vsel %vm3049, %v3290, 0.0
  %3300 = vadd.xlane.f32.xlu0 %v3299
  %v3301 = vpop.xlane.xlu0 %3300
  %v3302 = vsel %vm3049, %v3291, 0.0
  %3303 = vadd.xlane.f32.xlu0 %v3302
  %v3304 = vpop.xlane.xlu0 %3303
  %v3305 = vsel %vm3274, %v3292, 0.0
  %3306 = vadd.xlane.f32.xlu0 %v3305
  %v3307 = vpop.xlane.xlu0 %3306
  %v3308 = vmul.f32 %v3295, %v3062
  %v3309 = vmul.f32 %v3298, %v3062
  %v3310 = vmul.f32 %v3301, %v3062
  %v3311 = vmul.f32 %v3304, %v3062
  %v3312 = vmul.f32 %v3307, %v3062
  %v3313 = vadd.f32 %v3308, 1e-06
  %v3314 = vadd.f32 %v3309, 1e-06
  %v3315 = vadd.f32 %v3310, 1e-06
  %v3316 = vadd.f32 %v3311, 1e-06
  %v3317 = vadd.f32 %v3312, 1e-06
  %v3318 = vrsqrt.pop %v3313
  %v3319 = vrsqrt.pop %v3314
  %v3320 = vrsqrt.pop %v3315
  %v3321 = vrsqrt.pop %v3316
  %v3322 = vrsqrt.pop %v3317
  %v3323 = vmul.f32 %v3283, %v3318
  %v3324 = vmul.f32 %v3284, %v3319
  %v3325 = vmul.f32 %v3285, %v3320
  %v3326 = vmul.f32 %v3286, %v3321
  %v3327 = vmul.f32 %v3287, %v3322
  %v3328 = vmul.f32 %v3323, %v3260
  %v3329 = vmul.f32 %v3324, %v3260
  %v3330 = vmul.f32 %v3325, %v3260
  %v3331 = vmul.f32 %v3326, %v3260
  %v3332 = vmul.f32 %v3327, %v3260
  %v3333 = vadd.f32 %v3328, %v3261
  %v3334 = vadd.f32 %v3329, %v3261
  %v3335 = vadd.f32 %v3330, %v3261
  %v3336 = vadd.f32 %v3331, %v3261
  %v3337 = vadd.f32 %v3332, %v3261
  %v3338 = vld [vmem:[%s3 + $0x130] sm:$0xff]
  %v3339 = vld [vmem:[%s3 + $0x138] sm:$0xff]
  %v3340 = vld [vmem:[%s3 + $0x140] sm:$0xff]
  %v3341 = vld [vmem:[%s3 + $0x148] sm:$0xff]
  %v3342 = vld [vmem:[%s3 + $0x150] sm:$0xff]
  %v3343 = vld [vmem:[%s3 + $0x158] sm:$0xff]
  %v3344 = vld [vmem:[%s3 + $0x160] sm:$0xff]
  %v3345 = vld [vmem:[%s3 + $0x168] sm:$0xff]
  %v3346 = vld [vmem:[%s3 + $0x170] sm:$0xff]
  %v3347 = vld [vmem:[%s3 + $0x178] sm:$0xff]
  %v3348 = vld [vmem:[%s3 + $0x180] sm:$0xff]
  %v3349 = vld [vmem:[%s3 + $0x188] sm:$0xff]
  %v3351 = vsel %vm3049, %v3333, 0
  %v3354 = vsel %vm3049, %v3334, 0
  %v3357 = vsel %vm3049, %v3335, 0
  %v3360 = vsel %vm3049, %v3336, 0
  %v3363 = vsel %vm3049, %v3337, 0
  %3365 = vmatprep.subr.mxu0 %v3339
  %3366 = vmatpush1.msra.mxu0 %v3338
  %3367 = vmatprep.subr.mxu0 %v3341
  %3368 = vmatpush1.msra.mxu0 %v3340
  %3369 = vmatprep.subr.mxu0 %v3343
  %3370 = vmatpush1.msra.mxu0 %v3342
  %3371 = vmatprep.subr.mxu0 %v3345
  %3372 = vmatpush1.msra.mxu0 %v3344
  %3373 = vmatprep.subr.mxu0 %v3347
  %3374 = vmatpush1.msra.mxu0 %v3346
  %3375 = vmatprep.subr.mxu0 %v3349
  %3376 = vmatpush1.msra.mxu0 %v3348
  %3377 = vmatprep.subr.mxu0 0.0
  %3378 = vmatpush1.msra.mxu0 0.0
  %3379 = vmatprep.subr.mxu0 0.0
  %3380 = vmatpush1.msra.mxu0 0.0
  %3381 = vmatprep.subr.mxu0 0.0
  %3382 = vmatpush1.msra.mxu0 0.0
  %3383 = vmatprep.subr.mxu0 0.0
  %3384 = vmatpush1.msra.mxu0 0.0
  %3385 = vmatprep.subr.mxu0 0.0
  %3386 = vmatpush1.msra.mxu0 0.0
  %3387 = vmatprep.subr.mxu0 0.0
  %3388 = vmatpush1.msra.mxu0 0.0
  %3389 = vmatprep.subr.mxu0 0.0
  %3390 = vmatpush1.msra.mxu0 0.0
  %3391 = vmatprep.subr.mxu0 0.0
  %3392 = vmatpush1.msra.mxu0 0.0
  %3393 = vmatprep.subr.mxu0 0.0
  %3394 = vmatpush1.msra.mxu0 0.0
  %3395 = vmatprep.subr.mxu0 0.0
  %3396 = vmatpush1.msra.mxu0 0.0
  %3397 = vmatprep.subr.mxu0 0.0
  %3398 = vmatpush1.msra.mxu0 0.0
  %3399 = vmatprep.subr.mxu0 0.0
  %3400 = vmatpush1.msra.mxu0 0.0
  %3401 = vmatprep.subr.mxu0 0.0
  %3402 = vmatpush1.msra.mxu0 0.0
  %3403 = vmatprep.subr.mxu0 0.0
  %3404 = vmatpush1.msra.mxu0 0.0
  %3405 = vmatprep.subr.mxu0 0.0
  %3406 = vmatpush1.msra.mxu0 0.0
  %3407 = vmatprep.subr.mxu0 0.0
  %3408 = vmatpush1.msra.mxu0 0.0
  %3409 = vmatprep.subr.mxu0 0.0
  %3410 = vmatpush1.msra.mxu0 0.0
  %3411 = vmatprep.subr.mxu0 0.0
  %3412 = vmatpush1.msra.mxu0 0.0
  %3413 = vmatprep.subr.mxu0 0.0
  %3414 = vmatpush1.msra.mxu0 0.0
  %3415 = vmatprep.subr.mxu0 0.0
  %3416 = vmatpush1.msra.mxu0 0.0
  %3417 = vmatprep.subr.mxu0 0.0
  %3418 = vmatpush1.msra.mxu0 0.0
  %3419 = vmatprep.subr.mxu0 0.0
  %3420 = vmatpush1.msra.mxu0 0.0
  %3421 = vmatprep.subr.mxu0 0.0
  %3422 = vmatpush1.msra.mxu0 0.0
  %3423 = vmatprep.subr.mxu0 0.0
  %3424 = vmatpush1.msra.mxu0 0.0
  %3425 = vmatprep.subr.mxu0 0.0
  %3426 = vmatpush1.msra.mxu0 0.0
  %3427 = vmatprep.subr.mxu0 0.0
  %3428 = vmatpush1.msra.mxu0 0.0
  %3429 = vmatprep.mubr.f32.mxu0 0.0
  %3430 = vmatmul.mubr.f32.gmra.mrb[0].mxu0 %v3351
  %v3431 = vpop.f32.mrb[0].mxu0
  %v3432 = vadd.f32 0.0, %v3431
  %v3433 = vpop.f32.mrb[0].mxu0
  %v3434 = vadd.f32 0.0, %v3433
  %3435 = vmatprep.mubr.f32.mxu0 0.0
  %3436 = vmatmul.mubr.f32.gmra.mrb[0].mxu0 %v3354
  %v3437 = vpop.f32.mrb[0].mxu0
  %v3438 = vadd.f32 0.0, %v3437
  %v3439 = vpop.f32.mrb[0].mxu0
  %v3440 = vadd.f32 0.0, %v3439
  %3441 = vmatprep.mubr.f32.mxu0 0.0
  %3442 = vmatmul.mubr.f32.gmra.mrb[0].mxu0 %v3357
  %v3443 = vpop.f32.mrb[0].mxu0
  %v3444 = vadd.f32 0.0, %v3443
  %v3445 = vpop.f32.mrb[0].mxu0
  %v3446 = vadd.f32 0.0, %v3445
  %3447 = vmatprep.mubr.f32.mxu0 0.0
  %3448 = vmatmul.mubr.f32.gmra.mrb[0].mxu0 %v3360
  %v3449 = vpop.f32.mrb[0].mxu0
  %v3450 = vadd.f32 0.0, %v3449
  %v3451 = vpop.f32.mrb[0].mxu0
  %v3452 = vadd.f32 0.0, %v3451
  %3453 = vmatprep.mubr.f32.mxu0 0.0
  %3454 = vmatmul.mubr.f32.gmra.mrb[0].mxu0 %v3363
  %v3455 = vpop.f32.mrb[0].mxu0
  %v3456 = vadd.f32 0.0, %v3455
  %v3457 = vpop.f32.mrb[0].mxu0
  %v3458 = vadd.f32 0.0, %v3457
  %3459 = vdwg.mxu0
  %3463 = vrot.lane.b32.xlu0 %v3432, 80
  %v3464 = vpop.permute.xlu0 %3463
  %3465 = vrot.lane.b32.xlu0 %v3438, 80
  %v3466 = vpop.permute.xlu0 %3465
  %3467 = vrot.lane.b32.xlu0 %v3444, 80
  %v3468 = vpop.permute.xlu0 %3467
  %vm3469 = vcmask 97280
  %v3470 = vsel %vm3469, %v3432, 0
  %v3472 = vsel %vm3469, %v3438, 0
  %v3474 = vsel %vm3469, %v3444, 0
  %v3476 = vsel %vm3469, %v3464, 0
  %v3478 = vsel %vm3469, %v3466, 0
  %v3480 = vsel %vm3469, %v3468, 0
  %3482 = vmatprep.subr.mxu0 0.0
  %3483 = vmatpush1.xpose.msra.mxu0 %v3476
  %3484 = vmatprep.subr.mxu0 0.0
  %3485 = vmatpush1.xpose.msra.mxu0 %v3478
  %3486 = vmatprep.subr.mxu0 0.0
  %3487 = vmatpush1.xpose.msra.mxu0 %v3480
  %3488 = vmatprep.subr.mxu0 0.0
  %3489 = vmatpush1.xpose.msra.mxu0 0.0
  %3490 = vmatprep.subr.mxu0 0.0
  %3491 = vmatpush1.xpose.msra.mxu0 0.0
  %3492 = vmatprep.subr.mxu0 0.0
  %3493 = vmatpush1.xpose.msra.mxu0 0.0
  %3494 = vmatprep.subr.mxu0 0.0
  %3495 = vmatpush1.xpose.msra.mxu0 0.0
  %3496 = vmatprep.subr.mxu0 0.0
  %3497 = vmatpush1.xpose.msra.mxu0 0.0
  %3498 = vmatprep.subr.mxu0 0.0
  %3499 = vmatpush1.xpose.msra.mxu0 0.0
  %3500 = vmatprep.subr.mxu0 0.0
  %3501 = vmatpush1.xpose.msra.mxu0 0.0
  %3502 = vmatprep.subr.mxu0 0.0
  %3503 = vmatpush1.xpose.msra.mxu0 0.0
  %3504 = vmatprep.subr.mxu0 0.0
  %3505 = vmatpush1.xpose.msra.mxu0 0.0
  %3506 = vmatprep.subr.mxu0 0.0
  %3507 = vmatpush1.xpose.msra.mxu0 0.0
  %3508 = vmatprep.subr.mxu0 0.0
  %3509 = vmatpush1.xpose.msra.mxu0 0.0
  %3510 = vmatprep.subr.mxu0 0.0
  %3511 = vmatpush1.xpose.msra.mxu0 0.0
  %3512 = vmatprep.subr.mxu0 0.0
  %3513 = vmatpush1.xpose.msra.mxu0 0.0
  %3514 = vmatprep.subr.mxu0 0.0
  %3515 = vmatpush1.xpose.msra.mxu0 0.0
  %3516 = vmatprep.subr.mxu0 0.0
  %3517 = vmatpush1.xpose.msra.mxu0 0.0
  %3518 = vmatprep.subr.mxu0 0.0
  %3519 = vmatpush1.xpose.msra.mxu0 0.0
  %3520 = vmatprep.subr.mxu0 0.0
  %3521 = vmatpush1.xpose.msra.mxu0 0.0
  %3522 = vmatprep.subr.mxu0 0.0
  %3523 = vmatpush1.xpose.msra.mxu0 0.0
  %3524 = vmatprep.subr.mxu0 0.0
  %3525 = vmatpush1.xpose.msra.mxu0 0.0
  %3526 = vmatprep.subr.mxu0 0.0
  %3527 = vmatpush1.xpose.msra.mxu0 0.0
  %3528 = vmatprep.subr.mxu0 0.0
  %3529 = vmatpush1.xpose.msra.mxu0 0.0
  %3530 = vmatprep.subr.mxu0 0.0
  %3531 = vmatpush1.xpose.msra.mxu0 0.0
  %3532 = vmatprep.subr.mxu0 0.0
  %3533 = vmatpush1.xpose.msra.mxu0 0.0
  %3534 = vmatprep.subr.mxu0 0.0
  %3535 = vmatpush1.xpose.msra.mxu0 0.0
  %3536 = vmatprep.subr.mxu0 0.0
  %3537 = vmatpush1.xpose.msra.mxu0 0.0
  %3538 = vmatprep.subr.mxu0 0.0
  %3539 = vmatpush1.xpose.msra.mxu0 0.0
  %3540 = vmatprep.subr.mxu0 0.0
  %3541 = vmatpush1.xpose.msra.mxu0 0.0
  %3542 = vmatprep.subr.mxu0 0.0
  %3543 = vmatpush1.xpose.msra.mxu0 0.0
  %3544 = vmatprep.subr.mxu0 0.0
  %3545 = vmatpush1.xpose.msra.mxu0 0.0
  %3546 = vmatprep.mubr.f32.mxu0 0.0
  %3547 = vmatmul.mubr.f32.gmra.mrb[0].mxu0 %v3470
  %v3548 = vpop.f32.mrb[0].mxu0
  %v3549 = vadd.f32 0.0, %v3548
  %v3550 = vpop.f32.mrb[0].mxu0
  %3551 = vmatprep.mubr.f32.mxu0 0.0
  %3552 = vmatmul.mubr.f32.gmra.mrb[0].mxu0 %v3472
  %v3553 = vpop.f32.mrb[0].mxu0
  %v3554 = vadd.f32 0.0, %v3553
  %v3555 = vpop.f32.mrb[0].mxu0
  %3556 = vmatprep.mubr.f32.mxu0 0.0
  %3557 = vmatmul.mubr.f32.gmra.mrb[0].mxu0 %v3474
  %v3558 = vpop.f32.mrb[0].mxu0
  %v3559 = vadd.f32 0.0, %v3558
  %v3560 = vpop.f32.mrb[0].mxu0
  %3561 = vdwg.mxu0
  %v3562 = vmul.f32 %v3549, 0.28867513
  %v3563 = vmul.f32 %v3554, 0.28867513
  %v3564 = vmul.f32 %v3559, 0.28867513
  %vm3565 = vcmask 138240
  %v3566 = vsel %vm3565, %v3562, -inf
  %3567 = vmax.xlane.f32.xlu0 %v3566
  %v3568 = vpop.xlane.xlu0 %3567
  %v3569 = vsel %vm3565, %v3563, -inf
  %3570 = vmax.xlane.f32.xlu0 %v3569
  %v3571 = vpop.xlane.xlu0 %3570
  %vm3572 = vcmask 131072
  %v3573 = vsel %vm3572, %v3564, -inf
  %3574 = vmax.xlane.f32.xlu0 %v3573
  %v3575 = vpop.xlane.xlu0 %3574
  %v3576 = vsub.f32 %v3562, %v3568
  %v3577 = vsub.f32 %v3563, %v3571
  %v3578 = vsub.f32 %v3564, %v3575
  %v3579 = vmul.f32 %v3576, 1.442695
  %v3580 = vpow.pop %v3579
  %v3581 = vmul.f32 %v3577, 1.442695
  %v3582 = vpow.pop %v3581
  %v3583 = vmul.f32 %v3578, 1.442695
  %v3584 = vpow.pop %v3583
  %v3585 = vsel %vm3565, %v3580, 0.0
  %3586 = vadd.xlane.f32.xlu0 %v3585
  %v3587 = vpop.xlane.xlu0 %3586
  %v3588 = vsel %vm3565, %v3582, 0.0
  %3589 = vadd.xlane.f32.xlu0 %v3588
  %v3590 = vpop.xlane.xlu0 %3589
  %v3591 = vsel %vm3572, %v3584, 0.0
  %3592 = vadd.xlane.f32.xlu0 %v3591
  %v3593 = vpop.xlane.xlu0 %3592
  %v3594 = vrcp.pop %v3587
  %v3595 = vrcp.pop %v3590
  %v3596 = vrcp.pop %v3593
  %v3597 = vmul.f32 %v3580, %v3594
  %v3598 = vmul.f32 %v3582, %v3595
  %v3599 = vmul.f32 %v3584, %v3596
  %3600 = vrot.lane.b32.xlu0 %v3432, 32
  %v3601 = vpop.permute.xlu0 %3600
  %3602 = vrot.lane.b32.xlu0 %v3438, 32
  %v3603 = vpop.permute.xlu0 %3602
  %3604 = vrot.lane.b32.xlu0 %v3444, 32
  %v3605 = vpop.permute.xlu0 %3604
  %v3609 = vsel %vm3565, %v3597, 0
  %v3612 = vsel %vm3565, %v3598, 0
  %v3615 = vsel %vm3565, %v3599, 0
  %v3617 = vsel %vm3226, %v3605, 0
  %3619 = vmatprep.subr.mxu0 0.0
  %3620 = vmatpush1.msra.mxu0 %v3601
  %3621 = vmatprep.subr.mxu0 0.0
  %3622 = vmatpush1.msra.mxu0 %v3603
  %3623 = vmatprep.subr.mxu0 0.0
  %3624 = vmatpush1.msra.mxu0 %v3617
  %3625 = vmatprep.subr.mxu0 0.0
  %3626 = vmatpush1.msra.mxu0 0.0
  %3627 = vmatprep.subr.mxu0 0.0
  %3628 = vmatpush1.msra.mxu0 0.0
  %3629 = vmatprep.subr.mxu0 0.0
  %3630 = vmatpush1.msra.mxu0 0.0
  %3631 = vmatprep.subr.mxu0 0.0
  %3632 = vmatpush1.msra.mxu0 0.0
  %3633 = vmatprep.subr.mxu0 0.0
  %3634 = vmatpush1.msra.mxu0 0.0
  %3635 = vmatprep.subr.mxu0 0.0
  %3636 = vmatpush1.msra.mxu0 0.0
  %3637 = vmatprep.subr.mxu0 0.0
  %3638 = vmatpush1.msra.mxu0 0.0
  %3639 = vmatprep.subr.mxu0 0.0
  %3640 = vmatpush1.msra.mxu0 0.0
  %3641 = vmatprep.subr.mxu0 0.0
  %3642 = vmatpush1.msra.mxu0 0.0
  %3643 = vmatprep.subr.mxu0 0.0
  %3644 = vmatpush1.msra.mxu0 0.0
  %3645 = vmatprep.subr.mxu0 0.0
  %3646 = vmatpush1.msra.mxu0 0.0
  %3647 = vmatprep.subr.mxu0 0.0
  %3648 = vmatpush1.msra.mxu0 0.0
  %3649 = vmatprep.subr.mxu0 0.0
  %3650 = vmatpush1.msra.mxu0 0.0
  %3651 = vmatprep.subr.mxu0 0.0
  %3652 = vmatpush1.msra.mxu0 0.0
  %3653 = vmatprep.subr.mxu0 0.0
  %3654 = vmatpush1.msra.mxu0 0.0
  %3655 = vmatprep.subr.mxu0 0.0
  %3656 = vmatpush1.msra.mxu0 0.0
  %3657 = vmatprep.subr.mxu0 0.0
  %3658 = vmatpush1.msra.mxu0 0.0
  %3659 = vmatprep.subr.mxu0 0.0
  %3660 = vmatpush1.msra.mxu0 0.0
  %3661 = vmatprep.subr.mxu0 0.0
  %3662 = vmatpush1.msra.mxu0 0.0
  %3663 = vmatprep.subr.mxu0 0.0
  %3664 = vmatpush1.msra.mxu0 0.0
  %3665 = vmatprep.subr.mxu0 0.0
  %3666 = vmatpush1.msra.mxu0 0.0
  %3667 = vmatprep.subr.mxu0 0.0
  %3668 = vmatpush1.msra.mxu0 0.0
  %3669 = vmatprep.subr.mxu0 0.0
  %3670 = vmatpush1.msra.mxu0 0.0
  %3671 = vmatprep.subr.mxu0 0.0
  %3672 = vmatpush1.msra.mxu0 0.0
  %3673 = vmatprep.subr.mxu0 0.0
  %3674 = vmatpush1.msra.mxu0 0.0
  %3675 = vmatprep.subr.mxu0 0.0
  %3676 = vmatpush1.msra.mxu0 0.0
  %3677 = vmatprep.subr.mxu0 0.0
  %3678 = vmatpush1.msra.mxu0 0.0
  %3679 = vmatprep.subr.mxu0 0.0
  %3680 = vmatpush1.msra.mxu0 0.0
  %3681 = vmatprep.subr.mxu0 0.0
  %3682 = vmatpush1.msra.mxu0 0.0
  %3683 = vmatprep.mubr.f32.mxu0 0.0
  %3684 = vmatmul.mubr.f32.gmra.mrb[0].mxu0 %v3609
  %v3685 = vpop.f32.mrb[0].mxu0
  %v3686 = vadd.f32 0.0, %v3685
  %v3687 = vpop.f32.mrb[0].mxu0
  %3688 = vmatprep.mubr.f32.mxu0 0.0
  %3689 = vmatmul.mubr.f32.gmra.mrb[0].mxu0 %v3612
  %v3690 = vpop.f32.mrb[0].mxu0
  %v3691 = vadd.f32 0.0, %v3690
  %v3692 = vpop.f32.mrb[0].mxu0
  %3693 = vmatprep.mubr.f32.mxu0 0.0
  %3694 = vmatmul.mubr.f32.gmra.mrb[0].mxu0 %v3615
  %v3695 = vpop.f32.mrb[0].mxu0
  %v3696 = vadd.f32 0.0, %v3695
  %v3697 = vpop.f32.mrb[0].mxu0
  %3698 = vdwg.mxu0
  %3699 = vrot.lane.b32.xlu0 %v3432, 116
  %v3700 = vpop.permute.xlu0 %3699
  %3701 = vrot.lane.b32.xlu0 %v3438, 116
  %v3702 = vpop.permute.xlu0 %3701
  %3703 = vrot.lane.b32.xlu0 %v3444, 116
  %v3704 = vpop.permute.xlu0 %3703
  %3705 = vrot.lane.b32.xlu0 %v3432, 68
  %v3706 = vpop.permute.xlu0 %3705
  %3707 = vrot.lane.b32.xlu0 %v3438, 68
  %v3708 = vpop.permute.xlu0 %3707
  %3709 = vrot.lane.b32.xlu0 %v3444, 68
  %v3710 = vpop.permute.xlu0 %3709
  %v3711 = vsel %vm3469, %v3700, 0
  %v3713 = vsel %vm3469, %v3702, 0
  %v3715 = vsel %vm3469, %v3704, 0
  %v3717 = vsel %vm3469, %v3706, 0
  %v3719 = vsel %vm3469, %v3708, 0
  %v3721 = vsel %vm3469, %v3710, 0
  %3723 = vmatprep.subr.mxu0 0.0
  %3724 = vmatpush1.xpose.msra.mxu0 %v3717
  %3725 = vmatprep.subr.mxu0 0.0
  %3726 = vmatpush1.xpose.msra.mxu0 %v3719
  %3727 = vmatprep.subr.mxu0 0.0
  %3728 = vmatpush1.xpose.msra.mxu0 %v3721
  %3729 = vmatprep.subr.mxu0 0.0
  %3730 = vmatpush1.xpose.msra.mxu0 0.0
  %3731 = vmatprep.subr.mxu0 0.0
  %3732 = vmatpush1.xpose.msra.mxu0 0.0
  %3733 = vmatprep.subr.mxu0 0.0
  %3734 = vmatpush1.xpose.msra.mxu0 0.0
  %3735 = vmatprep.subr.mxu0 0.0
  %3736 = vmatpush1.xpose.msra.mxu0 0.0
  %3737 = vmatprep.subr.mxu0 0.0
  %3738 = vmatpush1.xpose.msra.mxu0 0.0
  %3739 = vmatprep.subr.mxu0 0.0
  %3740 = vmatpush1.xpose.msra.mxu0 0.0
  %3741 = vmatprep.subr.mxu0 0.0
  %3742 = vmatpush1.xpose.msra.mxu0 0.0
  %3743 = vmatprep.subr.mxu0 0.0
  %3744 = vmatpush1.xpose.msra.mxu0 0.0
  %3745 = vmatprep.subr.mxu0 0.0
  %3746 = vmatpush1.xpose.msra.mxu0 0.0
  %3747 = vmatprep.subr.mxu0 0.0
  %3748 = vmatpush1.xpose.msra.mxu0 0.0
  %3749 = vmatprep.subr.mxu0 0.0
  %3750 = vmatpush1.xpose.msra.mxu0 0.0
  %3751 = vmatprep.subr.mxu0 0.0
  %3752 = vmatpush1.xpose.msra.mxu0 0.0
  %3753 = vmatprep.subr.mxu0 0.0
  %3754 = vmatpush1.xpose.msra.mxu0 0.0
  %3755 = vmatprep.subr.mxu0 0.0
  %3756 = vmatpush1.xpose.msra.mxu0 0.0
  %3757 = vmatprep.subr.mxu0 0.0
  %3758 = vmatpush1.xpose.msra.mxu0 0.0
  %3759 = vmatprep.subr.mxu0 0.0
  %3760 = vmatpush1.xpose.msra.mxu0 0.0
  %3761 = vmatprep.subr.mxu0 0.0
  %3762 = vmatpush1.xpose.msra.mxu0 0.0
  %3763 = vmatprep.subr.mxu0 0.0
  %3764 = vmatpush1.xpose.msra.mxu0 0.0
  %3765 = vmatprep.subr.mxu0 0.0
  %3766 = vmatpush1.xpose.msra.mxu0 0.0
  %3767 = vmatprep.subr.mxu0 0.0
  %3768 = vmatpush1.xpose.msra.mxu0 0.0
  %3769 = vmatprep.subr.mxu0 0.0
  %3770 = vmatpush1.xpose.msra.mxu0 0.0
  %3771 = vmatprep.subr.mxu0 0.0
  %3772 = vmatpush1.xpose.msra.mxu0 0.0
  %3773 = vmatprep.subr.mxu0 0.0
  %3774 = vmatpush1.xpose.msra.mxu0 0.0
  %3775 = vmatprep.subr.mxu0 0.0
  %3776 = vmatpush1.xpose.msra.mxu0 0.0
  %3777 = vmatprep.subr.mxu0 0.0
  %3778 = vmatpush1.xpose.msra.mxu0 0.0
  %3779 = vmatprep.subr.mxu0 0.0
  %3780 = vmatpush1.xpose.msra.mxu0 0.0
  %3781 = vmatprep.subr.mxu0 0.0
  %3782 = vmatpush1.xpose.msra.mxu0 0.0
  %3783 = vmatprep.subr.mxu0 0.0
  %3784 = vmatpush1.xpose.msra.mxu0 0.0
  %3785 = vmatprep.subr.mxu0 0.0
  %3786 = vmatpush1.xpose.msra.mxu0 0.0
  %3787 = vmatprep.mubr.f32.mxu0 0.0
  %3788 = vmatmul.mubr.f32.gmra.mrb[0].mxu0 %v3711
  %v3789 = vpop.f32.mrb[0].mxu0
  %v3790 = vadd.f32 0.0, %v3789
  %v3791 = vpop.f32.mrb[0].mxu0
  %3792 = vmatprep.mubr.f32.mxu0 0.0
  %3793 = vmatmul.mubr.f32.gmra.mrb[0].mxu0 %v3713
  %v3794 = vpop.f32.mrb[0].mxu0
  %v3795 = vadd.f32 0.0, %v3794
  %v3796 = vpop.f32.mrb[0].mxu0
  %3797 = vmatprep.mubr.f32.mxu0 0.0
  %3798 = vmatmul.mubr.f32.gmra.mrb[0].mxu0 %v3715
  %v3799 = vpop.f32.mrb[0].mxu0
  %v3800 = vadd.f32 0.0, %v3799
  %v3801 = vpop.f32.mrb[0].mxu0
  %3802 = vdwg.mxu0
  %v3803 = vmul.f32 %v3790, 0.28867513
  %v3804 = vmul.f32 %v3795, 0.28867513
  %v3805 = vmul.f32 %v3800, 0.28867513
  %v3806 = vsel %vm3565, %v3803, -inf
  %3807 = vmax.xlane.f32.xlu0 %v3806
  %v3808 = vpop.xlane.xlu0 %3807
  %v3809 = vsel %vm3565, %v3804, -inf
  %3810 = vmax.xlane.f32.xlu0 %v3809
  %v3811 = vpop.xlane.xlu0 %3810
  %v3812 = vsel %vm3572, %v3805, -inf
  %3813 = vmax.xlane.f32.xlu0 %v3812
  %v3814 = vpop.xlane.xlu0 %3813
  %v3815 = vsub.f32 %v3803, %v3808
  %v3816 = vsub.f32 %v3804, %v3811
  %v3817 = vsub.f32 %v3805, %v3814
  %v3818 = vmul.f32 %v3815, 1.442695
  %v3819 = vpow.pop %v3818
  %v3820 = vmul.f32 %v3816, 1.442695
  %v3821 = vpow.pop %v3820
  %v3822 = vmul.f32 %v3817, 1.442695
  %v3823 = vpow.pop %v3822
  %v3824 = vsel %vm3565, %v3819, 0.0
  %3825 = vadd.xlane.f32.xlu0 %v3824
  %v3826 = vpop.xlane.xlu0 %3825
  %v3827 = vsel %vm3565, %v3821, 0.0
  %3828 = vadd.xlane.f32.xlu0 %v3827
  %v3829 = vpop.xlane.xlu0 %3828
  %v3830 = vsel %vm3572, %v3823, 0.0
  %3831 = vadd.xlane.f32.xlu0 %v3830
  %v3832 = vpop.xlane.xlu0 %3831
  %v3833 = vrcp.pop %v3826
  %v3834 = vrcp.pop %v3829
  %v3835 = vrcp.pop %v3832
  %v3836 = vmul.f32 %v3819, %v3833
  %v3837 = vmul.f32 %v3821, %v3834
  %v3838 = vmul.f32 %v3823, %v3835
  %3839 = vrot.lane.b32.xlu0 %v3432, 20
  %v3840 = vpop.permute.xlu0 %3839
  %3841 = vrot.lane.b32.xlu0 %v3438, 20
  %v3842 = vpop.permute.xlu0 %3841
  %3843 = vrot.lane.b32.xlu0 %v3444, 20
  %v3844 = vpop.permute.xlu0 %3843
  %v3848 = vsel %vm3565, %v3836, 0
  %v3851 = vsel %vm3565, %v3837, 0
  %v3854 = vsel %vm3565, %v3838, 0
  %v3856 = vsel %vm3226, %v3844, 0
  %3858 = vmatprep.subr.mxu0 0.0
  %3859 = vmatpush1.msra.mxu0 %v3840
  %3860 = vmatprep.subr.mxu0 0.0
  %3861 = vmatpush1.msra.mxu0 %v3842
  %3862 = vmatprep.subr.mxu0 0.0
  %3863 = vmatpush1.msra.mxu0 %v3856
  %3864 = vmatprep.subr.mxu0 0.0
  %3865 = vmatpush1.msra.mxu0 0.0
  %3866 = vmatprep.subr.mxu0 0.0
  %3867 = vmatpush1.msra.mxu0 0.0
  %3868 = vmatprep.subr.mxu0 0.0
  %3869 = vmatpush1.msra.mxu0 0.0
  %3870 = vmatprep.subr.mxu0 0.0
  %3871 = vmatpush1.msra.mxu0 0.0
  %3872 = vmatprep.subr.mxu0 0.0
  %3873 = vmatpush1.msra.mxu0 0.0
  %3874 = vmatprep.subr.mxu0 0.0
  %3875 = vmatpush1.msra.mxu0 0.0
  %3876 = vmatprep.subr.mxu0 0.0
  %3877 = vmatpush1.msra.mxu0 0.0
  %3878 = vmatprep.subr.mxu0 0.0
  %3879 = vmatpush1.msra.mxu0 0.0
  %3880 = vmatprep.subr.mxu0 0.0
  %3881 = vmatpush1.msra.mxu0 0.0
  %3882 = vmatprep.subr.mxu0 0.0
  %3883 = vmatpush1.msra.mxu0 0.0
  %3884 = vmatprep.subr.mxu0 0.0
  %3885 = vmatpush1.msra.mxu0 0.0
  %3886 = vmatprep.subr.mxu0 0.0
  %3887 = vmatpush1.msra.mxu0 0.0
  %3888 = vmatprep.subr.mxu0 0.0
  %3889 = vmatpush1.msra.mxu0 0.0
  %3890 = vmatprep.subr.mxu0 0.0
  %3891 = vmatpush1.msra.mxu0 0.0
  %3892 = vmatprep.subr.mxu0 0.0
  %3893 = vmatpush1.msra.mxu0 0.0
  %3894 = vmatprep.subr.mxu0 0.0
  %3895 = vmatpush1.msra.mxu0 0.0
  %3896 = vmatprep.subr.mxu0 0.0
  %3897 = vmatpush1.msra.mxu0 0.0
  %3898 = vmatprep.subr.mxu0 0.0
  %3899 = vmatpush1.msra.mxu0 0.0
  %3900 = vmatprep.subr.mxu0 0.0
  %3901 = vmatpush1.msra.mxu0 0.0
  %3902 = vmatprep.subr.mxu0 0.0
  %3903 = vmatpush1.msra.mxu0 0.0
  %3904 = vmatprep.subr.mxu0 0.0
  %3905 = vmatpush1.msra.mxu0 0.0
  %3906 = vmatprep.subr.mxu0 0.0
  %3907 = vmatpush1.msra.mxu0 0.0
  %3908 = vmatprep.subr.mxu0 0.0
  %3909 = vmatpush1.msra.mxu0 0.0
  %3910 = vmatprep.subr.mxu0 0.0
  %3911 = vmatpush1.msra.mxu0 0.0
  %3912 = vmatprep.subr.mxu0 0.0
  %3913 = vmatpush1.msra.mxu0 0.0
  %3914 = vmatprep.subr.mxu0 0.0
  %3915 = vmatpush1.msra.mxu0 0.0
  %3916 = vmatprep.subr.mxu0 0.0
  %3917 = vmatpush1.msra.mxu0 0.0
  %3918 = vmatprep.subr.mxu0 0.0
  %3919 = vmatpush1.msra.mxu0 0.0
  %3920 = vmatprep.subr.mxu0 0.0
  %3921 = vmatpush1.msra.mxu0 0.0
  %3922 = vmatprep.mubr.f32.mxu0 0.0
  %3923 = vmatmul.mubr.f32.gmra.mrb[0].mxu0 %v3848
  %v3924 = vpop.f32.mrb[0].mxu0
  %v3925 = vadd.f32 0.0, %v3924
  %v3926 = vpop.f32.mrb[0].mxu0
  %3927 = vmatprep.mubr.f32.mxu0 0.0
  %3928 = vmatmul.mubr.f32.gmra.mrb[0].mxu0 %v3851
  %v3929 = vpop.f32.mrb[0].mxu0
  %v3930 = vadd.f32 0.0, %v3929
  %v3931 = vpop.f32.mrb[0].mxu0
  %3932 = vmatprep.mubr.f32.mxu0 0.0
  %3933 = vmatmul.mubr.f32.gmra.mrb[0].mxu0 %v3854
  %v3934 = vpop.f32.mrb[0].mxu0
  %v3935 = vadd.f32 0.0, %v3934
  %v3936 = vpop.f32.mrb[0].mxu0
  %3937 = vdwg.mxu0
  %3938 = vrot.lane.b32.xlu0 %v3432, 104
  %v3939 = vpop.permute.xlu0 %3938
  %3940 = vrot.lane.b32.xlu0 %v3438, 104
  %v3941 = vpop.permute.xlu0 %3940
  %3942 = vrot.lane.b32.xlu0 %v3444, 104
  %v3943 = vpop.permute.xlu0 %3942
  %3944 = vrot.lane.b32.xlu0 %v3432, 56
  %v3945 = vpop.permute.xlu0 %3944
  %3946 = vrot.lane.b32.xlu0 %v3438, 56
  %v3947 = vpop.permute.xlu0 %3946
  %3948 = vrot.lane.b32.xlu0 %v3444, 56
  %v3949 = vpop.permute.xlu0 %3948
  %v3950 = vsel %vm3469, %v3939, 0
  %v3952 = vsel %vm3469, %v3941, 0
  %v3954 = vsel %vm3469, %v3943, 0
  %v3956 = vsel %vm3469, %v3945, 0
  %v3958 = vsel %vm3469, %v3947, 0
  %v3960 = vsel %vm3469, %v3949, 0
  %3962 = vmatprep.subr.mxu0 0.0
  %3963 = vmatpush1.xpose.msra.mxu0 %v3956
  %3964 = vmatprep.subr.mxu0 0.0
  %3965 = vmatpush1.xpose.msra.mxu0 %v3958
  %3966 = vmatprep.subr.mxu0 0.0
  %3967 = vmatpush1.xpose.msra.mxu0 %v3960
  %3968 = vmatprep.subr.mxu0 0.0
  %3969 = vmatpush1.xpose.msra.mxu0 0.0
  %3970 = vmatprep.subr.mxu0 0.0
  %3971 = vmatpush1.xpose.msra.mxu0 0.0
  %3972 = vmatprep.subr.mxu0 0.0
  %3973 = vmatpush1.xpose.msra.mxu0 0.0
  %3974 = vmatprep.subr.mxu0 0.0
  %3975 = vmatpush1.xpose.msra.mxu0 0.0
  %3976 = vmatprep.subr.mxu0 0.0
  %3977 = vmatpush1.xpose.msra.mxu0 0.0
  %3978 = vmatprep.subr.mxu0 0.0
  %3979 = vmatpush1.xpose.msra.mxu0 0.0
  %3980 = vmatprep.subr.mxu0 0.0
  %3981 = vmatpush1.xpose.msra.mxu0 0.0
  %3982 = vmatprep.subr.mxu0 0.0
  %3983 = vmatpush1.xpose.msra.mxu0 0.0
  %3984 = vmatprep.subr.mxu0 0.0
  %3985 = vmatpush1.xpose.msra.mxu0 0.0
  %3986 = vmatprep.subr.mxu0 0.0
  %3987 = vmatpush1.xpose.msra.mxu0 0.0
  %3988 = vmatprep.subr.mxu0 0.0
  %3989 = vmatpush1.xpose.msra.mxu0 0.0
  %3990 = vmatprep.subr.mxu0 0.0
  %3991 = vmatpush1.xpose.msra.mxu0 0.0
  %3992 = vmatprep.subr.mxu0 0.0
  %3993 = vmatpush1.xpose.msra.mxu0 0.0
  %3994 = vmatprep.subr.mxu0 0.0
  %3995 = vmatpush1.xpose.msra.mxu0 0.0
  %3996 = vmatprep.subr.mxu0 0.0
  %3997 = vmatpush1.xpose.msra.mxu0 0.0
  %3998 = vmatprep.subr.mxu0 0.0
  %3999 = vmatpush1.xpose.msra.mxu0 0.0
  %4000 = vmatprep.subr.mxu0 0.0
  %4001 = vmatpush1.xpose.msra.mxu0 0.0
  %4002 = vmatprep.subr.mxu0 0.0
  %4003 = vmatpush1.xpose.msra.mxu0 0.0
  %4004 = vmatprep.subr.mxu0 0.0
  %4005 = vmatpush1.xpose.msra.mxu0 0.0
  %4006 = vmatprep.subr.mxu0 0.0
  %4007 = vmatpush1.xpose.msra.mxu0 0.0
  %4008 = vmatprep.subr.mxu0 0.0
  %4009 = vmatpush1.xpose.msra.mxu0 0.0
  %4010 = vmatprep.subr.mxu0 0.0
  %4011 = vmatpush1.xpose.msra.mxu0 0.0
  %4012 = vmatprep.subr.mxu0 0.0
  %4013 = vmatpush1.xpose.msra.mxu0 0.0
  %4014 = vmatprep.subr.mxu0 0.0
  %4015 = vmatpush1.xpose.msra.mxu0 0.0
  %4016 = vmatprep.subr.mxu0 0.0
  %4017 = vmatpush1.xpose.msra.mxu0 0.0
  %4018 = vmatprep.subr.mxu0 0.0
  %4019 = vmatpush1.xpose.msra.mxu0 0.0
  %4020 = vmatprep.subr.mxu0 0.0
  %4021 = vmatpush1.xpose.msra.mxu0 0.0
  %4022 = vmatprep.subr.mxu0 0.0
  %4023 = vmatpush1.xpose.msra.mxu0 0.0
  %4024 = vmatprep.subr.mxu0 0.0
  %4025 = vmatpush1.xpose.msra.mxu0 0.0
  %4026 = vmatprep.mubr.f32.mxu0 0.0
  %4027 = vmatmul.mubr.f32.gmra.mrb[0].mxu0 %v3950
  %v4028 = vpop.f32.mrb[0].mxu0
  %v4029 = vadd.f32 0.0, %v4028
  %v4030 = vpop.f32.mrb[0].mxu0
  %4031 = vmatprep.mubr.f32.mxu0 0.0
  %4032 = vmatmul.mubr.f32.gmra.mrb[0].mxu0 %v3952
  %v4033 = vpop.f32.mrb[0].mxu0
  %v4034 = vadd.f32 0.0, %v4033
  %v4035 = vpop.f32.mrb[0].mxu0
  %4036 = vmatprep.mubr.f32.mxu0 0.0
  %4037 = vmatmul.mubr.f32.gmra.mrb[0].mxu0 %v3954
  %v4038 = vpop.f32.mrb[0].mxu0
  %v4039 = vadd.f32 0.0, %v4038
  %v4040 = vpop.f32.mrb[0].mxu0
  %4041 = vdwg.mxu0
  %v4042 = vmul.f32 %v4029, 0.28867513
  %v4043 = vmul.f32 %v4034, 0.28867513
  %v4044 = vmul.f32 %v4039, 0.28867513
  %v4045 = vsel %vm3565, %v4042, -inf
  %4046 = vmax.xlane.f32.xlu0 %v4045
  %v4047 = vpop.xlane.xlu0 %4046
  %v4048 = vsel %vm3565, %v4043, -inf
  %4049 = vmax.xlane.f32.xlu0 %v4048
  %v4050 = vpop.xlane.xlu0 %4049
  %v4051 = vsel %vm3572, %v4044, -inf
  %4052 = vmax.xlane.f32.xlu0 %v4051
  %v4053 = vpop.xlane.xlu0 %4052
  %v4054 = vsub.f32 %v4042, %v4047
  %v4055 = vsub.f32 %v4043, %v4050
  %v4056 = vsub.f32 %v4044, %v4053
  %v4057 = vmul.f32 %v4054, 1.442695
  %v4058 = vpow.pop %v4057
  %v4059 = vmul.f32 %v4055, 1.442695
  %v4060 = vpow.pop %v4059
  %v4061 = vmul.f32 %v4056, 1.442695
  %v4062 = vpow.pop %v4061
  %v4063 = vsel %vm3565, %v4058, 0.0
  %4064 = vadd.xlane.f32.xlu0 %v4063
  %v4065 = vpop.xlane.xlu0 %4064
  %v4066 = vsel %vm3565, %v4060, 0.0
  %4067 = vadd.xlane.f32.xlu0 %v4066
  %v4068 = vpop.xlane.xlu0 %4067
  %v4069 = vsel %vm3572, %v4062, 0.0
  %4070 = vadd.xlane.f32.xlu0 %v4069
  %v4071 = vpop.xlane.xlu0 %4070
  %v4072 = vrcp.pop %v4065
  %v4073 = vrcp.pop %v4068
  %v4074 = vrcp.pop %v4071
  %v4075 = vmul.f32 %v4058, %v4072
  %v4076 = vmul.f32 %v4060, %v4073
  %v4077 = vmul.f32 %v4062, %v4074
  %4081 = vrot.lane.b32.xlu0 %v3432, 8
  %v4082 = vpop.permute.xlu0 %4081
  %4083 = vrot.lane.b32.xlu0 %v3434, 8
  %v4084 = vpop.permute.xlu0 %4083
  %4085 = vrot.lane.b32.xlu0 %v3438, 8
  %v4086 = vpop.permute.xlu0 %4085
  %4087 = vrot.lane.b32.xlu0 %v3440, 8
  %v4088 = vpop.permute.xlu0 %4087
  %4089 = vrot.lane.b32.xlu0 %v3444, 8
  %v4090 = vpop.permute.xlu0 %4089
  %4091 = vrot.lane.b32.xlu0 %v3446, 8
  %v4092 = vpop.permute.xlu0 %4091
  %v4093 = vsel %vm551, %v4082, %v4084
  %v4094 = vsel %vm551, %v4086, %v4088
  %v4095 = vsel %vm551, %v4090, %v4092
  %v4099 = vsel %vm3565, %v4075, 0
  %v4102 = vsel %vm3565, %v4076, 0
  %v4105 = vsel %vm3565, %v4077, 0
  %v4107 = vsel %vm3226, %v4095, 0
  %4109 = vmatprep.subr.mxu0 0.0
  %4110 = vmatpush1.msra.mxu0 %v4093
  %4111 = vmatprep.subr.mxu0 0.0
  %4112 = vmatpush1.msra.mxu0 %v4094
  %4113 = vmatprep.subr.mxu0 0.0
  %4114 = vmatpush1.msra.mxu0 %v4107
  %4115 = vmatprep.subr.mxu0 0.0
  %4116 = vmatpush1.msra.mxu0 0.0
  %4117 = vmatprep.subr.mxu0 0.0
  %4118 = vmatpush1.msra.mxu0 0.0
  %4119 = vmatprep.subr.mxu0 0.0
  %4120 = vmatpush1.msra.mxu0 0.0
  %4121 = vmatprep.subr.mxu0 0.0
  %4122 = vmatpush1.msra.mxu0 0.0
  %4123 = vmatprep.subr.mxu0 0.0
  %4124 = vmatpush1.msra.mxu0 0.0
  %4125 = vmatprep.subr.mxu0 0.0
  %4126 = vmatpush1.msra.mxu0 0.0
  %4127 = vmatprep.subr.mxu0 0.0
  %4128 = vmatpush1.msra.mxu0 0.0
  %4129 = vmatprep.subr.mxu0 0.0
  %4130 = vmatpush1.msra.mxu0 0.0
  %4131 = vmatprep.subr.mxu0 0.0
  %4132 = vmatpush1.msra.mxu0 0.0
  %4133 = vmatprep.subr.mxu0 0.0
  %4134 = vmatpush1.msra.mxu0 0.0
  %4135 = vmatprep.subr.mxu0 0.0
  %4136 = vmatpush1.msra.mxu0 0.0
  %4137 = vmatprep.subr.mxu0 0.0
  %4138 = vmatpush1.msra.mxu0 0.0
  %4139 = vmatprep.subr.mxu0 0.0
  %4140 = vmatpush1.msra.mxu0 0.0
  %4141 = vmatprep.subr.mxu0 0.0
  %4142 = vmatpush1.msra.mxu0 0.0
  %4143 = vmatprep.subr.mxu0 0.0
  %4144 = vmatpush1.msra.mxu0 0.0
  %4145 = vmatprep.subr.mxu0 0.0
  %4146 = vmatpush1.msra.mxu0 0.0
  %4147 = vmatprep.subr.mxu0 0.0
  %4148 = vmatpush1.msra.mxu0 0.0
  %4149 = vmatprep.subr.mxu0 0.0
  %4150 = vmatpush1.msra.mxu0 0.0
  %4151 = vmatprep.subr.mxu0 0.0
  %4152 = vmatpush1.msra.mxu0 0.0
  %4153 = vmatprep.subr.mxu0 0.0
  %4154 = vmatpush1.msra.mxu0 0.0
  %4155 = vmatprep.subr.mxu0 0.0
  %4156 = vmatpush1.msra.mxu0 0.0
  %4157 = vmatprep.subr.mxu0 0.0
  %4158 = vmatpush1.msra.mxu0 0.0
  %4159 = vmatprep.subr.mxu0 0.0
  %4160 = vmatpush1.msra.mxu0 0.0
  %4161 = vmatprep.subr.mxu0 0.0
  %4162 = vmatpush1.msra.mxu0 0.0
  %4163 = vmatprep.subr.mxu0 0.0
  %4164 = vmatpush1.msra.mxu0 0.0
  %4165 = vmatprep.subr.mxu0 0.0
  %4166 = vmatpush1.msra.mxu0 0.0
  %4167 = vmatprep.subr.mxu0 0.0
  %4168 = vmatpush1.msra.mxu0 0.0
  %4169 = vmatprep.subr.mxu0 0.0
  %4170 = vmatpush1.msra.mxu0 0.0
  %4171 = vmatprep.subr.mxu0 0.0
  %4172 = vmatpush1.msra.mxu0 0.0
  %4173 = vmatprep.mubr.f32.mxu0 0.0
  %4174 = vmatmul.mubr.f32.gmra.mrb[0].mxu0 %v4099
  %v4175 = vpop.f32.mrb[0].mxu0
  %v4176 = vadd.f32 0.0, %v4175
  %v4177 = vpop.f32.mrb[0].mxu0
  %4178 = vmatprep.mubr.f32.mxu0 0.0
  %4179 = vmatmul.mubr.f32.gmra.mrb[0].mxu0 %v4102
  %v4180 = vpop.f32.mrb[0].mxu0
  %v4181 = vadd.f32 0.0, %v4180
  %v4182 = vpop.f32.mrb[0].mxu0
  %4183 = vmatprep.mubr.f32.mxu0 0.0
  %4184 = vmatmul.mubr.f32.gmra.mrb[0].mxu0 %v4105
  %v4185 = vpop.f32.mrb[0].mxu0
  %v4186 = vadd.f32 0.0, %v4185
  %v4187 = vpop.f32.mrb[0].mxu0
  %4188 = vdwg.mxu0
  %4189 = vrot.lane.b32.xlu0 %v3432, 92
  %v4190 = vpop.permute.xlu0 %4189
  %4191 = vrot.lane.b32.xlu0 %v3438, 92
  %v4192 = vpop.permute.xlu0 %4191
  %4193 = vrot.lane.b32.xlu0 %v3444, 92
  %v4194 = vpop.permute.xlu0 %4193
  %4195 = vrot.lane.b32.xlu0 %v3432, 44
  %v4196 = vpop.permute.xlu0 %4195
  %4197 = vrot.lane.b32.xlu0 %v3438, 44
  %v4198 = vpop.permute.xlu0 %4197
  %4199 = vrot.lane.b32.xlu0 %v3444, 44
  %v4200 = vpop.permute.xlu0 %4199
  %v4201 = vsel %vm3469, %v4190, 0
  %v4203 = vsel %vm3469, %v4192, 0
  %v4205 = vsel %vm3469, %v4194, 0
  %v4207 = vsel %vm3469, %v4196, 0
  %v4209 = vsel %vm3469, %v4198, 0
  %v4211 = vsel %vm3469, %v4200, 0
  %4213 = vmatprep.subr.mxu0 0.0
  %4214 = vmatpush1.xpose.msra.mxu0 %v4207
  %4215 = vmatprep.subr.mxu0 0.0
  %4216 = vmatpush1.xpose.msra.mxu0 %v4209
  %4217 = vmatprep.subr.mxu0 0.0
  %4218 = vmatpush1.xpose.msra.mxu0 %v4211
  %4219 = vmatprep.subr.mxu0 0.0
  %4220 = vmatpush1.xpose.msra.mxu0 0.0
  %4221 = vmatprep.subr.mxu0 0.0
  %4222 = vmatpush1.xpose.msra.mxu0 0.0
  %4223 = vmatprep.subr.mxu0 0.0
  %4224 = vmatpush1.xpose.msra.mxu0 0.0
  %4225 = vmatprep.subr.mxu0 0.0
  %4226 = vmatpush1.xpose.msra.mxu0 0.0
  %4227 = vmatprep.subr.mxu0 0.0
  %4228 = vmatpush1.xpose.msra.mxu0 0.0
  %4229 = vmatprep.subr.mxu0 0.0
  %4230 = vmatpush1.xpose.msra.mxu0 0.0
  %4231 = vmatprep.subr.mxu0 0.0
  %4232 = vmatpush1.xpose.msra.mxu0 0.0
  %4233 = vmatprep.subr.mxu0 0.0
  %4234 = vmatpush1.xpose.msra.mxu0 0.0
  %4235 = vmatprep.subr.mxu0 0.0
  %4236 = vmatpush1.xpose.msra.mxu0 0.0
  %4237 = vmatprep.subr.mxu0 0.0
  %4238 = vmatpush1.xpose.msra.mxu0 0.0
  %4239 = vmatprep.subr.mxu0 0.0
  %4240 = vmatpush1.xpose.msra.mxu0 0.0
  %4241 = vmatprep.subr.mxu0 0.0
  %4242 = vmatpush1.xpose.msra.mxu0 0.0
  %4243 = vmatprep.subr.mxu0 0.0
  %4244 = vmatpush1.xpose.msra.mxu0 0.0
  %4245 = vmatprep.subr.mxu0 0.0
  %4246 = vmatpush1.xpose.msra.mxu0 0.0
  %4247 = vmatprep.subr.mxu0 0.0
  %4248 = vmatpush1.xpose.msra.mxu0 0.0
  %4249 = vmatprep.subr.mxu0 0.0
  %4250 = vmatpush1.xpose.msra.mxu0 0.0
  %4251 = vmatprep.subr.mxu0 0.0
  %4252 = vmatpush1.xpose.msra.mxu0 0.0
  %4253 = vmatprep.subr.mxu0 0.0
  %4254 = vmatpush1.xpose.msra.mxu0 0.0
  %4255 = vmatprep.subr.mxu0 0.0
  %4256 = vmatpush1.xpose.msra.mxu0 0.0
  %4257 = vmatprep.subr.mxu0 0.0
  %4258 = vmatpush1.xpose.msra.mxu0 0.0
  %4259 = vmatprep.subr.mxu0 0.0
  %4260 = vmatpush1.xpose.msra.mxu0 0.0
  %4261 = vmatprep.subr.mxu0 0.0
  %4262 = vmatpush1.xpose.msra.mxu0 0.0
  %4263 = vmatprep.subr.mxu0 0.0
  %4264 = vmatpush1.xpose.msra.mxu0 0.0
  %4265 = vmatprep.subr.mxu0 0.0
  %4266 = vmatpush1.xpose.msra.mxu0 0.0
  %4267 = vmatprep.subr.mxu0 0.0
  %4268 = vmatpush1.xpose.msra.mxu0 0.0
  %4269 = vmatprep.subr.mxu0 0.0
  %4270 = vmatpush1.xpose.msra.mxu0 0.0
  %4271 = vmatprep.subr.mxu0 0.0
  %4272 = vmatpush1.xpose.msra.mxu0 0.0
  %4273 = vmatprep.subr.mxu0 0.0
  %4274 = vmatpush1.xpose.msra.mxu0 0.0
  %4275 = vmatprep.subr.mxu0 0.0
  %4276 = vmatpush1.xpose.msra.mxu0 0.0
  %4277 = vmatprep.mubr.f32.mxu0 0.0
  %4278 = vmatmul.mubr.f32.gmra.mrb[0].mxu0 %v4201
  %v4279 = vpop.f32.mrb[0].mxu0
  %v4280 = vadd.f32 0.0, %v4279
  %v4281 = vpop.f32.mrb[0].mxu0
  %4282 = vmatprep.mubr.f32.mxu0 0.0
  %4283 = vmatmul.mubr.f32.gmra.mrb[0].mxu0 %v4203
  %v4284 = vpop.f32.mrb[0].mxu0
  %v4285 = vadd.f32 0.0, %v4284
  %v4286 = vpop.f32.mrb[0].mxu0
  %4287 = vmatprep.mubr.f32.mxu0 0.0
  %4288 = vmatmul.mubr.f32.gmra.mrb[0].mxu0 %v4205
  %v4289 = vpop.f32.mrb[0].mxu0
  %v4290 = vadd.f32 0.0, %v4289
  %v4291 = vpop.f32.mrb[0].mxu0
  %4292 = vdwg.mxu0
  %v4293 = vmul.f32 %v4280, 0.28867513
  %v4294 = vmul.f32 %v4285, 0.28867513
  %v4295 = vmul.f32 %v4290, 0.28867513
  %v4296 = vsel %vm3565, %v4293, -inf
  %4297 = vmax.xlane.f32.xlu0 %v4296
  %v4298 = vpop.xlane.xlu0 %4297
  %v4299 = vsel %vm3565, %v4294, -inf
  %4300 = vmax.xlane.f32.xlu0 %v4299
  %v4301 = vpop.xlane.xlu0 %4300
  %v4302 = vsel %vm3572, %v4295, -inf
  %4303 = vmax.xlane.f32.xlu0 %v4302
  %v4304 = vpop.xlane.xlu0 %4303
  %v4305 = vsub.f32 %v4293, %v4298
  %v4306 = vsub.f32 %v4294, %v4301
  %v4307 = vsub.f32 %v4295, %v4304
  %v4308 = vmul.f32 %v4305, 1.442695
  %v4309 = vpow.pop %v4308
  %v4310 = vmul.f32 %v4306, 1.442695
  %v4311 = vpow.pop %v4310
  %v4312 = vmul.f32 %v4307, 1.442695
  %v4313 = vpow.pop %v4312
  %v4314 = vsel %vm3565, %v4309, 0.0
  %4315 = vadd.xlane.f32.xlu0 %v4314
  %v4316 = vpop.xlane.xlu0 %4315
  %v4317 = vsel %vm3565, %v4311, 0.0
  %4318 = vadd.xlane.f32.xlu0 %v4317
  %v4319 = vpop.xlane.xlu0 %4318
  %v4320 = vsel %vm3572, %v4313, 0.0
  %4321 = vadd.xlane.f32.xlu0 %v4320
  %v4322 = vpop.xlane.xlu0 %4321
  %v4323 = vrcp.pop %v4316
  %v4324 = vrcp.pop %v4319
  %v4325 = vrcp.pop %v4322
  %v4326 = vmul.f32 %v4309, %v4323
  %v4327 = vmul.f32 %v4311, %v4324
  %v4328 = vmul.f32 %v4313, %v4325
  %4329 = vrot.lane.b32.xlu0 %v3434, 124
  %v4330 = vpop.permute.xlu0 %4329
  %4331 = vrot.lane.b32.xlu0 %v3440, 124
  %v4332 = vpop.permute.xlu0 %4331
  %4333 = vrot.lane.b32.xlu0 %v3446, 124
  %v4334 = vpop.permute.xlu0 %4333
  %v4338 = vsel %vm3565, %v4326, 0
  %v4341 = vsel %vm3565, %v4327, 0
  %v4344 = vsel %vm3565, %v4328, 0
  %v4346 = vsel %vm3226, %v4334, 0
  %4348 = vmatprep.subr.mxu0 0.0
  %4349 = vmatpush1.msra.mxu0 %v4330
  %4350 = vmatprep.subr.mxu0 0.0
  %4351 = vmatpush1.msra.mxu0 %v4332
  %4352 = vmatprep.subr.mxu0 0.0
  %4353 = vmatpush1.msra.mxu0 %v4346
  %4354 = vmatprep.subr.mxu0 0.0
  %4355 = vmatpush1.msra.mxu0 0.0
  %4356 = vmatprep.subr.mxu0 0.0
  %4357 = vmatpush1.msra.mxu0 0.0
  %4358 = vmatprep.subr.mxu0 0.0
  %4359 = vmatpush1.msra.mxu0 0.0
  %4360 = vmatprep.subr.mxu0 0.0
  %4361 = vmatpush1.msra.mxu0 0.0
  %4362 = vmatprep.subr.mxu0 0.0
  %4363 = vmatpush1.msra.mxu0 0.0
  %4364 = vmatprep.subr.mxu0 0.0
  %4365 = vmatpush1.msra.mxu0 0.0
  %4366 = vmatprep.subr.mxu0 0.0
  %4367 = vmatpush1.msra.mxu0 0.0
  %4368 = vmatprep.subr.mxu0 0.0
  %4369 = vmatpush1.msra.mxu0 0.0
  %4370 = vmatprep.subr.mxu0 0.0
  %4371 = vmatpush1.msra.mxu0 0.0
  %4372 = vmatprep.subr.mxu0 0.0
  %4373 = vmatpush1.msra.mxu0 0.0
  %4374 = vmatprep.subr.mxu0 0.0
  %4375 = vmatpush1.msra.mxu0 0.0
  %4376 = vmatprep.subr.mxu0 0.0
  %4377 = vmatpush1.msra.mxu0 0.0
  %4378 = vmatprep.subr.mxu0 0.0
  %4379 = vmatpush1.msra.mxu0 0.0
  %4380 = vmatprep.subr.mxu0 0.0
  %4381 = vmatpush1.msra.mxu0 0.0
  %4382 = vmatprep.subr.mxu0 0.0
  %4383 = vmatpush1.msra.mxu0 0.0
  %4384 = vmatprep.subr.mxu0 0.0
  %4385 = vmatpush1.msra.mxu0 0.0
  %4386 = vmatprep.subr.mxu0 0.0
  %4387 = vmatpush1.msra.mxu0 0.0
  %4388 = vmatprep.subr.mxu0 0.0
  %4389 = vmatpush1.msra.mxu0 0.0
  %4390 = vmatprep.subr.mxu0 0.0
  %4391 = vmatpush1.msra.mxu0 0.0
  %4392 = vmatprep.subr.mxu0 0.0
  %4393 = vmatpush1.msra.mxu0 0.0
  %4394 = vmatprep.subr.mxu0 0.0
  %4395 = vmatpush1.msra.mxu0 0.0
  %4396 = vmatprep.subr.mxu0 0.0
  %4397 = vmatpush1.msra.mxu0 0.0
  %4398 = vmatprep.subr.mxu0 0.0
  %4399 = vmatpush1.msra.mxu0 0.0
  %4400 = vmatprep.subr.mxu0 0.0
  %4401 = vmatpush1.msra.mxu0 0.0
  %4402 = vmatprep.subr.mxu0 0.0
  %4403 = vmatpush1.msra.mxu0 0.0
  %4404 = vmatprep.subr.mxu0 0.0
  %4405 = vmatpush1.msra.mxu0 0.0
  %4406 = vmatprep.subr.mxu0 0.0
  %4407 = vmatpush1.msra.mxu0 0.0
  %4408 = vmatprep.subr.mxu0 0.0
  %4409 = vmatpush1.msra.mxu0 0.0
  %4410 = vmatprep.subr.mxu0 0.0
  %4411 = vmatpush1.msra.mxu0 0.0
  %4412 = vmatprep.mubr.f32.mxu0 0.0
  %4413 = vmatmul.mubr.f32.gmra.mrb[0].mxu0 %v4338
  %v4414 = vpop.f32.mrb[0].mxu0
  %v4415 = vadd.f32 0.0, %v4414
  %v4416 = vpop.f32.mrb[0].mxu0
  %4417 = vmatprep.mubr.f32.mxu0 0.0
  %4418 = vmatmul.mubr.f32.gmra.mrb[0].mxu0 %v4341
  %v4419 = vpop.f32.mrb[0].mxu0
  %v4420 = vadd.f32 0.0, %v4419
  %v4421 = vpop.f32.mrb[0].mxu0
  %4422 = vmatprep.mubr.f32.mxu0 0.0
  %4423 = vmatmul.mubr.f32.gmra.mrb[0].mxu0 %v4344
  %v4424 = vpop.f32.mrb[0].mxu0
  %v4425 = vadd.f32 0.0, %v4424
  %v4426 = vpop.f32.mrb[0].mxu0
  %4427 = vdwg.mxu0
  %4431 = vrot.lane.b32.xlu0 %v3925, 12
  %v4432 = vpop.permute.xlu0 %4431
  %4433 = vrot.lane.b32.xlu0 %v3930, 12
  %v4434 = vpop.permute.xlu0 %4433
  %4435 = vrot.lane.b32.xlu0 %v3935, 12
  %v4436 = vpop.permute.xlu0 %4435
  %4443 = vrot.lane.b32.xlu0 %v4176, 24
  %v4444 = vpop.permute.xlu0 %4443
  %4445 = vrot.lane.b32.xlu0 %v4181, 24
  %v4446 = vpop.permute.xlu0 %4445
  %4447 = vrot.lane.b32.xlu0 %v4186, 24
  %v4448 = vpop.permute.xlu0 %4447
  %4455 = vrot.lane.b32.xlu0 %v4415, 36
  %v4456 = vpop.permute.xlu0 %4455
  %4457 = vrot.lane.b32.xlu0 %v4420, 36
  %v4458 = vpop.permute.xlu0 %4457
  %4459 = vrot.lane.b32.xlu0 %v4425, 36
  %v4460 = vpop.permute.xlu0 %4459
  %v4464 = vsel %vm3469, %v3686, %v4432
  %v4465 = vsel %vm3469, %v3691, %v4434
  %v4466 = vsel %vm3469, %v3696, %v4436
  %vm4467 = vcmask 195584
  %v4468 = vsel %vm4467, %v4464, %v4444
  %v4469 = vsel %vm4467, %v4465, %v4446
  %v4470 = vsel %vm4467, %v4466, %v4448
  %vm4471 = vcmask 293888
  %v4472 = vsel %vm4471, %v4468, %v4456
  %v4473 = vsel %vm4471, %v4469, %v4458
  %v4474 = vsel %vm4471, %v4470, %v4460
  %vm4477 = vcmask 1046528
  %v4478 = vrot.slane %v3444, 1
  %v4479 = vrot.slane %v3450, 1
  %v4480 = vsel %vm4477, %v4478, %v4479
  %v4481 = vrot.slane %v3456, 1
  %v4482 = vsel %vm4477, %v4479, %v4481
  %4483 = vrot.lane.b32.xlu0 %v4480, 80
  %v4484 = vpop.permute.xlu0 %4483
  %4485 = vrot.lane.b32.xlu0 %v4482, 80
  %v4486 = vpop.permute.xlu0 %4485
  %4487 = vrot.lane.b32.xlu0 %v4481, 80
  %v4488 = vpop.permute.xlu0 %4487
  %v4489 = vsel %vm3469, %v4480, 0
  %v4491 = vsel %vm3469, %v4482, 0
  %v4493 = vsel %vm3469, %v4481, 0
  %v4495 = vsel %vm3469, %v4484, 0
  %v4497 = vsel %vm3469, %v4486, 0
  %v4499 = vsel %vm3469, %v4488, 0
  %4501 = vmatprep.subr.mxu0 0.0
  %4502 = vmatpush1.xpose.msra.mxu0 %v4495
  %4503 = vmatprep.subr.mxu0 0.0
  %4504 = vmatpush1.xpose.msra.mxu0 %v4497
  %4505 = vmatprep.subr.mxu0 0.0
  %4506 = vmatpush1.xpose.msra.mxu0 %v4499
  %4507 = vmatprep.subr.mxu0 0.0
  %4508 = vmatpush1.xpose.msra.mxu0 0.0
  %4509 = vmatprep.subr.mxu0 0.0
  %4510 = vmatpush1.xpose.msra.mxu0 0.0
  %4511 = vmatprep.subr.mxu0 0.0
  %4512 = vmatpush1.xpose.msra.mxu0 0.0
  %4513 = vmatprep.subr.mxu0 0.0
  %4514 = vmatpush1.xpose.msra.mxu0 0.0
  %4515 = vmatprep.subr.mxu0 0.0
  %4516 = vmatpush1.xpose.msra.mxu0 0.0
  %4517 = vmatprep.subr.mxu0 0.0
  %4518 = vmatpush1.xpose.msra.mxu0 0.0
  %4519 = vmatprep.subr.mxu0 0.0
  %4520 = vmatpush1.xpose.msra.mxu0 0.0
  %4521 = vmatprep.subr.mxu0 0.0
  %4522 = vmatpush1.xpose.msra.mxu0 0.0
  %4523 = vmatprep.subr.mxu0 0.0
  %4524 = vmatpush1.xpose.msra.mxu0 0.0
  %4525 = vmatprep.subr.mxu0 0.0
  %4526 = vmatpush1.xpose.msra.mxu0 0.0
  %4527 = vmatprep.subr.mxu0 0.0
  %4528 = vmatpush1.xpose.msra.mxu0 0.0
  %4529 = vmatprep.subr.mxu0 0.0
  %4530 = vmatpush1.xpose.msra.mxu0 0.0
  %4531 = vmatprep.subr.mxu0 0.0
  %4532 = vmatpush1.xpose.msra.mxu0 0.0
  %4533 = vmatprep.subr.mxu0 0.0
  %4534 = vmatpush1.xpose.msra.mxu0 0.0
  %4535 = vmatprep.subr.mxu0 0.0
  %4536 = vmatpush1.xpose.msra.mxu0 0.0
  %4537 = vmatprep.subr.mxu0 0.0
  %4538 = vmatpush1.xpose.msra.mxu0 0.0
  %4539 = vmatprep.subr.mxu0 0.0
  %4540 = vmatpush1.xpose.msra.mxu0 0.0
  %4541 = vmatprep.subr.mxu0 0.0
  %4542 = vmatpush1.xpose.msra.mxu0 0.0
  %4543 = vmatprep.subr.mxu0 0.0
  %4544 = vmatpush1.xpose.msra.mxu0 0.0
  %4545 = vmatprep.subr.mxu0 0.0
  %4546 = vmatpush1.xpose.msra.mxu0 0.0
  %4547 = vmatprep.subr.mxu0 0.0
  %4548 = vmatpush1.xpose.msra.mxu0 0.0
  %4549 = vmatprep.subr.mxu0 0.0
  %4550 = vmatpush1.xpose.msra.mxu0 0.0
  %4551 = vmatprep.subr.mxu0 0.0
  %4552 = vmatpush1.xpose.msra.mxu0 0.0
  %4553 = vmatprep.subr.mxu0 0.0
  %4554 = vmatpush1.xpose.msra.mxu0 0.0
  %4555 = vmatprep.subr.mxu0 0.0
  %4556 = vmatpush1.xpose.msra.mxu0 0.0
  %4557 = vmatprep.subr.mxu0 0.0
  %4558 = vmatpush1.xpose.msra.mxu0 0.0
  %4559 = vmatprep.subr.mxu0 0.0
  %4560 = vmatpush1.xpose.msra.mxu0 0.0
  %4561 = vmatprep.subr.mxu0 0.0
  %4562 = vmatpush1.xpose.msra.mxu0 0.0
  %4563 = vmatprep.subr.mxu0 0.0
  %4564 = vmatpush1.xpose.msra.mxu0 0.0
  %4565 = vmatprep.mubr.f32.mxu0 0.0
  %4566 = vmatmul.mubr.f32.gmra.mrb[0].mxu0 %v4489
  %v4567 = vpop.f32.mrb[0].mxu0
  %v4568 = vadd.f32 0.0, %v4567
  %v4569 = vpop.f32.mrb[0].mxu0
  %4570 = vmatprep.mubr.f32.mxu0 0.0
  %4571 = vmatmul.mubr.f32.gmra.mrb[0].mxu0 %v4491
  %v4572 = vpop.f32.mrb[0].mxu0
  %v4573 = vadd.f32 0.0, %v4572
  %v4574 = vpop.f32.mrb[0].mxu0
  %4575 = vmatprep.mubr.f32.mxu0 0.0
  %4576 = vmatmul.mubr.f32.gmra.mrb[0].mxu0 %v4493
  %v4577 = vpop.f32.mrb[0].mxu0
  %v4578 = vadd.f32 0.0, %v4577
  %v4579 = vpop.f32.mrb[0].mxu0
  %4580 = vdwg.mxu0
  %v4581 = vmul.f32 %v4568, 0.28867513
  %v4582 = vmul.f32 %v4573, 0.28867513
  %v4583 = vmul.f32 %v4578, 0.28867513
  %v4584 = vsel %vm3565, %v4581, -inf
  %4585 = vmax.xlane.f32.xlu0 %v4584
  %v4586 = vpop.xlane.xlu0 %4585
  %v4587 = vsel %vm3565, %v4582, -inf
  %4588 = vmax.xlane.f32.xlu0 %v4587
  %v4589 = vpop.xlane.xlu0 %4588
  %v4590 = vsel %vm3572, %v4583, -inf
  %4591 = vmax.xlane.f32.xlu0 %v4590
  %v4592 = vpop.xlane.xlu0 %4591
  %v4593 = vsub.f32 %v4581, %v4586
  %v4594 = vsub.f32 %v4582, %v4589
  %v4595 = vsub.f32 %v4583, %v4592
  %v4596 = vmul.f32 %v4593, 1.442695
  %v4597 = vpow.pop %v4596
  %v4598 = vmul.f32 %v4594, 1.442695
  %v4599 = vpow.pop %v4598
  %v4600 = vmul.f32 %v4595, 1.442695
  %v4601 = vpow.pop %v4600
  %v4602 = vsel %vm3565, %v4597, 0.0
  %4603 = vadd.xlane.f32.xlu0 %v4602
  %v4604 = vpop.xlane.xlu0 %4603
  %v4605 = vsel %vm3565, %v4599, 0.0
  %4606 = vadd.xlane.f32.xlu0 %v4605
  %v4607 = vpop.xlane.xlu0 %4606
  %v4608 = vsel %vm3572, %v4601, 0.0
  %4609 = vadd.xlane.f32.xlu0 %v4608
  %v4610 = vpop.xlane.xlu0 %4609
  %v4611 = vrcp.pop %v4604
  %v4612 = vrcp.pop %v4607
  %v4613 = vrcp.pop %v4610
  %v4614 = vmul.f32 %v4597, %v4611
  %v4615 = vmul.f32 %v4599, %v4612
  %v4616 = vmul.f32 %v4601, %v4613
  %4617 = vrot.lane.b32.xlu0 %v4480, 32
  %v4618 = vpop.permute.xlu0 %4617
  %4619 = vrot.lane.b32.xlu0 %v4482, 32
  %v4620 = vpop.permute.xlu0 %4619
  %4621 = vrot.lane.b32.xlu0 %v4481, 32
  %v4622 = vpop.permute.xlu0 %4621
  %v4626 = vsel %vm3565, %v4614, 0
  %v4629 = vsel %vm3565, %v4615, 0
  %v4632 = vsel %vm3565, %v4616, 0
  %v4634 = vsel %vm3226, %v4622, 0
  %4636 = vmatprep.subr.mxu0 0.0
  %4637 = vmatpush1.msra.mxu0 %v4618
  %4638 = vmatprep.subr.mxu0 0.0
  %4639 = vmatpush1.msra.mxu0 %v4620
  %4640 = vmatprep.subr.mxu0 0.0
  %4641 = vmatpush1.msra.mxu0 %v4634
  %4642 = vmatprep.subr.mxu0 0.0
  %4643 = vmatpush1.msra.mxu0 0.0
  %4644 = vmatprep.subr.mxu0 0.0
  %4645 = vmatpush1.msra.mxu0 0.0
  %4646 = vmatprep.subr.mxu0 0.0
  %4647 = vmatpush1.msra.mxu0 0.0
  %4648 = vmatprep.subr.mxu0 0.0
  %4649 = vmatpush1.msra.mxu0 0.0
  %4650 = vmatprep.subr.mxu0 0.0
  %4651 = vmatpush1.msra.mxu0 0.0
  %4652 = vmatprep.subr.mxu0 0.0
  %4653 = vmatpush1.msra.mxu0 0.0
  %4654 = vmatprep.subr.mxu0 0.0
  %4655 = vmatpush1.msra.mxu0 0.0
  %4656 = vmatprep.subr.mxu0 0.0
  %4657 = vmatpush1.msra.mxu0 0.0
  %4658 = vmatprep.subr.mxu0 0.0
  %4659 = vmatpush1.msra.mxu0 0.0
  %4660 = vmatprep.subr.mxu0 0.0
  %4661 = vmatpush1.msra.mxu0 0.0
  %4662 = vmatprep.subr.mxu0 0.0
  %4663 = vmatpush1.msra.mxu0 0.0
  %4664 = vmatprep.subr.mxu0 0.0
  %4665 = vmatpush1.msra.mxu0 0.0
  %4666 = vmatprep.subr.mxu0 0.0
  %4667 = vmatpush1.msra.mxu0 0.0
  %4668 = vmatprep.subr.mxu0 0.0
  %4669 = vmatpush1.msra.mxu0 0.0
  %4670 = vmatprep.subr.mxu0 0.0
  %4671 = vmatpush1.msra.mxu0 0.0
  %4672 = vmatprep.subr.mxu0 0.0
  %4673 = vmatpush1.msra.mxu0 0.0
  %4674 = vmatprep.subr.mxu0 0.0
  %4675 = vmatpush1.msra.mxu0 0.0
  %4676 = vmatprep.subr.mxu0 0.0
  %4677 = vmatpush1.msra.mxu0 0.0
  %4678 = vmatprep.subr.mxu0 0.0
  %4679 = vmatpush1.msra.mxu0 0.0
  %4680 = vmatprep.subr.mxu0 0.0
  %4681 = vmatpush1.msra.mxu0 0.0
  %4682 = vmatprep.subr.mxu0 0.0
  %4683 = vmatpush1.msra.mxu0 0.0
  %4684 = vmatprep.subr.mxu0 0.0
  %4685 = vmatpush1.msra.mxu0 0.0
  %4686 = vmatprep.subr.mxu0 0.0
  %4687 = vmatpush1.msra.mxu0 0.0
  %4688 = vmatprep.subr.mxu0 0.0
  %4689 = vmatpush1.msra.mxu0 0.0
  %4690 = vmatprep.subr.mxu0 0.0
  %4691 = vmatpush1.msra.mxu0 0.0
  %4692 = vmatprep.subr.mxu0 0.0
  %4693 = vmatpush1.msra.mxu0 0.0
  %4694 = vmatprep.subr.mxu0 0.0
  %4695 = vmatpush1.msra.mxu0 0.0
  %4696 = vmatprep.subr.mxu0 0.0
  %4697 = vmatpush1.msra.mxu0 0.0
  %4698 = vmatprep.subr.mxu0 0.0
  %4699 = vmatpush1.msra.mxu0 0.0
  %4700 = vmatprep.mubr.f32.mxu0 0.0
  %4701 = vmatmul.mubr.f32.gmra.mrb[0].mxu0 %v4626
  %v4702 = vpop.f32.mrb[0].mxu0
  %v4703 = vadd.f32 0.0, %v4702
  %v4704 = vpop.f32.mrb[0].mxu0
  %4705 = vmatprep.mubr.f32.mxu0 0.0
  %4706 = vmatmul.mubr.f32.gmra.mrb[0].mxu0 %v4629
  %v4707 = vpop.f32.mrb[0].mxu0
  %v4708 = vadd.f32 0.0, %v4707
  %v4709 = vpop.f32.mrb[0].mxu0
  %4710 = vmatprep.mubr.f32.mxu0 0.0
  %4711 = vmatmul.mubr.f32.gmra.mrb[0].mxu0 %v4632
  %v4712 = vpop.f32.mrb[0].mxu0
  %v4713 = vadd.f32 0.0, %v4712
  %v4714 = vpop.f32.mrb[0].mxu0
  %4715 = vdwg.mxu0
  %4716 = vrot.lane.b32.xlu0 %v4480, 116
  %v4717 = vpop.permute.xlu0 %4716
  %4718 = vrot.lane.b32.xlu0 %v4482, 116
  %v4719 = vpop.permute.xlu0 %4718
  %4720 = vrot.lane.b32.xlu0 %v4481, 116
  %v4721 = vpop.permute.xlu0 %4720
  %4722 = vrot.lane.b32.xlu0 %v4480, 68
  %v4723 = vpop.permute.xlu0 %4722
  %4724 = vrot.lane.b32.xlu0 %v4482, 68
  %v4725 = vpop.permute.xlu0 %4724
  %4726 = vrot.lane.b32.xlu0 %v4481, 68
  %v4727 = vpop.permute.xlu0 %4726
  %v4728 = vsel %vm3469, %v4717, 0
  %v4730 = vsel %vm3469, %v4719, 0
  %v4732 = vsel %vm3469, %v4721, 0
  %v4734 = vsel %vm3469, %v4723, 0
  %v4736 = vsel %vm3469, %v4725, 0
  %v4738 = vsel %vm3469, %v4727, 0
  %4740 = vmatprep.subr.mxu0 0.0
  %4741 = vmatpush1.xpose.msra.mxu0 %v4734
  %4742 = vmatprep.subr.mxu0 0.0
  %4743 = vmatpush1.xpose.msra.mxu0 %v4736
  %4744 = vmatprep.subr.mxu0 0.0
  %4745 = vmatpush1.xpose.msra.mxu0 %v4738
  %4746 = vmatprep.subr.mxu0 0.0
  %4747 = vmatpush1.xpose.msra.mxu0 0.0
  %4748 = vmatprep.subr.mxu0 0.0
  %4749 = vmatpush1.xpose.msra.mxu0 0.0
  %4750 = vmatprep.subr.mxu0 0.0
  %4751 = vmatpush1.xpose.msra.mxu0 0.0
  %4752 = vmatprep.subr.mxu0 0.0
  %4753 = vmatpush1.xpose.msra.mxu0 0.0
  %4754 = vmatprep.subr.mxu0 0.0
  %4755 = vmatpush1.xpose.msra.mxu0 0.0
  %4756 = vmatprep.subr.mxu0 0.0
  %4757 = vmatpush1.xpose.msra.mxu0 0.0
  %4758 = vmatprep.subr.mxu0 0.0
  %4759 = vmatpush1.xpose.msra.mxu0 0.0
  %4760 = vmatprep.subr.mxu0 0.0
  %4761 = vmatpush1.xpose.msra.mxu0 0.0
  %4762 = vmatprep.subr.mxu0 0.0
  %4763 = vmatpush1.xpose.msra.mxu0 0.0
  %4764 = vmatprep.subr.mxu0 0.0
  %4765 = vmatpush1.xpose.msra.mxu0 0.0
  %4766 = vmatprep.subr.mxu0 0.0
  %4767 = vmatpush1.xpose.msra.mxu0 0.0
  %4768 = vmatprep.subr.mxu0 0.0
  %4769 = vmatpush1.xpose.msra.mxu0 0.0
  %4770 = vmatprep.subr.mxu0 0.0
  %4771 = vmatpush1.xpose.msra.mxu0 0.0
  %4772 = vmatprep.subr.mxu0 0.0
  %4773 = vmatpush1.xpose.msra.mxu0 0.0
  %4774 = vmatprep.subr.mxu0 0.0
  %4775 = vmatpush1.xpose.msra.mxu0 0.0
  %4776 = vmatprep.subr.mxu0 0.0
  %4777 = vmatpush1.xpose.msra.mxu0 0.0
  %4778 = vmatprep.subr.mxu0 0.0
  %4779 = vmatpush1.xpose.msra.mxu0 0.0
  %4780 = vmatprep.subr.mxu0 0.0
  %4781 = vmatpush1.xpose.msra.mxu0 0.0
  %4782 = vmatprep.subr.mxu0 0.0
  %4783 = vmatpush1.xpose.msra.mxu0 0.0
  %4784 = vmatprep.subr.mxu0 0.0
  %4785 = vmatpush1.xpose.msra.mxu0 0.0
  %4786 = vmatprep.subr.mxu0 0.0
  %4787 = vmatpush1.xpose.msra.mxu0 0.0
  %4788 = vmatprep.subr.mxu0 0.0
  %4789 = vmatpush1.xpose.msra.mxu0 0.0
  %4790 = vmatprep.subr.mxu0 0.0
  %4791 = vmatpush1.xpose.msra.mxu0 0.0
  %4792 = vmatprep.subr.mxu0 0.0
  %4793 = vmatpush1.xpose.msra.mxu0 0.0
  %4794 = vmatprep.subr.mxu0 0.0
  %4795 = vmatpush1.xpose.msra.mxu0 0.0
  %4796 = vmatprep.subr.mxu0 0.0
  %4797 = vmatpush1.xpose.msra.mxu0 0.0
  %4798 = vmatprep.subr.mxu0 0.0
  %4799 = vmatpush1.xpose.msra.mxu0 0.0
  %4800 = vmatprep.subr.mxu0 0.0
  %4801 = vmatpush1.xpose.msra.mxu0 0.0
  %4802 = vmatprep.subr.mxu0 0.0
  %4803 = vmatpush1.xpose.msra.mxu0 0.0
  %4804 = vmatprep.mubr.f32.mxu0 0.0
  %4805 = vmatmul.mubr.f32.gmra.mrb[0].mxu0 %v4728
  %v4806 = vpop.f32.mrb[0].mxu0
  %v4807 = vadd.f32 0.0, %v4806
  %v4808 = vpop.f32.mrb[0].mxu0
  %4809 = vmatprep.mubr.f32.mxu0 0.0
  %4810 = vmatmul.mubr.f32.gmra.mrb[0].mxu0 %v4730
  %v4811 = vpop.f32.mrb[0].mxu0
  %v4812 = vadd.f32 0.0, %v4811
  %v4813 = vpop.f32.mrb[0].mxu0
  %4814 = vmatprep.mubr.f32.mxu0 0.0
  %4815 = vmatmul.mubr.f32.gmra.mrb[0].mxu0 %v4732
  %v4816 = vpop.f32.mrb[0].mxu0
  %v4817 = vadd.f32 0.0, %v4816
  %v4818 = vpop.f32.mrb[0].mxu0
  %4819 = vdwg.mxu0
  %v4820 = vmul.f32 %v4807, 0.28867513
  %v4821 = vmul.f32 %v4812, 0.28867513
  %v4822 = vmul.f32 %v4817, 0.28867513
  %v4823 = vsel %vm3565, %v4820, -inf
  %4824 = vmax.xlane.f32.xlu0 %v4823
  %v4825 = vpop.xlane.xlu0 %4824
  %v4826 = vsel %vm3565, %v4821, -inf
  %4827 = vmax.xlane.f32.xlu0 %v4826
  %v4828 = vpop.xlane.xlu0 %4827
  %v4829 = vsel %vm3572, %v4822, -inf
  %4830 = vmax.xlane.f32.xlu0 %v4829
  %v4831 = vpop.xlane.xlu0 %4830
  %v4832 = vsub.f32 %v4820, %v4825
  %v4833 = vsub.f32 %v4821, %v4828
  %v4834 = vsub.f32 %v4822, %v4831
  %v4835 = vmul.f32 %v4832, 1.442695
  %v4836 = vpow.pop %v4835
  %v4837 = vmul.f32 %v4833, 1.442695
  %v4838 = vpow.pop %v4837
  %v4839 = vmul.f32 %v4834, 1.442695
  %v4840 = vpow.pop %v4839
  %v4841 = vsel %vm3565, %v4836, 0.0
  %4842 = vadd.xlane.f32.xlu0 %v4841
  %v4843 = vpop.xlane.xlu0 %4842
  %v4844 = vsel %vm3565, %v4838, 0.0
  %4845 = vadd.xlane.f32.xlu0 %v4844
  %v4846 = vpop.xlane.xlu0 %4845
  %v4847 = vsel %vm3572, %v4840, 0.0
  %4848 = vadd.xlane.f32.xlu0 %v4847
  %v4849 = vpop.xlane.xlu0 %4848
  %v4850 = vrcp.pop %v4843
  %v4851 = vrcp.pop %v4846
  %v4852 = vrcp.pop %v4849
  %v4853 = vmul.f32 %v4836, %v4850
  %v4854 = vmul.f32 %v4838, %v4851
  %v4855 = vmul.f32 %v4840, %v4852
  %4856 = vrot.lane.b32.xlu0 %v4480, 20
  %v4857 = vpop.permute.xlu0 %4856
  %4858 = vrot.lane.b32.xlu0 %v4482, 20
  %v4859 = vpop.permute.xlu0 %4858
  %4860 = vrot.lane.b32.xlu0 %v4481, 20
  %v4861 = vpop.permute.xlu0 %4860
  %v4865 = vsel %vm3565, %v4853, 0
  %v4868 = vsel %vm3565, %v4854, 0
  %v4871 = vsel %vm3565, %v4855, 0
  %v4873 = vsel %vm3226, %v4861, 0
  %4875 = vmatprep.subr.mxu0 0.0
  %4876 = vmatpush1.msra.mxu0 %v4857
  %4877 = vmatprep.subr.mxu0 0.0
  %4878 = vmatpush1.msra.mxu0 %v4859
  %4879 = vmatprep.subr.mxu0 0.0
  %4880 = vmatpush1.msra.mxu0 %v4873
  %4881 = vmatprep.subr.mxu0 0.0
  %4882 = vmatpush1.msra.mxu0 0.0
  %4883 = vmatprep.subr.mxu0 0.0
  %4884 = vmatpush1.msra.mxu0 0.0
  %4885 = vmatprep.subr.mxu0 0.0
  %4886 = vmatpush1.msra.mxu0 0.0
  %4887 = vmatprep.subr.mxu0 0.0
  %4888 = vmatpush1.msra.mxu0 0.0
  %4889 = vmatprep.subr.mxu0 0.0
  %4890 = vmatpush1.msra.mxu0 0.0
  %4891 = vmatprep.subr.mxu0 0.0
  %4892 = vmatpush1.msra.mxu0 0.0
  %4893 = vmatprep.subr.mxu0 0.0
  %4894 = vmatpush1.msra.mxu0 0.0
  %4895 = vmatprep.subr.mxu0 0.0
  %4896 = vmatpush1.msra.mxu0 0.0
  %4897 = vmatprep.subr.mxu0 0.0
  %4898 = vmatpush1.msra.mxu0 0.0
  %4899 = vmatprep.subr.mxu0 0.0
  %4900 = vmatpush1.msra.mxu0 0.0
  %4901 = vmatprep.subr.mxu0 0.0
  %4902 = vmatpush1.msra.mxu0 0.0
  %4903 = vmatprep.subr.mxu0 0.0
  %4904 = vmatpush1.msra.mxu0 0.0
  %4905 = vmatprep.subr.mxu0 0.0
  %4906 = vmatpush1.msra.mxu0 0.0
  %4907 = vmatprep.subr.mxu0 0.0
  %4908 = vmatpush1.msra.mxu0 0.0
  %4909 = vmatprep.subr.mxu0 0.0
  %4910 = vmatpush1.msra.mxu0 0.0
  %4911 = vmatprep.subr.mxu0 0.0
  %4912 = vmatpush1.msra.mxu0 0.0
  %4913 = vmatprep.subr.mxu0 0.0
  %4914 = vmatpush1.msra.mxu0 0.0
  %4915 = vmatprep.subr.mxu0 0.0
  %4916 = vmatpush1.msra.mxu0 0.0
  %4917 = vmatprep.subr.mxu0 0.0
  %4918 = vmatpush1.msra.mxu0 0.0
  %4919 = vmatprep.subr.mxu0 0.0
  %4920 = vmatpush1.msra.mxu0 0.0
  %4921 = vmatprep.subr.mxu0 0.0
  %4922 = vmatpush1.msra.mxu0 0.0
  %4923 = vmatprep.subr.mxu0 0.0
  %4924 = vmatpush1.msra.mxu0 0.0
  %4925 = vmatprep.subr.mxu0 0.0
  %4926 = vmatpush1.msra.mxu0 0.0
  %4927 = vmatprep.subr.mxu0 0.0
  %4928 = vmatpush1.msra.mxu0 0.0
  %4929 = vmatprep.subr.mxu0 0.0
  %4930 = vmatpush1.msra.mxu0 0.0
  %4931 = vmatprep.subr.mxu0 0.0
  %4932 = vmatpush1.msra.mxu0 0.0
  %4933 = vmatprep.subr.mxu0 0.0
  %4934 = vmatpush1.msra.mxu0 0.0
  %4935 = vmatprep.subr.mxu0 0.0
  %4936 = vmatpush1.msra.mxu0 0.0
  %4937 = vmatprep.subr.mxu0 0.0
  %4938 = vmatpush1.msra.mxu0 0.0
  %4939 = vmatprep.mubr.f32.mxu0 0.0
  %4940 = vmatmul.mubr.f32.gmra.mrb[0].mxu0 %v4865
  %v4941 = vpop.f32.mrb[0].mxu0
  %v4942 = vadd.f32 0.0, %v4941
  %v4943 = vpop.f32.mrb[0].mxu0
  %4944 = vmatprep.mubr.f32.mxu0 0.0
  %4945 = vmatmul.mubr.f32.gmra.mrb[0].mxu0 %v4868
  %v4946 = vpop.f32.mrb[0].mxu0
  %v4947 = vadd.f32 0.0, %v4946
  %v4948 = vpop.f32.mrb[0].mxu0
  %4949 = vmatprep.mubr.f32.mxu0 0.0
  %4950 = vmatmul.mubr.f32.gmra.mrb[0].mxu0 %v4871
  %v4951 = vpop.f32.mrb[0].mxu0
  %v4952 = vadd.f32 0.0, %v4951
  %v4953 = vpop.f32.mrb[0].mxu0
  %4954 = vdwg.mxu0
  %4955 = vrot.lane.b32.xlu0 %v4480, 104
  %v4956 = vpop.permute.xlu0 %4955
  %4957 = vrot.lane.b32.xlu0 %v4482, 104
  %v4958 = vpop.permute.xlu0 %4957
  %4959 = vrot.lane.b32.xlu0 %v4481, 104
  %v4960 = vpop.permute.xlu0 %4959
  %4961 = vrot.lane.b32.xlu0 %v4480, 56
  %v4962 = vpop.permute.xlu0 %4961
  %4963 = vrot.lane.b32.xlu0 %v4482, 56
  %v4964 = vpop.permute.xlu0 %4963
  %4965 = vrot.lane.b32.xlu0 %v4481, 56
  %v4966 = vpop.permute.xlu0 %4965
  %v4967 = vsel %vm3469, %v4956, 0
  %v4969 = vsel %vm3469, %v4958, 0
  %v4971 = vsel %vm3469, %v4960, 0
  %v4973 = vsel %vm3469, %v4962, 0
  %v4975 = vsel %vm3469, %v4964, 0
  %v4977 = vsel %vm3469, %v4966, 0
  %4979 = vmatprep.subr.mxu0 0.0
  %4980 = vmatpush1.xpose.msra.mxu0 %v4973
  %4981 = vmatprep.subr.mxu0 0.0
  %4982 = vmatpush1.xpose.msra.mxu0 %v4975
  %4983 = vmatprep.subr.mxu0 0.0
  %4984 = vmatpush1.xpose.msra.mxu0 %v4977
  %4985 = vmatprep.subr.mxu0 0.0
  %4986 = vmatpush1.xpose.msra.mxu0 0.0
  %4987 = vmatprep.subr.mxu0 0.0
  %4988 = vmatpush1.xpose.msra.mxu0 0.0
  %4989 = vmatprep.subr.mxu0 0.0
  %4990 = vmatpush1.xpose.msra.mxu0 0.0
  %4991 = vmatprep.subr.mxu0 0.0
  %4992 = vmatpush1.xpose.msra.mxu0 0.0
  %4993 = vmatprep.subr.mxu0 0.0
  %4994 = vmatpush1.xpose.msra.mxu0 0.0
  %4995 = vmatprep.subr.mxu0 0.0
  %4996 = vmatpush1.xpose.msra.mxu0 0.0
  %4997 = vmatprep.subr.mxu0 0.0
  %4998 = vmatpush1.xpose.msra.mxu0 0.0
  %4999 = vmatprep.subr.mxu0 0.0
  %5000 = vmatpush1.xpose.msra.mxu0 0.0
  %5001 = vmatprep.subr.mxu0 0.0
  %5002 = vmatpush1.xpose.msra.mxu0 0.0
  %5003 = vmatprep.subr.mxu0 0.0
  %5004 = vmatpush1.xpose.msra.mxu0 0.0
  %5005 = vmatprep.subr.mxu0 0.0
  %5006 = vmatpush1.xpose.msra.mxu0 0.0
  %5007 = vmatprep.subr.mxu0 0.0
  %5008 = vmatpush1.xpose.msra.mxu0 0.0
  %5009 = vmatprep.subr.mxu0 0.0
  %5010 = vmatpush1.xpose.msra.mxu0 0.0
  %5011 = vmatprep.subr.mxu0 0.0
  %5012 = vmatpush1.xpose.msra.mxu0 0.0
  %5013 = vmatprep.subr.mxu0 0.0
  %5014 = vmatpush1.xpose.msra.mxu0 0.0
  %5015 = vmatprep.subr.mxu0 0.0
  %5016 = vmatpush1.xpose.msra.mxu0 0.0
  %5017 = vmatprep.subr.mxu0 0.0
  %5018 = vmatpush1.xpose.msra.mxu0 0.0
  %5019 = vmatprep.subr.mxu0 0.0
  %5020 = vmatpush1.xpose.msra.mxu0 0.0
  %5021 = vmatprep.subr.mxu0 0.0
  %5022 = vmatpush1.xpose.msra.mxu0 0.0
  %5023 = vmatprep.subr.mxu0 0.0
  %5024 = vmatpush1.xpose.msra.mxu0 0.0
  %5025 = vmatprep.subr.mxu0 0.0
  %5026 = vmatpush1.xpose.msra.mxu0 0.0
  %5027 = vmatprep.subr.mxu0 0.0
  %5028 = vmatpush1.xpose.msra.mxu0 0.0
  %5029 = vmatprep.subr.mxu0 0.0
  %5030 = vmatpush1.xpose.msra.mxu0 0.0
  %5031 = vmatprep.subr.mxu0 0.0
  %5032 = vmatpush1.xpose.msra.mxu0 0.0
  %5033 = vmatprep.subr.mxu0 0.0
  %5034 = vmatpush1.xpose.msra.mxu0 0.0
  %5035 = vmatprep.subr.mxu0 0.0
  %5036 = vmatpush1.xpose.msra.mxu0 0.0
  %5037 = vmatprep.subr.mxu0 0.0
  %5038 = vmatpush1.xpose.msra.mxu0 0.0
  %5039 = vmatprep.subr.mxu0 0.0
  %5040 = vmatpush1.xpose.msra.mxu0 0.0
  %5041 = vmatprep.subr.mxu0 0.0
  %5042 = vmatpush1.xpose.msra.mxu0 0.0
  %5043 = vmatprep.mubr.f32.mxu0 0.0
  %5044 = vmatmul.mubr.f32.gmra.mrb[0].mxu0 %v4967
  %v5045 = vpop.f32.mrb[0].mxu0
  %v5046 = vadd.f32 0.0, %v5045
  %v5047 = vpop.f32.mrb[0].mxu0
  %5048 = vmatprep.mubr.f32.mxu0 0.0
  %5049 = vmatmul.mubr.f32.gmra.mrb[0].mxu0 %v4969
  %v5050 = vpop.f32.mrb[0].mxu0
  %v5051 = vadd.f32 0.0, %v5050
  %v5052 = vpop.f32.mrb[0].mxu0
  %5053 = vmatprep.mubr.f32.mxu0 0.0
  %5054 = vmatmul.mubr.f32.gmra.mrb[0].mxu0 %v4971
  %v5055 = vpop.f32.mrb[0].mxu0
  %v5056 = vadd.f32 0.0, %v5055
  %v5057 = vpop.f32.mrb[0].mxu0
  %5058 = vdwg.mxu0
  %v5059 = vmul.f32 %v5046, 0.28867513
  %v5060 = vmul.f32 %v5051, 0.28867513
  %v5061 = vmul.f32 %v5056, 0.28867513
  %v5062 = vsel %vm3565, %v5059, -inf
  %5063 = vmax.xlane.f32.xlu0 %v5062
  %v5064 = vpop.xlane.xlu0 %5063
  %v5065 = vsel %vm3565, %v5060, -inf
  %5066 = vmax.xlane.f32.xlu0 %v5065
  %v5067 = vpop.xlane.xlu0 %5066
  %v5068 = vsel %vm3572, %v5061, -inf
  %5069 = vmax.xlane.f32.xlu0 %v5068
  %v5070 = vpop.xlane.xlu0 %5069
  %v5071 = vsub.f32 %v5059, %v5064
  %v5072 = vsub.f32 %v5060, %v5067
  %v5073 = vsub.f32 %v5061, %v5070
  %v5074 = vmul.f32 %v5071, 1.442695
  %v5075 = vpow.pop %v5074
  %v5076 = vmul.f32 %v5072, 1.442695
  %v5077 = vpow.pop %v5076
  %v5078 = vmul.f32 %v5073, 1.442695
  %v5079 = vpow.pop %v5078
  %v5080 = vsel %vm3565, %v5075, 0.0
  %5081 = vadd.xlane.f32.xlu0 %v5080
  %v5082 = vpop.xlane.xlu0 %5081
  %v5083 = vsel %vm3565, %v5077, 0.0
  %5084 = vadd.xlane.f32.xlu0 %v5083
  %v5085 = vpop.xlane.xlu0 %5084
  %v5086 = vsel %vm3572, %v5079, 0.0
  %5087 = vadd.xlane.f32.xlu0 %v5086
  %v5088 = vpop.xlane.xlu0 %5087
  %v5089 = vrcp.pop %v5082
  %v5090 = vrcp.pop %v5085
  %v5091 = vrcp.pop %v5088
  %v5092 = vmul.f32 %v5075, %v5089
  %v5093 = vmul.f32 %v5077, %v5090
  %v5094 = vmul.f32 %v5079, %v5091
  %v5097 = vrot.slane %v3446, 1
  %v5098 = vrot.slane %v3452, 1
  %v5099 = vsel %vm4477, %v5097, %v5098
  %v5100 = vrot.slane %v3458, 1
  %v5101 = vsel %vm4477, %v5098, %v5100
  %5102 = vrot.lane.b32.xlu0 %v4480, 8
  %v5103 = vpop.permute.xlu0 %5102
  %5104 = vrot.lane.b32.xlu0 %v5099, 8
  %v5105 = vpop.permute.xlu0 %5104
  %5106 = vrot.lane.b32.xlu0 %v4482, 8
  %v5107 = vpop.permute.xlu0 %5106
  %5108 = vrot.lane.b32.xlu0 %v5101, 8
  %v5109 = vpop.permute.xlu0 %5108
  %5110 = vrot.lane.b32.xlu0 %v4481, 8
  %v5111 = vpop.permute.xlu0 %5110
  %5112 = vrot.lane.b32.xlu0 %v5100, 8
  %v5113 = vpop.permute.xlu0 %5112
  %v5114 = vsel %vm551, %v5103, %v5105
  %v5115 = vsel %vm551, %v5107, %v5109
  %v5116 = vsel %vm551, %v5111, %v5113
  %v5120 = vsel %vm3565, %v5092, 0
  %v5123 = vsel %vm3565, %v5093, 0
  %v5126 = vsel %vm3565, %v5094, 0
  %v5128 = vsel %vm3226, %v5116, 0
  %5130 = vmatprep.subr.mxu0 0.0
  %5131 = vmatpush1.msra.mxu0 %v5114
  %5132 = vmatprep.subr.mxu0 0.0
  %5133 = vmatpush1.msra.mxu0 %v5115
  %5134 = vmatprep.subr.mxu0 0.0
  %5135 = vmatpush1.msra.mxu0 %v5128
  %5136 = vmatprep.subr.mxu0 0.0
  %5137 = vmatpush1.msra.mxu0 0.0
  %5138 = vmatprep.subr.mxu0 0.0
  %5139 = vmatpush1.msra.mxu0 0.0
  %5140 = vmatprep.subr.mxu0 0.0
  %5141 = vmatpush1.msra.mxu0 0.0
  %5142 = vmatprep.subr.mxu0 0.0
  %5143 = vmatpush1.msra.mxu0 0.0
  %5144 = vmatprep.subr.mxu0 0.0
  %5145 = vmatpush1.msra.mxu0 0.0
  %5146 = vmatprep.subr.mxu0 0.0
  %5147 = vmatpush1.msra.mxu0 0.0
  %5148 = vmatprep.subr.mxu0 0.0
  %5149 = vmatpush1.msra.mxu0 0.0
  %5150 = vmatprep.subr.mxu0 0.0
  %5151 = vmatpush1.msra.mxu0 0.0
  %5152 = vmatprep.subr.mxu0 0.0
  %5153 = vmatpush1.msra.mxu0 0.0
  %5154 = vmatprep.subr.mxu0 0.0
  %5155 = vmatpush1.msra.mxu0 0.0
  %5156 = vmatprep.subr.mxu0 0.0
  %5157 = vmatpush1.msra.mxu0 0.0
  %5158 = vmatprep.subr.mxu0 0.0
  %5159 = vmatpush1.msra.mxu0 0.0
  %5160 = vmatprep.subr.mxu0 0.0
  %5161 = vmatpush1.msra.mxu0 0.0
  %5162 = vmatprep.subr.mxu0 0.0
  %5163 = vmatpush1.msra.mxu0 0.0
  %5164 = vmatprep.subr.mxu0 0.0
  %5165 = vmatpush1.msra.mxu0 0.0
  %5166 = vmatprep.subr.mxu0 0.0
  %5167 = vmatpush1.msra.mxu0 0.0
  %5168 = vmatprep.subr.mxu0 0.0
  %5169 = vmatpush1.msra.mxu0 0.0
  %5170 = vmatprep.subr.mxu0 0.0
  %5171 = vmatpush1.msra.mxu0 0.0
  %5172 = vmatprep.subr.mxu0 0.0
  %5173 = vmatpush1.msra.mxu0 0.0
  %5174 = vmatprep.subr.mxu0 0.0
  %5175 = vmatpush1.msra.mxu0 0.0
  %5176 = vmatprep.subr.mxu0 0.0
  %5177 = vmatpush1.msra.mxu0 0.0
  %5178 = vmatprep.subr.mxu0 0.0
  %5179 = vmatpush1.msra.mxu0 0.0
  %5180 = vmatprep.subr.mxu0 0.0
  %5181 = vmatpush1.msra.mxu0 0.0
  %5182 = vmatprep.subr.mxu0 0.0
  %5183 = vmatpush1.msra.mxu0 0.0
  %5184 = vmatprep.subr.mxu0 0.0
  %5185 = vmatpush1.msra.mxu0 0.0
  %5186 = vmatprep.subr.mxu0 0.0
  %5187 = vmatpush1.msra.mxu0 0.0
  %5188 = vmatprep.subr.mxu0 0.0
  %5189 = vmatpush1.msra.mxu0 0.0
  %5190 = vmatprep.subr.mxu0 0.0
  %5191 = vmatpush1.msra.mxu0 0.0
  %5192 = vmatprep.subr.mxu0 0.0
  %5193 = vmatpush1.msra.mxu0 0.0
  %5194 = vmatprep.mubr.f32.mxu0 0.0
  %5195 = vmatmul.mubr.f32.gmra.mrb[0].mxu0 %v5120
  %v5196 = vpop.f32.mrb[0].mxu0
  %v5197 = vadd.f32 0.0, %v5196
  %v5198 = vpop.f32.mrb[0].mxu0
  %5199 = vmatprep.mubr.f32.mxu0 0.0
  %5200 = vmatmul.mubr.f32.gmra.mrb[0].mxu0 %v5123
  %v5201 = vpop.f32.mrb[0].mxu0
  %v5202 = vadd.f32 0.0, %v5201
  %v5203 = vpop.f32.mrb[0].mxu0
  %5204 = vmatprep.mubr.f32.mxu0 0.0
  %5205 = vmatmul.mubr.f32.gmra.mrb[0].mxu0 %v5126
  %v5206 = vpop.f32.mrb[0].mxu0
  %v5207 = vadd.f32 0.0, %v5206
  %v5208 = vpop.f32.mrb[0].mxu0
  %5209 = vdwg.mxu0
  %5210 = vrot.lane.b32.xlu0 %v4480, 92
  %v5211 = vpop.permute.xlu0 %5210
  %5212 = vrot.lane.b32.xlu0 %v4482, 92
  %v5213 = vpop.permute.xlu0 %5212
  %5214 = vrot.lane.b32.xlu0 %v4481, 92
  %v5215 = vpop.permute.xlu0 %5214
  %5216 = vrot.lane.b32.xlu0 %v4480, 44
  %v5217 = vpop.permute.xlu0 %5216
  %5218 = vrot.lane.b32.xlu0 %v4482, 44
  %v5219 = vpop.permute.xlu0 %5218
  %5220 = vrot.lane.b32.xlu0 %v4481, 44
  %v5221 = vpop.permute.xlu0 %5220
  %v5222 = vsel %vm3469, %v5211, 0
  %v5224 = vsel %vm3469, %v5213, 0
  %v5226 = vsel %vm3469, %v5215, 0
  %v5228 = vsel %vm3469, %v5217, 0
  %v5230 = vsel %vm3469, %v5219, 0
  %v5232 = vsel %vm3469, %v5221, 0
  %5234 = vmatprep.subr.mxu0 0.0
  %5235 = vmatpush1.xpose.msra.mxu0 %v5228
  %5236 = vmatprep.subr.mxu0 0.0
  %5237 = vmatpush1.xpose.msra.mxu0 %v5230
  %5238 = vmatprep.subr.mxu0 0.0
  %5239 = vmatpush1.xpose.msra.mxu0 %v5232
  %5240 = vmatprep.subr.mxu0 0.0
  %5241 = vmatpush1.xpose.msra.mxu0 0.0
  %5242 = vmatprep.subr.mxu0 0.0
  %5243 = vmatpush1.xpose.msra.mxu0 0.0
  %5244 = vmatprep.subr.mxu0 0.0
  %5245 = vmatpush1.xpose.msra.mxu0 0.0
  %5246 = vmatprep.subr.mxu0 0.0
  %5247 = vmatpush1.xpose.msra.mxu0 0.0
  %5248 = vmatprep.subr.mxu0 0.0
  %5249 = vmatpush1.xpose.msra.mxu0 0.0
  %5250 = vmatprep.subr.mxu0 0.0
  %5251 = vmatpush1.xpose.msra.mxu0 0.0
  %5252 = vmatprep.subr.mxu0 0.0
  %5253 = vmatpush1.xpose.msra.mxu0 0.0
  %5254 = vmatprep.subr.mxu0 0.0
  %5255 = vmatpush1.xpose.msra.mxu0 0.0
  %5256 = vmatprep.subr.mxu0 0.0
  %5257 = vmatpush1.xpose.msra.mxu0 0.0
  %5258 = vmatprep.subr.mxu0 0.0
  %5259 = vmatpush1.xpose.msra.mxu0 0.0
  %5260 = vmatprep.subr.mxu0 0.0
  %5261 = vmatpush1.xpose.msra.mxu0 0.0
  %5262 = vmatprep.subr.mxu0 0.0
  %5263 = vmatpush1.xpose.msra.mxu0 0.0
  %5264 = vmatprep.subr.mxu0 0.0
  %5265 = vmatpush1.xpose.msra.mxu0 0.0
  %5266 = vmatprep.subr.mxu0 0.0
  %5267 = vmatpush1.xpose.msra.mxu0 0.0
  %5268 = vmatprep.subr.mxu0 0.0
  %5269 = vmatpush1.xpose.msra.mxu0 0.0
  %5270 = vmatprep.subr.mxu0 0.0
  %5271 = vmatpush1.xpose.msra.mxu0 0.0
  %5272 = vmatprep.subr.mxu0 0.0
  %5273 = vmatpush1.xpose.msra.mxu0 0.0
  %5274 = vmatprep.subr.mxu0 0.0
  %5275 = vmatpush1.xpose.msra.mxu0 0.0
  %5276 = vmatprep.subr.mxu0 0.0
  %5277 = vmatpush1.xpose.msra.mxu0 0.0
  %5278 = vmatprep.subr.mxu0 0.0
  %5279 = vmatpush1.xpose.msra.mxu0 0.0
  %5280 = vmatprep.subr.mxu0 0.0
  %5281 = vmatpush1.xpose.msra.mxu0 0.0
  %5282 = vmatprep.subr.mxu0 0.0
  %5283 = vmatpush1.xpose.msra.mxu0 0.0
  %5284 = vmatprep.subr.mxu0 0.0
  %5285 = vmatpush1.xpose.msra.mxu0 0.0
  %5286 = vmatprep.subr.mxu0 0.0
  %5287 = vmatpush1.xpose.msra.mxu0 0.0
  %5288 = vmatprep.subr.mxu0 0.0
  %5289 = vmatpush1.xpose.msra.mxu0 0.0
  %5290 = vmatprep.subr.mxu0 0.0
  %5291 = vmatpush1.xpose.msra.mxu0 0.0
  %5292 = vmatprep.subr.mxu0 0.0
  %5293 = vmatpush1.xpose.msra.mxu0 0.0
  %5294 = vmatprep.subr.mxu0 0.0
  %5295 = vmatpush1.xpose.msra.mxu0 0.0
  %5296 = vmatprep.subr.mxu0 0.0
  %5297 = vmatpush1.xpose.msra.mxu0 0.0
  %5298 = vmatprep.mubr.f32.mxu0 0.0
  %5299 = vmatmul.mubr.f32.gmra.mrb[0].mxu0 %v5222
  %v5300 = vpop.f32.mrb[0].mxu0
  %v5301 = vadd.f32 0.0, %v5300
  %v5302 = vpop.f32.mrb[0].mxu0
  %5303 = vmatprep.mubr.f32.mxu0 0.0
  %5304 = vmatmul.mubr.f32.gmra.mrb[0].mxu0 %v5224
  %v5305 = vpop.f32.mrb[0].mxu0
  %v5306 = vadd.f32 0.0, %v5305
  %v5307 = vpop.f32.mrb[0].mxu0
  %5308 = vmatprep.mubr.f32.mxu0 0.0
  %5309 = vmatmul.mubr.f32.gmra.mrb[0].mxu0 %v5226
  %v5310 = vpop.f32.mrb[0].mxu0
  %v5311 = vadd.f32 0.0, %v5310
  %v5312 = vpop.f32.mrb[0].mxu0
  %5313 = vdwg.mxu0
  %v5314 = vmul.f32 %v5301, 0.28867513
  %v5315 = vmul.f32 %v5306, 0.28867513
  %v5316 = vmul.f32 %v5311, 0.28867513
  %v5317 = vsel %vm3565, %v5314, -inf
  %5318 = vmax.xlane.f32.xlu0 %v5317
  %v5319 = vpop.xlane.xlu0 %5318
  %v5320 = vsel %vm3565, %v5315, -inf
  %5321 = vmax.xlane.f32.xlu0 %v5320
  %v5322 = vpop.xlane.xlu0 %5321
  %v5323 = vsel %vm3572, %v5316, -inf
  %5324 = vmax.xlane.f32.xlu0 %v5323
  %v5325 = vpop.xlane.xlu0 %5324
  %v5326 = vsub.f32 %v5314, %v5319
  %v5327 = vsub.f32 %v5315, %v5322
  %v5328 = vsub.f32 %v5316, %v5325
  %v5329 = vmul.f32 %v5326, 1.442695
  %v5330 = vpow.pop %v5329
  %v5331 = vmul.f32 %v5327, 1.442695
  %v5332 = vpow.pop %v5331
  %v5333 = vmul.f32 %v5328, 1.442695
  %v5334 = vpow.pop %v5333
  %v5335 = vsel %vm3565, %v5330, 0.0
  %5336 = vadd.xlane.f32.xlu0 %v5335
  %v5337 = vpop.xlane.xlu0 %5336
  %v5338 = vsel %vm3565, %v5332, 0.0
  %5339 = vadd.xlane.f32.xlu0 %v5338
  %v5340 = vpop.xlane.xlu0 %5339
  %v5341 = vsel %vm3572, %v5334, 0.0
  %5342 = vadd.xlane.f32.xlu0 %v5341
  %v5343 = vpop.xlane.xlu0 %5342
  %v5344 = vrcp.pop %v5337
  %v5345 = vrcp.pop %v5340
  %v5346 = vrcp.pop %v5343
  %v5347 = vmul.f32 %v5330, %v5344
  %v5348 = vmul.f32 %v5332, %v5345
  %v5349 = vmul.f32 %v5334, %v5346
  %5350 = vrot.lane.b32.xlu0 %v5099, 124
  %v5351 = vpop.permute.xlu0 %5350
  %5352 = vrot.lane.b32.xlu0 %v5101, 124
  %v5353 = vpop.permute.xlu0 %5352
  %5354 = vrot.lane.b32.xlu0 %v5100, 124
  %v5355 = vpop.permute.xlu0 %5354
  %v5359 = vsel %vm3565, %v5347, 0
  %v5362 = vsel %vm3565, %v5348, 0
  %v5365 = vsel %vm3565, %v5349, 0
  %v5367 = vsel %vm3226, %v5355, 0
  %5369 = vmatprep.subr.mxu0 0.0
  %5370 = vmatpush1.msra.mxu0 %v5351
  %5371 = vmatprep.subr.mxu0 0.0
  %5372 = vmatpush1.msra.mxu0 %v5353
  %5373 = vmatprep.subr.mxu0 0.0
  %5374 = vmatpush1.msra.mxu0 %v5367
  %5375 = vmatprep.subr.mxu0 0.0
  %5376 = vmatpush1.msra.mxu0 0.0
  %5377 = vmatprep.subr.mxu0 0.0
  %5378 = vmatpush1.msra.mxu0 0.0
  %5379 = vmatprep.subr.mxu0 0.0
  %5380 = vmatpush1.msra.mxu0 0.0
  %5381 = vmatprep.subr.mxu0 0.0
  %5382 = vmatpush1.msra.mxu0 0.0
  %5383 = vmatprep.subr.mxu0 0.0
  %5384 = vmatpush1.msra.mxu0 0.0
  %5385 = vmatprep.subr.mxu0 0.0
  %5386 = vmatpush1.msra.mxu0 0.0
  %5387 = vmatprep.subr.mxu0 0.0
  %5388 = vmatpush1.msra.mxu0 0.0
  %5389 = vmatprep.subr.mxu0 0.0
  %5390 = vmatpush1.msra.mxu0 0.0
  %5391 = vmatprep.subr.mxu0 0.0
  %5392 = vmatpush1.msra.mxu0 0.0
  %5393 = vmatprep.subr.mxu0 0.0
  %5394 = vmatpush1.msra.mxu0 0.0
  %5395 = vmatprep.subr.mxu0 0.0
  %5396 = vmatpush1.msra.mxu0 0.0
  %5397 = vmatprep.subr.mxu0 0.0
  %5398 = vmatpush1.msra.mxu0 0.0
  %5399 = vmatprep.subr.mxu0 0.0
  %5400 = vmatpush1.msra.mxu0 0.0
  %5401 = vmatprep.subr.mxu0 0.0
  %5402 = vmatpush1.msra.mxu0 0.0
  %5403 = vmatprep.subr.mxu0 0.0
  %5404 = vmatpush1.msra.mxu0 0.0
  %5405 = vmatprep.subr.mxu0 0.0
  %5406 = vmatpush1.msra.mxu0 0.0
  %5407 = vmatprep.subr.mxu0 0.0
  %5408 = vmatpush1.msra.mxu0 0.0
  %5409 = vmatprep.subr.mxu0 0.0
  %5410 = vmatpush1.msra.mxu0 0.0
  %5411 = vmatprep.subr.mxu0 0.0
  %5412 = vmatpush1.msra.mxu0 0.0
  %5413 = vmatprep.subr.mxu0 0.0
  %5414 = vmatpush1.msra.mxu0 0.0
  %5415 = vmatprep.subr.mxu0 0.0
  %5416 = vmatpush1.msra.mxu0 0.0
  %5417 = vmatprep.subr.mxu0 0.0
  %5418 = vmatpush1.msra.mxu0 0.0
  %5419 = vmatprep.subr.mxu0 0.0
  %5420 = vmatpush1.msra.mxu0 0.0
  %5421 = vmatprep.subr.mxu0 0.0
  %5422 = vmatpush1.msra.mxu0 0.0
  %5423 = vmatprep.subr.mxu0 0.0
  %5424 = vmatpush1.msra.mxu0 0.0
  %5425 = vmatprep.subr.mxu0 0.0
  %5426 = vmatpush1.msra.mxu0 0.0
  %5427 = vmatprep.subr.mxu0 0.0
  %5428 = vmatpush1.msra.mxu0 0.0
  %5429 = vmatprep.subr.mxu0 0.0
  %5430 = vmatpush1.msra.mxu0 0.0
  %5431 = vmatprep.subr.mxu0 0.0
  %5432 = vmatpush1.msra.mxu0 0.0
  %5433 = vmatprep.mubr.f32.mxu0 0.0
  %5434 = vmatmul.mubr.f32.gmra.mrb[0].mxu0 %v5359
  %v5435 = vpop.f32.mrb[0].mxu0
  %v5436 = vadd.f32 0.0, %v5435
  %v5437 = vpop.f32.mrb[0].mxu0
  %5438 = vmatprep.mubr.f32.mxu0 0.0
  %5439 = vmatmul.mubr.f32.gmra.mrb[0].mxu0 %v5362
  %v5440 = vpop.f32.mrb[0].mxu0
  %v5441 = vadd.f32 0.0, %v5440
  %v5442 = vpop.f32.mrb[0].mxu0
  %5443 = vmatprep.mubr.f32.mxu0 0.0
  %5444 = vmatmul.mubr.f32.gmra.mrb[0].mxu0 %v5365
  %v5445 = vpop.f32.mrb[0].mxu0
  %v5446 = vadd.f32 0.0, %v5445
  %v5447 = vpop.f32.mrb[0].mxu0
  %5448 = vdwg.mxu0
  %5452 = vrot.lane.b32.xlu0 %v4942, 12
  %v5453 = vpop.permute.xlu0 %5452
  %5454 = vrot.lane.b32.xlu0 %v4947, 12
  %v5455 = vpop.permute.xlu0 %5454
  %5456 = vrot.lane.b32.xlu0 %v4952, 12
  %v5457 = vpop.permute.xlu0 %5456
  %5464 = vrot.lane.b32.xlu0 %v5197, 24
  %v5465 = vpop.permute.xlu0 %5464
  %5466 = vrot.lane.b32.xlu0 %v5202, 24
  %v5467 = vpop.permute.xlu0 %5466
  %5468 = vrot.lane.b32.xlu0 %v5207, 24
  %v5469 = vpop.permute.xlu0 %5468
  %5476 = vrot.lane.b32.xlu0 %v5436, 36
  %v5477 = vpop.permute.xlu0 %5476
  %5478 = vrot.lane.b32.xlu0 %v5441, 36
  %v5479 = vpop.permute.xlu0 %5478
  %5480 = vrot.lane.b32.xlu0 %v5446, 36
  %v5481 = vpop.permute.xlu0 %5480
  %v5485 = vsel %vm3469, %v4703, %v5453
  %v5486 = vsel %vm3469, %v4708, %v5455
  %v5487 = vsel %vm3469, %v4713, %v5457
  %v5488 = vsel %vm4467, %v5485, %v5465
  %v5489 = vsel %vm4467, %v5486, %v5467
  %v5490 = vsel %vm4467, %v5487, %v5469
  %v5491 = vsel %vm4471, %v5488, %v5477
  %v5492 = vsel %vm4471, %v5489, %v5479
  %v5493 = vsel %vm4471, %v5490, %v5481
  %v5497 = vrot.slane %v5491, 7
  %v5498 = vrot.slane %v5492, 7
  %v5499 = vsel %vm3226, %v5497, %v5498
  %v5500 = vrot.slane %v5493, 7
  %v5501 = vsel %vm3226, %v5498, %v5500
  %v5503 = vsel %vm3226, %v4474, %v5497
  %v5504 = vld [vmem:[%s3 + $0x190] sm:$0xff]
  %v5505 = vld [vmem:[%s3 + $0x1a0] sm:$0xff]
  %v5506 = vld [vmem:[%s3 + $0x1b0] sm:$0xff]
  %v5507 = vld [vmem:[%s3 + $0x1c0] sm:$0xff]
  %v5508 = vld [vmem:[%s3 + $0x1d0] sm:$0xff]
  %v5509 = vld [vmem:[%s3 + $0x1e0] sm:$0xff]
  %v5511 = vsel %vm3049, %v4472, 0
  %v5514 = vsel %vm3049, %v4473, 0
  %v5517 = vsel %vm3049, %v5503, 0
  %v5519 = vsel %vm3049, %v5499, 0
  %v5521 = vsel %vm3049, %v5501, 0
  %5523 = vmatprep.subr.mxu0 0.0
  %5524 = vmatpush1.msra.mxu0 %v5504
  %5525 = vmatprep.subr.mxu0 0.0
  %5526 = vmatpush1.msra.mxu0 %v5505
  %5527 = vmatprep.subr.mxu0 0.0
  %5528 = vmatpush1.msra.mxu0 %v5506
  %5529 = vmatprep.subr.mxu0 0.0
  %5530 = vmatpush1.msra.mxu0 %v5507
  %5531 = vmatprep.subr.mxu0 0.0
  %5532 = vmatpush1.msra.mxu0 %v5508
  %5533 = vmatprep.subr.mxu0 0.0
  %5534 = vmatpush1.msra.mxu0 %v5509
  %5535 = vmatprep.subr.mxu0 0.0
  %5536 = vmatpush1.msra.mxu0 0.0
  %5537 = vmatprep.subr.mxu0 0.0
  %5538 = vmatpush1.msra.mxu0 0.0
  %5539 = vmatprep.subr.mxu0 0.0
  %5540 = vmatpush1.msra.mxu0 0.0
  %5541 = vmatprep.subr.mxu0 0.0
  %5542 = vmatpush1.msra.mxu0 0.0
  %5543 = vmatprep.subr.mxu0 0.0
  %5544 = vmatpush1.msra.mxu0 0.0
  %5545 = vmatprep.subr.mxu0 0.0
  %5546 = vmatpush1.msra.mxu0 0.0
  %5547 = vmatprep.subr.mxu0 0.0
  %5548 = vmatpush1.msra.mxu0 0.0
  %5549 = vmatprep.subr.mxu0 0.0
  %5550 = vmatpush1.msra.mxu0 0.0
  %5551 = vmatprep.subr.mxu0 0.0
  %5552 = vmatpush1.msra.mxu0 0.0
  %5553 = vmatprep.subr.mxu0 0.0
  %5554 = vmatpush1.msra.mxu0 0.0
  %5555 = vmatprep.subr.mxu0 0.0
  %5556 = vmatpush1.msra.mxu0 0.0
  %5557 = vmatprep.subr.mxu0 0.0
  %5558 = vmatpush1.msra.mxu0 0.0
  %5559 = vmatprep.subr.mxu0 0.0
  %5560 = vmatpush1.msra.mxu0 0.0
  %5561 = vmatprep.subr.mxu0 0.0
  %5562 = vmatpush1.msra.mxu0 0.0
  %5563 = vmatprep.subr.mxu0 0.0
  %5564 = vmatpush1.msra.mxu0 0.0
  %5565 = vmatprep.subr.mxu0 0.0
  %5566 = vmatpush1.msra.mxu0 0.0
  %5567 = vmatprep.subr.mxu0 0.0
  %5568 = vmatpush1.msra.mxu0 0.0
  %5569 = vmatprep.subr.mxu0 0.0
  %5570 = vmatpush1.msra.mxu0 0.0
  %5571 = vmatprep.subr.mxu0 0.0
  %5572 = vmatpush1.msra.mxu0 0.0
  %5573 = vmatprep.subr.mxu0 0.0
  %5574 = vmatpush1.msra.mxu0 0.0
  %5575 = vmatprep.subr.mxu0 0.0
  %5576 = vmatpush1.msra.mxu0 0.0
  %5577 = vmatprep.subr.mxu0 0.0
  %5578 = vmatpush1.msra.mxu0 0.0
  %5579 = vmatprep.subr.mxu0 0.0
  %5580 = vmatpush1.msra.mxu0 0.0
  %5581 = vmatprep.subr.mxu0 0.0
  %5582 = vmatpush1.msra.mxu0 0.0
  %5583 = vmatprep.subr.mxu0 0.0
  %5584 = vmatpush1.msra.mxu0 0.0
  %5585 = vmatprep.subr.mxu0 0.0
  %5586 = vmatpush1.msra.mxu0 0.0
  %5587 = vmatprep.mubr.f32.mxu0 0.0
  %5588 = vmatmul.mubr.f32.gmra.mrb[0].mxu0 %v5511
  %v5589 = vpop.f32.mrb[0].mxu0
  %v5590 = vadd.f32 0.0, %v5589
  %v5591 = vpop.f32.mrb[0].mxu0
  %5592 = vmatprep.mubr.f32.mxu0 0.0
  %5593 = vmatmul.mubr.f32.gmra.mrb[0].mxu0 %v5514
  %v5594 = vpop.f32.mrb[0].mxu0
  %v5595 = vadd.f32 0.0, %v5594
  %v5596 = vpop.f32.mrb[0].mxu0
  %5597 = vmatprep.mubr.f32.mxu0 0.0
  %5598 = vmatmul.mubr.f32.gmra.mrb[0].mxu0 %v5517
  %v5599 = vpop.f32.mrb[0].mxu0
  %v5600 = vadd.f32 0.0, %v5599
  %v5601 = vpop.f32.mrb[0].mxu0
  %5602 = vmatprep.mubr.f32.mxu0 0.0
  %5603 = vmatmul.mubr.f32.gmra.mrb[0].mxu0 %v5519
  %v5604 = vpop.f32.mrb[0].mxu0
  %v5605 = vadd.f32 0.0, %v5604
  %v5606 = vpop.f32.mrb[0].mxu0
  %5607 = vmatprep.mubr.f32.mxu0 0.0
  %5608 = vmatmul.mubr.f32.gmra.mrb[0].mxu0 %v5521
  %v5609 = vpop.f32.mrb[0].mxu0
  %v5610 = vadd.f32 0.0, %v5609
  %v5611 = vpop.f32.mrb[0].mxu0
  %5612 = vdwg.mxu0
  %v5613 = vadd.f32 %v3234, %v5590
  %v5614 = vadd.f32 %v3235, %v5595
  %v5615 = vadd.f32 %v3259, %v5600
  %v5616 = vadd.f32 %v3257, %v5605
  %v5617 = vadd.f32 %v3258, %v5610
  %v5618 = vld [vmem:[%s2 + $0x26] ss:$0 sm:$0xff]
  %v5619 = vadd.f32 %v5613, %v5618
  %v5620 = vadd.f32 %v5614, %v5618
  %v5621 = vadd.f32 %v5615, %v5618
  %v5622 = vadd.f32 %v5616, %v5618
  %v5623 = vadd.f32 %v5617, %v5618
  %v5624 = vld [vmem:[%s2 + $0x27] ss:$0 sm:$0xff]
  %v5625 = vld [vmem:[%s2 + $0x30] ss:$0 sm:$0xff]
  %v5626 = vsel %vm3049, %v5619, 0.0
  %5627 = vadd.xlane.f32.xlu0 %v5626
  %v5628 = vpop.xlane.xlu0 %5627
  %v5629 = vsel %vm3049, %v5620, 0.0
  %5630 = vadd.xlane.f32.xlu0 %v5629
  %v5631 = vpop.xlane.xlu0 %5630
  %v5632 = vsel %vm3049, %v5621, 0.0
  %5633 = vadd.xlane.f32.xlu0 %v5632
  %v5634 = vpop.xlane.xlu0 %5633
  %v5635 = vsel %vm3049, %v5622, 0.0
  %5636 = vadd.xlane.f32.xlu0 %v5635
  %v5637 = vpop.xlane.xlu0 %5636
  %v5638 = vsel %vm3274, %v5623, 0.0
  %5639 = vadd.xlane.f32.xlu0 %v5638
  %v5640 = vpop.xlane.xlu0 %5639
  %v5641 = vmul.f32 %v5628, %v3062
  %v5642 = vmul.f32 %v5631, %v3062
  %v5643 = vmul.f32 %v5634, %v3062
  %v5644 = vmul.f32 %v5637, %v3062
  %v5645 = vmul.f32 %v5640, %v3062
  %v5646 = vsub.f32 %v5619, %v5641
  %v5647 = vsub.f32 %v5620, %v5642
  %v5648 = vsub.f32 %v5621, %v5643
  %v5649 = vsub.f32 %v5622, %v5644
  %v5650 = vsub.f32 %v5623, %v5645
  %v5651 = vmul.f32 %v5646, %v5646
  %v5652 = vmul.f32 %v5647, %v5647
  %v5653 = vmul.f32 %v5648, %v5648
  %v5654 = vmul.f32 %v5649, %v5649
  %v5655 = vmul.f32 %v5650, %v5650
  %v5656 = vsel %vm3049, %v5651, 0.0
  %5657 = vadd.xlane.f32.xlu0 %v5656
  %v5658 = vpop.xlane.xlu0 %5657
  %v5659 = vsel %vm3049, %v5652, 0.0
  %5660 = vadd.xlane.f32.xlu0 %v5659
  %v5661 = vpop.xlane.xlu0 %5660
  %v5662 = vsel %vm3049, %v5653, 0.0
  %5663 = vadd.xlane.f32.xlu0 %v5662
  %v5664 = vpop.xlane.xlu0 %5663
  %v5665 = vsel %vm3049, %v5654, 0.0
  %5666 = vadd.xlane.f32.xlu0 %v5665
  %v5667 = vpop.xlane.xlu0 %5666
  %v5668 = vsel %vm3274, %v5655, 0.0
  %5669 = vadd.xlane.f32.xlu0 %v5668
  %v5670 = vpop.xlane.xlu0 %5669
  %v5671 = vmul.f32 %v5658, %v3062
  %v5672 = vmul.f32 %v5661, %v3062
  %v5673 = vmul.f32 %v5664, %v3062
  %v5674 = vmul.f32 %v5667, %v3062
  %v5675 = vmul.f32 %v5670, %v3062
  %v5676 = vadd.f32 %v5671, 1e-06
  %v5677 = vadd.f32 %v5672, 1e-06
  %v5678 = vadd.f32 %v5673, 1e-06
  %v5679 = vadd.f32 %v5674, 1e-06
  %v5680 = vadd.f32 %v5675, 1e-06
  %v5681 = vrsqrt.pop %v5676
  %v5682 = vrsqrt.pop %v5677
  %v5683 = vrsqrt.pop %v5678
  %v5684 = vrsqrt.pop %v5679
  %v5685 = vrsqrt.pop %v5680
  %v5686 = vmul.f32 %v5646, %v5681
  %v5687 = vmul.f32 %v5647, %v5682
  %v5688 = vmul.f32 %v5648, %v5683
  %v5689 = vmul.f32 %v5649, %v5684
  %v5690 = vmul.f32 %v5650, %v5685
  %v5691 = vmul.f32 %v5686, %v5624
  %v5692 = vmul.f32 %v5687, %v5624
  %v5693 = vmul.f32 %v5688, %v5624
  %v5694 = vmul.f32 %v5689, %v5624
  %v5695 = vmul.f32 %v5690, %v5624
  %v5696 = vadd.f32 %v5691, %v5625
  %v5697 = vadd.f32 %v5692, %v5625
  %v5698 = vadd.f32 %v5693, %v5625
  %v5699 = vadd.f32 %v5694, %v5625
  %v5700 = vadd.f32 %v5695, %v5625
  %v5701 = vld [vmem:[%s3 + $0x1f0] sm:$0xff]
  %v5702 = vld [vmem:[%s3 + $0x1f8] sm:$0xff]
  %v5703 = vld [vmem:[%s3 + $0x200] sm:$0xff]
  %v5704 = vld [vmem:[%s3 + $0x208] sm:$0xff]
  %v5705 = vld [vmem:[%s3 + $0x210] sm:$0xff]
  %v5706 = vld [vmem:[%s3 + $0x218] sm:$0xff]
  %v5707 = vld [vmem:[%s3 + $0x220] sm:$0xff]
  %v5708 = vld [vmem:[%s3 + $0x228] sm:$0xff]
  %v5709 = vld [vmem:[%s3 + $0x230] sm:$0xff]
  %v5710 = vld [vmem:[%s3 + $0x238] sm:$0xff]
  %v5711 = vld [vmem:[%s3 + $0x240] sm:$0xff]
  %v5712 = vld [vmem:[%s3 + $0x248] sm:$0xff]
  %s5713 = scalar_lea.vmem %s2, 49
  %v5714 = vld [vmem:[%s5713] ss:$8 sm:$0x3]
  %v5716 = vlaneseq
  %v5717 = vshrl.u32 %v5716, 7
  %v5718 = vsub.s32 0, %v5717
  %v5719 = vrot.slane %v5714, %v5718
  %v5720 = vlaneseq
  %v5721 = vshrl.u32 %v5720, 7
  %v5722 = vsub.s32 1, %v5721
  %v5723 = vrot.slane %v5714, %v5722
  %v5727 = vsel %vm3049, %v5696, 0
  %v5730 = vsel %vm3049, %v5697, 0
  %v5733 = vsel %vm3049, %v5698, 0
  %v5736 = vsel %vm3049, %v5699, 0
  %v5739 = vsel %vm3049, %v5700, 0
  %5741 = vmatprep.subr.mxu0 %v5702
  %5742 = vmatpush1.msra.mxu0 %v5701
  %5743 = vmatprep.subr.mxu0 %v5704
  %5744 = vmatpush1.msra.mxu0 %v5703
  %5745 = vmatprep.subr.mxu0 %v5706
  %5746 = vmatpush1.msra.mxu0 %v5705
  %5747 = vmatprep.subr.mxu0 %v5708
  %5748 = vmatpush1.msra.mxu0 %v5707
  %5749 = vmatprep.subr.mxu0 %v5710
  %5750 = vmatpush1.msra.mxu0 %v5709
  %5751 = vmatprep.subr.mxu0 %v5712
  %5752 = vmatpush1.msra.mxu0 %v5711
  %5753 = vmatprep.subr.mxu0 0.0
  %5754 = vmatpush1.msra.mxu0 0.0
  %5755 = vmatprep.subr.mxu0 0.0
  %5756 = vmatpush1.msra.mxu0 0.0
  %5757 = vmatprep.subr.mxu0 0.0
  %5758 = vmatpush1.msra.mxu0 0.0
  %5759 = vmatprep.subr.mxu0 0.0
  %5760 = vmatpush1.msra.mxu0 0.0
  %5761 = vmatprep.subr.mxu0 0.0
  %5762 = vmatpush1.msra.mxu0 0.0
  %5763 = vmatprep.subr.mxu0 0.0
  %5764 = vmatpush1.msra.mxu0 0.0
  %5765 = vmatprep.subr.mxu0 0.0
  %5766 = vmatpush1.msra.mxu0 0.0
  %5767 = vmatprep.subr.mxu0 0.0
  %5768 = vmatpush1.msra.mxu0 0.0
  %5769 = vmatprep.subr.mxu0 0.0
  %5770 = vmatpush1.msra.mxu0 0.0
  %5771 = vmatprep.subr.mxu0 0.0
  %5772 = vmatpush1.msra.mxu0 0.0
  %5773 = vmatprep.subr.mxu0 0.0
  %5774 = vmatpush1.msra.mxu0 0.0
  %5775 = vmatprep.subr.mxu0 0.0
  %5776 = vmatpush1.msra.mxu0 0.0
  %5777 = vmatprep.subr.mxu0 0.0
  %5778 = vmatpush1.msra.mxu0 0.0
  %5779 = vmatprep.subr.mxu0 0.0
  %5780 = vmatpush1.msra.mxu0 0.0
  %5781 = vmatprep.subr.mxu0 0.0
  %5782 = vmatpush1.msra.mxu0 0.0
  %5783 = vmatprep.subr.mxu0 0.0
  %5784 = vmatpush1.msra.mxu0 0.0
  %5785 = vmatprep.subr.mxu0 0.0
  %5786 = vmatpush1.msra.mxu0 0.0
  %5787 = vmatprep.subr.mxu0 0.0
  %5788 = vmatpush1.msra.mxu0 0.0
  %5789 = vmatprep.subr.mxu0 0.0
  %5790 = vmatpush1.msra.mxu0 0.0
  %5791 = vmatprep.subr.mxu0 0.0
  %5792 = vmatpush1.msra.mxu0 0.0
  %5793 = vmatprep.subr.mxu0 0.0
  %5794 = vmatpush1.msra.mxu0 0.0
  %5795 = vmatprep.subr.mxu0 0.0
  %5796 = vmatpush1.msra.mxu0 0.0
  %5797 = vmatprep.subr.mxu0 0.0
  %5798 = vmatpush1.msra.mxu0 0.0
  %5799 = vmatprep.subr.mxu0 0.0
  %5800 = vmatpush1.msra.mxu0 0.0
  %5801 = vmatprep.subr.mxu0 0.0
  %5802 = vmatpush1.msra.mxu0 0.0
  %5803 = vmatprep.subr.mxu0 0.0
  %5804 = vmatpush1.msra.mxu0 0.0
  %5805 = vmatprep.mubr.f32.mxu0 0.0
  %5806 = vmatmul.mubr.f32.gmra.mrb[0].mxu0 %v5727
  %v5807 = vpop.f32.mrb[0].mxu0
  %v5808 = vadd.f32 %v5719, %v5807
  %v5809 = vpop.f32.mrb[0].mxu0
  %v5810 = vadd.f32 %v5723, %v5809
  %5811 = vmatprep.mubr.f32.mxu0 0.0
  %5812 = vmatmul.mubr.f32.gmra.mrb[0].mxu0 %v5730
  %v5813 = vpop.f32.mrb[0].mxu0
  %v5814 = vadd.f32 %v5719, %v5813
  %v5815 = vpop.f32.mrb[0].mxu0
  %v5816 = vadd.f32 %v5723, %v5815
  %5817 = vmatprep.mubr.f32.mxu0 0.0
  %5818 = vmatmul.mubr.f32.gmra.mrb[0].mxu0 %v5733
  %v5819 = vpop.f32.mrb[0].mxu0
  %v5820 = vadd.f32 %v5719, %v5819
  %v5821 = vpop.f32.mrb[0].mxu0
  %v5822 = vadd.f32 %v5723, %v5821
  %5823 = vmatprep.mubr.f32.mxu0 0.0
  %5824 = vmatmul.mubr.f32.gmra.mrb[0].mxu0 %v5736
  %v5825 = vpop.f32.mrb[0].mxu0
  %v5826 = vadd.f32 %v5719, %v5825
  %v5827 = vpop.f32.mrb[0].mxu0
  %v5828 = vadd.f32 %v5723, %v5827
  %5829 = vmatprep.mubr.f32.mxu0 0.0
  %5830 = vmatmul.mubr.f32.gmra.mrb[0].mxu0 %v5739
  %v5831 = vpop.f32.mrb[0].mxu0
  %v5832 = vadd.f32 %v5719, %v5831
  %v5833 = vpop.f32.mrb[0].mxu0
  %v5834 = vadd.f32 %v5723, %v5833
  %5835 = vdwg.mxu0
  %v5836 = vmul.f32 %v5808, 0.5
  %v5837 = vmul.f32 %v5810, 0.5
  %v5838 = vmul.f32 %v5814, 0.5
  %v5839 = vmul.f32 %v5816, 0.5
  %v5840 = vmul.f32 %v5820, 0.5
  %v5841 = vmul.f32 %v5822, 0.5
  %v5842 = vmul.f32 %v5826, 0.5
  %v5843 = vmul.f32 %v5828, 0.5
  %v5844 = vmul.f32 %v5832, 0.5
  %v5845 = vmul.f32 %v5834, 0.5
  %v5846 = vmul.f32 %v5808, 0.70710677
  %v5847 = vmul.f32 %v5810, 0.70710677
  %v5848 = vmul.f32 %v5814, 0.70710677
  %v5849 = vmul.f32 %v5816, 0.70710677
  %v5850 = vmul.f32 %v5820, 0.70710677
  %v5851 = vmul.f32 %v5822, 0.70710677
  %v5852 = vmul.f32 %v5826, 0.70710677
  %v5853 = vmul.f32 %v5828, 0.70710677
  %v5854 = vmul.f32 %v5832, 0.70710677
  %v5855 = vmul.f32 %v5834, 0.70710677
  %vm5856 = vcmp.ge.f32.partialorder %v5846, 0.0
  %vm5857 = vcmp.ge.f32.partialorder %v5847, 0.0
  %vm5858 = vcmp.ge.f32.partialorder %v5848, 0.0
  %vm5859 = vcmp.ge.f32.partialorder %v5849, 0.0
  %vm5860 = vcmp.ge.f32.partialorder %v5850, 0.0
  %vm5861 = vcmp.ge.f32.partialorder %v5851, 0.0
  %vm5862 = vcmp.ge.f32.partialorder %v5852, 0.0
  %vm5863 = vcmp.ge.f32.partialorder %v5853, 0.0
  %vm5864 = vcmp.ge.f32.partialorder %v5854, 0.0
  %vm5865 = vcmp.ge.f32.partialorder %v5855, 0.0
  %v5866 = vsel %vm5856, 1.0, -1.0
  %v5867 = vsel %vm5857, 1.0, -1.0
  %v5868 = vsel %vm5858, 1.0, -1.0
  %v5869 = vsel %vm5859, 1.0, -1.0
  %v5870 = vsel %vm5860, 1.0, -1.0
  %v5871 = vsel %vm5861, 1.0, -1.0
  %v5872 = vsel %vm5862, 1.0, -1.0
  %v5873 = vsel %vm5863, 1.0, -1.0
  %v5874 = vsel %vm5864, 1.0, -1.0
  %v5875 = vsel %vm5865, 1.0, -1.0
  %v5876 = vand.u32 2147483647, %v5846
  %v5877 = vand.u32 2147483647, %v5847
  %v5878 = vand.u32 2147483647, %v5848
  %v5879 = vand.u32 2147483647, %v5849
  %v5880 = vand.u32 2147483647, %v5850
  %v5881 = vand.u32 2147483647, %v5851
  %v5882 = vand.u32 2147483647, %v5852
  %v5883 = vand.u32 2147483647, %v5853
  %v5884 = vand.u32 2147483647, %v5854
  %v5885 = vand.u32 2147483647, %v5855
  %v5886 = vmul.f32 %v5876, 0.3275911
  %v5887 = vmul.f32 %v5877, 0.3275911
  %v5888 = vmul.f32 %v5878, 0.3275911
  %v5889 = vmul.f32 %v5879, 0.3275911
  %v5890 = vmul.f32 %v5880, 0.3275911
  %v5891 = vmul.f32 %v5881, 0.3275911
  %v5892 = vmul.f32 %v5882, 0.3275911
  %v5893 = vmul.f32 %v5883, 0.3275911
  %v5894 = vmul.f32 %v5884, 0.3275911
  %v5895 = vmul.f32 %v5885, 0.3275911
  %v5896 = vadd.f32 %v5886, 1.0
  %v5897 = vadd.f32 %v5887, 1.0
  %v5898 = vadd.f32 %v5888, 1.0
  %v5899 = vadd.f32 %v5889, 1.0
  %v5900 = vadd.f32 %v5890, 1.0
  %v5901 = vadd.f32 %v5891, 1.0
  %v5902 = vadd.f32 %v5892, 1.0
  %v5903 = vadd.f32 %v5893, 1.0
  %v5904 = vadd.f32 %v5894, 1.0
  %v5905 = vadd.f32 %v5895, 1.0
  %v5906 = vrcp.pop %v5896
  %v5907 = vmul.f32 1.0, %v5906
  %v5908 = vrcp.pop %v5897
  %v5909 = vmul.f32 1.0, %v5908
  %v5910 = vrcp.pop %v5898
  %v5911 = vmul.f32 1.0, %v5910
  %v5912 = vrcp.pop %v5899
  %v5913 = vmul.f32 1.0, %v5912
  %v5914 = vrcp.pop %v5900
  %v5915 = vmul.f32 1.0, %v5914
  %v5916 = vrcp.pop %v5901
  %v5917 = vmul.f32 1.0, %v5916
  %v5918 = vrcp.pop %v5902
  %v5919 = vmul.f32 1.0, %v5918
  %v5920 = vrcp.pop %v5903
  %v5921 = vmul.f32 1.0, %v5920
  %v5922 = vrcp.pop %v5904
  %v5923 = vmul.f32 1.0, %v5922
  %v5924 = vrcp.pop %v5905
  %v5925 = vmul.f32 1.0, %v5924
  %v5926 = vmul.f32 %v5907, 1.0614054
  %v5927 = vmul.f32 %v5909, 1.0614054
  %v5928 = vmul.f32 %v5911, 1.0614054
  %v5929 = vmul.f32 %v5913, 1.0614054
  %v5930 = vmul.f32 %v5915, 1.0614054
  %v5931 = vmul.f32 %v5917, 1.0614054
  %v5932 = vmul.f32 %v5919, 1.0614054
  %v5933 = vmul.f32 %v5921, 1.0614054
  %v5934 = vmul.f32 %v5923, 1.0614054
  %v5935 = vmul.f32 %v5925, 1.0614054
  %v5936 = vadd.f32 %v5926, -1.4531521
  %v5937 = vadd.f32 %v5927, -1.4531521
  %v5938 = vadd.f32 %v5928, -1.4531521
  %v5939 = vadd.f32 %v5929, -1.4531521
  %v5940 = vadd.f32 %v5930, -1.4531521
  %v5941 = vadd.f32 %v5931, -1.4531521
  %v5942 = vadd.f32 %v5932, -1.4531521
  %v5943 = vadd.f32 %v5933, -1.4531521
  %v5944 = vadd.f32 %v5934, -1.4531521
  %v5945 = vadd.f32 %v5935, -1.4531521
  %v5946 = vmul.f32 %v5936, %v5907
  %v5947 = vmul.f32 %v5937, %v5909
  %v5948 = vmul.f32 %v5938, %v5911
  %v5949 = vmul.f32 %v5939, %v5913
  %v5950 = vmul.f32 %v5940, %v5915
  %v5951 = vmul.f32 %v5941, %v5917
  %v5952 = vmul.f32 %v5942, %v5919
  %v5953 = vmul.f32 %v5943, %v5921
  %v5954 = vmul.f32 %v5944, %v5923
  %v5955 = vmul.f32 %v5945, %v5925
  %v5956 = vadd.f32 %v5946, 1.4214138
  %v5957 = vadd.f32 %v5947, 1.4214138
  %v5958 = vadd.f32 %v5948, 1.4214138
  %v5959 = vadd.f32 %v5949, 1.4214138
  %v5960 = vadd.f32 %v5950, 1.4214138
  %v5961 = vadd.f32 %v5951, 1.4214138
  %v5962 = vadd.f32 %v5952, 1.4214138
  %v5963 = vadd.f32 %v5953, 1.4214138
  %v5964 = vadd.f32 %v5954, 1.4214138
  %v5965 = vadd.f32 %v5955, 1.4214138
  %v5966 = vmul.f32 %v5956, %v5907
  %v5967 = vmul.f32 %v5957, %v5909
  %v5968 = vmul.f32 %v5958, %v5911
  %v5969 = vmul.f32 %v5959, %v5913
  %v5970 = vmul.f32 %v5960, %v5915
  %v5971 = vmul.f32 %v5961, %v5917
  %v5972 = vmul.f32 %v5962, %v5919
  %v5973 = vmul.f32 %v5963, %v5921
  %v5974 = vmul.f32 %v5964, %v5923
  %v5975 = vmul.f32 %v5965, %v5925
  %v5976 = vadd.f32 %v5966, -0.28449672
  %v5977 = vadd.f32 %v5967, -0.28449672
  %v5978 = vadd.f32 %v5968, -0.28449672
  %v5979 = vadd.f32 %v5969, -0.28449672
  %v5980 = vadd.f32 %v5970, -0.28449672
  %v5981 = vadd.f32 %v5971, -0.28449672
  %v5982 = vadd.f32 %v5972, -0.28449672
  %v5983 = vadd.f32 %v5973, -0.28449672
  %v5984 = vadd.f32 %v5974, -0.28449672
  %v5985 = vadd.f32 %v5975, -0.28449672
  %v5986 = vmul.f32 %v5976, %v5907
  %v5987 = vmul.f32 %v5977, %v5909
  %v5988 = vmul.f32 %v5978, %v5911
  %v5989 = vmul.f32 %v5979, %v5913
  %v5990 = vmul.f32 %v5980, %v5915
  %v5991 = vmul.f32 %v5981, %v5917
  %v5992 = vmul.f32 %v5982, %v5919
  %v5993 = vmul.f32 %v5983, %v5921
  %v5994 = vmul.f32 %v5984, %v5923
  %v5995 = vmul.f32 %v5985, %v5925
  %v5996 = vadd.f32 %v5986, 0.2548296
  %v5997 = vadd.f32 %v5987, 0.2548296
  %v5998 = vadd.f32 %v5988, 0.2548296
  %v5999 = vadd.f32 %v5989, 0.2548296
  %v6000 = vadd.f32 %v5990, 0.2548296
  %v6001 = vadd.f32 %v5991, 0.2548296
  %v6002 = vadd.f32 %v5992, 0.2548296
  %v6003 = vadd.f32 %v5993, 0.2548296
  %v6004 = vadd.f32 %v5994, 0.2548296
  %v6005 = vadd.f32 %v5995, 0.2548296
  %v6006 = vmul.f32 %v5996, %v5907
  %v6007 = vmul.f32 %v5997, %v5909
  %v6008 = vmul.f32 %v5998, %v5911
  %v6009 = vmul.f32 %v5999, %v5913
  %v6010 = vmul.f32 %v6000, %v5915
  %v6011 = vmul.f32 %v6001, %v5917
  %v6012 = vmul.f32 %v6002, %v5919
  %v6013 = vmul.f32 %v6003, %v5921
  %v6014 = vmul.f32 %v6004, %v5923
  %v6015 = vmul.f32 %v6005, %v5925
  %v6016 = vsub.f32 0.0, %v5876
  %v6017 = vsub.f32 0.0, %v5877
  %v6018 = vsub.f32 0.0, %v5878
  %v6019 = vsub.f32 0.0, %v5879
  %v6020 = vsub.f32 0.0, %v5880
  %v6021 = vsub.f32 0.0, %v5881
  %v6022 = vsub.f32 0.0, %v5882
  %v6023 = vsub.f32 0.0, %v5883
  %v6024 = vsub.f32 0.0, %v5884
  %v6025 = vsub.f32 0.0, %v5885
  %v6026 = vmul.f32 %v6016, %v5876
  %v6027 = vmul.f32 %v6017, %v5877
  %v6028 = vmul.f32 %v6018, %v5878
  %v6029 = vmul.f32 %v6019, %v5879
  %v6030 = vmul.f32 %v6020, %v5880
  %v6031 = vmul.f32 %v6021, %v5881
  %v6032 = vmul.f32 %v6022, %v5882
  %v6033 = vmul.f32 %v6023, %v5883
  %v6034 = vmul.f32 %v6024, %v5884
  %v6035 = vmul.f32 %v6025, %v5885
  %v6036 = vmul.f32 %v6026, 1.442695
  %v6037 = vpow.pop %v6036
  %v6038 = vmul.f32 %v6027, 1.442695
  %v6039 = vpow.pop %v6038
  %v6040 = vmul.f32 %v6028, 1.442695
  %v6041 = vpow.pop %v6040
  %v6042 = vmul.f32 %v6029, 1.442695
  %v6043 = vpow.pop %v6042
  %v6044 = vmul.f32 %v6030, 1.442695
  %v6045 = vpow.pop %v6044
  %v6046 = vmul.f32 %v6031, 1.442695
  %v6047 = vpow.pop %v6046
  %v6048 = vmul.f32 %v6032, 1.442695
  %v6049 = vpow.pop %v6048
  %v6050 = vmul.f32 %v6033, 1.442695
  %v6051 = vpow.pop %v6050
  %v6052 = vmul.f32 %v6034, 1.442695
  %v6053 = vpow.pop %v6052
  %v6054 = vmul.f32 %v6035, 1.442695
  %v6055 = vpow.pop %v6054
  %v6056 = vmul.f32 %v6006, %v6037
  %v6057 = vmul.f32 %v6007, %v6039
  %v6058 = vmul.f32 %v6008, %v6041
  %v6059 = vmul.f32 %v6009, %v6043
  %v6060 = vmul.f32 %v6010, %v6045
  %v6061 = vmul.f32 %v6011, %v6047
  %v6062 = vmul.f32 %v6012, %v6049
  %v6063 = vmul.f32 %v6013, %v6051
  %v6064 = vmul.f32 %v6014, %v6053
  %v6065 = vmul.f32 %v6015, %v6055
  %v6066 = vsub.f32 1.0, %v6056
  %v6067 = vsub.f32 1.0, %v6057
  %v6068 = vsub.f32 1.0, %v6058
  %v6069 = vsub.f32 1.0, %v6059
  %v6070 = vsub.f32 1.0, %v6060
  %v6071 = vsub.f32 1.0, %v6061
  %v6072 = vsub.f32 1.0, %v6062
  %v6073 = vsub.f32 1.0, %v6063
  %v6074 = vsub.f32 1.0, %v6064
  %v6075 = vsub.f32 1.0, %v6065
  %v6076 = vmul.f32 %v5866, %v6066
  %v6077 = vmul.f32 %v5867, %v6067
  %v6078 = vmul.f32 %v5868, %v6068
  %v6079 = vmul.f32 %v5869, %v6069
  %v6080 = vmul.f32 %v5870, %v6070
  %v6081 = vmul.f32 %v5871, %v6071
  %v6082 = vmul.f32 %v5872, %v6072
  %v6083 = vmul.f32 %v5873, %v6073
  %v6084 = vmul.f32 %v5874, %v6074
  %v6085 = vmul.f32 %v5875, %v6075
  %v6086 = vadd.f32 %v6076, 1.0
  %v6087 = vadd.f32 %v6077, 1.0
  %v6088 = vadd.f32 %v6078, 1.0
  %v6089 = vadd.f32 %v6079, 1.0
  %v6090 = vadd.f32 %v6080, 1.0
  %v6091 = vadd.f32 %v6081, 1.0
  %v6092 = vadd.f32 %v6082, 1.0
  %v6093 = vadd.f32 %v6083, 1.0
  %v6094 = vadd.f32 %v6084, 1.0
  %v6095 = vadd.f32 %v6085, 1.0
  %v6096 = vmul.f32 %v5836, %v6086
  %v6097 = vmul.f32 %v5837, %v6087
  %v6098 = vmul.f32 %v5838, %v6088
  %v6099 = vmul.f32 %v5839, %v6089
  %v6100 = vmul.f32 %v5840, %v6090
  %v6101 = vmul.f32 %v5841, %v6091
  %v6102 = vmul.f32 %v5842, %v6092
  %v6103 = vmul.f32 %v5843, %v6093
  %v6104 = vmul.f32 %v5844, %v6094
  %v6105 = vmul.f32 %v5845, %v6095
  %v6106 = vld [vmem:[%s3 + $0x250] sm:$0xff]
  %v6107 = vld [vmem:[%s3 + $0x260] sm:$0xff]
  %v6108 = vld [vmem:[%s3 + $0x270] sm:$0xff]
  %v6109 = vld [vmem:[%s3 + $0x280] sm:$0xff]
  %v6110 = vld [vmem:[%s3 + $0x290] sm:$0xff]
  %v6111 = vld [vmem:[%s3 + $0x2a0] sm:$0xff]
  %v6112 = vld [vmem:[%s3 + $0x2b0] sm:$0xff]
  %v6113 = vld [vmem:[%s3 + $0x2c0] sm:$0xff]
  %v6114 = vld [vmem:[%s3 + $0x2d0] sm:$0xff]
  %v6115 = vld [vmem:[%s3 + $0x2e0] sm:$0xff]
  %v6116 = vld [vmem:[%s3 + $0x2f0] sm:$0xff]
  %v6117 = vld [vmem:[%s3 + $0x300] sm:$0xff]
  %v6118 = vld [vmem:[%s3 + $0x310] sm:$0xff]
  %v6119 = vld [vmem:[%s3 + $0x320] sm:$0xff]
  %v6120 = vld [vmem:[%s3 + $0x330] sm:$0xff]
  %v6121 = vld [vmem:[%s3 + $0x340] sm:$0xff]
  %v6122 = vld [vmem:[%s3 + $0x350] sm:$0xff]
  %v6123 = vld [vmem:[%s3 + $0x360] sm:$0xff]
  %v6124 = vld [vmem:[%s3 + $0x370] sm:$0xff]
  %v6125 = vld [vmem:[%s3 + $0x380] sm:$0xff]
  %v6126 = vld [vmem:[%s3 + $0x390] sm:$0xff]
  %v6127 = vld [vmem:[%s3 + $0x3a0] sm:$0xff]
  %v6128 = vld [vmem:[%s3 + $0x3b0] sm:$0xff]
  %v6129 = vld [vmem:[%s3 + $0x3c0] sm:$0xff]
  %v6131 = vsel %vm104, %v6097, 0
  %v6134 = vsel %vm104, %v6099, 0
  %v6137 = vsel %vm104, %v6101, 0
  %v6140 = vsel %vm104, %v6103, 0
  %v6143 = vsel %vm104, %v6105, 0
  %6145 = vmatprep.subr.mxu0 0.0
  %6146 = vmatpush1.msra.mxu0 %v6106
  %6147 = vmatprep.subr.mxu0 0.0
  %6148 = vmatpush1.msra.mxu0 %v6107
  %6149 = vmatprep.subr.mxu0 0.0
  %6150 = vmatpush1.msra.mxu0 %v6108
  %6151 = vmatprep.subr.mxu0 0.0
  %6152 = vmatpush1.msra.mxu0 %v6109
  %6153 = vmatprep.subr.mxu0 0.0
  %6154 = vmatpush1.msra.mxu0 %v6110
  %6155 = vmatprep.subr.mxu0 0.0
  %6156 = vmatpush1.msra.mxu0 %v6111
  %6157 = vmatprep.subr.mxu0 0.0
  %6158 = vmatpush1.msra.mxu0 %v6112
  %6159 = vmatprep.subr.mxu0 0.0
  %6160 = vmatpush1.msra.mxu0 %v6113
  %6161 = vmatprep.subr.mxu0 0.0
  %6162 = vmatpush1.msra.mxu0 %v6114
  %6163 = vmatprep.subr.mxu0 0.0
  %6164 = vmatpush1.msra.mxu0 %v6115
  %6165 = vmatprep.subr.mxu0 0.0
  %6166 = vmatpush1.msra.mxu0 %v6116
  %6167 = vmatprep.subr.mxu0 0.0
  %6168 = vmatpush1.msra.mxu0 %v6117
  %6169 = vmatprep.subr.mxu0 0.0
  %6170 = vmatpush1.msra.mxu0 %v6118
  %6171 = vmatprep.subr.mxu0 0.0
  %6172 = vmatpush1.msra.mxu0 %v6119
  %6173 = vmatprep.subr.mxu0 0.0
  %6174 = vmatpush1.msra.mxu0 %v6120
  %6175 = vmatprep.subr.mxu0 0.0
  %6176 = vmatpush1.msra.mxu0 %v6121
  %6177 = vmatprep.subr.mxu0 0.0
  %6178 = vmatpush1.msra.mxu0 %v6122
  %6179 = vmatprep.subr.mxu0 0.0
  %6180 = vmatpush1.msra.mxu0 %v6123
  %6181 = vmatprep.subr.mxu0 0.0
  %6182 = vmatpush1.msra.mxu0 %v6124
  %6183 = vmatprep.subr.mxu0 0.0
  %6184 = vmatpush1.msra.mxu0 %v6125
  %6185 = vmatprep.subr.mxu0 0.0
  %6186 = vmatpush1.msra.mxu0 %v6126
  %6187 = vmatprep.subr.mxu0 0.0
  %6188 = vmatpush1.msra.mxu0 %v6127
  %6189 = vmatprep.subr.mxu0 0.0
  %6190 = vmatpush1.msra.mxu0 %v6128
  %6191 = vmatprep.subr.mxu0 0.0
  %6192 = vmatpush1.msra.mxu0 %v6129
  %6193 = vmatprep.subr.mxu0 0.0
  %6194 = vmatpush1.msra.mxu0 0.0
  %6195 = vmatprep.subr.mxu0 0.0
  %6196 = vmatpush1.msra.mxu0 0.0
  %6197 = vmatprep.subr.mxu0 0.0
  %6198 = vmatpush1.msra.mxu0 0.0
  %6199 = vmatprep.subr.mxu0 0.0
  %6200 = vmatpush1.msra.mxu0 0.0
  %6201 = vmatprep.subr.mxu0 0.0
  %6202 = vmatpush1.msra.mxu0 0.0
  %6203 = vmatprep.subr.mxu0 0.0
  %6204 = vmatpush1.msra.mxu0 0.0
  %6205 = vmatprep.subr.mxu0 0.0
  %6206 = vmatpush1.msra.mxu0 0.0
  %6207 = vmatprep.subr.mxu0 0.0
  %6208 = vmatpush1.msra.mxu0 0.0
  %6209 = vmatprep.mubr.f32.mxu0 %v6131
  %6210 = vmatmul.mubr.f32.gmra.mrb[0].mxu0 %v6096
  %v6211 = vpop.f32.mrb[0].mxu0
  %v6212 = vadd.f32 0.0, %v6211
  %v6213 = vpop.f32.mrb[0].mxu0
  %6214 = vmatprep.mubr.f32.mxu0 %v6134
  %6215 = vmatmul.mubr.f32.gmra.mrb[0].mxu0 %v6098
  %v6216 = vpop.f32.mrb[0].mxu0
  %v6217 = vadd.f32 0.0, %v6216
  %v6218 = vpop.f32.mrb[0].mxu0
  %6219 = vmatprep.mubr.f32.mxu0 %v6137
  %6220 = vmatmul.mubr.f32.gmra.mrb[0].mxu0 %v6100
  %v6221 = vpop.f32.mrb[0].mxu0
  %v6222 = vadd.f32 0.0, %v6221
  %v6223 = vpop.f32.mrb[0].mxu0
  %6224 = vmatprep.mubr.f32.mxu0 %v6140
  %6225 = vmatmul.mubr.f32.gmra.mrb[0].mxu0 %v6102
  %v6226 = vpop.f32.mrb[0].mxu0
  %v6227 = vadd.f32 0.0, %v6226
  %v6228 = vpop.f32.mrb[0].mxu0
  %6229 = vmatprep.mubr.f32.mxu0 %v6143
  %6230 = vmatmul.mubr.f32.gmra.mrb[0].mxu0 %v6104
  %v6231 = vpop.f32.mrb[0].mxu0
  %v6232 = vadd.f32 0.0, %v6231
  %v6233 = vpop.f32.mrb[0].mxu0
  %6234 = vdwg.mxu0
  %v6235 = vadd.f32 %v5619, %v6212
  %v6236 = vadd.f32 %v5620, %v6217
  %v6237 = vadd.f32 %v5621, %v6222
  %v6238 = vadd.f32 %v5622, %v6227
  %v6239 = vadd.f32 %v5623, %v6232
  %v6240 = vld [vmem:[%s2 + $0x32] ss:$0 sm:$0xff]
  %v6241 = vadd.f32 %v6235, %v6240
  %v6242 = vadd.f32 %v6236, %v6240
  %v6243 = vadd.f32 %v6237, %v6240
  %v6244 = vadd.f32 %v6238, %v6240
  %v6245 = vadd.f32 %v6239, %v6240
  %6246 = vst.msk [vmem:[%s5] sm:$0xff] %vm3049, %v6241
  %6247 = vst.msk [vmem:[%s5 + $0x8] sm:$0xff] %vm3049, %v6242
  %6248 = vst.msk [vmem:[%s5 + $0x10] sm:$0xff] %vm3049, %v6243
  %6249 = vst.msk [vmem:[%s5 + $0x18] sm:$0xff] %vm3049, %v6244
  %6250 = vst.msk [vmem:[%s5 + $0x20] sm:$0x3] %vm3274, %v6245
  %v6254 = vrot.slane %v6241, 1
  %v6255 = vrot.slane %v6242, 1
  %v6256 = vsel %vm4477, %v6254, %v6255
  %v6257 = vrot.slane %v6243, 1
  %v6258 = vsel %vm4477, %v6255, %v6257
  %vm6261 = vcmask 1045504
  %v6262 = vrot.slane %v6243, 2
  %v6263 = vrot.slane %v6244, 2
  %v6264 = vsel %vm6261, %v6262, %v6263
  %v6265 = vrot.slane %v6245, 2
  %v6266 = vsel %vm6261, %v6263, %v6265
  %v6267 = vld [vmem:[%s3 + $0xd0] sm:$0xff]
  %v6268 = vld [vmem:[%s3 + $0xe0] sm:$0xff]
  %v6269 = vld [vmem:[%s3 + $0xf0] sm:$0xff]
  %v6270 = vld [vmem:[%s3 + $0x100] sm:$0xff]
  %v6271 = vld [vmem:[%s3 + $0x110] sm:$0xff]
  %v6272 = vld [vmem:[%s3 + $0x120] sm:$0xff]
  %v6273 = vld [vmem:[%s2 + $0x21] ss:$0 sm:$0xff]
  %v6274 = vsel %vm3049, %v6256, 0
  %v6276 = vsel %vm3049, %v6258, 0
  %v6278 = vsel %vm3049, %v6264, 0
  %v6280 = vsel %vm3049, %v6266, 0
  %6282 = vmatprep.subr.mxu0 0.0
  %6283 = vmatpush1.msra.mxu0 %v6267
  %6284 = vmatprep.subr.mxu0 0.0
  %6285 = vmatpush1.msra.mxu0 %v6268
  %6286 = vmatprep.subr.mxu0 0.0
  %6287 = vmatpush1.msra.mxu0 %v6269
  %6288 = vmatprep.subr.mxu0 0.0
  %6289 = vmatpush1.msra.mxu0 %v6270
  %6290 = vmatprep.subr.mxu0 0.0
  %6291 = vmatpush1.msra.mxu0 %v6271
  %6292 = vmatprep.subr.mxu0 0.0
  %6293 = vmatpush1.msra.mxu0 %v6272
  %6294 = vmatprep.subr.mxu0 0.0
  %6295 = vmatpush1.msra.mxu0 0.0
  %6296 = vmatprep.subr.mxu0 0.0
  %6297 = vmatpush1.msra.mxu0 0.0
  %6298 = vmatprep.subr.mxu0 0.0
  %6299 = vmatpush1.msra.mxu0 0.0
  %6300 = vmatprep.subr.mxu0 0.0
  %6301 = vmatpush1.msra.mxu0 0.0
  %6302 = vmatprep.subr.mxu0 0.0
  %6303 = vmatpush1.msra.mxu0 0.0
  %6304 = vmatprep.subr.mxu0 0.0
  %6305 = vmatpush1.msra.mxu0 0.0
  %6306 = vmatprep.subr.mxu0 0.0
  %6307 = vmatpush1.msra.mxu0 0.0
  %6308 = vmatprep.subr.mxu0 0.0
  %6309 = vmatpush1.msra.mxu0 0.0
  %6310 = vmatprep.subr.mxu0 0.0
  %6311 = vmatpush1.msra.mxu0 0.0
  %6312 = vmatprep.subr.mxu0 0.0
  %6313 = vmatpush1.msra.mxu0 0.0
  %6314 = vmatprep.subr.mxu0 0.0
  %6315 = vmatpush1.msra.mxu0 0.0
  %6316 = vmatprep.subr.mxu0 0.0
  %6317 = vmatpush1.msra.mxu0 0.0
  %6318 = vmatprep.subr.mxu0 0.0
  %6319 = vmatpush1.msra.mxu0 0.0
  %6320 = vmatprep.subr.mxu0 0.0
  %6321 = vmatpush1.msra.mxu0 0.0
  %6322 = vmatprep.subr.mxu0 0.0
  %6323 = vmatpush1.msra.mxu0 0.0
  %6324 = vmatprep.subr.mxu0 0.0
  %6325 = vmatpush1.msra.mxu0 0.0
  %6326 = vmatprep.subr.mxu0 0.0
  %6327 = vmatpush1.msra.mxu0 0.0
  %6328 = vmatprep.subr.mxu0 0.0
  %6329 = vmatpush1.msra.mxu0 0.0
  %6330 = vmatprep.subr.mxu0 0.0
  %6331 = vmatpush1.msra.mxu0 0.0
  %6332 = vmatprep.subr.mxu0 0.0
  %6333 = vmatpush1.msra.mxu0 0.0
  %6334 = vmatprep.subr.mxu0 0.0
  %6335 = vmatpush1.msra.mxu0 0.0
  %6336 = vmatprep.subr.mxu0 0.0
  %6337 = vmatpush1.msra.mxu0 0.0
  %6338 = vmatprep.subr.mxu0 0.0
  %6339 = vmatpush1.msra.mxu0 0.0
  %6340 = vmatprep.subr.mxu0 0.0
  %6341 = vmatpush1.msra.mxu0 0.0
  %6342 = vmatprep.subr.mxu0 0.0
  %6343 = vmatpush1.msra.mxu0 0.0
  %6344 = vmatprep.subr.mxu0 0.0
  %6345 = vmatpush1.msra.mxu0 0.0
  %6346 = vmatprep.mubr.f32.mxu0 0.0
  %6347 = vmatmul.mubr.f32.gmra.mrb[0].mxu0 %v6274
  %v6348 = vpop.f32.mrb[0].mxu0
  %v6349 = vadd.f32 %v6273, %v6348
  %v6350 = vpop.f32.mrb[0].mxu0
  %6351 = vmatprep.mubr.f32.mxu0 0.0
  %6352 = vmatmul.mubr.f32.gmra.mrb[0].mxu0 %v6276
  %v6353 = vpop.f32.mrb[0].mxu0
  %v6354 = vadd.f32 %v6273, %v6353
  %v6355 = vpop.f32.mrb[0].mxu0
  %6356 = vmatprep.mubr.f32.mxu0 0.0
  %6357 = vmatmul.mubr.f32.gmra.mrb[0].mxu0 %v6278
  %v6358 = vpop.f32.mrb[0].mxu0
  %v6359 = vadd.f32 %v6273, %v6358
  %v6360 = vpop.f32.mrb[0].mxu0
  %6361 = vmatprep.mubr.f32.mxu0 0.0
  %6362 = vmatmul.mubr.f32.gmra.mrb[0].mxu0 %v6280
  %v6363 = vpop.f32.mrb[0].mxu0
  %v6364 = vadd.f32 %v6273, %v6363
  %v6365 = vpop.f32.mrb[0].mxu0
  %6366 = vdwg.mxu0
  %v6367 = vld [vmem:[%s2 + $0x22] ss:$0 sm:$0xff]
  %v6368 = vld [vmem:[%s2 + $0x23] ss:$0 sm:$0xff]
  %v6369 = vsel %vm551, %v6349, 0.0
  %v6370 = vsel %vm551, %v6354, 0.0
  %v6371 = vadd.f32 %v6369, %v6370
  %v6372 = vsel %vm551, %v6359, 0.0
  %v6373 = vadd.f32 %v6371, %v6372
  %v6374 = vsel %vm551, %v6364, 0.0
  %v6375 = vadd.f32 %v6373, %v6374
  %v6376 = vrot.slane %v6375, 4
  %v6377 = vadd.f32 %v6375, %v6376
  %v6378 = vrot.slane %v6377, 2
  %v6379 = vadd.f32 %v6377, %v6378
  %v6380 = vrot.slane %v6379, 1
  %v6381 = vadd.f32 %v6379, %v6380
  %v6382 = vrcp.pop 32.0
  %v6383 = vmul.f32 %v6381, %v6382
  %v6384 = vsub.f32 %v6349, %v6383
  %v6385 = vsub.f32 %v6354, %v6383
  %v6386 = vsub.f32 %v6359, %v6383
  %v6387 = vsub.f32 %v6364, %v6383
  %v6388 = vmul.f32 %v6384, %v6384
  %v6389 = vmul.f32 %v6385, %v6385
  %v6390 = vmul.f32 %v6386, %v6386
  %v6391 = vmul.f32 %v6387, %v6387
  %v6392 = vsel %vm551, %v6388, 0.0
  %v6393 = vsel %vm551, %v6389, 0.0
  %v6394 = vadd.f32 %v6392, %v6393
  %v6395 = vsel %vm551, %v6390, 0.0
  %v6396 = vadd.f32 %v6394, %v6395
  %v6397 = vsel %vm551, %v6391, 0.0
  %v6398 = vadd.f32 %v6396, %v6397
  %v6399 = vrot.slane %v6398, 4
  %v6400 = vadd.f32 %v6398, %v6399
  %v6401 = vrot.slane %v6400, 2
  %v6402 = vadd.f32 %v6400, %v6401
  %v6403 = vrot.slane %v6402, 1
  %v6404 = vadd.f32 %v6402, %v6403
  %v6405 = vmul.f32 %v6404, %v6382
  %v6406 = vadd.f32 %v6405, 1e-06
  %v6407 = vrsqrt.pop %v6406
  %v6408 = vmul.f32 %v6384, %v6407
  %v6409 = vmul.f32 %v6385, %v6407
  %v6410 = vmul.f32 %v6386, %v6407
  %v6411 = vmul.f32 %v6387, %v6407
  %v6412 = vmul.f32 %v6408, %v6367
  %v6413 = vmul.f32 %v6409, %v6367
  %v6414 = vmul.f32 %v6410, %v6367
  %v6415 = vmul.f32 %v6411, %v6367
  %v6416 = vadd.f32 %v6412, %v6368
  %v6417 = vadd.f32 %v6413, %v6368
  %v6418 = vadd.f32 %v6414, %v6368
  %v6419 = vadd.f32 %v6415, %v6368
  %v6420 = vmax.f32 %v6416, 0.0
  %v6421 = vmax.f32 %v6417, 0.0
  %v6422 = vmax.f32 %v6418, 0.0
  %v6423 = vmax.f32 %v6419, 0.0
  %v6424 = vshra.s32 %v20, 6
  %v6425 = vshra.s32 %v21, 6
  %v6426 = vshra.s32 %v22, 6
  %v6427 = vshra.s32 %v23, 6
  %v6428 = vshra.s32 %v24, 6
  %v6429 = vshra.s32 %v25, 6
  %v6430 = vshra.s32 %v26, 6
  %v6431 = vshra.s32 %v27, 6
  %v6432 = vshra.s32 %v28, 6
  %v6433 = vshra.s32 %v29, 6
  %v6434 = vshra.s32 %v30, 6
  %v6435 = vshra.s32 %v31, 6
  %v6436 = vshra.s32 %v32, 6
  %v6437 = vshra.s32 %v33, 6
  %v6438 = vshra.s32 %v34, 6
  %v6439 = vshra.s32 %v35, 6
  %v6440 = vshra.s32 %v85, 4
  %v6441 = vshra.s32 %v85, 2
  %v6442 = vand.u32 %v6441, 3
  %v6443 = vand.u32 %v85, 3
  %vm6444 = vcmp.eq.s32.totalorder %v6440, %v6424
  %vm6445 = vcmp.eq.s32.totalorder %v6440, %v6425
  %vm6446 = vcmp.eq.s32.totalorder %v6440, %v6426
  %vm6447 = vcmp.eq.s32.totalorder %v6440, %v6427
  %vm6448 = vcmp.eq.s32.totalorder %v6440, %v6428
  %vm6449 = vcmp.eq.s32.totalorder %v6440, %v6429
  %vm6450 = vcmp.eq.s32.totalorder %v6440, %v6430
  %vm6451 = vcmp.eq.s32.totalorder %v6440, %v6431
  %vm6452 = vcmp.eq.s32.totalorder %v6440, %v6432
  %vm6453 = vcmp.eq.s32.totalorder %v6440, %v6433
  %vm6454 = vcmp.eq.s32.totalorder %v6440, %v6434
  %vm6455 = vcmp.eq.s32.totalorder %v6440, %v6435
  %vm6456 = vcmp.eq.s32.totalorder %v6440, %v6436
  %vm6457 = vcmp.eq.s32.totalorder %v6440, %v6437
  %vm6458 = vcmp.eq.s32.totalorder %v6440, %v6438
  %vm6459 = vcmp.eq.s32.totalorder %v6440, %v6439
  %v6460 = vshra.s32 %v52, 1
  %v6461 = vshra.s32 %v53, 1
  %v6462 = vshra.s32 %v54, 1
  %v6463 = vshra.s32 %v55, 1
  %v6464 = vshra.s32 %v56, 1
  %v6465 = vshra.s32 %v57, 1
  %v6466 = vshra.s32 %v58, 1
  %v6467 = vshra.s32 %v59, 1
  %v6468 = vshra.s32 %v60, 1
  %v6469 = vshra.s32 %v61, 1
  %v6470 = vshra.s32 %v62, 1
  %v6471 = vshra.s32 %v63, 1
  %v6472 = vshra.s32 %v64, 1
  %v6473 = vshra.s32 %v65, 1
  %v6474 = vshra.s32 %v66, 1
  %v6475 = vshra.s32 %v67, 1
  %vm6476 = vcmp.eq.s32.totalorder %v6460, %v6442
  %vm6477 = vcmp.eq.s32.totalorder %v6461, %v6442
  %vm6478 = vcmp.eq.s32.totalorder %v6462, %v6442
  %vm6479 = vcmp.eq.s32.totalorder %v6463, %v6442
  %vm6480 = vcmp.eq.s32.totalorder %v6464, %v6442
  %vm6481 = vcmp.eq.s32.totalorder %v6465, %v6442
  %vm6482 = vcmp.eq.s32.totalorder %v6466, %v6442
  %vm6483 = vcmp.eq.s32.totalorder %v6467, %v6442
  %vm6484 = vcmp.eq.s32.totalorder %v6468, %v6442
  %vm6485 = vcmp.eq.s32.totalorder %v6469, %v6442
  %vm6486 = vcmp.eq.s32.totalorder %v6470, %v6442
  %vm6487 = vcmp.eq.s32.totalorder %v6471, %v6442
  %vm6488 = vcmp.eq.s32.totalorder %v6472, %v6442
  %vm6489 = vcmp.eq.s32.totalorder %v6473, %v6442
  %vm6490 = vcmp.eq.s32.totalorder %v6474, %v6442
  %vm6491 = vcmp.eq.s32.totalorder %v6475, %v6442
  %vm6492 = vmand %vm6444, %vm6476
  %vm6493 = vmand %vm6445, %vm6477
  %vm6494 = vmand %vm6446, %vm6478
  %vm6495 = vmand %vm6447, %vm6479
  %vm6496 = vmand %vm6448, %vm6480
  %vm6497 = vmand %vm6449, %vm6481
  %vm6498 = vmand %vm6450, %vm6482
  %vm6499 = vmand %vm6451, %vm6483
  %vm6500 = vmand %vm6452, %vm6484
  %vm6501 = vmand %vm6453, %vm6485
  %vm6502 = vmand %vm6454, %vm6486
  %vm6503 = vmand %vm6455, %vm6487
  %vm6504 = vmand %vm6456, %vm6488
  %vm6505 = vmand %vm6457, %vm6489
  %vm6506 = vmand %vm6458, %vm6490
  %vm6507 = vmand %vm6459, %vm6491
  %v6508 = vshra.s32 %v68, 1
  %v6509 = vshra.s32 %v69, 1
  %v6510 = vshra.s32 %v70, 1
  %v6511 = vshra.s32 %v71, 1
  %v6512 = vshra.s32 %v72, 1
  %v6513 = vshra.s32 %v73, 1
  %v6514 = vshra.s32 %v74, 1
  %v6515 = vshra.s32 %v75, 1
  %v6516 = vshra.s32 %v76, 1
  %v6517 = vshra.s32 %v77, 1
  %v6518 = vshra.s32 %v78, 1
  %v6519 = vshra.s32 %v79, 1
  %v6520 = vshra.s32 %v80, 1
  %v6521 = vshra.s32 %v81, 1
  %v6522 = vshra.s32 %v82, 1
  %v6523 = vshra.s32 %v83, 1
  %vm6524 = vcmp.eq.s32.totalorder %v6508, %v6443
  %vm6525 = vcmp.eq.s32.totalorder %v6509, %v6443
  %vm6526 = vcmp.eq.s32.totalorder %v6510, %v6443
  %vm6527 = vcmp.eq.s32.totalorder %v6511, %v6443
  %vm6528 = vcmp.eq.s32.totalorder %v6512, %v6443
  %vm6529 = vcmp.eq.s32.totalorder %v6513, %v6443
  %vm6530 = vcmp.eq.s32.totalorder %v6514, %v6443
  %vm6531 = vcmp.eq.s32.totalorder %v6515, %v6443
  %vm6532 = vcmp.eq.s32.totalorder %v6516, %v6443
  %vm6533 = vcmp.eq.s32.totalorder %v6517, %v6443
  %vm6534 = vcmp.eq.s32.totalorder %v6518, %v6443
  %vm6535 = vcmp.eq.s32.totalorder %v6519, %v6443
  %vm6536 = vcmp.eq.s32.totalorder %v6520, %v6443
  %vm6537 = vcmp.eq.s32.totalorder %v6521, %v6443
  %vm6538 = vcmp.eq.s32.totalorder %v6522, %v6443
  %vm6539 = vcmp.eq.s32.totalorder %v6523, %v6443
  %vm6540 = vmand %vm6492, %vm6524
  %vm6541 = vmand %vm6493, %vm6525
  %vm6542 = vmand %vm6494, %vm6526
  %vm6543 = vmand %vm6495, %vm6527
  %vm6544 = vmand %vm6496, %vm6528
  %vm6545 = vmand %vm6497, %vm6529
  %vm6546 = vmand %vm6498, %vm6530
  %vm6547 = vmand %vm6499, %vm6531
  %vm6548 = vmand %vm6500, %vm6532
  %vm6549 = vmand %vm6501, %vm6533
  %vm6550 = vmand %vm6502, %vm6534
  %vm6551 = vmand %vm6503, %vm6535
  %vm6552 = vmand %vm6504, %vm6536
  %vm6553 = vmand %vm6505, %vm6537
  %vm6554 = vmand %vm6506, %vm6538
  %vm6555 = vmand %vm6507, %vm6539
  %v6556 = vsel %vm6540, 1.0, 0.0
  %v6557 = vsel %vm6541, 1.0, 0.0
  %v6558 = vsel %vm6542, 1.0, 0.0
  %v6559 = vsel %vm6543, 1.0, 0.0
  %v6560 = vsel %vm6544, 1.0, 0.0
  %v6561 = vsel %vm6545, 1.0, 0.0
  %v6562 = vsel %vm6546, 1.0, 0.0
  %v6563 = vsel %vm6547, 1.0, 0.0
  %v6564 = vsel %vm6548, 1.0, 0.0
  %v6565 = vsel %vm6549, 1.0, 0.0
  %v6566 = vsel %vm6550, 1.0, 0.0
  %v6567 = vsel %vm6551, 1.0, 0.0
  %v6568 = vsel %vm6552, 1.0, 0.0
  %v6569 = vsel %vm6553, 1.0, 0.0
  %v6570 = vsel %vm6554, 1.0, 0.0
  %v6571 = vsel %vm6555, 1.0, 0.0
  %v6573 = vsel %vm2271, %v6556, 0
  %v6576 = vsel %vm2271, %v6557, 0
  %v6579 = vsel %vm2271, %v6558, 0
  %v6582 = vsel %vm2271, %v6559, 0
  %v6585 = vsel %vm2271, %v6560, 0
  %v6588 = vsel %vm2271, %v6561, 0
  %v6591 = vsel %vm2271, %v6562, 0
  %v6594 = vsel %vm2271, %v6563, 0
  %v6597 = vsel %vm2271, %v6564, 0
  %v6600 = vsel %vm2271, %v6565, 0
  %v6603 = vsel %vm2271, %v6566, 0
  %v6606 = vsel %vm2271, %v6567, 0
  %v6609 = vsel %vm2271, %v6568, 0
  %v6612 = vsel %vm2271, %v6569, 0
  %v6615 = vsel %vm2271, %v6570, 0
  %v6618 = vsel %vm2271, %v6571, 0
  %6620 = vmatprep.subr.mxu0 0.0
  %6621 = vmatpush1.msra.mxu0 %v6420
  %6622 = vmatprep.subr.mxu0 0.0
  %6623 = vmatpush1.msra.mxu0 %v6421
  %6624 = vmatprep.subr.mxu0 0.0
  %6625 = vmatpush1.msra.mxu0 %v6422
  %6626 = vmatprep.subr.mxu0 0.0
  %6627 = vmatpush1.msra.mxu0 %v6423
  %6628 = vmatprep.subr.mxu0 0.0
  %6629 = vmatpush1.msra.mxu0 0.0
  %6630 = vmatprep.subr.mxu0 0.0
  %6631 = vmatpush1.msra.mxu0 0.0
  %6632 = vmatprep.subr.mxu0 0.0
  %6633 = vmatpush1.msra.mxu0 0.0
  %6634 = vmatprep.subr.mxu0 0.0
  %6635 = vmatpush1.msra.mxu0 0.0
  %6636 = vmatprep.subr.mxu0 0.0
  %6637 = vmatpush1.msra.mxu0 0.0
  %6638 = vmatprep.subr.mxu0 0.0
  %6639 = vmatpush1.msra.mxu0 0.0
  %6640 = vmatprep.subr.mxu0 0.0
  %6641 = vmatpush1.msra.mxu0 0.0
  %6642 = vmatprep.subr.mxu0 0.0
  %6643 = vmatpush1.msra.mxu0 0.0
  %6644 = vmatprep.subr.mxu0 0.0
  %6645 = vmatpush1.msra.mxu0 0.0
  %6646 = vmatprep.subr.mxu0 0.0
  %6647 = vmatpush1.msra.mxu0 0.0
  %6648 = vmatprep.subr.mxu0 0.0
  %6649 = vmatpush1.msra.mxu0 0.0
  %6650 = vmatprep.subr.mxu0 0.0
  %6651 = vmatpush1.msra.mxu0 0.0
  %6652 = vmatprep.subr.mxu0 0.0
  %6653 = vmatpush1.msra.mxu0 0.0
  %6654 = vmatprep.subr.mxu0 0.0
  %6655 = vmatpush1.msra.mxu0 0.0
  %6656 = vmatprep.subr.mxu0 0.0
  %6657 = vmatpush1.msra.mxu0 0.0
  %6658 = vmatprep.subr.mxu0 0.0
  %6659 = vmatpush1.msra.mxu0 0.0
  %6660 = vmatprep.subr.mxu0 0.0
  %6661 = vmatpush1.msra.mxu0 0.0
  %6662 = vmatprep.subr.mxu0 0.0
  %6663 = vmatpush1.msra.mxu0 0.0
  %6664 = vmatprep.subr.mxu0 0.0
  %6665 = vmatpush1.msra.mxu0 0.0
  %6666 = vmatprep.subr.mxu0 0.0
  %6667 = vmatpush1.msra.mxu0 0.0
  %6668 = vmatprep.subr.mxu0 0.0
  %6669 = vmatpush1.msra.mxu0 0.0
  %6670 = vmatprep.subr.mxu0 0.0
  %6671 = vmatpush1.msra.mxu0 0.0
  %6672 = vmatprep.subr.mxu0 0.0
  %6673 = vmatpush1.msra.mxu0 0.0
  %6674 = vmatprep.subr.mxu0 0.0
  %6675 = vmatpush1.msra.mxu0 0.0
  %6676 = vmatprep.subr.mxu0 0.0
  %6677 = vmatpush1.msra.mxu0 0.0
  %6678 = vmatprep.subr.mxu0 0.0
  %6679 = vmatpush1.msra.mxu0 0.0
  %6680 = vmatprep.subr.mxu0 0.0
  %6681 = vmatpush1.msra.mxu0 0.0
  %6682 = vmatprep.subr.mxu0 0.0
  %6683 = vmatpush1.msra.mxu0 0.0
  %6684 = vmatprep.mubr.f32.mxu0 0.0
  %6685 = vmatmul.mubr.f32.gmra.mrb[0].mxu0 %v6573
  %v6686 = vpop.f32.mrb[0].mxu0
  %v6687 = vadd.f32 0.0, %v6686
  %v6688 = vpop.f32.mrb[0].mxu0
  %6689 = vmatprep.mubr.f32.mxu0 0.0
  %6690 = vmatmul.mubr.f32.gmra.mrb[0].mxu0 %v6576
  %v6691 = vpop.f32.mrb[0].mxu0
  %v6692 = vadd.f32 0.0, %v6691
  %v6693 = vpop.f32.mrb[0].mxu0
  %6694 = vmatprep.mubr.f32.mxu0 0.0
  %6695 = vmatmul.mubr.f32.gmra.mrb[0].mxu0 %v6579
  %v6696 = vpop.f32.mrb[0].mxu0
  %v6697 = vadd.f32 0.0, %v6696
  %v6698 = vpop.f32.mrb[0].mxu0
  %6699 = vmatprep.mubr.f32.mxu0 0.0
  %6700 = vmatmul.mubr.f32.gmra.mrb[0].mxu0 %v6582
  %v6701 = vpop.f32.mrb[0].mxu0
  %v6702 = vadd.f32 0.0, %v6701
  %v6703 = vpop.f32.mrb[0].mxu0
  %6704 = vmatprep.mubr.f32.mxu0 0.0
  %6705 = vmatmul.mubr.f32.gmra.mrb[0].mxu0 %v6585
  %v6706 = vpop.f32.mrb[0].mxu0
  %v6707 = vadd.f32 0.0, %v6706
  %v6708 = vpop.f32.mrb[0].mxu0
  %6709 = vmatprep.mubr.f32.mxu0 0.0
  %6710 = vmatmul.mubr.f32.gmra.mrb[0].mxu0 %v6588
  %v6711 = vpop.f32.mrb[0].mxu0
  %v6712 = vadd.f32 0.0, %v6711
  %v6713 = vpop.f32.mrb[0].mxu0
  %6714 = vmatprep.mubr.f32.mxu0 0.0
  %6715 = vmatmul.mubr.f32.gmra.mrb[0].mxu0 %v6591
  %v6716 = vpop.f32.mrb[0].mxu0
  %v6717 = vadd.f32 0.0, %v6716
  %v6718 = vpop.f32.mrb[0].mxu0
  %6719 = vmatprep.mubr.f32.mxu0 0.0
  %6720 = vmatmul.mubr.f32.gmra.mrb[0].mxu0 %v6594
  %v6721 = vpop.f32.mrb[0].mxu0
  %v6722 = vadd.f32 0.0, %v6721
  %v6723 = vpop.f32.mrb[0].mxu0
  %6724 = vmatprep.mubr.f32.mxu0 0.0
  %6725 = vmatmul.mubr.f32.gmra.mrb[0].mxu0 %v6597
  %v6726 = vpop.f32.mrb[0].mxu0
  %v6727 = vadd.f32 0.0, %v6726
  %v6728 = vpop.f32.mrb[0].mxu0
  %6729 = vmatprep.mubr.f32.mxu0 0.0
  %6730 = vmatmul.mubr.f32.gmra.mrb[0].mxu0 %v6600
  %v6731 = vpop.f32.mrb[0].mxu0
  %v6732 = vadd.f32 0.0, %v6731
  %v6733 = vpop.f32.mrb[0].mxu0
  %6734 = vmatprep.mubr.f32.mxu0 0.0
  %6735 = vmatmul.mubr.f32.gmra.mrb[0].mxu0 %v6603
  %v6736 = vpop.f32.mrb[0].mxu0
  %v6737 = vadd.f32 0.0, %v6736
  %v6738 = vpop.f32.mrb[0].mxu0
  %6739 = vmatprep.mubr.f32.mxu0 0.0
  %6740 = vmatmul.mubr.f32.gmra.mrb[0].mxu0 %v6606
  %v6741 = vpop.f32.mrb[0].mxu0
  %v6742 = vadd.f32 0.0, %v6741
  %v6743 = vpop.f32.mrb[0].mxu0
  %6744 = vmatprep.mubr.f32.mxu0 0.0
  %6745 = vmatmul.mubr.f32.gmra.mrb[0].mxu0 %v6609
  %v6746 = vpop.f32.mrb[0].mxu0
  %v6747 = vadd.f32 0.0, %v6746
  %v6748 = vpop.f32.mrb[0].mxu0
  %6749 = vmatprep.mubr.f32.mxu0 0.0
  %6750 = vmatmul.mubr.f32.gmra.mrb[0].mxu0 %v6612
  %v6751 = vpop.f32.mrb[0].mxu0
  %v6752 = vadd.f32 0.0, %v6751
  %v6753 = vpop.f32.mrb[0].mxu0
  %6754 = vmatprep.mubr.f32.mxu0 0.0
  %6755 = vmatmul.mubr.f32.gmra.mrb[0].mxu0 %v6615
  %v6756 = vpop.f32.mrb[0].mxu0
  %v6757 = vadd.f32 0.0, %v6756
  %v6758 = vpop.f32.mrb[0].mxu0
  %6759 = vmatprep.mubr.f32.mxu0 0.0
  %6760 = vmatmul.mubr.f32.gmra.mrb[0].mxu0 %v6618
  %v6761 = vpop.f32.mrb[0].mxu0
  %v6762 = vadd.f32 0.0, %v6761
  %v6763 = vpop.f32.mrb[0].mxu0
  %6764 = vdwg.mxu0
  %v6765 = vld [vmem:[%s3 + $0x60] sm:$0xff]
  %v6766 = vld [vmem:[%s3 + $0x70] sm:$0xff]
  %v6767 = vld [vmem:[%s3 + $0x80] sm:$0xff]
  %v6768 = vld [vmem:[%s3 + $0x90] sm:$0xff]
  %v6770 = vsel %vm2271, %v2753, 0
  %v6773 = vsel %vm2271, %v2754, 0
  %v6776 = vsel %vm2271, %v2755, 0
  %v6779 = vsel %vm2271, %v2756, 0
  %v6782 = vsel %vm2271, %v2757, 0
  %v6785 = vsel %vm2271, %v2758, 0
  %v6788 = vsel %vm2271, %v2759, 0
  %v6791 = vsel %vm2271, %v2760, 0
  %v6794 = vsel %vm2271, %v2761, 0
  %v6797 = vsel %vm2271, %v2762, 0
  %v6800 = vsel %vm2271, %v2763, 0
  %v6803 = vsel %vm2271, %v2764, 0
  %v6806 = vsel %vm2271, %v2765, 0
  %v6809 = vsel %vm2271, %v2766, 0
  %v6812 = vsel %vm2271, %v2767, 0
  %v6815 = vsel %vm2271, %v2768, 0
  %6817 = vmatprep.subr.mxu0 0.0
  %6818 = vmatpush1.msra.mxu0 %v6765
  %6819 = vmatprep.subr.mxu0 0.0
  %6820 = vmatpush1.msra.mxu0 %v6766
  %6821 = vmatprep.subr.mxu0 0.0
  %6822 = vmatpush1.msra.mxu0 %v6767
  %6823 = vmatprep.subr.mxu0 0.0
  %6824 = vmatpush1.msra.mxu0 %v6768
  %6825 = vmatprep.subr.mxu0 0.0
  %6826 = vmatpush1.msra.mxu0 0.0
  %6827 = vmatprep.subr.mxu0 0.0
  %6828 = vmatpush1.msra.mxu0 0.0
  %6829 = vmatprep.subr.mxu0 0.0
  %6830 = vmatpush1.msra.mxu0 0.0
  %6831 = vmatprep.subr.mxu0 0.0
  %6832 = vmatpush1.msra.mxu0 0.0
  %6833 = vmatprep.subr.mxu0 0.0
  %6834 = vmatpush1.msra.mxu0 0.0
  %6835 = vmatprep.subr.mxu0 0.0
  %6836 = vmatpush1.msra.mxu0 0.0
  %6837 = vmatprep.subr.mxu0 0.0
  %6838 = vmatpush1.msra.mxu0 0.0
  %6839 = vmatprep.subr.mxu0 0.0
  %6840 = vmatpush1.msra.mxu0 0.0
  %6841 = vmatprep.subr.mxu0 0.0
  %6842 = vmatpush1.msra.mxu0 0.0
  %6843 = vmatprep.subr.mxu0 0.0
  %6844 = vmatpush1.msra.mxu0 0.0
  %6845 = vmatprep.subr.mxu0 0.0
  %6846 = vmatpush1.msra.mxu0 0.0
  %6847 = vmatprep.subr.mxu0 0.0
  %6848 = vmatpush1.msra.mxu0 0.0
  %6849 = vmatprep.subr.mxu0 0.0
  %6850 = vmatpush1.msra.mxu0 0.0
  %6851 = vmatprep.subr.mxu0 0.0
  %6852 = vmatpush1.msra.mxu0 0.0
  %6853 = vmatprep.subr.mxu0 0.0
  %6854 = vmatpush1.msra.mxu0 0.0
  %6855 = vmatprep.subr.mxu0 0.0
  %6856 = vmatpush1.msra.mxu0 0.0
  %6857 = vmatprep.subr.mxu0 0.0
  %6858 = vmatpush1.msra.mxu0 0.0
  %6859 = vmatprep.subr.mxu0 0.0
  %6860 = vmatpush1.msra.mxu0 0.0
  %6861 = vmatprep.subr.mxu0 0.0
  %6862 = vmatpush1.msra.mxu0 0.0
  %6863 = vmatprep.subr.mxu0 0.0
  %6864 = vmatpush1.msra.mxu0 0.0
  %6865 = vmatprep.subr.mxu0 0.0
  %6866 = vmatpush1.msra.mxu0 0.0
  %6867 = vmatprep.subr.mxu0 0.0
  %6868 = vmatpush1.msra.mxu0 0.0
  %6869 = vmatprep.subr.mxu0 0.0
  %6870 = vmatpush1.msra.mxu0 0.0
  %6871 = vmatprep.subr.mxu0 0.0
  %6872 = vmatpush1.msra.mxu0 0.0
  %6873 = vmatprep.subr.mxu0 0.0
  %6874 = vmatpush1.msra.mxu0 0.0
  %6875 = vmatprep.subr.mxu0 0.0
  %6876 = vmatpush1.msra.mxu0 0.0
  %6877 = vmatprep.subr.mxu0 0.0
  %6878 = vmatpush1.msra.mxu0 0.0
  %6879 = vmatprep.subr.mxu0 0.0
  %6880 = vmatpush1.msra.mxu0 0.0
  %6881 = vmatprep.mubr.f32.mxu0 0.0
  %6882 = vmatmul.mubr.f32.gmra.mrb[0].mxu0 %v6770
  %v6883 = vpop.f32.mrb[0].mxu0
  %v6884 = vadd.f32 0.0, %v6883
  %v6885 = vpop.f32.mrb[0].mxu0
  %6886 = vmatprep.mubr.f32.mxu0 0.0
  %6887 = vmatmul.mubr.f32.gmra.mrb[0].mxu0 %v6773
  %v6888 = vpop.f32.mrb[0].mxu0
  %v6889 = vadd.f32 0.0, %v6888
  %v6890 = vpop.f32.mrb[0].mxu0
  %6891 = vmatprep.mubr.f32.mxu0 0.0
  %6892 = vmatmul.mubr.f32.gmra.mrb[0].mxu0 %v6776
  %v6893 = vpop.f32.mrb[0].mxu0
  %v6894 = vadd.f32 0.0, %v6893
  %v6895 = vpop.f32.mrb[0].mxu0
  %6896 = vmatprep.mubr.f32.mxu0 0.0
  %6897 = vmatmul.mubr.f32.gmra.mrb[0].mxu0 %v6779
  %v6898 = vpop.f32.mrb[0].mxu0
  %v6899 = vadd.f32 0.0, %v6898
  %v6900 = vpop.f32.mrb[0].mxu0
  %6901 = vmatprep.mubr.f32.mxu0 0.0
  %6902 = vmatmul.mubr.f32.gmra.mrb[0].mxu0 %v6782
  %v6903 = vpop.f32.mrb[0].mxu0
  %v6904 = vadd.f32 0.0, %v6903
  %v6905 = vpop.f32.mrb[0].mxu0
  %6906 = vmatprep.mubr.f32.mxu0 0.0
  %6907 = vmatmul.mubr.f32.gmra.mrb[0].mxu0 %v6785
  %v6908 = vpop.f32.mrb[0].mxu0
  %v6909 = vadd.f32 0.0, %v6908
  %v6910 = vpop.f32.mrb[0].mxu0
  %6911 = vmatprep.mubr.f32.mxu0 0.0
  %6912 = vmatmul.mubr.f32.gmra.mrb[0].mxu0 %v6788
  %v6913 = vpop.f32.mrb[0].mxu0
  %v6914 = vadd.f32 0.0, %v6913
  %v6915 = vpop.f32.mrb[0].mxu0
  %6916 = vmatprep.mubr.f32.mxu0 0.0
  %6917 = vmatmul.mubr.f32.gmra.mrb[0].mxu0 %v6791
  %v6918 = vpop.f32.mrb[0].mxu0
  %v6919 = vadd.f32 0.0, %v6918
  %v6920 = vpop.f32.mrb[0].mxu0
  %6921 = vmatprep.mubr.f32.mxu0 0.0
  %6922 = vmatmul.mubr.f32.gmra.mrb[0].mxu0 %v6794
  %v6923 = vpop.f32.mrb[0].mxu0
  %v6924 = vadd.f32 0.0, %v6923
  %v6925 = vpop.f32.mrb[0].mxu0
  %6926 = vmatprep.mubr.f32.mxu0 0.0
  %6927 = vmatmul.mubr.f32.gmra.mrb[0].mxu0 %v6797
  %v6928 = vpop.f32.mrb[0].mxu0
  %v6929 = vadd.f32 0.0, %v6928
  %v6930 = vpop.f32.mrb[0].mxu0
  %6931 = vmatprep.mubr.f32.mxu0 0.0
  %6932 = vmatmul.mubr.f32.gmra.mrb[0].mxu0 %v6800
  %v6933 = vpop.f32.mrb[0].mxu0
  %v6934 = vadd.f32 0.0, %v6933
  %v6935 = vpop.f32.mrb[0].mxu0
  %6936 = vmatprep.mubr.f32.mxu0 0.0
  %6937 = vmatmul.mubr.f32.gmra.mrb[0].mxu0 %v6803
  %v6938 = vpop.f32.mrb[0].mxu0
  %v6939 = vadd.f32 0.0, %v6938
  %v6940 = vpop.f32.mrb[0].mxu0
  %6941 = vmatprep.mubr.f32.mxu0 0.0
  %6942 = vmatmul.mubr.f32.gmra.mrb[0].mxu0 %v6806
  %v6943 = vpop.f32.mrb[0].mxu0
  %v6944 = vadd.f32 0.0, %v6943
  %v6945 = vpop.f32.mrb[0].mxu0
  %6946 = vmatprep.mubr.f32.mxu0 0.0
  %6947 = vmatmul.mubr.f32.gmra.mrb[0].mxu0 %v6809
  %v6948 = vpop.f32.mrb[0].mxu0
  %v6949 = vadd.f32 0.0, %v6948
  %v6950 = vpop.f32.mrb[0].mxu0
  %6951 = vmatprep.mubr.f32.mxu0 0.0
  %6952 = vmatmul.mubr.f32.gmra.mrb[0].mxu0 %v6812
  %v6953 = vpop.f32.mrb[0].mxu0
  %v6954 = vadd.f32 0.0, %v6953
  %v6955 = vpop.f32.mrb[0].mxu0
  %6956 = vmatprep.mubr.f32.mxu0 0.0
  %6957 = vmatmul.mubr.f32.gmra.mrb[0].mxu0 %v6815
  %v6958 = vpop.f32.mrb[0].mxu0
  %v6959 = vadd.f32 0.0, %v6958
  %v6960 = vpop.f32.mrb[0].mxu0
  %6961 = vdwg.mxu0
  %v6962 = vld [vmem:[%s2 + $0x10] ss:$0 sm:$0xff]
  %v6963 = vld [vmem:[%s2 + $0x11] ss:$0 sm:$0xff]
  %v6964 = vsel %vm551, %v6884, 0.0
  %v6965 = vsel %vm551, %v6889, 0.0
  %v6966 = vadd.f32 %v6964, %v6965
  %v6967 = vsel %vm551, %v6894, 0.0
  %v6968 = vadd.f32 %v6966, %v6967
  %v6969 = vsel %vm551, %v6899, 0.0
  %v6970 = vadd.f32 %v6968, %v6969
  %v6971 = vsel %vm551, %v6904, 0.0
  %v6972 = vadd.f32 %v6970, %v6971
  %v6973 = vsel %vm551, %v6909, 0.0
  %v6974 = vadd.f32 %v6972, %v6973
  %v6975 = vsel %vm551, %v6914, 0.0
  %v6976 = vadd.f32 %v6974, %v6975
  %v6977 = vsel %vm551, %v6919, 0.0
  %v6978 = vadd.f32 %v6976, %v6977
  %v6979 = vsel %vm551, %v6924, 0.0
  %v6980 = vadd.f32 %v6978, %v6979
  %v6981 = vsel %vm551, %v6929, 0.0
  %v6982 = vadd.f32 %v6980, %v6981
  %v6983 = vsel %vm551, %v6934, 0.0
  %v6984 = vadd.f32 %v6982, %v6983
  %v6985 = vsel %vm551, %v6939, 0.0
  %v6986 = vadd.f32 %v6984, %v6985
  %v6987 = vsel %vm551, %v6944, 0.0
  %v6988 = vadd.f32 %v6986, %v6987
  %v6989 = vsel %vm551, %v6949, 0.0
  %v6990 = vadd.f32 %v6988, %v6989
  %v6991 = vsel %vm551, %v6954, 0.0
  %v6992 = vadd.f32 %v6990, %v6991
  %v6993 = vsel %vm551, %v6959, 0.0
  %v6994 = vadd.f32 %v6992, %v6993
  %v6995 = vrot.slane %v6994, 4
  %v6996 = vadd.f32 %v6994, %v6995
  %v6997 = vrot.slane %v6996, 2
  %v6998 = vadd.f32 %v6996, %v6997
  %v6999 = vrot.slane %v6998, 1
  %v7000 = vadd.f32 %v6998, %v6999
  %v7001 = vmul.f32 %v7000, %v589
  %v7002 = vsub.f32 %v6884, %v7001
  %v7003 = vsub.f32 %v6889, %v7001
  %v7004 = vsub.f32 %v6894, %v7001
  %v7005 = vsub.f32 %v6899, %v7001
  %v7006 = vsub.f32 %v6904, %v7001
  %v7007 = vsub.f32 %v6909, %v7001
  %v7008 = vsub.f32 %v6914, %v7001
  %v7009 = vsub.f32 %v6919, %v7001
  %v7010 = vsub.f32 %v6924, %v7001
  %v7011 = vsub.f32 %v6929, %v7001
  %v7012 = vsub.f32 %v6934, %v7001
  %v7013 = vsub.f32 %v6939, %v7001
  %v7014 = vsub.f32 %v6944, %v7001
  %v7015 = vsub.f32 %v6949, %v7001
  %v7016 = vsub.f32 %v6954, %v7001
  %v7017 = vsub.f32 %v6959, %v7001
  %v7018 = vmul.f32 %v7002, %v7002
  %v7019 = vmul.f32 %v7003, %v7003
  %v7020 = vmul.f32 %v7004, %v7004
  %v7021 = vmul.f32 %v7005, %v7005
  %v7022 = vmul.f32 %v7006, %v7006
  %v7023 = vmul.f32 %v7007, %v7007
  %v7024 = vmul.f32 %v7008, %v7008
  %v7025 = vmul.f32 %v7009, %v7009
  %v7026 = vmul.f32 %v7010, %v7010
  %v7027 = vmul.f32 %v7011, %v7011
  %v7028 = vmul.f32 %v7012, %v7012
  %v7029 = vmul.f32 %v7013, %v7013
  %v7030 = vmul.f32 %v7014, %v7014
  %v7031 = vmul.f32 %v7015, %v7015
  %v7032 = vmul.f32 %v7016, %v7016
  %v7033 = vmul.f32 %v7017, %v7017
  %v7034 = vsel %vm551, %v7018, 0.0
  %v7035 = vsel %vm551, %v7019, 0.0
  %v7036 = vadd.f32 %v7034, %v7035
  %v7037 = vsel %vm551, %v7020, 0.0
  %v7038 = vadd.f32 %v7036, %v7037
  %v7039 = vsel %vm551, %v7021, 0.0
  %v7040 = vadd.f32 %v7038, %v7039
  %v7041 = vsel %vm551, %v7022, 0.0
  %v7042 = vadd.f32 %v7040, %v7041
  %v7043 = vsel %vm551, %v7023, 0.0
  %v7044 = vadd.f32 %v7042, %v7043
  %v7045 = vsel %vm551, %v7024, 0.0
  %v7046 = vadd.f32 %v7044, %v7045
  %v7047 = vsel %vm551, %v7025, 0.0
  %v7048 = vadd.f32 %v7046, %v7047
  %v7049 = vsel %vm551, %v7026, 0.0
  %v7050 = vadd.f32 %v7048, %v7049
  %v7051 = vsel %vm551, %v7027, 0.0
  %v7052 = vadd.f32 %v7050, %v7051
  %v7053 = vsel %vm551, %v7028, 0.0
  %v7054 = vadd.f32 %v7052, %v7053
  %v7055 = vsel %vm551, %v7029, 0.0
  %v7056 = vadd.f32 %v7054, %v7055
  %v7057 = vsel %vm551, %v7030, 0.0
  %v7058 = vadd.f32 %v7056, %v7057
  %v7059 = vsel %vm551, %v7031, 0.0
  %v7060 = vadd.f32 %v7058, %v7059
  %v7061 = vsel %vm551, %v7032, 0.0
  %v7062 = vadd.f32 %v7060, %v7061
  %v7063 = vsel %vm551, %v7033, 0.0
  %v7064 = vadd.f32 %v7062, %v7063
  %v7065 = vrot.slane %v7064, 4
  %v7066 = vadd.f32 %v7064, %v7065
  %v7067 = vrot.slane %v7066, 2
  %v7068 = vadd.f32 %v7066, %v7067
  %v7069 = vrot.slane %v7068, 1
  %v7070 = vadd.f32 %v7068, %v7069
  %v7071 = vmul.f32 %v7070, %v589
  %v7072 = vadd.f32 %v7071, 1e-06
  %v7073 = vrsqrt.pop %v7072
  %v7074 = vmul.f32 %v7002, %v7073
  %v7075 = vmul.f32 %v7003, %v7073
  %v7076 = vmul.f32 %v7004, %v7073
  %v7077 = vmul.f32 %v7005, %v7073
  %v7078 = vmul.f32 %v7006, %v7073
  %v7079 = vmul.f32 %v7007, %v7073
  %v7080 = vmul.f32 %v7008, %v7073
  %v7081 = vmul.f32 %v7009, %v7073
  %v7082 = vmul.f32 %v7010, %v7073
  %v7083 = vmul.f32 %v7011, %v7073
  %v7084 = vmul.f32 %v7012, %v7073
  %v7085 = vmul.f32 %v7013, %v7073
  %v7086 = vmul.f32 %v7014, %v7073
  %v7087 = vmul.f32 %v7015, %v7073
  %v7088 = vmul.f32 %v7016, %v7073
  %v7089 = vmul.f32 %v7017, %v7073
  %v7090 = vmul.f32 %v7074, %v6962
  %v7091 = vmul.f32 %v7075, %v6962
  %v7092 = vmul.f32 %v7076, %v6962
  %v7093 = vmul.f32 %v7077, %v6962
  %v7094 = vmul.f32 %v7078, %v6962
  %v7095 = vmul.f32 %v7079, %v6962
  %v7096 = vmul.f32 %v7080, %v6962
  %v7097 = vmul.f32 %v7081, %v6962
  %v7098 = vmul.f32 %v7082, %v6962
  %v7099 = vmul.f32 %v7083, %v6962
  %v7100 = vmul.f32 %v7084, %v6962
  %v7101 = vmul.f32 %v7085, %v6962
  %v7102 = vmul.f32 %v7086, %v6962
  %v7103 = vmul.f32 %v7087, %v6962
  %v7104 = vmul.f32 %v7088, %v6962
  %v7105 = vmul.f32 %v7089, %v6962
  %v7106 = vadd.f32 %v7090, %v6963
  %v7107 = vadd.f32 %v7091, %v6963
  %v7108 = vadd.f32 %v7092, %v6963
  %v7109 = vadd.f32 %v7093, %v6963
  %v7110 = vadd.f32 %v7094, %v6963
  %v7111 = vadd.f32 %v7095, %v6963
  %v7112 = vadd.f32 %v7096, %v6963
  %v7113 = vadd.f32 %v7097, %v6963
  %v7114 = vadd.f32 %v7098, %v6963
  %v7115 = vadd.f32 %v7099, %v6963
  %v7116 = vadd.f32 %v7100, %v6963
  %v7117 = vadd.f32 %v7101, %v6963
  %v7118 = vadd.f32 %v7102, %v6963
  %v7119 = vadd.f32 %v7103, %v6963
  %v7120 = vadd.f32 %v7104, %v6963
  %v7121 = vadd.f32 %v7105, %v6963
  %v7122 = vmax.f32 %v7106, 0.0
  %v7123 = vmax.f32 %v7107, 0.0
  %v7124 = vmax.f32 %v7108, 0.0
  %v7125 = vmax.f32 %v7109, 0.0
  %v7126 = vmax.f32 %v7110, 0.0
  %v7127 = vmax.f32 %v7111, 0.0
  %v7128 = vmax.f32 %v7112, 0.0
  %v7129 = vmax.f32 %v7113, 0.0
  %v7130 = vmax.f32 %v7114, 0.0
  %v7131 = vmax.f32 %v7115, 0.0
  %v7132 = vmax.f32 %v7116, 0.0
  %v7133 = vmax.f32 %v7117, 0.0
  %v7134 = vmax.f32 %v7118, 0.0
  %v7135 = vmax.f32 %v7119, 0.0
  %v7136 = vmax.f32 %v7120, 0.0
  %v7137 = vmax.f32 %v7121, 0.0
  %v7138 = vadd.f32 %v7122, %v6687
  %v7139 = vadd.f32 %v7123, %v6692
  %v7140 = vadd.f32 %v7124, %v6697
  %v7141 = vadd.f32 %v7125, %v6702
  %v7142 = vadd.f32 %v7126, %v6707
  %v7143 = vadd.f32 %v7127, %v6712
  %v7144 = vadd.f32 %v7128, %v6717
  %v7145 = vadd.f32 %v7129, %v6722
  %v7146 = vadd.f32 %v7130, %v6727
  %v7147 = vadd.f32 %v7131, %v6732
  %v7148 = vadd.f32 %v7132, %v6737
  %v7149 = vadd.f32 %v7133, %v6742
  %v7150 = vadd.f32 %v7134, %v6747
  %v7151 = vadd.f32 %v7135, %v6752
  %v7152 = vadd.f32 %v7136, %v6757
  %v7153 = vadd.f32 %v7137, %v6762
  %v7154 = vld [vmem:[%s3 + $0xa0] sm:$0xff]
  %v7156 = vsel %vm551, %v7138, 0
  %v7159 = vsel %vm551, %v7139, 0
  %v7162 = vsel %vm551, %v7140, 0
  %v7165 = vsel %vm551, %v7141, 0
  %v7168 = vsel %vm551, %v7142, 0
  %v7171 = vsel %vm551, %v7143, 0
  %v7174 = vsel %vm551, %v7144, 0
  %v7177 = vsel %vm551, %v7145, 0
  %v7180 = vsel %vm551, %v7146, 0
  %v7183 = vsel %vm551, %v7147, 0
  %v7186 = vsel %vm551, %v7148, 0
  %v7189 = vsel %vm551, %v7149, 0
  %v7192 = vsel %vm551, %v7150, 0
  %v7195 = vsel %vm551, %v7151, 0
  %v7198 = vsel %vm551, %v7152, 0
  %v7201 = vsel %vm551, %v7153, 0
  %7203 = vmatprep.subr.mxu0 0.0
  %7204 = vmatpush1.msra.mxu0 %v7154
  %7205 = vmatprep.subr.mxu0 0.0
  %7206 = vmatpush1.msra.mxu0 0.0
  %7207 = vmatprep.subr.mxu0 0.0
  %7208 = vmatpush1.msra.mxu0 0.0
  %7209 = vmatprep.subr.mxu0 0.0
  %7210 = vmatpush1.msra.mxu0 0.0
  %7211 = vmatprep.subr.mxu0 0.0
  %7212 = vmatpush1.msra.mxu0 0.0
  %7213 = vmatprep.subr.mxu0 0.0
  %7214 = vmatpush1.msra.mxu0 0.0
  %7215 = vmatprep.subr.mxu0 0.0
  %7216 = vmatpush1.msra.mxu0 0.0
  %7217 = vmatprep.subr.mxu0 0.0
  %7218 = vmatpush1.msra.mxu0 0.0
  %7219 = vmatprep.subr.mxu0 0.0
  %7220 = vmatpush1.msra.mxu0 0.0
  %7221 = vmatprep.subr.mxu0 0.0
  %7222 = vmatpush1.msra.mxu0 0.0
  %7223 = vmatprep.subr.mxu0 0.0
  %7224 = vmatpush1.msra.mxu0 0.0
  %7225 = vmatprep.subr.mxu0 0.0
  %7226 = vmatpush1.msra.mxu0 0.0
  %7227 = vmatprep.subr.mxu0 0.0
  %7228 = vmatpush1.msra.mxu0 0.0
  %7229 = vmatprep.subr.mxu0 0.0
  %7230 = vmatpush1.msra.mxu0 0.0
  %7231 = vmatprep.subr.mxu0 0.0
  %7232 = vmatpush1.msra.mxu0 0.0
  %7233 = vmatprep.subr.mxu0 0.0
  %7234 = vmatpush1.msra.mxu0 0.0
  %7235 = vmatprep.subr.mxu0 0.0
  %7236 = vmatpush1.msra.mxu0 0.0
  %7237 = vmatprep.subr.mxu0 0.0
  %7238 = vmatpush1.msra.mxu0 0.0
  %7239 = vmatprep.subr.mxu0 0.0
  %7240 = vmatpush1.msra.mxu0 0.0
  %7241 = vmatprep.subr.mxu0 0.0
  %7242 = vmatpush1.msra.mxu0 0.0
  %7243 = vmatprep.subr.mxu0 0.0
  %7244 = vmatpush1.msra.mxu0 0.0
  %7245 = vmatprep.subr.mxu0 0.0
  %7246 = vmatpush1.msra.mxu0 0.0
  %7247 = vmatprep.subr.mxu0 0.0
  %7248 = vmatpush1.msra.mxu0 0.0
  %7249 = vmatprep.subr.mxu0 0.0
  %7250 = vmatpush1.msra.mxu0 0.0
  %7251 = vmatprep.subr.mxu0 0.0
  %7252 = vmatpush1.msra.mxu0 0.0
  %7253 = vmatprep.subr.mxu0 0.0
  %7254 = vmatpush1.msra.mxu0 0.0
  %7255 = vmatprep.subr.mxu0 0.0
  %7256 = vmatpush1.msra.mxu0 0.0
  %7257 = vmatprep.subr.mxu0 0.0
  %7258 = vmatpush1.msra.mxu0 0.0
  %7259 = vmatprep.subr.mxu0 0.0
  %7260 = vmatpush1.msra.mxu0 0.0
  %7261 = vmatprep.subr.mxu0 0.0
  %7262 = vmatpush1.msra.mxu0 0.0
  %7263 = vmatprep.subr.mxu0 0.0
  %7264 = vmatpush1.msra.mxu0 0.0
  %7265 = vmatprep.subr.mxu0 0.0
  %7266 = vmatpush1.msra.mxu0 0.0
  %7267 = vmatprep.mubr.f32.mxu0 0.0
  %7268 = vmatmul.mubr.f32.gmra.mrb[0].mxu0 %v7156
  %v7269 = vpop.f32.mrb[0].mxu0
  %v7270 = vadd.f32 0.0, %v7269
  %v7271 = vpop.f32.mrb[0].mxu0
  %7272 = vmatprep.mubr.f32.mxu0 0.0
  %7273 = vmatmul.mubr.f32.gmra.mrb[0].mxu0 %v7159
  %v7274 = vpop.f32.mrb[0].mxu0
  %v7275 = vadd.f32 0.0, %v7274
  %v7276 = vpop.f32.mrb[0].mxu0
  %7277 = vmatprep.mubr.f32.mxu0 0.0
  %7278 = vmatmul.mubr.f32.gmra.mrb[0].mxu0 %v7162
  %v7279 = vpop.f32.mrb[0].mxu0
  %v7280 = vadd.f32 0.0, %v7279
  %v7281 = vpop.f32.mrb[0].mxu0
  %7282 = vmatprep.mubr.f32.mxu0 0.0
  %7283 = vmatmul.mubr.f32.gmra.mrb[0].mxu0 %v7165
  %v7284 = vpop.f32.mrb[0].mxu0
  %v7285 = vadd.f32 0.0, %v7284
  %v7286 = vpop.f32.mrb[0].mxu0
  %7287 = vmatprep.mubr.f32.mxu0 0.0
  %7288 = vmatmul.mubr.f32.gmra.mrb[0].mxu0 %v7168
  %v7289 = vpop.f32.mrb[0].mxu0
  %v7290 = vadd.f32 0.0, %v7289
  %v7291 = vpop.f32.mrb[0].mxu0
  %7292 = vmatprep.mubr.f32.mxu0 0.0
  %7293 = vmatmul.mubr.f32.gmra.mrb[0].mxu0 %v7171
  %v7294 = vpop.f32.mrb[0].mxu0
  %v7295 = vadd.f32 0.0, %v7294
  %v7296 = vpop.f32.mrb[0].mxu0
  %7297 = vmatprep.mubr.f32.mxu0 0.0
  %7298 = vmatmul.mubr.f32.gmra.mrb[0].mxu0 %v7174
  %v7299 = vpop.f32.mrb[0].mxu0
  %v7300 = vadd.f32 0.0, %v7299
  %v7301 = vpop.f32.mrb[0].mxu0
  %7302 = vmatprep.mubr.f32.mxu0 0.0
  %7303 = vmatmul.mubr.f32.gmra.mrb[0].mxu0 %v7177
  %v7304 = vpop.f32.mrb[0].mxu0
  %v7305 = vadd.f32 0.0, %v7304
  %v7306 = vpop.f32.mrb[0].mxu0
  %7307 = vmatprep.mubr.f32.mxu0 0.0
  %7308 = vmatmul.mubr.f32.gmra.mrb[0].mxu0 %v7180
  %v7309 = vpop.f32.mrb[0].mxu0
  %v7310 = vadd.f32 0.0, %v7309
  %v7311 = vpop.f32.mrb[0].mxu0
  %7312 = vmatprep.mubr.f32.mxu0 0.0
  %7313 = vmatmul.mubr.f32.gmra.mrb[0].mxu0 %v7183
  %v7314 = vpop.f32.mrb[0].mxu0
  %v7315 = vadd.f32 0.0, %v7314
  %v7316 = vpop.f32.mrb[0].mxu0
  %7317 = vmatprep.mubr.f32.mxu0 0.0
  %7318 = vmatmul.mubr.f32.gmra.mrb[0].mxu0 %v7186
  %v7319 = vpop.f32.mrb[0].mxu0
  %v7320 = vadd.f32 0.0, %v7319
  %v7321 = vpop.f32.mrb[0].mxu0
  %7322 = vmatprep.mubr.f32.mxu0 0.0
  %7323 = vmatmul.mubr.f32.gmra.mrb[0].mxu0 %v7189
  %v7324 = vpop.f32.mrb[0].mxu0
  %v7325 = vadd.f32 0.0, %v7324
  %v7326 = vpop.f32.mrb[0].mxu0
  %7327 = vmatprep.mubr.f32.mxu0 0.0
  %7328 = vmatmul.mubr.f32.gmra.mrb[0].mxu0 %v7192
  %v7329 = vpop.f32.mrb[0].mxu0
  %v7330 = vadd.f32 0.0, %v7329
  %v7331 = vpop.f32.mrb[0].mxu0
  %7332 = vmatprep.mubr.f32.mxu0 0.0
  %7333 = vmatmul.mubr.f32.gmra.mrb[0].mxu0 %v7195
  %v7334 = vpop.f32.mrb[0].mxu0
  %v7335 = vadd.f32 0.0, %v7334
  %v7336 = vpop.f32.mrb[0].mxu0
  %7337 = vmatprep.mubr.f32.mxu0 0.0
  %7338 = vmatmul.mubr.f32.gmra.mrb[0].mxu0 %v7198
  %v7339 = vpop.f32.mrb[0].mxu0
  %v7340 = vadd.f32 0.0, %v7339
  %v7341 = vpop.f32.mrb[0].mxu0
  %7342 = vmatprep.mubr.f32.mxu0 0.0
  %7343 = vmatmul.mubr.f32.gmra.mrb[0].mxu0 %v7201
  %v7344 = vpop.f32.mrb[0].mxu0
  %v7345 = vadd.f32 0.0, %v7344
  %v7346 = vpop.f32.mrb[0].mxu0
  %7347 = vdwg.mxu0
  %v7348 = vrot.slane %v7270, 7
  %v7349 = vrot.slane %v7275, 7
  %v7350 = vrot.slane %v7280, 7
  %v7351 = vrot.slane %v7285, 7
  %v7352 = vrot.slane %v7290, 7
  %v7353 = vrot.slane %v7295, 7
  %v7354 = vrot.slane %v7300, 7
  %v7355 = vrot.slane %v7305, 7
  %v7356 = vrot.slane %v7310, 7
  %v7357 = vrot.slane %v7315, 7
  %v7358 = vrot.slane %v7320, 7
  %v7359 = vrot.slane %v7325, 7
  %v7360 = vrot.slane %v7330, 7
  %v7361 = vrot.slane %v7335, 7
  %v7362 = vrot.slane %v7340, 7
  %v7363 = vrot.slane %v7345, 7
  %v7364 = vsel %vm937, %v7362, %v7363
  %v7365 = vsel %vm937, %v7361, %v7362
  %v7366 = vsel %vm937, %v7360, %v7361
  %v7367 = vsel %vm937, %v7359, %v7360
  %v7368 = vsel %vm937, %v7358, %v7359
  %v7369 = vsel %vm937, %v7357, %v7358
  %v7370 = vsel %vm937, %v7356, %v7357
  %v7371 = vsel %vm937, %v7355, %v7356
  %v7372 = vsel %vm937, %v7354, %v7355
  %v7373 = vsel %vm937, %v7353, %v7354
  %v7374 = vsel %vm937, %v7352, %v7353
  %v7375 = vsel %vm937, %v7351, %v7352
  %v7376 = vsel %vm937, %v7350, %v7351
  %v7377 = vsel %vm937, %v7349, %v7350
  %v7378 = vsel %vm937, %v7348, %v7349
  %v7379 = vsel %vm937, %v7363, %v7348
  %v7380 = vsel %vm986, %v7364, 0.0
  %v7381 = vsel %vm987, %v7379, 0.0
  %v7382 = vsel %vm988, %v7378, 0.0
  %v7383 = vsel %vm989, %v7377, 0.0
  %v7384 = vsel %vm990, %v7376, 0.0
  %v7385 = vsel %vm991, %v7375, 0.0
  %v7386 = vsel %vm992, %v7374, 0.0
  %v7387 = vsel %vm993, %v7373, 0.0
  %v7388 = vsel %vm994, %v7372, 0.0
  %v7389 = vsel %vm995, %v7371, 0.0
  %v7390 = vsel %vm996, %v7370, 0.0
  %v7391 = vsel %vm997, %v7369, 0.0
  %v7392 = vsel %vm998, %v7368, 0.0
  %v7393 = vsel %vm999, %v7367, 0.0
  %v7394 = vsel %vm1000, %v7366, 0.0
  %v7395 = vsel %vm1001, %v7365, 0.0
  %7412 = vrot.lane.b32.xlu0 %v7270, 120
  %v7413 = vpop.permute.xlu0 %7412
  %7414 = vrot.lane.b32.xlu0 %v7275, 120
  %v7415 = vpop.permute.xlu0 %7414
  %7416 = vrot.lane.b32.xlu0 %v7280, 120
  %v7417 = vpop.permute.xlu0 %7416
  %7418 = vrot.lane.b32.xlu0 %v7285, 120
  %v7419 = vpop.permute.xlu0 %7418
  %7420 = vrot.lane.b32.xlu0 %v7290, 120
  %v7421 = vpop.permute.xlu0 %7420
  %7422 = vrot.lane.b32.xlu0 %v7295, 120
  %v7423 = vpop.permute.xlu0 %7422
  %7424 = vrot.lane.b32.xlu0 %v7300, 120
  %v7425 = vpop.permute.xlu0 %7424
  %7426 = vrot.lane.b32.xlu0 %v7305, 120
  %v7427 = vpop.permute.xlu0 %7426
  %7428 = vrot.lane.b32.xlu0 %v7310, 120
  %v7429 = vpop.permute.xlu0 %7428
  %7430 = vrot.lane.b32.xlu0 %v7315, 120
  %v7431 = vpop.permute.xlu0 %7430
  %7432 = vrot.lane.b32.xlu0 %v7320, 120
  %v7433 = vpop.permute.xlu0 %7432
  %7434 = vrot.lane.b32.xlu0 %v7325, 120
  %v7435 = vpop.permute.xlu0 %7434
  %7436 = vrot.lane.b32.xlu0 %v7330, 120
  %v7437 = vpop.permute.xlu0 %7436
  %7438 = vrot.lane.b32.xlu0 %v7335, 120
  %v7439 = vpop.permute.xlu0 %7438
  %7440 = vrot.lane.b32.xlu0 %v7340, 120
  %v7441 = vpop.permute.xlu0 %7440
  %7442 = vrot.lane.b32.xlu0 %v7345, 120
  %v7443 = vpop.permute.xlu0 %7442
  %v7460 = vsel %vm954, %v7443, 0.0
  %v7461 = vsel %vm955, %v7413, 0.0
  %v7462 = vsel %vm956, %v7415, 0.0
  %v7463 = vsel %vm957, %v7417, 0.0
  %v7464 = vsel %vm958, %v7419, 0.0
  %v7465 = vsel %vm959, %v7421, 0.0
  %v7466 = vsel %vm960, %v7423, 0.0
  %v7467 = vsel %vm961, %v7425, 0.0
  %v7468 = vsel %vm962, %v7427, 0.0
  %v7469 = vsel %vm963, %v7429, 0.0
  %v7470 = vsel %vm964, %v7431, 0.0
  %v7471 = vsel %vm965, %v7433, 0.0
  %v7472 = vsel %vm966, %v7435, 0.0
  %v7473 = vsel %vm967, %v7437, 0.0
  %v7474 = vsel %vm968, %v7439, 0.0
  %v7475 = vsel %vm969, %v7441, 0.0
  %v7476 = vadd.f32 %v7380, %v7460
  %v7477 = vadd.f32 %v7381, %v7461
  %v7478 = vadd.f32 %v7382, %v7462
  %v7479 = vadd.f32 %v7383, %v7463
  %v7480 = vadd.f32 %v7384, %v7464
  %v7481 = vadd.f32 %v7385, %v7465
  %v7482 = vadd.f32 %v7386, %v7466
  %v7483 = vadd.f32 %v7387, %v7467
  %v7484 = vadd.f32 %v7388, %v7468
  %v7485 = vadd.f32 %v7389, %v7469
  %v7486 = vadd.f32 %v7390, %v7470
  %v7487 = vadd.f32 %v7391, %v7471
  %v7488 = vadd.f32 %v7392, %v7472
  %v7489 = vadd.f32 %v7393, %v7473
  %v7490 = vadd.f32 %v7394, %v7474
  %v7491 = vadd.f32 %v7395, %v7475
  %7492 = vrot.lane.b32.xlu0 %v7270, 112
  %v7493 = vpop.permute.xlu0 %7492
  %7494 = vrot.lane.b32.xlu0 %v7275, 112
  %v7495 = vpop.permute.xlu0 %7494
  %7496 = vrot.lane.b32.xlu0 %v7280, 112
  %v7497 = vpop.permute.xlu0 %7496
  %7498 = vrot.lane.b32.xlu0 %v7285, 112
  %v7499 = vpop.permute.xlu0 %7498
  %7500 = vrot.lane.b32.xlu0 %v7290, 112
  %v7501 = vpop.permute.xlu0 %7500
  %7502 = vrot.lane.b32.xlu0 %v7295, 112
  %v7503 = vpop.permute.xlu0 %7502
  %7504 = vrot.lane.b32.xlu0 %v7300, 112
  %v7505 = vpop.permute.xlu0 %7504
  %7506 = vrot.lane.b32.xlu0 %v7305, 112
  %v7507 = vpop.permute.xlu0 %7506
  %7508 = vrot.lane.b32.xlu0 %v7310, 112
  %v7509 = vpop.permute.xlu0 %7508
  %7510 = vrot.lane.b32.xlu0 %v7315, 112
  %v7511 = vpop.permute.xlu0 %7510
  %7512 = vrot.lane.b32.xlu0 %v7320, 112
  %v7513 = vpop.permute.xlu0 %7512
  %7514 = vrot.lane.b32.xlu0 %v7325, 112
  %v7515 = vpop.permute.xlu0 %7514
  %7516 = vrot.lane.b32.xlu0 %v7330, 112
  %v7517 = vpop.permute.xlu0 %7516
  %7518 = vrot.lane.b32.xlu0 %v7335, 112
  %v7519 = vpop.permute.xlu0 %7518
  %7520 = vrot.lane.b32.xlu0 %v7340, 112
  %v7521 = vpop.permute.xlu0 %7520
  %7522 = vrot.lane.b32.xlu0 %v7345, 112
  %v7523 = vpop.permute.xlu0 %7522
  %v7540 = vrot.slane %v7493, 1
  %v7541 = vrot.slane %v7495, 1
  %v7542 = vrot.slane %v7497, 1
  %v7543 = vrot.slane %v7499, 1
  %v7544 = vrot.slane %v7501, 1
  %v7545 = vrot.slane %v7503, 1
  %v7546 = vrot.slane %v7505, 1
  %v7547 = vrot.slane %v7507, 1
  %v7548 = vrot.slane %v7509, 1
  %v7549 = vrot.slane %v7511, 1
  %v7550 = vrot.slane %v7513, 1
  %v7551 = vrot.slane %v7515, 1
  %v7552 = vrot.slane %v7517, 1
  %v7553 = vrot.slane %v7519, 1
  %v7554 = vrot.slane %v7521, 1
  %v7555 = vrot.slane %v7523, 1
  %v7556 = vsel %vm1178, %v7554, %v7555
  %v7557 = vsel %vm1178, %v7553, %v7554
  %v7558 = vsel %vm1178, %v7552, %v7553
  %v7559 = vsel %vm1178, %v7551, %v7552
  %v7560 = vsel %vm1178, %v7550, %v7551
  %v7561 = vsel %vm1178, %v7549, %v7550
  %v7562 = vsel %vm1178, %v7548, %v7549
  %v7563 = vsel %vm1178, %v7547, %v7548
  %v7564 = vsel %vm1178, %v7546, %v7547
  %v7565 = vsel %vm1178, %v7545, %v7546
  %v7566 = vsel %vm1178, %v7544, %v7545
  %v7567 = vsel %vm1178, %v7543, %v7544
  %v7568 = vsel %vm1178, %v7542, %v7543
  %v7569 = vsel %vm1178, %v7541, %v7542
  %v7570 = vsel %vm1178, %v7540, %v7541
  %v7571 = vsel %vm1178, %v7555, %v7540
  %v7572 = vsel %vm1211, %v7571, 0.0
  %v7573 = vsel %vm1212, %v7570, 0.0
  %v7574 = vsel %vm1213, %v7569, 0.0
  %v7575 = vsel %vm1214, %v7568, 0.0
  %v7576 = vsel %vm1215, %v7567, 0.0
  %v7577 = vsel %vm1216, %v7566, 0.0
  %v7578 = vsel %vm1217, %v7565, 0.0
  %v7579 = vsel %vm1218, %v7564, 0.0
  %v7580 = vsel %vm1219, %v7563, 0.0
  %v7581 = vsel %vm1220, %v7562, 0.0
  %v7582 = vsel %vm1221, %v7561, 0.0
  %v7583 = vsel %vm1222, %v7560, 0.0
  %v7584 = vsel %vm1223, %v7559, 0.0
  %v7585 = vsel %vm1224, %v7558, 0.0
  %v7586 = vsel %vm1225, %v7557, 0.0
  %v7587 = vsel %vm1226, %v7556, 0.0
  %v7588 = vadd.f32 %v7476, %v7572
  %v7589 = vadd.f32 %v7477, %v7573
  %v7590 = vadd.f32 %v7478, %v7574
  %v7591 = vadd.f32 %v7479, %v7575
  %v7592 = vadd.f32 %v7480, %v7576
  %v7593 = vadd.f32 %v7481, %v7577
  %v7594 = vadd.f32 %v7482, %v7578
  %v7595 = vadd.f32 %v7483, %v7579
  %v7596 = vadd.f32 %v7484, %v7580
  %v7597 = vadd.f32 %v7485, %v7581
  %v7598 = vadd.f32 %v7486, %v7582
  %v7599 = vadd.f32 %v7487, %v7583
  %v7600 = vadd.f32 %v7488, %v7584
  %v7601 = vadd.f32 %v7489, %v7585
  %v7602 = vadd.f32 %v7490, %v7586
  %v7603 = vadd.f32 %v7491, %v7587
  %7604 = vrot.lane.b32.xlu0 %v7270, 104
  %v7605 = vpop.permute.xlu0 %7604
  %7606 = vrot.lane.b32.xlu0 %v7275, 104
  %v7607 = vpop.permute.xlu0 %7606
  %7608 = vrot.lane.b32.xlu0 %v7280, 104
  %v7609 = vpop.permute.xlu0 %7608
  %7610 = vrot.lane.b32.xlu0 %v7285, 104
  %v7611 = vpop.permute.xlu0 %7610
  %7612 = vrot.lane.b32.xlu0 %v7290, 104
  %v7613 = vpop.permute.xlu0 %7612
  %7614 = vrot.lane.b32.xlu0 %v7295, 104
  %v7615 = vpop.permute.xlu0 %7614
  %7616 = vrot.lane.b32.xlu0 %v7300, 104
  %v7617 = vpop.permute.xlu0 %7616
  %7618 = vrot.lane.b32.xlu0 %v7305, 104
  %v7619 = vpop.permute.xlu0 %7618
  %7620 = vrot.lane.b32.xlu0 %v7310, 104
  %v7621 = vpop.permute.xlu0 %7620
  %7622 = vrot.lane.b32.xlu0 %v7315, 104
  %v7623 = vpop.permute.xlu0 %7622
  %7624 = vrot.lane.b32.xlu0 %v7320, 104
  %v7625 = vpop.permute.xlu0 %7624
  %7626 = vrot.lane.b32.xlu0 %v7325, 104
  %v7627 = vpop.permute.xlu0 %7626
  %7628 = vrot.lane.b32.xlu0 %v7330, 104
  %v7629 = vpop.permute.xlu0 %7628
  %7630 = vrot.lane.b32.xlu0 %v7335, 104
  %v7631 = vpop.permute.xlu0 %7630
  %7632 = vrot.lane.b32.xlu0 %v7340, 104
  %v7633 = vpop.permute.xlu0 %7632
  %7634 = vrot.lane.b32.xlu0 %v7345, 104
  %v7635 = vpop.permute.xlu0 %7634
  %v7652 = vrot.slane %v7605, 7
  %v7653 = vrot.slane %v7607, 7
  %v7654 = vrot.slane %v7609, 7
  %v7655 = vrot.slane %v7611, 7
  %v7656 = vrot.slane %v7613, 7
  %v7657 = vrot.slane %v7615, 7
  %v7658 = vrot.slane %v7617, 7
  %v7659 = vrot.slane %v7619, 7
  %v7660 = vrot.slane %v7621, 7
  %v7661 = vrot.slane %v7623, 7
  %v7662 = vrot.slane %v7625, 7
  %v7663 = vrot.slane %v7627, 7
  %v7664 = vrot.slane %v7629, 7
  %v7665 = vrot.slane %v7631, 7
  %v7666 = vrot.slane %v7633, 7
  %v7667 = vrot.slane %v7635, 7
  %v7668 = vsel %vm937, %v7666, %v7667
  %v7669 = vsel %vm937, %v7665, %v7666
  %v7670 = vsel %vm937, %v7664, %v7665
  %v7671 = vsel %vm937, %v7663, %v7664
  %v7672 = vsel %vm937, %v7662, %v7663
  %v7673 = vsel %vm937, %v7661, %v7662
  %v7674 = vsel %vm937, %v7660, %v7661
  %v7675 = vsel %vm937, %v7659, %v7660
  %v7676 = vsel %vm937, %v7658, %v7659
  %v7677 = vsel %vm937, %v7657, %v7658
  %v7678 = vsel %vm937, %v7656, %v7657
  %v7679 = vsel %vm937, %v7655, %v7656
  %v7680 = vsel %vm937, %v7654, %v7655
  %v7681 = vsel %vm937, %v7653, %v7654
  %v7682 = vsel %vm937, %v7652, %v7653
  %v7683 = vsel %vm937, %v7667, %v7652
  %v7684 = vsel %vm970, %v7683, 0.0
  %v7685 = vsel %vm971, %v7682, 0.0
  %v7686 = vsel %vm972, %v7681, 0.0
  %v7687 = vsel %vm973, %v7680, 0.0
  %v7688 = vsel %vm974, %v7679, 0.0
  %v7689 = vsel %vm975, %v7678, 0.0
  %v7690 = vsel %vm976, %v7677, 0.0
  %v7691 = vsel %vm977, %v7676, 0.0
  %v7692 = vsel %vm978, %v7675, 0.0
  %v7693 = vsel %vm979, %v7674, 0.0
  %v7694 = vsel %vm980, %v7673, 0.0
  %v7695 = vsel %vm981, %v7672, 0.0
  %v7696 = vsel %vm982, %v7671, 0.0
  %v7697 = vsel %vm983, %v7670, 0.0
  %v7698 = vsel %vm984, %v7669, 0.0
  %v7699 = vsel %vm985, %v7668, 0.0
  %v7700 = vadd.f32 %v7588, %v7684
  %v7701 = vadd.f32 %v7589, %v7685
  %v7702 = vadd.f32 %v7590, %v7686
  %v7703 = vadd.f32 %v7591, %v7687
  %v7704 = vadd.f32 %v7592, %v7688
  %v7705 = vadd.f32 %v7593, %v7689
  %v7706 = vadd.f32 %v7594, %v7690
  %v7707 = vadd.f32 %v7595, %v7691
  %v7708 = vadd.f32 %v7596, %v7692
  %v7709 = vadd.f32 %v7597, %v7693
  %v7710 = vadd.f32 %v7598, %v7694
  %v7711 = vadd.f32 %v7599, %v7695
  %v7712 = vadd.f32 %v7600, %v7696
  %v7713 = vadd.f32 %v7601, %v7697
  %v7714 = vadd.f32 %v7602, %v7698
  %v7715 = vadd.f32 %v7603, %v7699
  %7716 = vrot.lane.b32.xlu0 %v7270, 96
  %v7717 = vpop.permute.xlu0 %7716
  %7718 = vrot.lane.b32.xlu0 %v7275, 96
  %v7719 = vpop.permute.xlu0 %7718
  %7720 = vrot.lane.b32.xlu0 %v7280, 96
  %v7721 = vpop.permute.xlu0 %7720
  %7722 = vrot.lane.b32.xlu0 %v7285, 96
  %v7723 = vpop.permute.xlu0 %7722
  %7724 = vrot.lane.b32.xlu0 %v7290, 96
  %v7725 = vpop.permute.xlu0 %7724
  %7726 = vrot.lane.b32.xlu0 %v7295, 96
  %v7727 = vpop.permute.xlu0 %7726
  %7728 = vrot.lane.b32.xlu0 %v7300, 96
  %v7729 = vpop.permute.xlu0 %7728
  %7730 = vrot.lane.b32.xlu0 %v7305, 96
  %v7731 = vpop.permute.xlu0 %7730
  %7732 = vrot.lane.b32.xlu0 %v7310, 96
  %v7733 = vpop.permute.xlu0 %7732
  %7734 = vrot.lane.b32.xlu0 %v7315, 96
  %v7735 = vpop.permute.xlu0 %7734
  %7736 = vrot.lane.b32.xlu0 %v7320, 96
  %v7737 = vpop.permute.xlu0 %7736
  %7738 = vrot.lane.b32.xlu0 %v7325, 96
  %v7739 = vpop.permute.xlu0 %7738
  %7740 = vrot.lane.b32.xlu0 %v7330, 96
  %v7741 = vpop.permute.xlu0 %7740
  %7742 = vrot.lane.b32.xlu0 %v7335, 96
  %v7743 = vpop.permute.xlu0 %7742
  %7744 = vrot.lane.b32.xlu0 %v7340, 96
  %v7745 = vpop.permute.xlu0 %7744
  %7746 = vrot.lane.b32.xlu0 %v7345, 96
  %v7747 = vpop.permute.xlu0 %7746
  %v7764 = vadd.f32 %v7700, %v7717
  %v7765 = vadd.f32 %v7701, %v7719
  %v7766 = vadd.f32 %v7702, %v7721
  %v7767 = vadd.f32 %v7703, %v7723
  %v7768 = vadd.f32 %v7704, %v7725
  %v7769 = vadd.f32 %v7705, %v7727
  %v7770 = vadd.f32 %v7706, %v7729
  %v7771 = vadd.f32 %v7707, %v7731
  %v7772 = vadd.f32 %v7708, %v7733
  %v7773 = vadd.f32 %v7709, %v7735
  %v7774 = vadd.f32 %v7710, %v7737
  %v7775 = vadd.f32 %v7711, %v7739
  %v7776 = vadd.f32 %v7712, %v7741
  %v7777 = vadd.f32 %v7713, %v7743
  %v7778 = vadd.f32 %v7714, %v7745
  %v7779 = vadd.f32 %v7715, %v7747
  %7780 = vrot.lane.b32.xlu0 %v7270, 88
  %v7781 = vpop.permute.xlu0 %7780
  %7782 = vrot.lane.b32.xlu0 %v7275, 88
  %v7783 = vpop.permute.xlu0 %7782
  %7784 = vrot.lane.b32.xlu0 %v7280, 88
  %v7785 = vpop.permute.xlu0 %7784
  %7786 = vrot.lane.b32.xlu0 %v7285, 88
  %v7787 = vpop.permute.xlu0 %7786
  %7788 = vrot.lane.b32.xlu0 %v7290, 88
  %v7789 = vpop.permute.xlu0 %7788
  %7790 = vrot.lane.b32.xlu0 %v7295, 88
  %v7791 = vpop.permute.xlu0 %7790
  %7792 = vrot.lane.b32.xlu0 %v7300, 88
  %v7793 = vpop.permute.xlu0 %7792
  %7794 = vrot.lane.b32.xlu0 %v7305, 88
  %v7795 = vpop.permute.xlu0 %7794
  %7796 = vrot.lane.b32.xlu0 %v7310, 88
  %v7797 = vpop.permute.xlu0 %7796
  %7798 = vrot.lane.b32.xlu0 %v7315, 88
  %v7799 = vpop.permute.xlu0 %7798
  %7800 = vrot.lane.b32.xlu0 %v7320, 88
  %v7801 = vpop.permute.xlu0 %7800
  %7802 = vrot.lane.b32.xlu0 %v7325, 88
  %v7803 = vpop.permute.xlu0 %7802
  %7804 = vrot.lane.b32.xlu0 %v7330, 88
  %v7805 = vpop.permute.xlu0 %7804
  %7806 = vrot.lane.b32.xlu0 %v7335, 88
  %v7807 = vpop.permute.xlu0 %7806
  %7808 = vrot.lane.b32.xlu0 %v7340, 88
  %v7809 = vpop.permute.xlu0 %7808
  %7810 = vrot.lane.b32.xlu0 %v7345, 88
  %v7811 = vpop.permute.xlu0 %7810
  %v7828 = vrot.slane %v7781, 1
  %v7829 = vrot.slane %v7783, 1
  %v7830 = vrot.slane %v7785, 1
  %v7831 = vrot.slane %v7787, 1
  %v7832 = vrot.slane %v7789, 1
  %v7833 = vrot.slane %v7791, 1
  %v7834 = vrot.slane %v7793, 1
  %v7835 = vrot.slane %v7795, 1
  %v7836 = vrot.slane %v7797, 1
  %v7837 = vrot.slane %v7799, 1
  %v7838 = vrot.slane %v7801, 1
  %v7839 = vrot.slane %v7803, 1
  %v7840 = vrot.slane %v7805, 1
  %v7841 = vrot.slane %v7807, 1
  %v7842 = vrot.slane %v7809, 1
  %v7843 = vrot.slane %v7811, 1
  %v7844 = vsel %vm1178, %v7842, %v7843
  %v7845 = vsel %vm1178, %v7841, %v7842
  %v7846 = vsel %vm1178, %v7840, %v7841
  %v7847 = vsel %vm1178, %v7839, %v7840
  %v7848 = vsel %vm1178, %v7838, %v7839
  %v7849 = vsel %vm1178, %v7837, %v7838
  %v7850 = vsel %vm1178, %v7836, %v7837
  %v7851 = vsel %vm1178, %v7835, %v7836
  %v7852 = vsel %vm1178, %v7834, %v7835
  %v7853 = vsel %vm1178, %v7833, %v7834
  %v7854 = vsel %vm1178, %v7832, %v7833
  %v7855 = vsel %vm1178, %v7831, %v7832
  %v7856 = vsel %vm1178, %v7830, %v7831
  %v7857 = vsel %vm1178, %v7829, %v7830
  %v7858 = vsel %vm1178, %v7828, %v7829
  %v7859 = vsel %vm1178, %v7843, %v7828
  %v7860 = vsel %vm1195, %v7858, 0.0
  %v7861 = vsel %vm1196, %v7857, 0.0
  %v7862 = vsel %vm1197, %v7856, 0.0
  %v7863 = vsel %vm1198, %v7855, 0.0
  %v7864 = vsel %vm1199, %v7854, 0.0
  %v7865 = vsel %vm1200, %v7853, 0.0
  %v7866 = vsel %vm1201, %v7852, 0.0
  %v7867 = vsel %vm1202, %v7851, 0.0
  %v7868 = vsel %vm1203, %v7850, 0.0
  %v7869 = vsel %vm1204, %v7849, 0.0
  %v7870 = vsel %vm1205, %v7848, 0.0
  %v7871 = vsel %vm1206, %v7847, 0.0
  %v7872 = vsel %vm1207, %v7846, 0.0
  %v7873 = vsel %vm1208, %v7845, 0.0
  %v7874 = vsel %vm1209, %v7844, 0.0
  %v7875 = vsel %vm1210, %v7859, 0.0
  %v7876 = vadd.f32 %v7764, %v7860
  %v7877 = vadd.f32 %v7765, %v7861
  %v7878 = vadd.f32 %v7766, %v7862
  %v7879 = vadd.f32 %v7767, %v7863
  %v7880 = vadd.f32 %v7768, %v7864
  %v7881 = vadd.f32 %v7769, %v7865
  %v7882 = vadd.f32 %v7770, %v7866
  %v7883 = vadd.f32 %v7771, %v7867
  %v7884 = vadd.f32 %v7772, %v7868
  %v7885 = vadd.f32 %v7773, %v7869
  %v7886 = vadd.f32 %v7774, %v7870
  %v7887 = vadd.f32 %v7775, %v7871
  %v7888 = vadd.f32 %v7776, %v7872
  %v7889 = vadd.f32 %v7777, %v7873
  %v7890 = vadd.f32 %v7778, %v7874
  %v7891 = vadd.f32 %v7779, %v7875
  %7892 = vrot.lane.b32.xlu0 %v7270, 80
  %v7893 = vpop.permute.xlu0 %7892
  %7894 = vrot.lane.b32.xlu0 %v7275, 80
  %v7895 = vpop.permute.xlu0 %7894
  %7896 = vrot.lane.b32.xlu0 %v7280, 80
  %v7897 = vpop.permute.xlu0 %7896
  %7898 = vrot.lane.b32.xlu0 %v7285, 80
  %v7899 = vpop.permute.xlu0 %7898
  %7900 = vrot.lane.b32.xlu0 %v7290, 80
  %v7901 = vpop.permute.xlu0 %7900
  %7902 = vrot.lane.b32.xlu0 %v7295, 80
  %v7903 = vpop.permute.xlu0 %7902
  %7904 = vrot.lane.b32.xlu0 %v7300, 80
  %v7905 = vpop.permute.xlu0 %7904
  %7906 = vrot.lane.b32.xlu0 %v7305, 80
  %v7907 = vpop.permute.xlu0 %7906
  %7908 = vrot.lane.b32.xlu0 %v7310, 80
  %v7909 = vpop.permute.xlu0 %7908
  %7910 = vrot.lane.b32.xlu0 %v7315, 80
  %v7911 = vpop.permute.xlu0 %7910
  %7912 = vrot.lane.b32.xlu0 %v7320, 80
  %v7913 = vpop.permute.xlu0 %7912
  %7914 = vrot.lane.b32.xlu0 %v7325, 80
  %v7915 = vpop.permute.xlu0 %7914
  %7916 = vrot.lane.b32.xlu0 %v7330, 80
  %v7917 = vpop.permute.xlu0 %7916
  %7918 = vrot.lane.b32.xlu0 %v7335, 80
  %v7919 = vpop.permute.xlu0 %7918
  %7920 = vrot.lane.b32.xlu0 %v7340, 80
  %v7921 = vpop.permute.xlu0 %7920
  %7922 = vrot.lane.b32.xlu0 %v7345, 80
  %v7923 = vpop.permute.xlu0 %7922
  %v7940 = vrot.slane %v7893, 7
  %v7941 = vrot.slane %v7895, 7
  %v7942 = vrot.slane %v7897, 7
  %v7943 = vrot.slane %v7899, 7
  %v7944 = vrot.slane %v7901, 7
  %v7945 = vrot.slane %v7903, 7
  %v7946 = vrot.slane %v7905, 7
  %v7947 = vrot.slane %v7907, 7
  %v7948 = vrot.slane %v7909, 7
  %v7949 = vrot.slane %v7911, 7
  %v7950 = vrot.slane %v7913, 7
  %v7951 = vrot.slane %v7915, 7
  %v7952 = vrot.slane %v7917, 7
  %v7953 = vrot.slane %v7919, 7
  %v7954 = vrot.slane %v7921, 7
  %v7955 = vrot.slane %v7923, 7
  %v7956 = vsel %vm937, %v7954, %v7955
  %v7957 = vsel %vm937, %v7953, %v7954
  %v7958 = vsel %vm937, %v7952, %v7953
  %v7959 = vsel %vm937, %v7951, %v7952
  %v7960 = vsel %vm937, %v7950, %v7951
  %v7961 = vsel %vm937, %v7949, %v7950
  %v7962 = vsel %vm937, %v7948, %v7949
  %v7963 = vsel %vm937, %v7947, %v7948
  %v7964 = vsel %vm937, %v7946, %v7947
  %v7965 = vsel %vm937, %v7945, %v7946
  %v7966 = vsel %vm937, %v7944, %v7945
  %v7967 = vsel %vm937, %v7943, %v7944
  %v7968 = vsel %vm937, %v7942, %v7943
  %v7969 = vsel %vm937, %v7941, %v7942
  %v7970 = vsel %vm937, %v7940, %v7941
  %v7971 = vsel %vm937, %v7955, %v7940
  %v7972 = vsel %vm1643, %v7970, 0.0
  %v7973 = vsel %vm1644, %v7969, 0.0
  %v7974 = vsel %vm1645, %v7968, 0.0
  %v7975 = vsel %vm1646, %v7967, 0.0
  %v7976 = vsel %vm1647, %v7966, 0.0
  %v7977 = vsel %vm1648, %v7965, 0.0
  %v7978 = vsel %vm1649, %v7964, 0.0
  %v7979 = vsel %vm1650, %v7963, 0.0
  %v7980 = vsel %vm1651, %v7962, 0.0
  %v7981 = vsel %vm1652, %v7961, 0.0
  %v7982 = vsel %vm1653, %v7960, 0.0
  %v7983 = vsel %vm1654, %v7959, 0.0
  %v7984 = vsel %vm1655, %v7958, 0.0
  %v7985 = vsel %vm1656, %v7957, 0.0
  %v7986 = vsel %vm1657, %v7956, 0.0
  %v7987 = vsel %vm1658, %v7971, 0.0
  %v7988 = vadd.f32 %v7876, %v7972
  %v7989 = vadd.f32 %v7877, %v7973
  %v7990 = vadd.f32 %v7878, %v7974
  %v7991 = vadd.f32 %v7879, %v7975
  %v7992 = vadd.f32 %v7880, %v7976
  %v7993 = vadd.f32 %v7881, %v7977
  %v7994 = vadd.f32 %v7882, %v7978
  %v7995 = vadd.f32 %v7883, %v7979
  %v7996 = vadd.f32 %v7884, %v7980
  %v7997 = vadd.f32 %v7885, %v7981
  %v7998 = vadd.f32 %v7886, %v7982
  %v7999 = vadd.f32 %v7887, %v7983
  %v8000 = vadd.f32 %v7888, %v7984
  %v8001 = vadd.f32 %v7889, %v7985
  %v8002 = vadd.f32 %v7890, %v7986
  %v8003 = vadd.f32 %v7891, %v7987
  %8004 = vrot.lane.b32.xlu0 %v7270, 72
  %v8005 = vpop.permute.xlu0 %8004
  %8006 = vrot.lane.b32.xlu0 %v7275, 72
  %v8007 = vpop.permute.xlu0 %8006
  %8008 = vrot.lane.b32.xlu0 %v7280, 72
  %v8009 = vpop.permute.xlu0 %8008
  %8010 = vrot.lane.b32.xlu0 %v7285, 72
  %v8011 = vpop.permute.xlu0 %8010
  %8012 = vrot.lane.b32.xlu0 %v7290, 72
  %v8013 = vpop.permute.xlu0 %8012
  %8014 = vrot.lane.b32.xlu0 %v7295, 72
  %v8015 = vpop.permute.xlu0 %8014
  %8016 = vrot.lane.b32.xlu0 %v7300, 72
  %v8017 = vpop.permute.xlu0 %8016
  %8018 = vrot.lane.b32.xlu0 %v7305, 72
  %v8019 = vpop.permute.xlu0 %8018
  %8020 = vrot.lane.b32.xlu0 %v7310, 72
  %v8021 = vpop.permute.xlu0 %8020
  %8022 = vrot.lane.b32.xlu0 %v7315, 72
  %v8023 = vpop.permute.xlu0 %8022
  %8024 = vrot.lane.b32.xlu0 %v7320, 72
  %v8025 = vpop.permute.xlu0 %8024
  %8026 = vrot.lane.b32.xlu0 %v7325, 72
  %v8027 = vpop.permute.xlu0 %8026
  %8028 = vrot.lane.b32.xlu0 %v7330, 72
  %v8029 = vpop.permute.xlu0 %8028
  %8030 = vrot.lane.b32.xlu0 %v7335, 72
  %v8031 = vpop.permute.xlu0 %8030
  %8032 = vrot.lane.b32.xlu0 %v7340, 72
  %v8033 = vpop.permute.xlu0 %8032
  %8034 = vrot.lane.b32.xlu0 %v7345, 72
  %v8035 = vpop.permute.xlu0 %8034
  %v8052 = vsel %vm1627, %v8007, 0.0
  %v8053 = vsel %vm1628, %v8009, 0.0
  %v8054 = vsel %vm1629, %v8011, 0.0
  %v8055 = vsel %vm1630, %v8013, 0.0
  %v8056 = vsel %vm1631, %v8015, 0.0
  %v8057 = vsel %vm1632, %v8017, 0.0
  %v8058 = vsel %vm1633, %v8019, 0.0
  %v8059 = vsel %vm1634, %v8021, 0.0
  %v8060 = vsel %vm1635, %v8023, 0.0
  %v8061 = vsel %vm1636, %v8025, 0.0
  %v8062 = vsel %vm1637, %v8027, 0.0
  %v8063 = vsel %vm1638, %v8029, 0.0
  %v8064 = vsel %vm1639, %v8031, 0.0
  %v8065 = vsel %vm1640, %v8033, 0.0
  %v8066 = vsel %vm1641, %v8035, 0.0
  %v8067 = vsel %vm1642, %v8005, 0.0
  %v8068 = vadd.f32 %v7988, %v8052
  %v8069 = vadd.f32 %v7989, %v8053
  %v8070 = vadd.f32 %v7990, %v8054
  %v8071 = vadd.f32 %v7991, %v8055
  %v8072 = vadd.f32 %v7992, %v8056
  %v8073 = vadd.f32 %v7993, %v8057
  %v8074 = vadd.f32 %v7994, %v8058
  %v8075 = vadd.f32 %v7995, %v8059
  %v8076 = vadd.f32 %v7996, %v8060
  %v8077 = vadd.f32 %v7997, %v8061
  %v8078 = vadd.f32 %v7998, %v8062
  %v8079 = vadd.f32 %v7999, %v8063
  %v8080 = vadd.f32 %v8000, %v8064
  %v8081 = vadd.f32 %v8001, %v8065
  %v8082 = vadd.f32 %v8002, %v8066
  %v8083 = vadd.f32 %v8003, %v8067
  %8084 = vrot.lane.b32.xlu0 %v7270, 64
  %v8085 = vpop.permute.xlu0 %8084
  %8086 = vrot.lane.b32.xlu0 %v7275, 64
  %v8087 = vpop.permute.xlu0 %8086
  %8088 = vrot.lane.b32.xlu0 %v7280, 64
  %v8089 = vpop.permute.xlu0 %8088
  %8090 = vrot.lane.b32.xlu0 %v7285, 64
  %v8091 = vpop.permute.xlu0 %8090
  %8092 = vrot.lane.b32.xlu0 %v7290, 64
  %v8093 = vpop.permute.xlu0 %8092
  %8094 = vrot.lane.b32.xlu0 %v7295, 64
  %v8095 = vpop.permute.xlu0 %8094
  %8096 = vrot.lane.b32.xlu0 %v7300, 64
  %v8097 = vpop.permute.xlu0 %8096
  %8098 = vrot.lane.b32.xlu0 %v7305, 64
  %v8099 = vpop.permute.xlu0 %8098
  %8100 = vrot.lane.b32.xlu0 %v7310, 64
  %v8101 = vpop.permute.xlu0 %8100
  %8102 = vrot.lane.b32.xlu0 %v7315, 64
  %v8103 = vpop.permute.xlu0 %8102
  %8104 = vrot.lane.b32.xlu0 %v7320, 64
  %v8105 = vpop.permute.xlu0 %8104
  %8106 = vrot.lane.b32.xlu0 %v7325, 64
  %v8107 = vpop.permute.xlu0 %8106
  %8108 = vrot.lane.b32.xlu0 %v7330, 64
  %v8109 = vpop.permute.xlu0 %8108
  %8110 = vrot.lane.b32.xlu0 %v7335, 64
  %v8111 = vpop.permute.xlu0 %8110
  %8112 = vrot.lane.b32.xlu0 %v7340, 64
  %v8113 = vpop.permute.xlu0 %8112
  %8114 = vrot.lane.b32.xlu0 %v7345, 64
  %v8115 = vpop.permute.xlu0 %8114
  %v8132 = vrot.slane %v8085, 1
  %v8133 = vrot.slane %v8087, 1
  %v8134 = vrot.slane %v8089, 1
  %v8135 = vrot.slane %v8091, 1
  %v8136 = vrot.slane %v8093, 1
  %v8137 = vrot.slane %v8095, 1
  %v8138 = vrot.slane %v8097, 1
  %v8139 = vrot.slane %v8099, 1
  %v8140 = vrot.slane %v8101, 1
  %v8141 = vrot.slane %v8103, 1
  %v8142 = vrot.slane %v8105, 1
  %v8143 = vrot.slane %v8107, 1
  %v8144 = vrot.slane %v8109, 1
  %v8145 = vrot.slane %v8111, 1
  %v8146 = vrot.slane %v8113, 1
  %v8147 = vrot.slane %v8115, 1
  %v8148 = vsel %vm1178, %v8146, %v8147
  %v8149 = vsel %vm1178, %v8145, %v8146
  %v8150 = vsel %vm1178, %v8144, %v8145
  %v8151 = vsel %vm1178, %v8143, %v8144
  %v8152 = vsel %vm1178, %v8142, %v8143
  %v8153 = vsel %vm1178, %v8141, %v8142
  %v8154 = vsel %vm1178, %v8140, %v8141
  %v8155 = vsel %vm1178, %v8139, %v8140
  %v8156 = vsel %vm1178, %v8138, %v8139
  %v8157 = vsel %vm1178, %v8137, %v8138
  %v8158 = vsel %vm1178, %v8136, %v8137
  %v8159 = vsel %vm1178, %v8135, %v8136
  %v8160 = vsel %vm1178, %v8134, %v8135
  %v8161 = vsel %vm1178, %v8133, %v8134
  %v8162 = vsel %vm1178, %v8132, %v8133
  %v8163 = vsel %vm1178, %v8147, %v8132
  %v8164 = vsel %vm1851, %v8161, 0.0
  %v8165 = vsel %vm1852, %v8160, 0.0
  %v8166 = vsel %vm1853, %v8159, 0.0
  %v8167 = vsel %vm1854, %v8158, 0.0
  %v8168 = vsel %vm1855, %v8157, 0.0
  %v8169 = vsel %vm1856, %v8156, 0.0
  %v8170 = vsel %vm1857, %v8155, 0.0
  %v8171 = vsel %vm1858, %v8154, 0.0
  %v8172 = vsel %vm1859, %v8153, 0.0
  %v8173 = vsel %vm1860, %v8152, 0.0
  %v8174 = vsel %vm1861, %v8151, 0.0
  %v8175 = vsel %vm1862, %v8150, 0.0
  %v8176 = vsel %vm1863, %v8149, 0.0
  %v8177 = vsel %vm1864, %v8148, 0.0
  %v8178 = vsel %vm1865, %v8163, 0.0
  %v8179 = vsel %vm1866, %v8162, 0.0
  %v8180 = vadd.f32 %v8068, %v8164
  %v8181 = vadd.f32 %v8069, %v8165
  %v8182 = vadd.f32 %v8070, %v8166
  %v8183 = vadd.f32 %v8071, %v8167
  %v8184 = vadd.f32 %v8072, %v8168
  %v8185 = vadd.f32 %v8073, %v8169
  %v8186 = vadd.f32 %v8074, %v8170
  %v8187 = vadd.f32 %v8075, %v8171
  %v8188 = vadd.f32 %v8076, %v8172
  %v8189 = vadd.f32 %v8077, %v8173
  %v8190 = vadd.f32 %v8078, %v8174
  %v8191 = vadd.f32 %v8079, %v8175
  %v8192 = vadd.f32 %v8080, %v8176
  %v8193 = vadd.f32 %v8081, %v8177
  %v8194 = vadd.f32 %v8082, %v8178
  %v8195 = vadd.f32 %v8083, %v8179
  %v8196 = vld [vmem:[%s2 + $0x12] ss:$0 sm:$0xff]
  %v8197 = vld [vmem:[%s2 + $0x13] ss:$0 sm:$0xff]
  %v8198 = vsel %vm551, %v8180, 0.0
  %v8199 = vsel %vm551, %v8181, 0.0
  %v8200 = vadd.f32 %v8198, %v8199
  %v8201 = vsel %vm551, %v8182, 0.0
  %v8202 = vadd.f32 %v8200, %v8201
  %v8203 = vsel %vm551, %v8183, 0.0
  %v8204 = vadd.f32 %v8202, %v8203
  %v8205 = vsel %vm551, %v8184, 0.0
  %v8206 = vadd.f32 %v8204, %v8205
  %v8207 = vsel %vm551, %v8185, 0.0
  %v8208 = vadd.f32 %v8206, %v8207
  %v8209 = vsel %vm551, %v8186, 0.0
  %v8210 = vadd.f32 %v8208, %v8209
  %v8211 = vsel %vm551, %v8187, 0.0
  %v8212 = vadd.f32 %v8210, %v8211
  %v8213 = vsel %vm551, %v8188, 0.0
  %v8214 = vadd.f32 %v8212, %v8213
  %v8215 = vsel %vm551, %v8189, 0.0
  %v8216 = vadd.f32 %v8214, %v8215
  %v8217 = vsel %vm551, %v8190, 0.0
  %v8218 = vadd.f32 %v8216, %v8217
  %v8219 = vsel %vm551, %v8191, 0.0
  %v8220 = vadd.f32 %v8218, %v8219
  %v8221 = vsel %vm551, %v8192, 0.0
  %v8222 = vadd.f32 %v8220, %v8221
  %v8223 = vsel %vm551, %v8193, 0.0
  %v8224 = vadd.f32 %v8222, %v8223
  %v8225 = vsel %vm551, %v8194, 0.0
  %v8226 = vadd.f32 %v8224, %v8225
  %v8227 = vsel %vm551, %v8195, 0.0
  %v8228 = vadd.f32 %v8226, %v8227
  %v8229 = vrot.slane %v8228, 4
  %v8230 = vadd.f32 %v8228, %v8229
  %v8231 = vrot.slane %v8230, 2
  %v8232 = vadd.f32 %v8230, %v8231
  %v8233 = vrot.slane %v8232, 1
  %v8234 = vadd.f32 %v8232, %v8233
  %v8235 = vmul.f32 %v8234, %v589
  %v8236 = vsub.f32 %v8180, %v8235
  %v8237 = vsub.f32 %v8181, %v8235
  %v8238 = vsub.f32 %v8182, %v8235
  %v8239 = vsub.f32 %v8183, %v8235
  %v8240 = vsub.f32 %v8184, %v8235
  %v8241 = vsub.f32 %v8185, %v8235
  %v8242 = vsub.f32 %v8186, %v8235
  %v8243 = vsub.f32 %v8187, %v8235
  %v8244 = vsub.f32 %v8188, %v8235
  %v8245 = vsub.f32 %v8189, %v8235
  %v8246 = vsub.f32 %v8190, %v8235
  %v8247 = vsub.f32 %v8191, %v8235
  %v8248 = vsub.f32 %v8192, %v8235
  %v8249 = vsub.f32 %v8193, %v8235
  %v8250 = vsub.f32 %v8194, %v8235
  %v8251 = vsub.f32 %v8195, %v8235
  %v8252 = vmul.f32 %v8236, %v8236
  %v8253 = vmul.f32 %v8237, %v8237
  %v8254 = vmul.f32 %v8238, %v8238
  %v8255 = vmul.f32 %v8239, %v8239
  %v8256 = vmul.f32 %v8240, %v8240
  %v8257 = vmul.f32 %v8241, %v8241
  %v8258 = vmul.f32 %v8242, %v8242
  %v8259 = vmul.f32 %v8243, %v8243
  %v8260 = vmul.f32 %v8244, %v8244
  %v8261 = vmul.f32 %v8245, %v8245
  %v8262 = vmul.f32 %v8246, %v8246
  %v8263 = vmul.f32 %v8247, %v8247
  %v8264 = vmul.f32 %v8248, %v8248
  %v8265 = vmul.f32 %v8249, %v8249
  %v8266 = vmul.f32 %v8250, %v8250
  %v8267 = vmul.f32 %v8251, %v8251
  %v8268 = vsel %vm551, %v8252, 0.0
  %v8269 = vsel %vm551, %v8253, 0.0
  %v8270 = vadd.f32 %v8268, %v8269
  %v8271 = vsel %vm551, %v8254, 0.0
  %v8272 = vadd.f32 %v8270, %v8271
  %v8273 = vsel %vm551, %v8255, 0.0
  %v8274 = vadd.f32 %v8272, %v8273
  %v8275 = vsel %vm551, %v8256, 0.0
  %v8276 = vadd.f32 %v8274, %v8275
  %v8277 = vsel %vm551, %v8257, 0.0
  %v8278 = vadd.f32 %v8276, %v8277
  %v8279 = vsel %vm551, %v8258, 0.0
  %v8280 = vadd.f32 %v8278, %v8279
  %v8281 = vsel %vm551, %v8259, 0.0
  %v8282 = vadd.f32 %v8280, %v8281
  %v8283 = vsel %vm551, %v8260, 0.0
  %v8284 = vadd.f32 %v8282, %v8283
  %v8285 = vsel %vm551, %v8261, 0.0
  %v8286 = vadd.f32 %v8284, %v8285
  %v8287 = vsel %vm551, %v8262, 0.0
  %v8288 = vadd.f32 %v8286, %v8287
  %v8289 = vsel %vm551, %v8263, 0.0
  %v8290 = vadd.f32 %v8288, %v8289
  %v8291 = vsel %vm551, %v8264, 0.0
  %v8292 = vadd.f32 %v8290, %v8291
  %v8293 = vsel %vm551, %v8265, 0.0
  %v8294 = vadd.f32 %v8292, %v8293
  %v8295 = vsel %vm551, %v8266, 0.0
  %v8296 = vadd.f32 %v8294, %v8295
  %v8297 = vsel %vm551, %v8267, 0.0
  %v8298 = vadd.f32 %v8296, %v8297
  %v8299 = vrot.slane %v8298, 4
  %v8300 = vadd.f32 %v8298, %v8299
  %v8301 = vrot.slane %v8300, 2
  %v8302 = vadd.f32 %v8300, %v8301
  %v8303 = vrot.slane %v8302, 1
  %v8304 = vadd.f32 %v8302, %v8303
  %v8305 = vmul.f32 %v8304, %v589
  %v8306 = vadd.f32 %v8305, 1e-06
  %v8307 = vrsqrt.pop %v8306
  %v8308 = vmul.f32 %v8236, %v8307
  %v8309 = vmul.f32 %v8237, %v8307
  %v8310 = vmul.f32 %v8238, %v8307
  %v8311 = vmul.f32 %v8239, %v8307
  %v8312 = vmul.f32 %v8240, %v8307
  %v8313 = vmul.f32 %v8241, %v8307
  %v8314 = vmul.f32 %v8242, %v8307
  %v8315 = vmul.f32 %v8243, %v8307
  %v8316 = vmul.f32 %v8244, %v8307
  %v8317 = vmul.f32 %v8245, %v8307
  %v8318 = vmul.f32 %v8246, %v8307
  %v8319 = vmul.f32 %v8247, %v8307
  %v8320 = vmul.f32 %v8248, %v8307
  %v8321 = vmul.f32 %v8249, %v8307
  %v8322 = vmul.f32 %v8250, %v8307
  %v8323 = vmul.f32 %v8251, %v8307
  %v8324 = vmul.f32 %v8308, %v8196
  %v8325 = vmul.f32 %v8309, %v8196
  %v8326 = vmul.f32 %v8310, %v8196
  %v8327 = vmul.f32 %v8311, %v8196
  %v8328 = vmul.f32 %v8312, %v8196
  %v8329 = vmul.f32 %v8313, %v8196
  %v8330 = vmul.f32 %v8314, %v8196
  %v8331 = vmul.f32 %v8315, %v8196
  %v8332 = vmul.f32 %v8316, %v8196
  %v8333 = vmul.f32 %v8317, %v8196
  %v8334 = vmul.f32 %v8318, %v8196
  %v8335 = vmul.f32 %v8319, %v8196
  %v8336 = vmul.f32 %v8320, %v8196
  %v8337 = vmul.f32 %v8321, %v8196
  %v8338 = vmul.f32 %v8322, %v8196
  %v8339 = vmul.f32 %v8323, %v8196
  %v8340 = vadd.f32 %v8324, %v8197
  %v8341 = vadd.f32 %v8325, %v8197
  %v8342 = vadd.f32 %v8326, %v8197
  %v8343 = vadd.f32 %v8327, %v8197
  %v8344 = vadd.f32 %v8328, %v8197
  %v8345 = vadd.f32 %v8329, %v8197
  %v8346 = vadd.f32 %v8330, %v8197
  %v8347 = vadd.f32 %v8331, %v8197
  %v8348 = vadd.f32 %v8332, %v8197
  %v8349 = vadd.f32 %v8333, %v8197
  %v8350 = vadd.f32 %v8334, %v8197
  %v8351 = vadd.f32 %v8335, %v8197
  %v8352 = vadd.f32 %v8336, %v8197
  %v8353 = vadd.f32 %v8337, %v8197
  %v8354 = vadd.f32 %v8338, %v8197
  %v8355 = vadd.f32 %v8339, %v8197
  %v8356 = vmax.f32 %v8340, 0.0
  %v8357 = vmax.f32 %v8341, 0.0
  %v8358 = vmax.f32 %v8342, 0.0
  %v8359 = vmax.f32 %v8343, 0.0
  %v8360 = vmax.f32 %v8344, 0.0
  %v8361 = vmax.f32 %v8345, 0.0
  %v8362 = vmax.f32 %v8346, 0.0
  %v8363 = vmax.f32 %v8347, 0.0
  %v8364 = vmax.f32 %v8348, 0.0
  %v8365 = vmax.f32 %v8349, 0.0
  %v8366 = vmax.f32 %v8350, 0.0
  %v8367 = vmax.f32 %v8351, 0.0
  %v8368 = vmax.f32 %v8352, 0.0
  %v8369 = vmax.f32 %v8353, 0.0
  %v8370 = vmax.f32 %v8354, 0.0
  %v8371 = vmax.f32 %v8355, 0.0
  %v8372 = vld [vmem:[%s3 + $0xb0] sm:$0xff]
  %v8374 = vsel %vm551, %v8356, 0
  %v8377 = vsel %vm551, %v8357, 0
  %v8380 = vsel %vm551, %v8358, 0
  %v8383 = vsel %vm551, %v8359, 0
  %v8386 = vsel %vm551, %v8360, 0
  %v8389 = vsel %vm551, %v8361, 0
  %v8392 = vsel %vm551, %v8362, 0
  %v8395 = vsel %vm551, %v8363, 0
  %v8398 = vsel %vm551, %v8364, 0
  %v8401 = vsel %vm551, %v8365, 0
  %v8404 = vsel %vm551, %v8366, 0
  %v8407 = vsel %vm551, %v8367, 0
  %v8410 = vsel %vm551, %v8368, 0
  %v8413 = vsel %vm551, %v8369, 0
  %v8416 = vsel %vm551, %v8370, 0
  %v8419 = vsel %vm551, %v8371, 0
  %8421 = vmatprep.subr.mxu0 0.0
  %8422 = vmatpush1.msra.mxu0 %v8372
  %8423 = vmatprep.subr.mxu0 0.0
  %8424 = vmatpush1.msra.mxu0 0.0
  %8425 = vmatprep.subr.mxu0 0.0
  %8426 = vmatpush1.msra.mxu0 0.0
  %8427 = vmatprep.subr.mxu0 0.0
  %8428 = vmatpush1.msra.mxu0 0.0
  %8429 = vmatprep.subr.mxu0 0.0
  %8430 = vmatpush1.msra.mxu0 0.0
  %8431 = vmatprep.subr.mxu0 0.0
  %8432 = vmatpush1.msra.mxu0 0.0
  %8433 = vmatprep.subr.mxu0 0.0
  %8434 = vmatpush1.msra.mxu0 0.0
  %8435 = vmatprep.subr.mxu0 0.0
  %8436 = vmatpush1.msra.mxu0 0.0
  %8437 = vmatprep.subr.mxu0 0.0
  %8438 = vmatpush1.msra.mxu0 0.0
  %8439 = vmatprep.subr.mxu0 0.0
  %8440 = vmatpush1.msra.mxu0 0.0
  %8441 = vmatprep.subr.mxu0 0.0
  %8442 = vmatpush1.msra.mxu0 0.0
  %8443 = vmatprep.subr.mxu0 0.0
  %8444 = vmatpush1.msra.mxu0 0.0
  %8445 = vmatprep.subr.mxu0 0.0
  %8446 = vmatpush1.msra.mxu0 0.0
  %8447 = vmatprep.subr.mxu0 0.0
  %8448 = vmatpush1.msra.mxu0 0.0
  %8449 = vmatprep.subr.mxu0 0.0
  %8450 = vmatpush1.msra.mxu0 0.0
  %8451 = vmatprep.subr.mxu0 0.0
  %8452 = vmatpush1.msra.mxu0 0.0
  %8453 = vmatprep.subr.mxu0 0.0
  %8454 = vmatpush1.msra.mxu0 0.0
  %8455 = vmatprep.subr.mxu0 0.0
  %8456 = vmatpush1.msra.mxu0 0.0
  %8457 = vmatprep.subr.mxu0 0.0
  %8458 = vmatpush1.msra.mxu0 0.0
  %8459 = vmatprep.subr.mxu0 0.0
  %8460 = vmatpush1.msra.mxu0 0.0
  %8461 = vmatprep.subr.mxu0 0.0
  %8462 = vmatpush1.msra.mxu0 0.0
  %8463 = vmatprep.subr.mxu0 0.0
  %8464 = vmatpush1.msra.mxu0 0.0
  %8465 = vmatprep.subr.mxu0 0.0
  %8466 = vmatpush1.msra.mxu0 0.0
  %8467 = vmatprep.subr.mxu0 0.0
  %8468 = vmatpush1.msra.mxu0 0.0
  %8469 = vmatprep.subr.mxu0 0.0
  %8470 = vmatpush1.msra.mxu0 0.0
  %8471 = vmatprep.subr.mxu0 0.0
  %8472 = vmatpush1.msra.mxu0 0.0
  %8473 = vmatprep.subr.mxu0 0.0
  %8474 = vmatpush1.msra.mxu0 0.0
  %8475 = vmatprep.subr.mxu0 0.0
  %8476 = vmatpush1.msra.mxu0 0.0
  %8477 = vmatprep.subr.mxu0 0.0
  %8478 = vmatpush1.msra.mxu0 0.0
  %8479 = vmatprep.subr.mxu0 0.0
  %8480 = vmatpush1.msra.mxu0 0.0
  %8481 = vmatprep.subr.mxu0 0.0
  %8482 = vmatpush1.msra.mxu0 0.0
  %8483 = vmatprep.subr.mxu0 0.0
  %8484 = vmatpush1.msra.mxu0 0.0
  %8485 = vmatprep.mubr.f32.mxu0 0.0
  %8486 = vmatmul.mubr.f32.gmra.mrb[0].mxu0 %v8374
  %v8487 = vpop.f32.mrb[0].mxu0
  %v8488 = vadd.f32 0.0, %v8487
  %v8489 = vpop.f32.mrb[0].mxu0
  %8490 = vmatprep.mubr.f32.mxu0 0.0
  %8491 = vmatmul.mubr.f32.gmra.mrb[0].mxu0 %v8377
  %v8492 = vpop.f32.mrb[0].mxu0
  %v8493 = vadd.f32 0.0, %v8492
  %v8494 = vpop.f32.mrb[0].mxu0
  %8495 = vmatprep.mubr.f32.mxu0 0.0
  %8496 = vmatmul.mubr.f32.gmra.mrb[0].mxu0 %v8380
  %v8497 = vpop.f32.mrb[0].mxu0
  %v8498 = vadd.f32 0.0, %v8497
  %v8499 = vpop.f32.mrb[0].mxu0
  %8500 = vmatprep.mubr.f32.mxu0 0.0
  %8501 = vmatmul.mubr.f32.gmra.mrb[0].mxu0 %v8383
  %v8502 = vpop.f32.mrb[0].mxu0
  %v8503 = vadd.f32 0.0, %v8502
  %v8504 = vpop.f32.mrb[0].mxu0
  %8505 = vmatprep.mubr.f32.mxu0 0.0
  %8506 = vmatmul.mubr.f32.gmra.mrb[0].mxu0 %v8386
  %v8507 = vpop.f32.mrb[0].mxu0
  %v8508 = vadd.f32 0.0, %v8507
  %v8509 = vpop.f32.mrb[0].mxu0
  %8510 = vmatprep.mubr.f32.mxu0 0.0
  %8511 = vmatmul.mubr.f32.gmra.mrb[0].mxu0 %v8389
  %v8512 = vpop.f32.mrb[0].mxu0
  %v8513 = vadd.f32 0.0, %v8512
  %v8514 = vpop.f32.mrb[0].mxu0
  %8515 = vmatprep.mubr.f32.mxu0 0.0
  %8516 = vmatmul.mubr.f32.gmra.mrb[0].mxu0 %v8392
  %v8517 = vpop.f32.mrb[0].mxu0
  %v8518 = vadd.f32 0.0, %v8517
  %v8519 = vpop.f32.mrb[0].mxu0
  %8520 = vmatprep.mubr.f32.mxu0 0.0
  %8521 = vmatmul.mubr.f32.gmra.mrb[0].mxu0 %v8395
  %v8522 = vpop.f32.mrb[0].mxu0
  %v8523 = vadd.f32 0.0, %v8522
  %v8524 = vpop.f32.mrb[0].mxu0
  %8525 = vmatprep.mubr.f32.mxu0 0.0
  %8526 = vmatmul.mubr.f32.gmra.mrb[0].mxu0 %v8398
  %v8527 = vpop.f32.mrb[0].mxu0
  %v8528 = vadd.f32 0.0, %v8527
  %v8529 = vpop.f32.mrb[0].mxu0
  %8530 = vmatprep.mubr.f32.mxu0 0.0
  %8531 = vmatmul.mubr.f32.gmra.mrb[0].mxu0 %v8401
  %v8532 = vpop.f32.mrb[0].mxu0
  %v8533 = vadd.f32 0.0, %v8532
  %v8534 = vpop.f32.mrb[0].mxu0
  %8535 = vmatprep.mubr.f32.mxu0 0.0
  %8536 = vmatmul.mubr.f32.gmra.mrb[0].mxu0 %v8404
  %v8537 = vpop.f32.mrb[0].mxu0
  %v8538 = vadd.f32 0.0, %v8537
  %v8539 = vpop.f32.mrb[0].mxu0
  %8540 = vmatprep.mubr.f32.mxu0 0.0
  %8541 = vmatmul.mubr.f32.gmra.mrb[0].mxu0 %v8407
  %v8542 = vpop.f32.mrb[0].mxu0
  %v8543 = vadd.f32 0.0, %v8542
  %v8544 = vpop.f32.mrb[0].mxu0
  %8545 = vmatprep.mubr.f32.mxu0 0.0
  %8546 = vmatmul.mubr.f32.gmra.mrb[0].mxu0 %v8410
  %v8547 = vpop.f32.mrb[0].mxu0
  %v8548 = vadd.f32 0.0, %v8547
  %v8549 = vpop.f32.mrb[0].mxu0
  %8550 = vmatprep.mubr.f32.mxu0 0.0
  %8551 = vmatmul.mubr.f32.gmra.mrb[0].mxu0 %v8413
  %v8552 = vpop.f32.mrb[0].mxu0
  %v8553 = vadd.f32 0.0, %v8552
  %v8554 = vpop.f32.mrb[0].mxu0
  %8555 = vmatprep.mubr.f32.mxu0 0.0
  %8556 = vmatmul.mubr.f32.gmra.mrb[0].mxu0 %v8416
  %v8557 = vpop.f32.mrb[0].mxu0
  %v8558 = vadd.f32 0.0, %v8557
  %v8559 = vpop.f32.mrb[0].mxu0
  %8560 = vmatprep.mubr.f32.mxu0 0.0
  %8561 = vmatmul.mubr.f32.gmra.mrb[0].mxu0 %v8419
  %v8562 = vpop.f32.mrb[0].mxu0
  %v8563 = vadd.f32 0.0, %v8562
  %v8564 = vpop.f32.mrb[0].mxu0
  %8565 = vdwg.mxu0
  %v8566 = vld [vmem:[%s2 + $0x14] ss:$0 sm:$0xff]
  %v8567 = vld [vmem:[%s2 + $0x15] ss:$0 sm:$0xff]
  %v8568 = vsel %vm2271, %v8488, 0.0
  %v8569 = vsel %vm2271, %v8493, 0.0
  %v8570 = vadd.f32 %v8568, %v8569
  %v8571 = vsel %vm2271, %v8498, 0.0
  %v8572 = vadd.f32 %v8570, %v8571
  %v8573 = vsel %vm2271, %v8503, 0.0
  %v8574 = vadd.f32 %v8572, %v8573
  %v8575 = vsel %vm2271, %v8508, 0.0
  %v8576 = vadd.f32 %v8574, %v8575
  %v8577 = vsel %vm2271, %v8513, 0.0
  %v8578 = vadd.f32 %v8576, %v8577
  %v8579 = vsel %vm2271, %v8518, 0.0
  %v8580 = vadd.f32 %v8578, %v8579
  %v8581 = vsel %vm2271, %v8523, 0.0
  %v8582 = vadd.f32 %v8580, %v8581
  %v8583 = vsel %vm2271, %v8528, 0.0
  %v8584 = vadd.f32 %v8582, %v8583
  %v8585 = vsel %vm2271, %v8533, 0.0
  %v8586 = vadd.f32 %v8584, %v8585
  %v8587 = vsel %vm2271, %v8538, 0.0
  %v8588 = vadd.f32 %v8586, %v8587
  %v8589 = vsel %vm2271, %v8543, 0.0
  %v8590 = vadd.f32 %v8588, %v8589
  %v8591 = vsel %vm2271, %v8548, 0.0
  %v8592 = vadd.f32 %v8590, %v8591
  %v8593 = vsel %vm2271, %v8553, 0.0
  %v8594 = vadd.f32 %v8592, %v8593
  %v8595 = vsel %vm2271, %v8558, 0.0
  %v8596 = vadd.f32 %v8594, %v8595
  %v8597 = vsel %vm2271, %v8563, 0.0
  %v8598 = vadd.f32 %v8596, %v8597
  %v8599 = vrot.slane %v8598, 4
  %v8600 = vadd.f32 %v8598, %v8599
  %v8601 = vrot.slane %v8600, 2
  %v8602 = vadd.f32 %v8600, %v8601
  %v8603 = vrot.slane %v8602, 1
  %v8604 = vadd.f32 %v8602, %v8603
  %v8605 = vmul.f32 %v8604, %v589
  %v8606 = vsub.f32 %v8488, %v8605
  %v8607 = vsub.f32 %v8493, %v8605
  %v8608 = vsub.f32 %v8498, %v8605
  %v8609 = vsub.f32 %v8503, %v8605
  %v8610 = vsub.f32 %v8508, %v8605
  %v8611 = vsub.f32 %v8513, %v8605
  %v8612 = vsub.f32 %v8518, %v8605
  %v8613 = vsub.f32 %v8523, %v8605
  %v8614 = vsub.f32 %v8528, %v8605
  %v8615 = vsub.f32 %v8533, %v8605
  %v8616 = vsub.f32 %v8538, %v8605
  %v8617 = vsub.f32 %v8543, %v8605
  %v8618 = vsub.f32 %v8548, %v8605
  %v8619 = vsub.f32 %v8553, %v8605
  %v8620 = vsub.f32 %v8558, %v8605
  %v8621 = vsub.f32 %v8563, %v8605
  %v8622 = vmul.f32 %v8606, %v8606
  %v8623 = vmul.f32 %v8607, %v8607
  %v8624 = vmul.f32 %v8608, %v8608
  %v8625 = vmul.f32 %v8609, %v8609
  %v8626 = vmul.f32 %v8610, %v8610
  %v8627 = vmul.f32 %v8611, %v8611
  %v8628 = vmul.f32 %v8612, %v8612
  %v8629 = vmul.f32 %v8613, %v8613
  %v8630 = vmul.f32 %v8614, %v8614
  %v8631 = vmul.f32 %v8615, %v8615
  %v8632 = vmul.f32 %v8616, %v8616
  %v8633 = vmul.f32 %v8617, %v8617
  %v8634 = vmul.f32 %v8618, %v8618
  %v8635 = vmul.f32 %v8619, %v8619
  %v8636 = vmul.f32 %v8620, %v8620
  %v8637 = vmul.f32 %v8621, %v8621
  %v8638 = vsel %vm2271, %v8622, 0.0
  %v8639 = vsel %vm2271, %v8623, 0.0
  %v8640 = vadd.f32 %v8638, %v8639
  %v8641 = vsel %vm2271, %v8624, 0.0
  %v8642 = vadd.f32 %v8640, %v8641
  %v8643 = vsel %vm2271, %v8625, 0.0
  %v8644 = vadd.f32 %v8642, %v8643
  %v8645 = vsel %vm2271, %v8626, 0.0
  %v8646 = vadd.f32 %v8644, %v8645
  %v8647 = vsel %vm2271, %v8627, 0.0
  %v8648 = vadd.f32 %v8646, %v8647
  %v8649 = vsel %vm2271, %v8628, 0.0
  %v8650 = vadd.f32 %v8648, %v8649
  %v8651 = vsel %vm2271, %v8629, 0.0
  %v8652 = vadd.f32 %v8650, %v8651
  %v8653 = vsel %vm2271, %v8630, 0.0
  %v8654 = vadd.f32 %v8652, %v8653
  %v8655 = vsel %vm2271, %v8631, 0.0
  %v8656 = vadd.f32 %v8654, %v8655
  %v8657 = vsel %vm2271, %v8632, 0.0
  %v8658 = vadd.f32 %v8656, %v8657
  %v8659 = vsel %vm2271, %v8633, 0.0
  %v8660 = vadd.f32 %v8658, %v8659
  %v8661 = vsel %vm2271, %v8634, 0.0
  %v8662 = vadd.f32 %v8660, %v8661
  %v8663 = vsel %vm2271, %v8635, 0.0
  %v8664 = vadd.f32 %v8662, %v8663
  %v8665 = vsel %vm2271, %v8636, 0.0
  %v8666 = vadd.f32 %v8664, %v8665
  %v8667 = vsel %vm2271, %v8637, 0.0
  %v8668 = vadd.f32 %v8666, %v8667
  %v8669 = vrot.slane %v8668, 4
  %v8670 = vadd.f32 %v8668, %v8669
  %v8671 = vrot.slane %v8670, 2
  %v8672 = vadd.f32 %v8670, %v8671
  %v8673 = vrot.slane %v8672, 1
  %v8674 = vadd.f32 %v8672, %v8673
  %v8675 = vmul.f32 %v8674, %v589
  %v8676 = vadd.f32 %v8675, 1e-06
  %v8677 = vrsqrt.pop %v8676
  %v8678 = vmul.f32 %v8606, %v8677
  %v8679 = vmul.f32 %v8607, %v8677
  %v8680 = vmul.f32 %v8608, %v8677
  %v8681 = vmul.f32 %v8609, %v8677
  %v8682 = vmul.f32 %v8610, %v8677
  %v8683 = vmul.f32 %v8611, %v8677
  %v8684 = vmul.f32 %v8612, %v8677
  %v8685 = vmul.f32 %v8613, %v8677
  %v8686 = vmul.f32 %v8614, %v8677
  %v8687 = vmul.f32 %v8615, %v8677
  %v8688 = vmul.f32 %v8616, %v8677
  %v8689 = vmul.f32 %v8617, %v8677
  %v8690 = vmul.f32 %v8618, %v8677
  %v8691 = vmul.f32 %v8619, %v8677
  %v8692 = vmul.f32 %v8620, %v8677
  %v8693 = vmul.f32 %v8621, %v8677
  %v8694 = vmul.f32 %v8678, %v8566
  %v8695 = vmul.f32 %v8679, %v8566
  %v8696 = vmul.f32 %v8680, %v8566
  %v8697 = vmul.f32 %v8681, %v8566
  %v8698 = vmul.f32 %v8682, %v8566
  %v8699 = vmul.f32 %v8683, %v8566
  %v8700 = vmul.f32 %v8684, %v8566
  %v8701 = vmul.f32 %v8685, %v8566
  %v8702 = vmul.f32 %v8686, %v8566
  %v8703 = vmul.f32 %v8687, %v8566
  %v8704 = vmul.f32 %v8688, %v8566
  %v8705 = vmul.f32 %v8689, %v8566
  %v8706 = vmul.f32 %v8690, %v8566
  %v8707 = vmul.f32 %v8691, %v8566
  %v8708 = vmul.f32 %v8692, %v8566
  %v8709 = vmul.f32 %v8693, %v8566
  %v8710 = vadd.f32 %v8694, %v8567
  %v8711 = vadd.f32 %v8695, %v8567
  %v8712 = vadd.f32 %v8696, %v8567
  %v8713 = vadd.f32 %v8697, %v8567
  %v8714 = vadd.f32 %v8698, %v8567
  %v8715 = vadd.f32 %v8699, %v8567
  %v8716 = vadd.f32 %v8700, %v8567
  %v8717 = vadd.f32 %v8701, %v8567
  %v8718 = vadd.f32 %v8702, %v8567
  %v8719 = vadd.f32 %v8703, %v8567
  %v8720 = vadd.f32 %v8704, %v8567
  %v8721 = vadd.f32 %v8705, %v8567
  %v8722 = vadd.f32 %v8706, %v8567
  %v8723 = vadd.f32 %v8707, %v8567
  %v8724 = vadd.f32 %v8708, %v8567
  %v8725 = vadd.f32 %v8709, %v8567
  %v8726 = vadd.f32 %v8710, %v2753
  %v8727 = vadd.f32 %v8711, %v2754
  %v8728 = vadd.f32 %v8712, %v2755
  %v8729 = vadd.f32 %v8713, %v2756
  %v8730 = vadd.f32 %v8714, %v2757
  %v8731 = vadd.f32 %v8715, %v2758
  %v8732 = vadd.f32 %v8716, %v2759
  %v8733 = vadd.f32 %v8717, %v2760
  %v8734 = vadd.f32 %v8718, %v2761
  %v8735 = vadd.f32 %v8719, %v2762
  %v8736 = vadd.f32 %v8720, %v2763
  %v8737 = vadd.f32 %v8721, %v2764
  %v8738 = vadd.f32 %v8722, %v2765
  %v8739 = vadd.f32 %v8723, %v2766
  %v8740 = vadd.f32 %v8724, %v2767
  %v8741 = vadd.f32 %v8725, %v2768
  %v8742 = vmax.f32 %v8726, 0.0
  %v8743 = vmax.f32 %v8727, 0.0
  %v8744 = vmax.f32 %v8728, 0.0
  %v8745 = vmax.f32 %v8729, 0.0
  %v8746 = vmax.f32 %v8730, 0.0
  %v8747 = vmax.f32 %v8731, 0.0
  %v8748 = vmax.f32 %v8732, 0.0
  %v8749 = vmax.f32 %v8733, 0.0
  %v8750 = vmax.f32 %v8734, 0.0
  %v8751 = vmax.f32 %v8735, 0.0
  %v8752 = vmax.f32 %v8736, 0.0
  %v8753 = vmax.f32 %v8737, 0.0
  %v8754 = vmax.f32 %v8738, 0.0
  %v8755 = vmax.f32 %v8739, 0.0
  %v8756 = vmax.f32 %v8740, 0.0
  %v8757 = vmax.f32 %v8741, 0.0
  %v8758 = vsel %vm2271, %v94, 0
  %v8760 = vsel %vm2271, %v95, 0
  %v8762 = vsel %vm2271, %v96, 0
  %v8764 = vsel %vm2271, %v97, 0
  %v8767 = vsel %vm2271, %v8742, 0
  %v8770 = vsel %vm2271, %v8743, 0
  %v8773 = vsel %vm2271, %v8744, 0
  %v8776 = vsel %vm2271, %v8745, 0
  %v8779 = vsel %vm2271, %v8746, 0
  %v8782 = vsel %vm2271, %v8747, 0
  %v8785 = vsel %vm2271, %v8748, 0
  %v8788 = vsel %vm2271, %v8749, 0
  %8790 = vmatprep.subr.mxu0 0.0
  %8791 = vmatpush1.xpose.msra.mxu0 %v8767
  %8792 = vmatprep.subr.mxu0 0.0
  %8793 = vmatpush1.xpose.msra.mxu0 %v8770
  %8794 = vmatprep.subr.mxu0 0.0
  %8795 = vmatpush1.xpose.msra.mxu0 %v8773
  %8796 = vmatprep.subr.mxu0 0.0
  %8797 = vmatpush1.xpose.msra.mxu0 %v8776
  %8798 = vmatprep.subr.mxu0 0.0
  %8799 = vmatpush1.xpose.msra.mxu0 %v8779
  %8800 = vmatprep.subr.mxu0 0.0
  %8801 = vmatpush1.xpose.msra.mxu0 %v8782
  %8802 = vmatprep.subr.mxu0 0.0
  %8803 = vmatpush1.xpose.msra.mxu0 %v8785
  %8804 = vmatprep.subr.mxu0 0.0
  %8805 = vmatpush1.xpose.msra.mxu0 %v8788
  %8806 = vmatprep.subr.mxu0 0.0
  %8807 = vmatpush1.xpose.msra.mxu0 0.0
  %8808 = vmatprep.subr.mxu0 0.0
  %8809 = vmatpush1.xpose.msra.mxu0 0.0
  %8810 = vmatprep.subr.mxu0 0.0
  %8811 = vmatpush1.xpose.msra.mxu0 0.0
  %8812 = vmatprep.subr.mxu0 0.0
  %8813 = vmatpush1.xpose.msra.mxu0 0.0
  %8814 = vmatprep.subr.mxu0 0.0
  %8815 = vmatpush1.xpose.msra.mxu0 0.0
  %8816 = vmatprep.subr.mxu0 0.0
  %8817 = vmatpush1.xpose.msra.mxu0 0.0
  %8818 = vmatprep.subr.mxu0 0.0
  %8819 = vmatpush1.xpose.msra.mxu0 0.0
  %8820 = vmatprep.subr.mxu0 0.0
  %8821 = vmatpush1.xpose.msra.mxu0 0.0
  %8822 = vmatprep.subr.mxu0 0.0
  %8823 = vmatpush1.xpose.msra.mxu0 0.0
  %8824 = vmatprep.subr.mxu0 0.0
  %8825 = vmatpush1.xpose.msra.mxu0 0.0
  %8826 = vmatprep.subr.mxu0 0.0
  %8827 = vmatpush1.xpose.msra.mxu0 0.0
  %8828 = vmatprep.subr.mxu0 0.0
  %8829 = vmatpush1.xpose.msra.mxu0 0.0
  %8830 = vmatprep.subr.mxu0 0.0
  %8831 = vmatpush1.xpose.msra.mxu0 0.0
  %8832 = vmatprep.subr.mxu0 0.0
  %8833 = vmatpush1.xpose.msra.mxu0 0.0
  %8834 = vmatprep.subr.mxu0 0.0
  %8835 = vmatpush1.xpose.msra.mxu0 0.0
  %8836 = vmatprep.subr.mxu0 0.0
  %8837 = vmatpush1.xpose.msra.mxu0 0.0
  %8838 = vmatprep.subr.mxu0 0.0
  %8839 = vmatpush1.xpose.msra.mxu0 0.0
  %8840 = vmatprep.subr.mxu0 0.0
  %8841 = vmatpush1.xpose.msra.mxu0 0.0
  %8842 = vmatprep.subr.mxu0 0.0
  %8843 = vmatpush1.xpose.msra.mxu0 0.0
  %8844 = vmatprep.subr.mxu0 0.0
  %8845 = vmatpush1.xpose.msra.mxu0 0.0
  %8846 = vmatprep.subr.mxu0 0.0
  %8847 = vmatpush1.xpose.msra.mxu0 0.0
  %8848 = vmatprep.subr.mxu0 0.0
  %8849 = vmatpush1.xpose.msra.mxu0 0.0
  %8850 = vmatprep.subr.mxu0 0.0
  %8851 = vmatpush1.xpose.msra.mxu0 0.0
  %8852 = vmatprep.subr.mxu0 0.0
  %8853 = vmatpush1.xpose.msra.mxu0 0.0
  %8854 = vmatprep.mubr.f32.mxu0 0.0
  %8855 = vmatmul.mubr.f32.gmra.mrb[0].mxu0 %v8758
  %v8856 = vpop.f32.mrb[0].mxu0
  %v8857 = vadd.f32 0.0, %v8856
  %v8858 = vpop.f32.mrb[0].mxu0
  %8859 = vmatprep.mubr.f32.mxu0 0.0
  %8860 = vmatmul.mubr.f32.gmra.mrb[0].mxu0 %v8760
  %v8861 = vpop.f32.mrb[0].mxu0
  %v8862 = vadd.f32 0.0, %v8861
  %v8863 = vpop.f32.mrb[0].mxu0
  %8864 = vmatprep.mubr.f32.mxu0 0.0
  %8865 = vmatmul.mubr.f32.gmra.mrb[0].mxu0 %v8762
  %v8866 = vpop.f32.mrb[0].mxu0
  %v8867 = vadd.f32 0.0, %v8866
  %v8868 = vpop.f32.mrb[0].mxu0
  %8869 = vmatprep.mubr.f32.mxu0 0.0
  %8870 = vmatmul.mubr.f32.gmra.mrb[0].mxu0 %v8764
  %v8871 = vpop.f32.mrb[0].mxu0
  %v8872 = vadd.f32 0.0, %v8871
  %v8873 = vpop.f32.mrb[0].mxu0
  %8874 = vdwg.mxu0
  %v8876 = vsel %vm2271, %v8750, 0
  %v8879 = vsel %vm2271, %v8751, 0
  %v8882 = vsel %vm2271, %v8752, 0
  %v8885 = vsel %vm2271, %v8753, 0
  %v8888 = vsel %vm2271, %v8754, 0
  %v8891 = vsel %vm2271, %v8755, 0
  %v8894 = vsel %vm2271, %v8756, 0
  %v8897 = vsel %vm2271, %v8757, 0
  %8899 = vmatprep.subr.mxu0 0.0
  %8900 = vmatpush1.xpose.msra.mxu0 %v8876
  %8901 = vmatprep.subr.mxu0 0.0
  %8902 = vmatpush1.xpose.msra.mxu0 %v8879
  %8903 = vmatprep.subr.mxu0 0.0
  %8904 = vmatpush1.xpose.msra.mxu0 %v8882
  %8905 = vmatprep.subr.mxu0 0.0
  %8906 = vmatpush1.xpose.msra.mxu0 %v8885
  %8907 = vmatprep.subr.mxu0 0.0
  %8908 = vmatpush1.xpose.msra.mxu0 %v8888
  %8909 = vmatprep.subr.mxu0 0.0
  %8910 = vmatpush1.xpose.msra.mxu0 %v8891
  %8911 = vmatprep.subr.mxu0 0.0
  %8912 = vmatpush1.xpose.msra.mxu0 %v8894
  %8913 = vmatprep.subr.mxu0 0.0
  %8914 = vmatpush1.xpose.msra.mxu0 %v8897
  %8915 = vmatprep.subr.mxu0 0.0
  %8916 = vmatpush1.xpose.msra.mxu0 0.0
  %8917 = vmatprep.subr.mxu0 0.0
  %8918 = vmatpush1.xpose.msra.mxu0 0.0
  %8919 = vmatprep.subr.mxu0 0.0
  %8920 = vmatpush1.xpose.msra.mxu0 0.0
  %8921 = vmatprep.subr.mxu0 0.0
  %8922 = vmatpush1.xpose.msra.mxu0 0.0
  %8923 = vmatprep.subr.mxu0 0.0
  %8924 = vmatpush1.xpose.msra.mxu0 0.0
  %8925 = vmatprep.subr.mxu0 0.0
  %8926 = vmatpush1.xpose.msra.mxu0 0.0
  %8927 = vmatprep.subr.mxu0 0.0
  %8928 = vmatpush1.xpose.msra.mxu0 0.0
  %8929 = vmatprep.subr.mxu0 0.0
  %8930 = vmatpush1.xpose.msra.mxu0 0.0
  %8931 = vmatprep.subr.mxu0 0.0
  %8932 = vmatpush1.xpose.msra.mxu0 0.0
  %8933 = vmatprep.subr.mxu0 0.0
  %8934 = vmatpush1.xpose.msra.mxu0 0.0
  %8935 = vmatprep.subr.mxu0 0.0
  %8936 = vmatpush1.xpose.msra.mxu0 0.0
  %8937 = vmatprep.subr.mxu0 0.0
  %8938 = vmatpush1.xpose.msra.mxu0 0.0
  %8939 = vmatprep.subr.mxu0 0.0
  %8940 = vmatpush1.xpose.msra.mxu0 0.0
  %8941 = vmatprep.subr.mxu0 0.0
  %8942 = vmatpush1.xpose.msra.mxu0 0.0
  %8943 = vmatprep.subr.mxu0 0.0
  %8944 = vmatpush1.xpose.msra.mxu0 0.0
  %8945 = vmatprep.subr.mxu0 0.0
  %8946 = vmatpush1.xpose.msra.mxu0 0.0
  %8947 = vmatprep.subr.mxu0 0.0
  %8948 = vmatpush1.xpose.msra.mxu0 0.0
  %8949 = vmatprep.subr.mxu0 0.0
  %8950 = vmatpush1.xpose.msra.mxu0 0.0
  %8951 = vmatprep.subr.mxu0 0.0
  %8952 = vmatpush1.xpose.msra.mxu0 0.0
  %8953 = vmatprep.subr.mxu0 0.0
  %8954 = vmatpush1.xpose.msra.mxu0 0.0
  %8955 = vmatprep.subr.mxu0 0.0
  %8956 = vmatpush1.xpose.msra.mxu0 0.0
  %8957 = vmatprep.subr.mxu0 0.0
  %8958 = vmatpush1.xpose.msra.mxu0 0.0
  %8959 = vmatprep.subr.mxu0 0.0
  %8960 = vmatpush1.xpose.msra.mxu0 0.0
  %8961 = vmatprep.subr.mxu0 0.0
  %8962 = vmatpush1.xpose.msra.mxu0 0.0
  %8963 = vmatprep.mubr.f32.mxu0 0.0
  %8964 = vmatmul.mubr.f32.gmra.mrb[0].mxu0 %v8758
  %v8965 = vpop.f32.mrb[0].mxu0
  %v8966 = vadd.f32 0.0, %v8965
  %v8967 = vpop.f32.mrb[0].mxu0
  %8968 = vmatprep.mubr.f32.mxu0 0.0
  %8969 = vmatmul.mubr.f32.gmra.mrb[0].mxu0 %v8760
  %v8970 = vpop.f32.mrb[0].mxu0
  %v8971 = vadd.f32 0.0, %v8970
  %v8972 = vpop.f32.mrb[0].mxu0
  %8973 = vmatprep.mubr.f32.mxu0 0.0
  %8974 = vmatmul.mubr.f32.gmra.mrb[0].mxu0 %v8762
  %v8975 = vpop.f32.mrb[0].mxu0
  %v8976 = vadd.f32 0.0, %v8975
  %v8977 = vpop.f32.mrb[0].mxu0
  %8978 = vmatprep.mubr.f32.mxu0 0.0
  %8979 = vmatmul.mubr.f32.gmra.mrb[0].mxu0 %v8764
  %v8980 = vpop.f32.mrb[0].mxu0
  %v8981 = vadd.f32 0.0, %v8980
  %v8982 = vpop.f32.mrb[0].mxu0
  %8983 = vdwg.mxu0
  %8984 = vst.msk [vmem:[%s4] sm:$0xff] %vm104, %v8857
  %8985 = vst.msk [vmem:[%s4 + $0x8] sm:$0xff] %vm104, %v8862
  %8986 = vst.msk [vmem:[%s4 + $0x10] sm:$0xff] %vm104, %v8867
  %8987 = vst.msk [vmem:[%s4 + $0x18] sm:$0xff] %vm104, %v8872
  %8988 = vst.msk [vmem:[%s4 + $0x20] sm:$0xff] %vm104, %v8966
  %8989 = vst.msk [vmem:[%s4 + $0x28] sm:$0xff] %vm104, %v8971
  %8990 = vst.msk [vmem:[%s4 + $0x30] sm:$0xff] %vm104, %v8976
  %8991 = vst.msk [vmem:[%s4 + $0x38] sm:$0xff] %vm104, %v8981
  // Predicated region
  $region18: #{conv_trans_block_forward.1} parent=0 // pred_check
    _
  $region19: #{conv_trans_block_forward.1} parent=0 // pred_check_branch
    %8993 = sbr.rel (0) target = $region21
  $region20: #{conv_trans_block_forward.1} parent=0 // pred_region
    _
  $region21: #{conv_trans_block_forward.1} parent=0 // pred_fallthru
    _
  // Predicated region
  $region22: #{conv_trans_block_forward.1} parent=0 // pred_check
    _
  $region23: #{conv_trans_block_forward.1} parent=0 // pred_check_branch
    %8995 = sbr.rel (0) target = $region25
  $region24: #{conv_trans_block_forward.1} parent=0 // pred_region
    _
  $region25: #{conv_trans_block_forward.1} parent=0 // pred_fallthru
    _
  // Predicated region
  $region26: #{conv_trans_block_forward.1} parent=0 // pred_check
    _
  $region27: #{conv_trans_block_forward.1} parent=0 // pred_check_branch
    %8997 = sbr.rel (0) target = $region29
  $region28: #{conv_trans_block_forward.1} parent=0 // pred_region
    _
  $region29: #{conv_trans_block_forward.1} parent=0 // pred_fallthru
    _
  // Predicated region
  $region30: #{conv_trans_block_forward.1} parent=0 // pred_check
    _
  $region31: #{conv_trans_block_forward.1} parent=0 // pred_check_branch
    %8999 = sbr.rel (0) target = $region33
  $region32: #{conv_trans_block_forward.1} parent=0 // pred_region
    _
  $region33: #{conv_trans_block_forward.1} parent=0 // pred_fallthru
    _

</llo_original>
